<compile_context>
chip_gen: v6e
topology: v6e:2x2x1
jax: 0.10.0
libtpu: 0.0.40
codegen_flags: <defaults>
</compile_context>

<pallas_src>
import functools

import jax
import jax.numpy as jnp
from jax import lax
from jax.experimental import pallas as pl
from jax.experimental.pallas import tpu as pltpu


def _round_up(x, m):
    return (x + m - 1) // m * m


def _clamp_vmem(nbytes):
    # Explicit scoped-VMEM budget: at least the v5e default (16 MiB), never
    # more than v7x's physical VMEM (64 MiB).
    return int(min(max(nbytes, 16 * 1024 * 1024), 64 * 1024 * 1024))


# -----------------------------------------------------------------------------
# Kernel 1: tiled linear  (M, K) @ (K, Np) + (1, Np) -> (M, Np)
# Used only for the decoder's vocabulary projection.  Weights/bias are
# pre-padded (Np multiple of 128) and pre-cast to bf16 at parameter build
# time; the kernel accumulates in f32 and casts at the store (bf16 logits).
# -----------------------------------------------------------------------------
def _linear_kernel(x_ref, w_ref, b_ref, o_ref):
    acc = jnp.dot(x_ref[...], w_ref[...], preferred_element_type=jnp.float32)
    o_ref[...] = (acc + b_ref[...]).astype(o_ref.dtype)


def linear(x, w_padded, b_padded, n_out, *, tm=256, out_dtype=jnp.float32):
    """x: (M, K) f32; w_padded: (K, Np) bf16; b_padded: (1, Np) f32.

    Np must be a multiple of 128 (pre-padded).  Returns (M, n_out) out_dtype.
    """
    M, K = x.shape
    Np = w_padded.shape[1]
    tn = 256 if Np % 256 == 0 else 128
    tm = min(tm, _round_up(M, 8))
    Mp = _round_up(M, tm)
    x_p = jnp.pad(x, ((0, Mp - M), (0, 0))).astype(jnp.bfloat16)

    # Rough per-step footprint (double-buffered blocks) + slack.
    blk_bytes = tm * K * 2 + K * tn * 2 + tn * 4 + tm * tn * 4
    vmem_limit = _clamp_vmem(2 * blk_bytes + (2 << 20))

    out = pl.pallas_call(
        _linear_kernel,
        out_shape=jax.ShapeDtypeStruct((Mp, Np), out_dtype),
        grid=(Mp // tm, Np // tn),
        in_specs=[
            pl.BlockSpec((tm, K), lambda i, j: (i, 0)),
            pl.BlockSpec((K, tn), lambda i, j: (0, j)),
            pl.BlockSpec((1, tn), lambda i, j: (0, j)),
        ],
        out_specs=pl.BlockSpec((tm, tn), lambda i, j: (i, j)),
        compiler_params=pltpu.CompilerParams(
            dimension_semantics=("parallel", "parallel"),
            vmem_limit_bytes=vmem_limit),
    )(x_p, w_padded, b_padded)
    return out[:M, :n_out]


# -----------------------------------------------------------------------------
# Kernel 2: fused multi-layer LSTM.  One pallas_call over a batch-block grid;
# weights, states and the full activation sequence stay resident in VMEM.
# Per layer, the input projection over ALL timesteps is one big MXU matmul
# into the xproj scratch; the serial per-step body only does h @ W_hh.
#
#   x_ref        : (T, B, E)  bf16   embedded inputs (time-major)
#   wih0_ref     : (E, 4H)    bf16   layer-0 input->gate weights
#   wih_rest_ref : (max(L-1,1), H, 4H) bf16   layers 1..L-1 input->gate weights
#   whh_ref      : (L, H, 4H) bf16   hidden->gate weights, all layers
#   b_ref        : (L, 1, 4H) f32    fused biases (b_ih + b_hh), all layers
#   h0_ref, c0_ref : (L, B, H) f32
#   out_ref      : (T, B, H)  f32    top-layer hidden sequence (also used in
#                                    place as the inter-layer activation buf)
#   hn_ref, cn_ref : (L, B, H) f32   final states
#   xproj_ref    : VMEM (T, B, 4H) f32 scratch (per-layer hoisted projection)
# -----------------------------------------------------------------------------
def _fused_lstm_kernel(x_ref, wih0_ref, wih_rest_ref, whh_ref, b_ref,
                       h0_ref, c0_ref, out_ref, hn_ref, cn_ref, xproj_ref):
    T, B, H = out_ref.shape
    G = 4 * H
    L = whh_ref.shape[0]
    E = x_ref.shape[-1]
    unroll = min(T, 8)   # bounded unroll: serial dependence, no need for full

    for layer in range(L):                       # static unroll over layers
        # --- hoisted input projection for this layer (one big MXU matmul) ---
        if layer == 0:
            rows = x_ref[...].reshape(T * B, E)              # already bf16
            w_in = wih0_ref[...]
        else:
            rows = out_ref[...].reshape(T * B, H).astype(jnp.bfloat16)
            w_in = wih_rest_ref[layer - 1]
        proj = jnp.dot(rows, w_in, preferred_element_type=jnp.float32)
        xproj_ref[...] = proj.reshape(T, B, G) + b_ref[layer]

        # Recurrent weight loaded once per layer (hoisted out of the time loop).
        # TODO(synk): explicit weight-stationary MXU driving
        # (pltpu.matmul_push_rhs / matmul_acc_lhs / matmul_pop) if profiling
        # shows the W_hh panel being re-pushed every timestep.
        w_hh = whh_ref[layer]

        # --- serial recurrence: only h @ W_hh per step -----------------------
        def step(t, carry, w_hh=w_hh):
            h, c = carry
            gates = xproj_ref[t] + jnp.dot(
                h.astype(jnp.bfloat16), w_hh,
                preferred_element_type=jnp.float32)           # (B, 4H)
            i_g = jax.nn.sigmoid(gates[:, 0 * H:1 * H])
            f_g = jax.nn.sigmoid(gates[:, 1 * H:2 * H])
            g_g = jnp.tanh(gates[:, 2 * H:3 * H])
            o_g = jax.nn.sigmoid(gates[:, 3 * H:4 * H])
            c_new = f_g * c + i_g * g_g
            h_new = o_g * jnp.tanh(c_new)
            out_ref[t] = h_new                    # in-place VMEM update
            return h_new, c_new

        h_fin, c_fin = lax.fori_loop(
            0, T, step, (h0_ref[layer], c0_ref[layer]), unroll=unroll)
        hn_ref[layer] = h_fin
        cn_ref[layer] = c_fin


def lstm_stack(params, x_tbe, h0, c0, *, batch_blocks=None):
    """x_tbe: (T, B, E) f32; h0/c0: (L, B, H) f32."""
    T, B, E = x_tbe.shape
    L, H = params["whh"].shape[0], params["whh"].shape[1]
    G = 4 * H
    if batch_blocks is None:
        # v7x: one batch block per TensorCore when the batch allows it; the
        # recurrence is independent per batch row so blocks are independent.
        batch_blocks = 2 if (B % 16 == 0) else 1
    bb = B // batch_blocks
    x_bf16 = x_tbe.astype(jnp.bfloat16)
    Lr = max(L - 1, 1)

    # Per-grid-step footprint (inputs/outputs double-buffered) + scratch + slack.
    blk_bytes = (T * bb * E * 2 + E * G * 2 + Lr * H * G * 2 + L * H * G * 2
                 + L * G * 4 + 2 * L * bb * H * 4          # h0, c0
                 + T * bb * H * 4 + 2 * L * bb * H * 4)    # out, hn, cn
    vmem_limit = _clamp_vmem(2 * blk_bytes + T * bb * G * 4 + (2 << 20))

    out, h_n, c_n = pl.pallas_call(
        _fused_lstm_kernel,
        out_shape=(
            jax.ShapeDtypeStruct((T, B, H), jnp.float32),
            jax.ShapeDtypeStruct((L, B, H), jnp.float32),
            jax.ShapeDtypeStruct((L, B, H), jnp.float32),
        ),
        grid=(batch_blocks,),
        in_specs=[
            pl.BlockSpec((T, bb, E), lambda b: (0, b, 0)),
            pl.BlockSpec((E, G), lambda b: (0, 0)),
            pl.BlockSpec((Lr, H, G), lambda b: (0, 0, 0)),
            pl.BlockSpec((L, H, G), lambda b: (0, 0, 0)),
            pl.BlockSpec((L, 1, G), lambda b: (0, 0, 0)),
            pl.BlockSpec((L, bb, H), lambda b: (0, b, 0)),
            pl.BlockSpec((L, bb, H), lambda b: (0, b, 0)),
        ],
        out_specs=(
            pl.BlockSpec((T, bb, H), lambda b: (0, b, 0)),
            pl.BlockSpec((L, bb, H), lambda b: (0, b, 0)),
            pl.BlockSpec((L, bb, H), lambda b: (0, b, 0)),
        ),
        scratch_shapes=[pltpu.VMEM((T, bb, G), jnp.float32)],
        compiler_params=pltpu.CompilerParams(
            dimension_semantics=("parallel",),
            vmem_limit_bytes=vmem_limit),
    )(x_bf16, params["wih0"], params["wih_rest"], params["whh"], params["b"],
      h0, c0)
    return out, h_n, c_n


# -----------------------------------------------------------------------------
# Model (plain-JAX glue: embedding gather, transposes, parameter setup)
# -----------------------------------------------------------------------------
def make_params(key, vocab_size, embed_size, num_hiddens, num_layers):
    E, H, L = embed_size, num_hiddens, num_layers
    G = 4 * H
    keys = jax.random.split(key, 1 + L)
    emb = 0.1 * jax.random.normal(keys[0], (vocab_size, E), jnp.float32)
    wih, whh, bias = [], [], []
    for l in range(L):
        k1, k2, k3 = jax.random.split(keys[1 + l], 3)
        in_dim = E if l == 0 else H
        wih.append(0.1 * jax.random.normal(k1, (in_dim, G), jnp.float32))
        whh.append(0.1 * jax.random.normal(k2, (H, G), jnp.float32))
        # Single fused bias per layer == PyTorch's (b_ih + b_hh).
        bias.append(0.1 * jax.random.normal(k3, (G,), jnp.float32))
    params = {
        "embedding": emb,
        # Weights pre-cast to bf16 ONCE here (no per-forward cast/pad).
        "wih0": wih[0].astype(jnp.bfloat16),                       # (E, 4H)
        "whh": jnp.stack(whh).astype(jnp.bfloat16),                # (L, H, 4H)
        "b": jnp.stack([b.reshape(1, G) for b in bias]),           # (L, 1, 4H)
    }
    if L > 1:
        params["wih_rest"] = jnp.stack(wih[1:]).astype(jnp.bfloat16)
    else:  # dummy (never read inside the kernel when L == 1)
        params["wih_rest"] = jnp.zeros((1, H, G), jnp.bfloat16)
    return params


def make_dense(key, num_hiddens, vocab_size):
    """Vocabulary head, pre-padded to a lane multiple of 128 and pre-cast."""
    k1, k2 = jax.random.split(key)
    Vp = _round_up(vocab_size, 128)
    w = 0.1 * jax.random.normal(k1, (num_hiddens, vocab_size), jnp.float32)
    b = 0.1 * jax.random.normal(k2, (vocab_size,), jnp.float32)
    return {
        "dense_w": jnp.pad(w, ((0, 0), (0, Vp - vocab_size))).astype(jnp.bfloat16),
        "dense_b": jnp.pad(b.reshape(1, -1), ((0, 0), (0, Vp - vocab_size))),
    }


def seq2seq_encoder(params, enc_X):
    # enc_X: (B, T) int32
    B, T = enc_X.shape
    L, H = params["whh"].shape[0], params["whh"].shape[1]
    emb = jnp.take(params["embedding"], enc_X, axis=0)        # (B, T, E)
    x = jnp.transpose(emb, (1, 0, 2))                         # (T, B, E)
    h0 = jnp.zeros((L, B, H), jnp.float32)
    c0 = jnp.zeros((L, B, H), jnp.float32)
    out, h_n, c_n = lstm_stack(params, x, h0, c0)
    return out, (h_n, c_n)


def seq2seq_decoder(params, dec_X, state, vocab_size):
    # dec_X: (B, T) int32 ; state: (h, c) each (L, B, H)
    emb = jnp.take(params["embedding"], dec_X, axis=0)        # (B, T, E)
    x = jnp.transpose(emb, (1, 0, 2))                         # (T, B, E)
    h0, c0 = state
    out, h_n, c_n = lstm_stack(params, x, h0, c0)             # (T, B, H)
    T, B, H = out.shape
    logits = linear(out.reshape(T * B, H), params["dense_w"], params["dense_b"],
                    vocab_size, out_dtype=jnp.bfloat16)       # bf16 logits
    logits = logits.reshape(T, B, vocab_size)
    return jnp.transpose(logits, (1, 0, 2)), (h_n, c_n)       # (B, T, V)


def encoder_decoder_forward(enc_params, dec_params, enc_X, dec_X, tgt_vocab):
    enc_outputs = seq2seq_encoder(enc_params, enc_X)
    dec_state = enc_outputs[1]                 # Decoder.init_state
    return seq2seq_decoder(dec_params, dec_X, dec_state, tgt_vocab)


# -----------------------------------------------------------------------------
if __name__ == "__main__":
    # Small deterministic config.  H is a multiple of 128 (lane-aligned gates)
    # and B a multiple of 8 (full f32 sublanes), per the TPU layout rules.
    # For v6e/v7x MXU depth, prefer H and E multiples of 256 in real configs.
    SRC_VOCAB, TGT_VOCAB = 64, 72
    EMBED, HIDDEN, LAYERS = 64, 128, 2
    BATCH, SEQ = 8, 8

    key = jax.random.PRNGKey(0)
    k_enc, k_dec, k_dense, k_x1, k_x2 = jax.random.split(key, 5)

    enc_params = make_params(k_enc, SRC_VOCAB, EMBED, HIDDEN, LAYERS)
    dec_params = make_params(k_dec, TGT_VOCAB, EMBED, HIDDEN, LAYERS)
    dec_params.update(make_dense(k_dense, HIDDEN, TGT_VOCAB))

    enc_X = jax.random.randint(k_x1, (BATCH, SEQ), 0, SRC_VOCAB, jnp.int32)
    dec_X = jax.random.randint(k_x2, (BATCH, SEQ), 0, TGT_VOCAB, jnp.int32)

    fwd = jax.jit(encoder_decoder_forward, static_argnums=(4,))
    logits, (h_n, c_n) = fwd(enc_params, dec_params, enc_X, dec_X, TGT_VOCAB)
    jax.block_until_ready((logits, h_n, c_n))

    assert logits.shape == (BATCH, SEQ, TGT_VOCAB)
    assert h_n.shape == (LAYERS, BATCH, HIDDEN)
    assert c_n.shape == (LAYERS, BATCH, HIDDEN)
    assert bool(jnp.all(jnp.isfinite(logits.astype(jnp.float32))))
    assert bool(jnp.all(jnp.isfinite(h_n))) and bool(jnp.all(jnp.isfinite(c_n)))
    print("KERNEL_OK")
</pallas_src>

<mosaic_0001>
module attributes {stable_mosaic.version = 11 : i64} {
  func.func @_linear_kernel(%arg0: i32, %arg1: i32, %arg2: memref<64x128xbf16, #tpu.memory_space<vmem>>, %arg3: memref<128x128xbf16, #tpu.memory_space<vmem>>, %arg4: memref<1x128xf32, #tpu.memory_space<vmem>>, %arg5: memref<64x128xbf16, #tpu.memory_space<vmem>>) attributes {dimension_semantics = [#tpu.dimension_semantics<parallel>, #tpu.dimension_semantics<parallel>], iteration_bounds = array<i64: 1, 1>, scalar_prefetch = 0 : i64, scratch_operands = 0 : i64, tpu.core_type = #tpu.core_type<tc>, window_params = [{transform_indices = @transform_0, window_bounds = array<i64: 64, 128>}, {transform_indices = @transform_1, window_bounds = array<i64: 128, 128>}, {transform_indices = @transform_2, window_bounds = array<i64: 1, 128>}, {transform_indices = @transform_3, window_bounds = array<i64: 64, 128>}]} {
    %c0 = arith.constant 0 : index
    %c0_0 = arith.constant 0 : index
    %0 = vector.load %arg2[%c0, %c0_0] : memref<64x128xbf16, #tpu.memory_space<vmem>>, vector<64x128xbf16>
    %c0_1 = arith.constant 0 : index
    %c0_2 = arith.constant 0 : index
    %1 = vector.load %arg3[%c0_1, %c0_2] : memref<128x128xbf16, #tpu.memory_space<vmem>>, vector<128x128xbf16>
    %cst = arith.constant dense<0.000000e+00> : vector<64x128xf32>
    %2 = tpu.matmul %0, %1, %cst {dimension_numbers = #tpu.dot_dimension_numbers<[1], [0], [0], [1], [0, 0, 1, 1], [], []>} : vector<64x128xbf16>, vector<128x128xbf16>, vector<64x128xf32> -> vector<64x128xf32>
    %c0_3 = arith.constant 0 : index
    %c0_4 = arith.constant 0 : index
    %3 = vector.load %arg4[%c0_3, %c0_4] : memref<1x128xf32, #tpu.memory_space<vmem>>, vector<1x128xf32>
    %4 = vector.broadcast %3 : vector<1x128xf32> to vector<64x128xf32>
    %5 = arith.addf %2, %4 : vector<64x128xf32>
    %6 = arith.truncf %5 : vector<64x128xf32> to vector<64x128xbf16>
    %c0_5 = arith.constant 0 : index
    %c0_6 = arith.constant 0 : index
    %7 = vector.load %arg5[%c0_5, %c0_6] : memref<64x128xbf16, #tpu.memory_space<vmem>>, vector<64x128xbf16>
    tpu.vector_store %arg5[%c0_5, %c0_6], %6 {strides = array<i32>} : memref<64x128xbf16, #tpu.memory_space<vmem>>, vector<64x128xbf16>,
    return
  }
  func.func @transform_0(%arg0: i32, %arg1: i32) -> (i32, i32) {
    %c0_i32 = arith.constant 0 : i32
    %c0_i32_0 = arith.constant 0 : i32
    return %arg0, %c0_i32 : i32, i32
  }
  func.func @transform_1(%arg0: i32, %arg1: i32) -> (i32, i32) {
    %c0_i32 = arith.constant 0 : i32
    %c0_i32_0 = arith.constant 0 : i32
    return %c0_i32, %arg1 : i32, i32
  }
  func.func @transform_2(%arg0: i32, %arg1: i32) -> (i32, i32) {
    %c0_i32 = arith.constant 0 : i32
    %c0_i32_0 = arith.constant 0 : i32
    return %c0_i32, %arg1 : i32, i32
  }
  func.func @transform_3(%arg0: i32, %arg1: i32) -> (i32, i32) {
    %c0_i32 = arith.constant 0 : i32
    return %arg0, %arg1 : i32, i32
  }
}

module attributes {stable_mosaic.version = 11 : i64} {
  func.func @_fused_lstm_kernel(%arg0: i32, %arg1: memref<8x8x64xbf16, #tpu.memory_space<vmem>>, %arg2: memref<64x512xbf16, #tpu.memory_space<vmem>>, %arg3: memref<1x128x512xbf16, #tpu.memory_space<vmem>>, %arg4: memref<2x128x512xbf16, #tpu.memory_space<vmem>>, %arg5: memref<2x1x512xf32, #tpu.memory_space<vmem>>, %arg6: memref<2x8x128xf32, #tpu.memory_space<vmem>>, %arg7: memref<2x8x128xf32, #tpu.memory_space<vmem>>, %arg8: memref<8x8x128xf32, #tpu.memory_space<vmem>>, %arg9: memref<2x8x128xf32, #tpu.memory_space<vmem>>, %arg10: memref<2x8x128xf32, #tpu.memory_space<vmem>>, %arg11: memref<8x8x512xf32, #tpu.memory_space<vmem>>) attributes {dimension_semantics = [#tpu.dimension_semantics<parallel>], iteration_bounds = array<i64: 1>, scalar_prefetch = 0 : i64, scratch_operands = 1 : i64, tpu.core_type = #tpu.core_type<tc>, window_params = [{transform_indices = @transform_0, window_bounds = array<i64: 8, 8, 64>}, {pipeline_mode = #tpu.pipeline_mode<synchronous>, transform_indices = @transform_1, window_bounds = array<i64: 64, 512>}, {pipeline_mode = #tpu.pipeline_mode<synchronous>, transform_indices = @transform_2, window_bounds = array<i64: 1, 128, 512>}, {pipeline_mode = #tpu.pipeline_mode<synchronous>, transform_indices = @transform_3, window_bounds = array<i64: 2, 128, 512>}, {pipeline_mode = #tpu.pipeline_mode<synchronous>, transform_indices = @transform_4, window_bounds = array<i64: 2, 1, 512>}, {transform_indices = @transform_5, window_bounds = array<i64: 2, 8, 128>}, {transform_indices = @transform_6, window_bounds = array<i64: 2, 8, 128>}, {transform_indices = @transform_7, window_bounds = array<i64: 8, 8, 128>}, {transform_indices = @transform_8, window_bounds = array<i64: 2, 8, 128>}, {transform_indices = @transform_9, window_bounds = array<i64: 2, 8, 128>}]} {
    %c0 = arith.constant 0 : index
    %c0_0 = arith.constant 0 : index
    %c0_1 = arith.constant 0 : index
    %0 = vector.load %arg1[%c0, %c0_0, %c0_1] : memref<8x8x64xbf16, #tpu.memory_space<vmem>>, vector<8x8x64xbf16>
    %1 = vector.shape_cast %0 : vector<8x8x64xbf16> to vector<64x64xbf16>
    %c0_2 = arith.constant 0 : index
    %c0_3 = arith.constant 0 : index
    %2 = vector.load %arg2[%c0_2, %c0_3] : memref<64x512xbf16, #tpu.memory_space<vmem>>, vector<64x512xbf16>
    %cst = arith.constant dense<0.000000e+00> : vector<64x512xf32>
    %3 = tpu.matmul %1, %2, %cst {dimension_numbers = #tpu.dot_dimension_numbers<[1], [0], [0], [1], [0, 0, 1, 1], [], []>} : vector<64x64xbf16>, vector<64x512xbf16>, vector<64x512xf32> -> vector<64x512xf32>
    %4 = vector.shape_cast %3 : vector<64x512xf32> to vector<8x8x512xf32>
    %c0_4 = arith.constant 0 : index
    %c0_5 = arith.constant 0 : index
    %c0_6 = arith.constant 0 : index
    %5 = vector.load %arg5[%c0_4, %c0_5, %c0_6] : memref<2x1x512xf32, #tpu.memory_space<vmem>>, vector<1x1x512xf32>
    %6 = vector.shape_cast %5 : vector<1x1x512xf32> to vector<1x512xf32>
    %7 = vector.shape_cast %6 : vector<1x512xf32> to vector<1x1x512xf32>
    %8 = vector.broadcast %7 : vector<1x1x512xf32> to vector<8x8x512xf32>
    %9 = arith.addf %4, %8 : vector<8x8x512xf32>
    %c0_7 = arith.constant 0 : index
    %c0_8 = arith.constant 0 : index
    %c0_9 = arith.constant 0 : index
    %10 = vector.load %arg11[%c0_7, %c0_8, %c0_9] : memref<8x8x512xf32, #tpu.memory_space<vmem>>, vector<8x8x512xf32>
    tpu.vector_store %arg11[%c0_7, %c0_8, %c0_9], %9 {strides = array<i32>} : memref<8x8x512xf32, #tpu.memory_space<vmem>>, vector<8x8x512xf32>,
    %c0_10 = arith.constant 0 : index
    %c0_11 = arith.constant 0 : index
    %c0_12 = arith.constant 0 : index
    %11 = vector.load %arg4[%c0_10, %c0_11, %c0_12] : memref<2x128x512xbf16, #tpu.memory_space<vmem>>, vector<1x128x512xbf16>
    %12 = vector.shape_cast %11 : vector<1x128x512xbf16> to vector<128x512xbf16>
    %c0_13 = arith.constant 0 : index
    %c0_14 = arith.constant 0 : index
    %c0_15 = arith.constant 0 : index
    %13 = vector.load %arg6[%c0_13, %c0_14, %c0_15] : memref<2x8x128xf32, #tpu.memory_space<vmem>>, vector<1x8x128xf32>
    %14 = vector.shape_cast %13 : vector<1x8x128xf32> to vector<8x128xf32>
    %c0_16 = arith.constant 0 : index
    %c0_17 = arith.constant 0 : index
    %c0_18 = arith.constant 0 : index
    %15 = vector.load %arg7[%c0_16, %c0_17, %c0_18] : memref<2x8x128xf32, #tpu.memory_space<vmem>>, vector<1x8x128xf32>
    %16 = vector.shape_cast %15 : vector<1x8x128xf32> to vector<8x128xf32>
    %c0_i32 = arith.constant 0 : i32
    %17 = arith.index_cast %c0_i32 : i32 to index
    %c0_19 = arith.constant 0 : index
    %c0_20 = arith.constant 0 : index
    %18 = vector.load %arg11[%17, %c0_19, %c0_20] : memref<8x8x512xf32, #tpu.memory_space<vmem>>, vector<1x8x512xf32>
    %19 = vector.shape_cast %18 : vector<1x8x512xf32> to vector<8x512xf32>
    %20 = arith.truncf %14 : vector<8x128xf32> to vector<8x128xbf16>
    %cst_21 = arith.constant dense<0.000000e+00> : vector<8x512xf32>
    %21 = tpu.matmul %20, %12, %cst_21 {dimension_numbers = #tpu.dot_dimension_numbers<[1], [0], [0], [1], [0, 0, 1, 1], [], []>} : vector<8x128xbf16>, vector<128x512xbf16>, vector<8x512xf32> -> vector<8x512xf32>
    %22 = arith.addf %19, %21 : vector<8x512xf32>
    %23 = vector.extract_strided_slice %22 {offsets = [0, 0], sizes = [8, 128], strides = [1, 1]} : vector<8x512xf32> to vector<8x128xf32>
    %24 = arith.negf %23 : vector<8x128xf32>
    %25 = math.exp %24 : vector<8x128xf32>
    %cst_22 = arith.constant 1.000000e+00 : f32
    %26 = vector.broadcast %cst_22 : f32 to vector<8x128xf32>
    %27 = arith.addf %26, %25 : vector<8x128xf32>
    %28 = arith.divf %26, %27 : vector<8x128xf32>
    %29 = vector.extract_strided_slice %22 {offsets = [0, 128], sizes = [8, 128], strides = [1, 1]} : vector<8x512xf32> to vector<8x128xf32>
    %30 = arith.negf %29 : vector<8x128xf32>
    %31 = math.exp %30 : vector<8x128xf32>
    %cst_23 = arith.constant 1.000000e+00 : f32
    %32 = vector.broadcast %cst_23 : f32 to vector<8x128xf32>
    %33 = arith.addf %32, %31 : vector<8x128xf32>
    %34 = arith.divf %32, %33 : vector<8x128xf32>
    %35 = vector.extract_strided_slice %22 {offsets = [0, 256], sizes = [8, 128], strides = [1, 1]} : vector<8x512xf32> to vector<8x128xf32>
    %36 = math.tanh %35 : vector<8x128xf32>
    %37 = vector.extract_strided_slice %22 {offsets = [0, 384], sizes = [8, 128], strides = [1, 1]} : vector<8x512xf32> to vector<8x128xf32>
    %38 = arith.negf %37 : vector<8x128xf32>
    %39 = math.exp %38 : vector<8x128xf32>
    %cst_24 = arith.constant 1.000000e+00 : f32
    %40 = vector.broadcast %cst_24 : f32 to vector<8x128xf32>
    %41 = arith.addf %40, %39 : vector<8x128xf32>
    %42 = arith.divf %40, %41 : vector<8x128xf32>
    %43 = arith.mulf %34, %16 : vector<8x128xf32>
    %44 = arith.mulf %28, %36 : vector<8x128xf32>
    %45 = arith.addf %43, %44 : vector<8x128xf32>
    %46 = math.tanh %45 : vector<8x128xf32>
    %47 = arith.mulf %42, %46 : vector<8x128xf32>
    %48 = arith.index_cast %c0_i32 : i32 to index
    %c0_25 = arith.constant 0 : index
    %c0_26 = arith.constant 0 : index
    %49 = vector.load %arg8[%48, %c0_25, %c0_26] : memref<8x8x128xf32, #tpu.memory_space<vmem>>, vector<1x8x128xf32>
    %50 = vector.shape_cast %49 : vector<1x8x128xf32> to vector<8x128xf32>
    %51 = vector.shape_cast %47 : vector<8x128xf32> to vector<1x8x128xf32>
    tpu.vector_store %arg8[%48, %c0_25, %c0_26], %51 {strides = array<i32>} : memref<8x8x128xf32, #tpu.memory_space<vmem>>, vector<1x8x128xf32>,
    %c1_i32 = arith.constant 1 : i32
    %52 = arith.index_cast %c1_i32 : i32 to index
    %c0_27 = arith.constant 0 : index
    %c0_28 = arith.constant 0 : index
    %53 = vector.load %arg11[%52, %c0_27, %c0_28] : memref<8x8x512xf32, #tpu.memory_space<vmem>>, vector<1x8x512xf32>
    %54 = vector.shape_cast %53 : vector<1x8x512xf32> to vector<8x512xf32>
    %55 = arith.truncf %47 : vector<8x128xf32> to vector<8x128xbf16>
    %cst_29 = arith.constant dense<0.000000e+00> : vector<8x512xf32>
    %56 = tpu.matmul %55, %12, %cst_29 {dimension_numbers = #tpu.dot_dimension_numbers<[1], [0], [0], [1], [0, 0, 1, 1], [], []>} : vector<8x128xbf16>, vector<128x512xbf16>, vector<8x512xf32> -> vector<8x512xf32>
    %57 = arith.addf %54, %56 : vector<8x512xf32>
    %58 = vector.extract_strided_slice %57 {offsets = [0, 0], sizes = [8, 128], strides = [1, 1]} : vector<8x512xf32> to vector<8x128xf32>
    %59 = arith.negf %58 : vector<8x128xf32>
    %60 = math.exp %59 : vector<8x128xf32>
    %cst_30 = arith.constant 1.000000e+00 : f32
    %61 = vector.broadcast %cst_30 : f32 to vector<8x128xf32>
    %62 = arith.addf %61, %60 : vector<8x128xf32>
    %63 = arith.divf %61, %62 : vector<8x128xf32>
    %64 = vector.extract_strided_slice %57 {offsets = [0, 128], sizes = [8, 128], strides = [1, 1]} : vector<8x512xf32> to vector<8x128xf32>
    %65 = arith.negf %64 : vector<8x128xf32>
    %66 = math.exp %65 : vector<8x128xf32>
    %cst_31 = arith.constant 1.000000e+00 : f32
    %67 = vector.broadcast %cst_31 : f32 to vector<8x128xf32>
    %68 = arith.addf %67, %66 : vector<8x128xf32>
    %69 = arith.divf %67, %68 : vector<8x128xf32>
    %70 = vector.extract_strided_slice %57 {offsets = [0, 256], sizes = [8, 128], strides = [1, 1]} : vector<8x512xf32> to vector<8x128xf32>
    %71 = math.tanh %70 : vector<8x128xf32>
    %72 = vector.extract_strided_slice %57 {offsets = [0, 384], sizes = [8, 128], strides = [1, 1]} : vector<8x512xf32> to vector<8x128xf32>
    %73 = arith.negf %72 : vector<8x128xf32>
    %74 = math.exp %73 : vector<8x128xf32>
    %cst_32 = arith.constant 1.000000e+00 : f32
    %75 = vector.broadcast %cst_32 : f32 to vector<8x128xf32>
    %76 = arith.addf %75, %74 : vector<8x128xf32>
    %77 = arith.divf %75, %76 : vector<8x128xf32>
    %78 = arith.mulf %69, %45 : vector<8x128xf32>
    %79 = arith.mulf %63, %71 : vector<8x128xf32>
    %80 = arith.addf %78, %79 : vector<8x128xf32>
    %81 = math.tanh %80 : vector<8x128xf32>
    %82 = arith.mulf %77, %81 : vector<8x128xf32>
    %83 = arith.index_cast %c1_i32 : i32 to index
    %c0_33 = arith.constant 0 : index
    %c0_34 = arith.constant 0 : index
    %84 = vector.load %arg8[%83, %c0_33, %c0_34] : memref<8x8x128xf32, #tpu.memory_space<vmem>>, vector<1x8x128xf32>
    %85 = vector.shape_cast %84 : vector<1x8x128xf32> to vector<8x128xf32>
    %86 = vector.shape_cast %82 : vector<8x128xf32> to vector<1x8x128xf32>
    tpu.vector_store %arg8[%83, %c0_33, %c0_34], %86 {strides = array<i32>} : memref<8x8x128xf32, #tpu.memory_space<vmem>>, vector<1x8x128xf32>,
    %c2_i32 = arith.constant 2 : i32
    %87 = arith.index_cast %c2_i32 : i32 to index
    %c0_35 = arith.constant 0 : index
    %c0_36 = arith.constant 0 : index
    %88 = vector.load %arg11[%87, %c0_35, %c0_36] : memref<8x8x512xf32, #tpu.memory_space<vmem>>, vector<1x8x512xf32>
    %89 = vector.shape_cast %88 : vector<1x8x512xf32> to vector<8x512xf32>
    %90 = arith.truncf %82 : vector<8x128xf32> to vector<8x128xbf16>
    %cst_37 = arith.constant dense<0.000000e+00> : vector<8x512xf32>
    %91 = tpu.matmul %90, %12, %cst_37 {dimension_numbers = #tpu.dot_dimension_numbers<[1], [0], [0], [1], [0, 0, 1, 1], [], []>} : vector<8x128xbf16>, vector<128x512xbf16>, vector<8x512xf32> -> vector<8x512xf32>
    %92 = arith.addf %89, %91 : vector<8x512xf32>
    %93 = vector.extract_strided_slice %92 {offsets = [0, 0], sizes = [8, 128], strides = [1, 1]} : vector<8x512xf32> to vector<8x128xf32>
    %94 = arith.negf %93 : vector<8x128xf32>
    %95 = math.exp %94 : vector<8x128xf32>
    %cst_38 = arith.constant 1.000000e+00 : f32
    %96 = vector.broadcast %cst_38 : f32 to vector<8x128xf32>
    %97 = arith.addf %96, %95 : vector<8x128xf32>
    %98 = arith.divf %96, %97 : vector<8x128xf32>
    %99 = vector.extract_strided_slice %92 {offsets = [0, 128], sizes = [8, 128], strides = [1, 1]} : vector<8x512xf32> to vector<8x128xf32>
    %100 = arith.negf %99 : vector<8x128xf32>
    %101 = math.exp %100 : vector<8x128xf32>
    %cst_39 = arith.constant 1.000000e+00 : f32
    %102 = vector.broadcast %cst_39 : f32 to vector<8x128xf32>
    %103 = arith.addf %102, %101 : vector<8x128xf32>
    %104 = arith.divf %102, %103 : vector<8x128xf32>
    %105 = vector.extract_strided_slice %92 {offsets = [0, 256], sizes = [8, 128], strides = [1, 1]} : vector<8x512xf32> to vector<8x128xf32>
    %106 = math.tanh %105 : vector<8x128xf32>
    %107 = vector.extract_strided_slice %92 {offsets = [0, 384], sizes = [8, 128], strides = [1, 1]} : vector<8x512xf32> to vector<8x128xf32>
    %108 = arith.negf %107 : vector<8x128xf32>
    %109 = math.exp %108 : vector<8x128xf32>
    %cst_40 = arith.constant 1.000000e+00 : f32
    %110 = vector.broadcast %cst_40 : f32 to vector<8x128xf32>
    %111 = arith.addf %110, %109 : vector<8x128xf32>
    %112 = arith.divf %110, %111 : vector<8x128xf32>
    %113 = arith.mulf %104, %80 : vector<8x128xf32>
    %114 = arith.mulf %98, %106 : vector<8x128xf32>
    %115 = arith.addf %113, %114 : vector<8x128xf32>
    %116 = math.tanh %115 : vector<8x128xf32>
    %117 = arith.mulf %112, %116 : vector<8x128xf32>
    %118 = arith.index_cast %c2_i32 : i32 to index
    %c0_41 = arith.constant 0 : index
    %c0_42 = arith.constant 0 : index
    %119 = vector.load %arg8[%118, %c0_41, %c0_42] : memref<8x8x128xf32, #tpu.memory_space<vmem>>, vector<1x8x128xf32>
    %120 = vector.shape_cast %119 : vector<1x8x128xf32> to vector<8x128xf32>
    %121 = vector.shape_cast %117 : vector<8x128xf32> to vector<1x8x128xf32>
    tpu.vector_store %arg8[%118, %c0_41, %c0_42], %121 {strides = array<i32>} : memref<8x8x128xf32, #tpu.memory_space<vmem>>, vector<1x8x128xf32>,
    %c3_i32 = arith.constant 3 : i32
    %122 = arith.index_cast %c3_i32 : i32 to index
    %c0_43 = arith.constant 0 : index
    %c0_44 = arith.constant 0 : index
    %123 = vector.load %arg11[%122, %c0_43, %c0_44] : memref<8x8x512xf32, #tpu.memory_space<vmem>>, vector<1x8x512xf32>
    %124 = vector.shape_cast %123 : vector<1x8x512xf32> to vector<8x512xf32>
    %125 = arith.truncf %117 : vector<8x128xf32> to vector<8x128xbf16>
    %cst_45 = arith.constant dense<0.000000e+00> : vector<8x512xf32>
    %126 = tpu.matmul %125, %12, %cst_45 {dimension_numbers = #tpu.dot_dimension_numbers<[1], [0], [0], [1], [0, 0, 1, 1], [], []>} : vector<8x128xbf16>, vector<128x512xbf16>, vector<8x512xf32> -> vector<8x512xf32>
    %127 = arith.addf %124, %126 : vector<8x512xf32>
    %128 = vector.extract_strided_slice %127 {offsets = [0, 0], sizes = [8, 128], strides = [1, 1]} : vector<8x512xf32> to vector<8x128xf32>
    %129 = arith.negf %128 : vector<8x128xf32>
    %130 = math.exp %129 : vector<8x128xf32>
    %cst_46 = arith.constant 1.000000e+00 : f32
    %131 = vector.broadcast %cst_46 : f32 to vector<8x128xf32>
    %132 = arith.addf %131, %130 : vector<8x128xf32>
    %133 = arith.divf %131, %132 : vector<8x128xf32>
    %134 = vector.extract_strided_slice %127 {offsets = [0, 128], sizes = [8, 128], strides = [1, 1]} : vector<8x512xf32> to vector<8x128xf32>
    %135 = arith.negf %134 : vector<8x128xf32>
    %136 = math.exp %135 : vector<8x128xf32>
    %cst_47 = arith.constant 1.000000e+00 : f32
    %137 = vector.broadcast %cst_47 : f32 to vector<8x128xf32>
    %138 = arith.addf %137, %136 : vector<8x128xf32>
    %139 = arith.divf %137, %138 : vector<8x128xf32>
    %140 = vector.extract_strided_slice %127 {offsets = [0, 256], sizes = [8, 128], strides = [1, 1]} : vector<8x512xf32> to vector<8x128xf32>
    %141 = math.tanh %140 : vector<8x128xf32>
    %142 = vector.extract_strided_slice %127 {offsets = [0, 384], sizes = [8, 128], strides = [1, 1]} : vector<8x512xf32> to vector<8x128xf32>
    %143 = arith.negf %142 : vector<8x128xf32>
    %144 = math.exp %143 : vector<8x128xf32>
    %cst_48 = arith.constant 1.000000e+00 : f32
    %145 = vector.broadcast %cst_48 : f32 to vector<8x128xf32>
    %146 = arith.addf %145, %144 : vector<8x128xf32>
    %147 = arith.divf %145, %146 : vector<8x128xf32>
    %148 = arith.mulf %139, %115 : vector<8x128xf32>
    %149 = arith.mulf %133, %141 : vector<8x128xf32>
    %150 = arith.addf %148, %149 : vector<8x128xf32>
    %151 = math.tanh %150 : vector<8x128xf32>
    %152 = arith.mulf %147, %151 : vector<8x128xf32>
    %153 = arith.index_cast %c3_i32 : i32 to index
    %c0_49 = arith.constant 0 : index
    %c0_50 = arith.constant 0 : index
    %154 = vector.load %arg8[%153, %c0_49, %c0_50] : memref<8x8x128xf32, #tpu.memory_space<vmem>>, vector<1x8x128xf32>
    %155 = vector.shape_cast %154 : vector<1x8x128xf32> to vector<8x128xf32>
    %156 = vector.shape_cast %152 : vector<8x128xf32> to vector<1x8x128xf32>
    tpu.vector_store %arg8[%153, %c0_49, %c0_50], %156 {strides = array<i32>} : memref<8x8x128xf32, #tpu.memory_space<vmem>>, vector<1x8x128xf32>,
    %c4_i32 = arith.constant 4 : i32
    %157 = arith.index_cast %c4_i32 : i32 to index
    %c0_51 = arith.constant 0 : index
    %c0_52 = arith.constant 0 : index
    %158 = vector.load %arg11[%157, %c0_51, %c0_52] : memref<8x8x512xf32, #tpu.memory_space<vmem>>, vector<1x8x512xf32>
    %159 = vector.shape_cast %158 : vector<1x8x512xf32> to vector<8x512xf32>
    %160 = arith.truncf %152 : vector<8x128xf32> to vector<8x128xbf16>
    %cst_53 = arith.constant dense<0.000000e+00> : vector<8x512xf32>
    %161 = tpu.matmul %160, %12, %cst_53 {dimension_numbers = #tpu.dot_dimension_numbers<[1], [0], [0], [1], [0, 0, 1, 1], [], []>} : vector<8x128xbf16>, vector<128x512xbf16>, vector<8x512xf32> -> vector<8x512xf32>
    %162 = arith.addf %159, %161 : vector<8x512xf32>
    %163 = vector.extract_strided_slice %162 {offsets = [0, 0], sizes = [8, 128], strides = [1, 1]} : vector<8x512xf32> to vector<8x128xf32>
    %164 = arith.negf %163 : vector<8x128xf32>
    %165 = math.exp %164 : vector<8x128xf32>
    %cst_54 = arith.constant 1.000000e+00 : f32
    %166 = vector.broadcast %cst_54 : f32 to vector<8x128xf32>
    %167 = arith.addf %166, %165 : vector<8x128xf32>
    %168 = arith.divf %166, %167 : vector<8x128xf32>
    %169 = vector.extract_strided_slice %162 {offsets = [0, 128], sizes = [8, 128], strides = [1, 1]} : vector<8x512xf32> to vector<8x128xf32>
    %170 = arith.negf %169 : vector<8x128xf32>
    %171 = math.exp %170 : vector<8x128xf32>
    %cst_55 = arith.constant 1.000000e+00 : f32
    %172 = vector.broadcast %cst_55 : f32 to vector<8x128xf32>
    %173 = arith.addf %172, %171 : vector<8x128xf32>
    %174 = arith.divf %172, %173 : vector<8x128xf32>
    %175 = vector.extract_strided_slice %162 {offsets = [0, 256], sizes = [8, 128], strides = [1, 1]} : vector<8x512xf32> to vector<8x128xf32>
    %176 = math.tanh %175 : vector<8x128xf32>
    %177 = vector.extract_strided_slice %162 {offsets = [0, 384], sizes = [8, 128], strides = [1, 1]} : vector<8x512xf32> to vector<8x128xf32>
    %178 = arith.negf %177 : vector<8x128xf32>
    %179 = math.exp %178 : vector<8x128xf32>
    %cst_56 = arith.constant 1.000000e+00 : f32
    %180 = vector.broadcast %cst_56 : f32 to vector<8x128xf32>
    %181 = arith.addf %180, %179 : vector<8x128xf32>
    %182 = arith.divf %180, %181 : vector<8x128xf32>
    %183 = arith.mulf %174, %150 : vector<8x128xf32>
    %184 = arith.mulf %168, %176 : vector<8x128xf32>
    %185 = arith.addf %183, %184 : vector<8x128xf32>
    %186 = math.tanh %185 : vector<8x128xf32>
    %187 = arith.mulf %182, %186 : vector<8x128xf32>
    %188 = arith.index_cast %c4_i32 : i32 to index
    %c0_57 = arith.constant 0 : index
    %c0_58 = arith.constant 0 : index
    %189 = vector.load %arg8[%188, %c0_57, %c0_58] : memref<8x8x128xf32, #tpu.memory_space<vmem>>, vector<1x8x128xf32>
    %190 = vector.shape_cast %189 : vector<1x8x128xf32> to vector<8x128xf32>
    %191 = vector.shape_cast %187 : vector<8x128xf32> to vector<1x8x128xf32>
    tpu.vector_store %arg8[%188, %c0_57, %c0_58], %191 {strides = array<i32>} : memref<8x8x128xf32, #tpu.memory_space<vmem>>, vector<1x8x128xf32>,
    %c5_i32 = arith.constant 5 : i32
    %192 = arith.index_cast %c5_i32 : i32 to index
    %c0_59 = arith.constant 0 : index
    %c0_60 = arith.constant 0 : index
    %193 = vector.load %arg11[%192, %c0_59, %c0_60] : memref<8x8x512xf32, #tpu.memory_space<vmem>>, vector<1x8x512xf32>
    %194 = vector.shape_cast %193 : vector<1x8x512xf32> to vector<8x512xf32>
    %195 = arith.truncf %187 : vector<8x128xf32> to vector<8x128xbf16>
    %cst_61 = arith.constant dense<0.000000e+00> : vector<8x512xf32>
    %196 = tpu.matmul %195, %12, %cst_61 {dimension_numbers = #tpu.dot_dimension_numbers<[1], [0], [0], [1], [0, 0, 1, 1], [], []>} : vector<8x128xbf16>, vector<128x512xbf16>, vector<8x512xf32> -> vector<8x512xf32>
    %197 = arith.addf %194, %196 : vector<8x512xf32>
    %198 = vector.extract_strided_slice %197 {offsets = [0, 0], sizes = [8, 128], strides = [1, 1]} : vector<8x512xf32> to vector<8x128xf32>
    %199 = arith.negf %198 : vector<8x128xf32>
    %200 = math.exp %199 : vector<8x128xf32>
    %cst_62 = arith.constant 1.000000e+00 : f32
    %201 = vector.broadcast %cst_62 : f32 to vector<8x128xf32>
    %202 = arith.addf %201, %200 : vector<8x128xf32>
    %203 = arith.divf %201, %202 : vector<8x128xf32>
    %204 = vector.extract_strided_slice %197 {offsets = [0, 128], sizes = [8, 128], strides = [1, 1]} : vector<8x512xf32> to vector<8x128xf32>
    %205 = arith.negf %204 : vector<8x128xf32>
    %206 = math.exp %205 : vector<8x128xf32>
    %cst_63 = arith.constant 1.000000e+00 : f32
    %207 = vector.broadcast %cst_63 : f32 to vector<8x128xf32>
    %208 = arith.addf %207, %206 : vector<8x128xf32>
    %209 = arith.divf %207, %208 : vector<8x128xf32>
    %210 = vector.extract_strided_slice %197 {offsets = [0, 256], sizes = [8, 128], strides = [1, 1]} : vector<8x512xf32> to vector<8x128xf32>
    %211 = math.tanh %210 : vector<8x128xf32>
    %212 = vector.extract_strided_slice %197 {offsets = [0, 384], sizes = [8, 128], strides = [1, 1]} : vector<8x512xf32> to vector<8x128xf32>
    %213 = arith.negf %212 : vector<8x128xf32>
    %214 = math.exp %213 : vector<8x128xf32>
    %cst_64 = arith.constant 1.000000e+00 : f32
    %215 = vector.broadcast %cst_64 : f32 to vector<8x128xf32>
    %216 = arith.addf %215, %214 : vector<8x128xf32>
    %217 = arith.divf %215, %216 : vector<8x128xf32>
    %218 = arith.mulf %209, %185 : vector<8x128xf32>
    %219 = arith.mulf %203, %211 : vector<8x128xf32>
    %220 = arith.addf %218, %219 : vector<8x128xf32>
    %221 = math.tanh %220 : vector<8x128xf32>
    %222 = arith.mulf %217, %221 : vector<8x128xf32>
    %223 = arith.index_cast %c5_i32 : i32 to index
    %c0_65 = arith.constant 0 : index
    %c0_66 = arith.constant 0 : index
    %224 = vector.load %arg8[%223, %c0_65, %c0_66] : memref<8x8x128xf32, #tpu.memory_space<vmem>>, vector<1x8x128xf32>
    %225 = vector.shape_cast %224 : vector<1x8x128xf32> to vector<8x128xf32>
    %226 = vector.shape_cast %222 : vector<8x128xf32> to vector<1x8x128xf32>
    tpu.vector_store %arg8[%223, %c0_65, %c0_66], %226 {strides = array<i32>} : memref<8x8x128xf32, #tpu.memory_space<vmem>>, vector<1x8x128xf32>,
    %c6_i32 = arith.constant 6 : i32
    %227 = arith.index_cast %c6_i32 : i32 to index
    %c0_67 = arith.constant 0 : index
    %c0_68 = arith.constant 0 : index
    %228 = vector.load %arg11[%227, %c0_67, %c0_68] : memref<8x8x512xf32, #tpu.memory_space<vmem>>, vector<1x8x512xf32>
    %229 = vector.shape_cast %228 : vector<1x8x512xf32> to vector<8x512xf32>
    %230 = arith.truncf %222 : vector<8x128xf32> to vector<8x128xbf16>
    %cst_69 = arith.constant dense<0.000000e+00> : vector<8x512xf32>
    %231 = tpu.matmul %230, %12, %cst_69 {dimension_numbers = #tpu.dot_dimension_numbers<[1], [0], [0], [1], [0, 0, 1, 1], [], []>} : vector<8x128xbf16>, vector<128x512xbf16>, vector<8x512xf32> -> vector<8x512xf32>
    %232 = arith.addf %229, %231 : vector<8x512xf32>
    %233 = vector.extract_strided_slice %232 {offsets = [0, 0], sizes = [8, 128], strides = [1, 1]} : vector<8x512xf32> to vector<8x128xf32>
    %234 = arith.negf %233 : vector<8x128xf32>
    %235 = math.exp %234 : vector<8x128xf32>
    %cst_70 = arith.constant 1.000000e+00 : f32
    %236 = vector.broadcast %cst_70 : f32 to vector<8x128xf32>
    %237 = arith.addf %236, %235 : vector<8x128xf32>
    %238 = arith.divf %236, %237 : vector<8x128xf32>
    %239 = vector.extract_strided_slice %232 {offsets = [0, 128], sizes = [8, 128], strides = [1, 1]} : vector<8x512xf32> to vector<8x128xf32>
    %240 = arith.negf %239 : vector<8x128xf32>
    %241 = math.exp %240 : vector<8x128xf32>
    %cst_71 = arith.constant 1.000000e+00 : f32
    %242 = vector.broadcast %cst_71 : f32 to vector<8x128xf32>
    %243 = arith.addf %242, %241 : vector<8x128xf32>
    %244 = arith.divf %242, %243 : vector<8x128xf32>
    %245 = vector.extract_strided_slice %232 {offsets = [0, 256], sizes = [8, 128], strides = [1, 1]} : vector<8x512xf32> to vector<8x128xf32>
    %246 = math.tanh %245 : vector<8x128xf32>
    %247 = vector.extract_strided_slice %232 {offsets = [0, 384], sizes = [8, 128], strides = [1, 1]} : vector<8x512xf32> to vector<8x128xf32>
    %248 = arith.negf %247 : vector<8x128xf32>
    %249 = math.exp %248 : vector<8x128xf32>
    %cst_72 = arith.constant 1.000000e+00 : f32
    %250 = vector.broadcast %cst_72 : f32 to vector<8x128xf32>
    %251 = arith.addf %250, %249 : vector<8x128xf32>
    %252 = arith.divf %250, %251 : vector<8x128xf32>
    %253 = arith.mulf %244, %220 : vector<8x128xf32>
    %254 = arith.mulf %238, %246 : vector<8x128xf32>
    %255 = arith.addf %253, %254 : vector<8x128xf32>
    %256 = math.tanh %255 : vector<8x128xf32>
    %257 = arith.mulf %252, %256 : vector<8x128xf32>
    %258 = arith.index_cast %c6_i32 : i32 to index
    %c0_73 = arith.constant 0 : index
    %c0_74 = arith.constant 0 : index
    %259 = vector.load %arg8[%258, %c0_73, %c0_74] : memref<8x8x128xf32, #tpu.memory_space<vmem>>, vector<1x8x128xf32>
    %260 = vector.shape_cast %259 : vector<1x8x128xf32> to vector<8x128xf32>
    %261 = vector.shape_cast %257 : vector<8x128xf32> to vector<1x8x128xf32>
    tpu.vector_store %arg8[%258, %c0_73, %c0_74], %261 {strides = array<i32>} : memref<8x8x128xf32, #tpu.memory_space<vmem>>, vector<1x8x128xf32>,
    %c7_i32 = arith.constant 7 : i32
    %262 = arith.index_cast %c7_i32 : i32 to index
    %c0_75 = arith.constant 0 : index
    %c0_76 = arith.constant 0 : index
    %263 = vector.load %arg11[%262, %c0_75, %c0_76] : memref<8x8x512xf32, #tpu.memory_space<vmem>>, vector<1x8x512xf32>
    %264 = vector.shape_cast %263 : vector<1x8x512xf32> to vector<8x512xf32>
    %265 = arith.truncf %257 : vector<8x128xf32> to vector<8x128xbf16>
    %cst_77 = arith.constant dense<0.000000e+00> : vector<8x512xf32>
    %266 = tpu.matmul %265, %12, %cst_77 {dimension_numbers = #tpu.dot_dimension_numbers<[1], [0], [0], [1], [0, 0, 1, 1], [], []>} : vector<8x128xbf16>, vector<128x512xbf16>, vector<8x512xf32> -> vector<8x512xf32>
    %267 = arith.addf %264, %266 : vector<8x512xf32>
    %268 = vector.extract_strided_slice %267 {offsets = [0, 0], sizes = [8, 128], strides = [1, 1]} : vector<8x512xf32> to vector<8x128xf32>
    %269 = arith.negf %268 : vector<8x128xf32>
    %270 = math.exp %269 : vector<8x128xf32>
    %cst_78 = arith.constant 1.000000e+00 : f32
    %271 = vector.broadcast %cst_78 : f32 to vector<8x128xf32>
    %272 = arith.addf %271, %270 : vector<8x128xf32>
    %273 = arith.divf %271, %272 : vector<8x128xf32>
    %274 = vector.extract_strided_slice %267 {offsets = [0, 128], sizes = [8, 128], strides = [1, 1]} : vector<8x512xf32> to vector<8x128xf32>
    %275 = arith.negf %274 : vector<8x128xf32>
    %276 = math.exp %275 : vector<8x128xf32>
    %cst_79 = arith.constant 1.000000e+00 : f32
    %277 = vector.broadcast %cst_79 : f32 to vector<8x128xf32>
    %278 = arith.addf %277, %276 : vector<8x128xf32>
    %279 = arith.divf %277, %278 : vector<8x128xf32>
    %280 = vector.extract_strided_slice %267 {offsets = [0, 256], sizes = [8, 128], strides = [1, 1]} : vector<8x512xf32> to vector<8x128xf32>
    %281 = math.tanh %280 : vector<8x128xf32>
    %282 = vector.extract_strided_slice %267 {offsets = [0, 384], sizes = [8, 128], strides = [1, 1]} : vector<8x512xf32> to vector<8x128xf32>
    %283 = arith.negf %282 : vector<8x128xf32>
    %284 = math.exp %283 : vector<8x128xf32>
    %cst_80 = arith.constant 1.000000e+00 : f32
    %285 = vector.broadcast %cst_80 : f32 to vector<8x128xf32>
    %286 = arith.addf %285, %284 : vector<8x128xf32>
    %287 = arith.divf %285, %286 : vector<8x128xf32>
    %288 = arith.mulf %279, %255 : vector<8x128xf32>
    %289 = arith.mulf %273, %281 : vector<8x128xf32>
    %290 = arith.addf %288, %289 : vector<8x128xf32>
    %291 = math.tanh %290 : vector<8x128xf32>
    %292 = arith.mulf %287, %291 : vector<8x128xf32>
    %293 = arith.index_cast %c7_i32 : i32 to index
    %c0_81 = arith.constant 0 : index
    %c0_82 = arith.constant 0 : index
    %294 = vector.load %arg8[%293, %c0_81, %c0_82] : memref<8x8x128xf32, #tpu.memory_space<vmem>>, vector<1x8x128xf32>
    %295 = vector.shape_cast %294 : vector<1x8x128xf32> to vector<8x128xf32>
    %296 = vector.shape_cast %292 : vector<8x128xf32> to vector<1x8x128xf32>
    tpu.vector_store %arg8[%293, %c0_81, %c0_82], %296 {strides = array<i32>} : memref<8x8x128xf32, #tpu.memory_space<vmem>>, vector<1x8x128xf32>,
    %c8_i32 = arith.constant 8 : i32
    %c0_83 = arith.constant 0 : index
    %c0_84 = arith.constant 0 : index
    %c0_85 = arith.constant 0 : index
    %297 = vector.load %arg9[%c0_83, %c0_84, %c0_85] : memref<2x8x128xf32, #tpu.memory_space<vmem>>, vector<1x8x128xf32>
    %298 = vector.shape_cast %297 : vector<1x8x128xf32> to vector<8x128xf32>
    %299 = vector.shape_cast %292 : vector<8x128xf32> to vector<1x8x128xf32>
    tpu.vector_store %arg9[%c0_83, %c0_84, %c0_85], %299 {strides = array<i32>} : memref<2x8x128xf32, #tpu.memory_space<vmem>>, vector<1x8x128xf32>,
    %c0_86 = arith.constant 0 : index
    %c0_87 = arith.constant 0 : index
    %c0_88 = arith.constant 0 : index
    %300 = vector.load %arg10[%c0_86, %c0_87, %c0_88] : memref<2x8x128xf32, #tpu.memory_space<vmem>>, vector<1x8x128xf32>
    %301 = vector.shape_cast %300 : vector<1x8x128xf32> to vector<8x128xf32>
    %302 = vector.shape_cast %290 : vector<8x128xf32> to vector<1x8x128xf32>
    tpu.vector_store %arg10[%c0_86, %c0_87, %c0_88], %302 {strides = array<i32>} : memref<2x8x128xf32, #tpu.memory_space<vmem>>, vector<1x8x128xf32>,
    %c0_89 = arith.constant 0 : index
    %c0_90 = arith.constant 0 : index
    %c0_91 = arith.constant 0 : index
    %303 = vector.load %arg8[%c0_89, %c0_90, %c0_91] : memref<8x8x128xf32, #tpu.memory_space<vmem>>, vector<8x8x128xf32>
    %304 = vector.shape_cast %303 : vector<8x8x128xf32> to vector<64x128xf32>
    %305 = arith.truncf %304 : vector<64x128xf32> to vector<64x128xbf16>
    %c0_92 = arith.constant 0 : index
    %c0_93 = arith.constant 0 : index
    %c0_94 = arith.constant 0 : index
    %306 = vector.load %arg3[%c0_92, %c0_93, %c0_94] : memref<1x128x512xbf16, #tpu.memory_space<vmem>>, vector<1x128x512xbf16>
    %307 = vector.shape_cast %306 : vector<1x128x512xbf16> to vector<128x512xbf16>
    %cst_95 = arith.constant dense<0.000000e+00> : vector<64x512xf32>
    %308 = tpu.matmul %305, %307, %cst_95 {dimension_numbers = #tpu.dot_dimension_numbers<[1], [0], [0], [1], [0, 0, 1, 1], [], []>} : vector<64x128xbf16>, vector<128x512xbf16>, vector<64x512xf32> -> vector<64x512xf32>
    %309 = vector.shape_cast %308 : vector<64x512xf32> to vector<8x8x512xf32>
    %c1 = arith.constant 1 : index
    %c0_96 = arith.constant 0 : index
    %c0_97 = arith.constant 0 : index
    %310 = vector.load %arg5[%c1, %c0_96, %c0_97] : memref<2x1x512xf32, #tpu.memory_space<vmem>>, vector<1x1x512xf32>
    %311 = vector.shape_cast %310 : vector<1x1x512xf32> to vector<1x512xf32>
    %312 = vector.shape_cast %311 : vector<1x512xf32> to vector<1x1x512xf32>
    %313 = vector.broadcast %312 : vector<1x1x512xf32> to vector<8x8x512xf32>
    %314 = arith.addf %309, %313 : vector<8x8x512xf32>
    %c0_98 = arith.constant 0 : index
    %c0_99 = arith.constant 0 : index
    %c0_100 = arith.constant 0 : index
    %315 = vector.load %arg11[%c0_98, %c0_99, %c0_100] : memref<8x8x512xf32, #tpu.memory_space<vmem>>, vector<8x8x512xf32>
    tpu.vector_store %arg11[%c0_98, %c0_99, %c0_100], %314 {strides = array<i32>} : memref<8x8x512xf32, #tpu.memory_space<vmem>>, vector<8x8x512xf32>,
    %c1_101 = arith.constant 1 : index
    %c0_102 = arith.constant 0 : index
    %c0_103 = arith.constant 0 : index
    %316 = vector.load %arg4[%c1_101, %c0_102, %c0_103] : memref<2x128x512xbf16, #tpu.memory_space<vmem>>, vector<1x128x512xbf16>
    %317 = vector.shape_cast %316 : vector<1x128x512xbf16> to vector<128x512xbf16>
    %c1_104 = arith.constant 1 : index
    %c0_105 = arith.constant 0 : index
    %c0_106 = arith.constant 0 : index
    %318 = vector.load %arg6[%c1_104, %c0_105, %c0_106] : memref<2x8x128xf32, #tpu.memory_space<vmem>>, vector<1x8x128xf32>
    %319 = vector.shape_cast %318 : vector<1x8x128xf32> to vector<8x128xf32>
    %c1_107 = arith.constant 1 : index
    %c0_108 = arith.constant 0 : index
    %c0_109 = arith.constant 0 : index
    %320 = vector.load %arg7[%c1_107, %c0_108, %c0_109] : memref<2x8x128xf32, #tpu.memory_space<vmem>>, vector<1x8x128xf32>
    %321 = vector.shape_cast %320 : vector<1x8x128xf32> to vector<8x128xf32>
    %c0_i32_110 = arith.constant 0 : i32
    %322 = arith.index_cast %c0_i32_110 : i32 to index
    %c0_111 = arith.constant 0 : index
    %c0_112 = arith.constant 0 : index
    %323 = vector.load %arg11[%322, %c0_111, %c0_112] : memref<8x8x512xf32, #tpu.memory_space<vmem>>, vector<1x8x512xf32>
    %324 = vector.shape_cast %323 : vector<1x8x512xf32> to vector<8x512xf32>
    %325 = arith.truncf %319 : vector<8x128xf32> to vector<8x128xbf16>
    %cst_113 = arith.constant dense<0.000000e+00> : vector<8x512xf32>
    %326 = tpu.matmul %325, %317, %cst_113 {dimension_numbers = #tpu.dot_dimension_numbers<[1], [0], [0], [1], [0, 0, 1, 1], [], []>} : vector<8x128xbf16>, vector<128x512xbf16>, vector<8x512xf32> -> vector<8x512xf32>
    %327 = arith.addf %324, %326 : vector<8x512xf32>
    %328 = vector.extract_strided_slice %327 {offsets = [0, 0], sizes = [8, 128], strides = [1, 1]} : vector<8x512xf32> to vector<8x128xf32>
    %329 = arith.negf %328 : vector<8x128xf32>
    %330 = math.exp %329 : vector<8x128xf32>
    %cst_114 = arith.constant 1.000000e+00 : f32
    %331 = vector.broadcast %cst_114 : f32 to vector<8x128xf32>
    %332 = arith.addf %331, %330 : vector<8x128xf32>
    %333 = arith.divf %331, %332 : vector<8x128xf32>
    %334 = vector.extract_strided_slice %327 {offsets = [0, 128], sizes = [8, 128], strides = [1, 1]} : vector<8x512xf32> to vector<8x128xf32>
    %335 = arith.negf %334 : vector<8x128xf32>
    %336 = math.exp %335 : vector<8x128xf32>
    %cst_115 = arith.constant 1.000000e+00 : f32
    %337 = vector.broadcast %cst_115 : f32 to vector<8x128xf32>
    %338 = arith.addf %337, %336 : vector<8x128xf32>
    %339 = arith.divf %337, %338 : vector<8x128xf32>
    %340 = vector.extract_strided_slice %327 {offsets = [0, 256], sizes = [8, 128], strides = [1, 1]} : vector<8x512xf32> to vector<8x128xf32>
    %341 = math.tanh %340 : vector<8x128xf32>
    %342 = vector.extract_strided_slice %327 {offsets = [0, 384], sizes = [8, 128], strides = [1, 1]} : vector<8x512xf32> to vector<8x128xf32>
    %343 = arith.negf %342 : vector<8x128xf32>
    %344 = math.exp %343 : vector<8x128xf32>
    %cst_116 = arith.constant 1.000000e+00 : f32
    %345 = vector.broadcast %cst_116 : f32 to vector<8x128xf32>
    %346 = arith.addf %345, %344 : vector<8x128xf32>
    %347 = arith.divf %345, %346 : vector<8x128xf32>
    %348 = arith.mulf %339, %321 : vector<8x128xf32>
    %349 = arith.mulf %333, %341 : vector<8x128xf32>
    %350 = arith.addf %348, %349 : vector<8x128xf32>
    %351 = math.tanh %350 : vector<8x128xf32>
    %352 = arith.mulf %347, %351 : vector<8x128xf32>
    %353 = arith.index_cast %c0_i32_110 : i32 to index
    %c0_117 = arith.constant 0 : index
    %c0_118 = arith.constant 0 : index
    %354 = vector.load %arg8[%353, %c0_117, %c0_118] : memref<8x8x128xf32, #tpu.memory_space<vmem>>, vector<1x8x128xf32>
    %355 = vector.shape_cast %354 : vector<1x8x128xf32> to vector<8x128xf32>
    %356 = vector.shape_cast %352 : vector<8x128xf32> to vector<1x8x128xf32>
    tpu.vector_store %arg8[%353, %c0_117, %c0_118], %356 {strides = array<i32>} : memref<8x8x128xf32, #tpu.memory_space<vmem>>, vector<1x8x128xf32>,
    %c1_i32_119 = arith.constant 1 : i32
    %357 = arith.index_cast %c1_i32_119 : i32 to index
    %c0_120 = arith.constant 0 : index
    %c0_121 = arith.constant 0 : index
    %358 = vector.load %arg11[%357, %c0_120, %c0_121] : memref<8x8x512xf32, #tpu.memory_space<vmem>>, vector<1x8x512xf32>
    %359 = vector.shape_cast %358 : vector<1x8x512xf32> to vector<8x512xf32>
    %360 = arith.truncf %352 : vector<8x128xf32> to vector<8x128xbf16>
    %cst_122 = arith.constant dense<0.000000e+00> : vector<8x512xf32>
    %361 = tpu.matmul %360, %317, %cst_122 {dimension_numbers = #tpu.dot_dimension_numbers<[1], [0], [0], [1], [0, 0, 1, 1], [], []>} : vector<8x128xbf16>, vector<128x512xbf16>, vector<8x512xf32> -> vector<8x512xf32>
    %362 = arith.addf %359, %361 : vector<8x512xf32>
    %363 = vector.extract_strided_slice %362 {offsets = [0, 0], sizes = [8, 128], strides = [1, 1]} : vector<8x512xf32> to vector<8x128xf32>
    %364 = arith.negf %363 : vector<8x128xf32>
    %365 = math.exp %364 : vector<8x128xf32>
    %cst_123 = arith.constant 1.000000e+00 : f32
    %366 = vector.broadcast %cst_123 : f32 to vector<8x128xf32>
    %367 = arith.addf %366, %365 : vector<8x128xf32>
    %368 = arith.divf %366, %367 : vector<8x128xf32>
    %369 = vector.extract_strided_slice %362 {offsets = [0, 128], sizes = [8, 128], strides = [1, 1]} : vector<8x512xf32> to vector<8x128xf32>
    %370 = arith.negf %369 : vector<8x128xf32>
    %371 = math.exp %370 : vector<8x128xf32>
    %cst_124 = arith.constant 1.000000e+00 : f32
    %372 = vector.broadcast %cst_124 : f32 to vector<8x128xf32>
    %373 = arith.addf %372, %371 : vector<8x128xf32>
    %374 = arith.divf %372, %373 : vector<8x128xf32>
    %375 = vector.extract_strided_slice %362 {offsets = [0, 256], sizes = [8, 128], strides = [1, 1]} : vector<8x512xf32> to vector<8x128xf32>
    %376 = math.tanh %375 : vector<8x128xf32>
    %377 = vector.extract_strided_slice %362 {offsets = [0, 384], sizes = [8, 128], strides = [1, 1]} : vector<8x512xf32> to vector<8x128xf32>
    %378 = arith.negf %377 : vector<8x128xf32>
    %379 = math.exp %378 : vector<8x128xf32>
    %cst_125 = arith.constant 1.000000e+00 : f32
    %380 = vector.broadcast %cst_125 : f32 to vector<8x128xf32>
    %381 = arith.addf %380, %379 : vector<8x128xf32>
    %382 = arith.divf %380, %381 : vector<8x128xf32>
    %383 = arith.mulf %374, %350 : vector<8x128xf32>
    %384 = arith.mulf %368, %376 : vector<8x128xf32>
    %385 = arith.addf %383, %384 : vector<8x128xf32>
    %386 = math.tanh %385 : vector<8x128xf32>
    %387 = arith.mulf %382, %386 : vector<8x128xf32>
    %388 = arith.index_cast %c1_i32_119 : i32 to index
    %c0_126 = arith.constant 0 : index
    %c0_127 = arith.constant 0 : index
    %389 = vector.load %arg8[%388, %c0_126, %c0_127] : memref<8x8x128xf32, #tpu.memory_space<vmem>>, vector<1x8x128xf32>
    %390 = vector.shape_cast %389 : vector<1x8x128xf32> to vector<8x128xf32>
    %391 = vector.shape_cast %387 : vector<8x128xf32> to vector<1x8x128xf32>
    tpu.vector_store %arg8[%388, %c0_126, %c0_127], %391 {strides = array<i32>} : memref<8x8x128xf32, #tpu.memory_space<vmem>>, vector<1x8x128xf32>,
    %c2_i32_128 = arith.constant 2 : i32
    %392 = arith.index_cast %c2_i32_128 : i32 to index
    %c0_129 = arith.constant 0 : index
    %c0_130 = arith.constant 0 : index
    %393 = vector.load %arg11[%392, %c0_129, %c0_130] : memref<8x8x512xf32, #tpu.memory_space<vmem>>, vector<1x8x512xf32>
    %394 = vector.shape_cast %393 : vector<1x8x512xf32> to vector<8x512xf32>
    %395 = arith.truncf %387 : vector<8x128xf32> to vector<8x128xbf16>
    %cst_131 = arith.constant dense<0.000000e+00> : vector<8x512xf32>
    %396 = tpu.matmul %395, %317, %cst_131 {dimension_numbers = #tpu.dot_dimension_numbers<[1], [0], [0], [1], [0, 0, 1, 1], [], []>} : vector<8x128xbf16>, vector<128x512xbf16>, vector<8x512xf32> -> vector<8x512xf32>
    %397 = arith.addf %394, %396 : vector<8x512xf32>
    %398 = vector.extract_strided_slice %397 {offsets = [0, 0], sizes = [8, 128], strides = [1, 1]} : vector<8x512xf32> to vector<8x128xf32>
    %399 = arith.negf %398 : vector<8x128xf32>
    %400 = math.exp %399 : vector<8x128xf32>
    %cst_132 = arith.constant 1.000000e+00 : f32
    %401 = vector.broadcast %cst_132 : f32 to vector<8x128xf32>
    %402 = arith.addf %401, %400 : vector<8x128xf32>
    %403 = arith.divf %401, %402 : vector<8x128xf32>
    %404 = vector.extract_strided_slice %397 {offsets = [0, 128], sizes = [8, 128], strides = [1, 1]} : vector<8x512xf32> to vector<8x128xf32>
    %405 = arith.negf %404 : vector<8x128xf32>
    %406 = math.exp %405 : vector<8x128xf32>
    %cst_133 = arith.constant 1.000000e+00 : f32
    %407 = vector.broadcast %cst_133 : f32 to vector<8x128xf32>
    %408 = arith.addf %407, %406 : vector<8x128xf32>
    %409 = arith.divf %407, %408 : vector<8x128xf32>
    %410 = vector.extract_strided_slice %397 {offsets = [0, 256], sizes = [8, 128], strides = [1, 1]} : vector<8x512xf32> to vector<8x128xf32>
    %411 = math.tanh %410 : vector<8x128xf32>
    %412 = vector.extract_strided_slice %397 {offsets = [0, 384], sizes = [8, 128], strides = [1, 1]} : vector<8x512xf32> to vector<8x128xf32>
    %413 = arith.negf %412 : vector<8x128xf32>
    %414 = math.exp %413 : vector<8x128xf32>
    %cst_134 = arith.constant 1.000000e+00 : f32
    %415 = vector.broadcast %cst_134 : f32 to vector<8x128xf32>
    %416 = arith.addf %415, %414 : vector<8x128xf32>
    %417 = arith.divf %415, %416 : vector<8x128xf32>
    %418 = arith.mulf %409, %385 : vector<8x128xf32>
    %419 = arith.mulf %403, %411 : vector<8x128xf32>
    %420 = arith.addf %418, %419 : vector<8x128xf32>
    %421 = math.tanh %420 : vector<8x128xf32>
    %422 = arith.mulf %417, %421 : vector<8x128xf32>
    %423 = arith.index_cast %c2_i32_128 : i32 to index
    %c0_135 = arith.constant 0 : index
    %c0_136 = arith.constant 0 : index
    %424 = vector.load %arg8[%423, %c0_135, %c0_136] : memref<8x8x128xf32, #tpu.memory_space<vmem>>, vector<1x8x128xf32>
    %425 = vector.shape_cast %424 : vector<1x8x128xf32> to vector<8x128xf32>
    %426 = vector.shape_cast %422 : vector<8x128xf32> to vector<1x8x128xf32>
    tpu.vector_store %arg8[%423, %c0_135, %c0_136], %426 {strides = array<i32>} : memref<8x8x128xf32, #tpu.memory_space<vmem>>, vector<1x8x128xf32>,
    %c3_i32_137 = arith.constant 3 : i32
    %427 = arith.index_cast %c3_i32_137 : i32 to index
    %c0_138 = arith.constant 0 : index
    %c0_139 = arith.constant 0 : index
    %428 = vector.load %arg11[%427, %c0_138, %c0_139] : memref<8x8x512xf32, #tpu.memory_space<vmem>>, vector<1x8x512xf32>
    %429 = vector.shape_cast %428 : vector<1x8x512xf32> to vector<8x512xf32>
    %430 = arith.truncf %422 : vector<8x128xf32> to vector<8x128xbf16>
    %cst_140 = arith.constant dense<0.000000e+00> : vector<8x512xf32>
    %431 = tpu.matmul %430, %317, %cst_140 {dimension_numbers = #tpu.dot_dimension_numbers<[1], [0], [0], [1], [0, 0, 1, 1], [], []>} : vector<8x128xbf16>, vector<128x512xbf16>, vector<8x512xf32> -> vector<8x512xf32>
    %432 = arith.addf %429, %431 : vector<8x512xf32>
    %433 = vector.extract_strided_slice %432 {offsets = [0, 0], sizes = [8, 128], strides = [1, 1]} : vector<8x512xf32> to vector<8x128xf32>
    %434 = arith.negf %433 : vector<8x128xf32>
    %435 = math.exp %434 : vector<8x128xf32>
    %cst_141 = arith.constant 1.000000e+00 : f32
    %436 = vector.broadcast %cst_141 : f32 to vector<8x128xf32>
    %437 = arith.addf %436, %435 : vector<8x128xf32>
    %438 = arith.divf %436, %437 : vector<8x128xf32>
    %439 = vector.extract_strided_slice %432 {offsets = [0, 128], sizes = [8, 128], strides = [1, 1]} : vector<8x512xf32> to vector<8x128xf32>
    %440 = arith.negf %439 : vector<8x128xf32>
    %441 = math.exp %440 : vector<8x128xf32>
    %cst_142 = arith.constant 1.000000e+00 : f32
    %442 = vector.broadcast %cst_142 : f32 to vector<8x128xf32>
    %443 = arith.addf %442, %441 : vector<8x128xf32>
    %444 = arith.divf %442, %443 : vector<8x128xf32>
    %445 = vector.extract_strided_slice %432 {offsets = [0, 256], sizes = [8, 128], strides = [1, 1]} : vector<8x512xf32> to vector<8x128xf32>
    %446 = math.tanh %445 : vector<8x128xf32>
    %447 = vector.extract_strided_slice %432 {offsets = [0, 384], sizes = [8, 128], strides = [1, 1]} : vector<8x512xf32> to vector<8x128xf32>
    %448 = arith.negf %447 : vector<8x128xf32>
    %449 = math.exp %448 : vector<8x128xf32>
    %cst_143 = arith.constant 1.000000e+00 : f32
    %450 = vector.broadcast %cst_143 : f32 to vector<8x128xf32>
    %451 = arith.addf %450, %449 : vector<8x128xf32>
    %452 = arith.divf %450, %451 : vector<8x128xf32>
    %453 = arith.mulf %444, %420 : vector<8x128xf32>
    %454 = arith.mulf %438, %446 : vector<8x128xf32>
    %455 = arith.addf %453, %454 : vector<8x128xf32>
    %456 = math.tanh %455 : vector<8x128xf32>
    %457 = arith.mulf %452, %456 : vector<8x128xf32>
    %458 = arith.index_cast %c3_i32_137 : i32 to index
    %c0_144 = arith.constant 0 : index
    %c0_145 = arith.constant 0 : index
    %459 = vector.load %arg8[%458, %c0_144, %c0_145] : memref<8x8x128xf32, #tpu.memory_space<vmem>>, vector<1x8x128xf32>
    %460 = vector.shape_cast %459 : vector<1x8x128xf32> to vector<8x128xf32>
    %461 = vector.shape_cast %457 : vector<8x128xf32> to vector<1x8x128xf32>
    tpu.vector_store %arg8[%458, %c0_144, %c0_145], %461 {strides = array<i32>} : memref<8x8x128xf32, #tpu.memory_space<vmem>>, vector<1x8x128xf32>,
    %c4_i32_146 = arith.constant 4 : i32
    %462 = arith.index_cast %c4_i32_146 : i32 to index
    %c0_147 = arith.constant 0 : index
    %c0_148 = arith.constant 0 : index
    %463 = vector.load %arg11[%462, %c0_147, %c0_148] : memref<8x8x512xf32, #tpu.memory_space<vmem>>, vector<1x8x512xf32>
    %464 = vector.shape_cast %463 : vector<1x8x512xf32> to vector<8x512xf32>
    %465 = arith.truncf %457 : vector<8x128xf32> to vector<8x128xbf16>
    %cst_149 = arith.constant dense<0.000000e+00> : vector<8x512xf32>
    %466 = tpu.matmul %465, %317, %cst_149 {dimension_numbers = #tpu.dot_dimension_numbers<[1], [0], [0], [1], [0, 0, 1, 1], [], []>} : vector<8x128xbf16>, vector<128x512xbf16>, vector<8x512xf32> -> vector<8x512xf32>
    %467 = arith.addf %464, %466 : vector<8x512xf32>
    %468 = vector.extract_strided_slice %467 {offsets = [0, 0], sizes = [8, 128], strides = [1, 1]} : vector<8x512xf32> to vector<8x128xf32>
    %469 = arith.negf %468 : vector<8x128xf32>
    %470 = math.exp %469 : vector<8x128xf32>
    %cst_150 = arith.constant 1.000000e+00 : f32
    %471 = vector.broadcast %cst_150 : f32 to vector<8x128xf32>
    %472 = arith.addf %471, %470 : vector<8x128xf32>
    %473 = arith.divf %471, %472 : vector<8x128xf32>
    %474 = vector.extract_strided_slice %467 {offsets = [0, 128], sizes = [8, 128], strides = [1, 1]} : vector<8x512xf32> to vector<8x128xf32>
    %475 = arith.negf %474 : vector<8x128xf32>
    %476 = math.exp %475 : vector<8x128xf32>
    %cst_151 = arith.constant 1.000000e+00 : f32
    %477 = vector.broadcast %cst_151 : f32 to vector<8x128xf32>
    %478 = arith.addf %477, %476 : vector<8x128xf32>
    %479 = arith.divf %477, %478 : vector<8x128xf32>
    %480 = vector.extract_strided_slice %467 {offsets = [0, 256], sizes = [8, 128], strides = [1, 1]} : vector<8x512xf32> to vector<8x128xf32>
    %481 = math.tanh %480 : vector<8x128xf32>
    %482 = vector.extract_strided_slice %467 {offsets = [0, 384], sizes = [8, 128], strides = [1, 1]} : vector<8x512xf32> to vector<8x128xf32>
    %483 = arith.negf %482 : vector<8x128xf32>
    %484 = math.exp %483 : vector<8x128xf32>
    %cst_152 = arith.constant 1.000000e+00 : f32
    %485 = vector.broadcast %cst_152 : f32 to vector<8x128xf32>
    %486 = arith.addf %485, %484 : vector<8x128xf32>
    %487 = arith.divf %485, %486 : vector<8x128xf32>
    %488 = arith.mulf %479, %455 : vector<8x128xf32>
    %489 = arith.mulf %473, %481 : vector<8x128xf32>
    %490 = arith.addf %488, %489 : vector<8x128xf32>
    %491 = math.tanh %490 : vector<8x128xf32>
    %492 = arith.mulf %487, %491 : vector<8x128xf32>
    %493 = arith.index_cast %c4_i32_146 : i32 to index
    %c0_153 = arith.constant 0 : index
    %c0_154 = arith.constant 0 : index
    %494 = vector.load %arg8[%493, %c0_153, %c0_154] : memref<8x8x128xf32, #tpu.memory_space<vmem>>, vector<1x8x128xf32>
    %495 = vector.shape_cast %494 : vector<1x8x128xf32> to vector<8x128xf32>
    %496 = vector.shape_cast %492 : vector<8x128xf32> to vector<1x8x128xf32>
    tpu.vector_store %arg8[%493, %c0_153, %c0_154], %496 {strides = array<i32>} : memref<8x8x128xf32, #tpu.memory_space<vmem>>, vector<1x8x128xf32>,
    %c5_i32_155 = arith.constant 5 : i32
    %497 = arith.index_cast %c5_i32_155 : i32 to index
    %c0_156 = arith.constant 0 : index
    %c0_157 = arith.constant 0 : index
    %498 = vector.load %arg11[%497, %c0_156, %c0_157] : memref<8x8x512xf32, #tpu.memory_space<vmem>>, vector<1x8x512xf32>
    %499 = vector.shape_cast %498 : vector<1x8x512xf32> to vector<8x512xf32>
    %500 = arith.truncf %492 : vector<8x128xf32> to vector<8x128xbf16>
    %cst_158 = arith.constant dense<0.000000e+00> : vector<8x512xf32>
    %501 = tpu.matmul %500, %317, %cst_158 {dimension_numbers = #tpu.dot_dimension_numbers<[1], [0], [0], [1], [0, 0, 1, 1], [], []>} : vector<8x128xbf16>, vector<128x512xbf16>, vector<8x512xf32> -> vector<8x512xf32>
    %502 = arith.addf %499, %501 : vector<8x512xf32>
    %503 = vector.extract_strided_slice %502 {offsets = [0, 0], sizes = [8, 128], strides = [1, 1]} : vector<8x512xf32> to vector<8x128xf32>
    %504 = arith.negf %503 : vector<8x128xf32>
    %505 = math.exp %504 : vector<8x128xf32>
    %cst_159 = arith.constant 1.000000e+00 : f32
    %506 = vector.broadcast %cst_159 : f32 to vector<8x128xf32>
    %507 = arith.addf %506, %505 : vector<8x128xf32>
    %508 = arith.divf %506, %507 : vector<8x128xf32>
    %509 = vector.extract_strided_slice %502 {offsets = [0, 128], sizes = [8, 128], strides = [1, 1]} : vector<8x512xf32> to vector<8x128xf32>
    %510 = arith.negf %509 : vector<8x128xf32>
    %511 = math.exp %510 : vector<8x128xf32>
    %cst_160 = arith.constant 1.000000e+00 : f32
    %512 = vector.broadcast %cst_160 : f32 to vector<8x128xf32>
    %513 = arith.addf %512, %511 : vector<8x128xf32>
    %514 = arith.divf %512, %513 : vector<8x128xf32>
    %515 = vector.extract_strided_slice %502 {offsets = [0, 256], sizes = [8, 128], strides = [1, 1]} : vector<8x512xf32> to vector<8x128xf32>
    %516 = math.tanh %515 : vector<8x128xf32>
    %517 = vector.extract_strided_slice %502 {offsets = [0, 384], sizes = [8, 128], strides = [1, 1]} : vector<8x512xf32> to vector<8x128xf32>
    %518 = arith.negf %517 : vector<8x128xf32>
    %519 = math.exp %518 : vector<8x128xf32>
    %cst_161 = arith.constant 1.000000e+00 : f32
    %520 = vector.broadcast %cst_161 : f32 to vector<8x128xf32>
    %521 = arith.addf %520, %519 : vector<8x128xf32>
    %522 = arith.divf %520, %521 : vector<8x128xf32>
    %523 = arith.mulf %514, %490 : vector<8x128xf32>
    %524 = arith.mulf %508, %516 : vector<8x128xf32>
    %525 = arith.addf %523, %524 : vector<8x128xf32>
    %526 = math.tanh %525 : vector<8x128xf32>
    %527 = arith.mulf %522, %526 : vector<8x128xf32>
    %528 = arith.index_cast %c5_i32_155 : i32 to index
    %c0_162 = arith.constant 0 : index
    %c0_163 = arith.constant 0 : index
    %529 = vector.load %arg8[%528, %c0_162, %c0_163] : memref<8x8x128xf32, #tpu.memory_space<vmem>>, vector<1x8x128xf32>
    %530 = vector.shape_cast %529 : vector<1x8x128xf32> to vector<8x128xf32>
    %531 = vector.shape_cast %527 : vector<8x128xf32> to vector<1x8x128xf32>
    tpu.vector_store %arg8[%528, %c0_162, %c0_163], %531 {strides = array<i32>} : memref<8x8x128xf32, #tpu.memory_space<vmem>>, vector<1x8x128xf32>,
    %c6_i32_164 = arith.constant 6 : i32
    %532 = arith.index_cast %c6_i32_164 : i32 to index
    %c0_165 = arith.constant 0 : index
    %c0_166 = arith.constant 0 : index
    %533 = vector.load %arg11[%532, %c0_165, %c0_166] : memref<8x8x512xf32, #tpu.memory_space<vmem>>, vector<1x8x512xf32>
    %534 = vector.shape_cast %533 : vector<1x8x512xf32> to vector<8x512xf32>
    %535 = arith.truncf %527 : vector<8x128xf32> to vector<8x128xbf16>
    %cst_167 = arith.constant dense<0.000000e+00> : vector<8x512xf32>
    %536 = tpu.matmul %535, %317, %cst_167 {dimension_numbers = #tpu.dot_dimension_numbers<[1], [0], [0], [1], [0, 0, 1, 1], [], []>} : vector<8x128xbf16>, vector<128x512xbf16>, vector<8x512xf32> -> vector<8x512xf32>
    %537 = arith.addf %534, %536 : vector<8x512xf32>
    %538 = vector.extract_strided_slice %537 {offsets = [0, 0], sizes = [8, 128], strides = [1, 1]} : vector<8x512xf32> to vector<8x128xf32>
    %539 = arith.negf %538 : vector<8x128xf32>
    %540 = math.exp %539 : vector<8x128xf32>
    %cst_168 = arith.constant 1.000000e+00 : f32
    %541 = vector.broadcast %cst_168 : f32 to vector<8x128xf32>
    %542 = arith.addf %541, %540 : vector<8x128xf32>
    %543 = arith.divf %541, %542 : vector<8x128xf32>
    %544 = vector.extract_strided_slice %537 {offsets = [0, 128], sizes = [8, 128], strides = [1, 1]} : vector<8x512xf32> to vector<8x128xf32>
    %545 = arith.negf %544 : vector<8x128xf32>
    %546 = math.exp %545 : vector<8x128xf32>
    %cst_169 = arith.constant 1.000000e+00 : f32
    %547 = vector.broadcast %cst_169 : f32 to vector<8x128xf32>
    %548 = arith.addf %547, %546 : vector<8x128xf32>
    %549 = arith.divf %547, %548 : vector<8x128xf32>
    %550 = vector.extract_strided_slice %537 {offsets = [0, 256], sizes = [8, 128], strides = [1, 1]} : vector<8x512xf32> to vector<8x128xf32>
    %551 = math.tanh %550 : vector<8x128xf32>
    %552 = vector.extract_strided_slice %537 {offsets = [0, 384], sizes = [8, 128], strides = [1, 1]} : vector<8x512xf32> to vector<8x128xf32>
    %553 = arith.negf %552 : vector<8x128xf32>
    %554 = math.exp %553 : vector<8x128xf32>
    %cst_170 = arith.constant 1.000000e+00 : f32
    %555 = vector.broadcast %cst_170 : f32 to vector<8x128xf32>
    %556 = arith.addf %555, %554 : vector<8x128xf32>
    %557 = arith.divf %555, %556 : vector<8x128xf32>
    %558 = arith.mulf %549, %525 : vector<8x128xf32>
    %559 = arith.mulf %543, %551 : vector<8x128xf32>
    %560 = arith.addf %558, %559 : vector<8x128xf32>
    %561 = math.tanh %560 : vector<8x128xf32>
    %562 = arith.mulf %557, %561 : vector<8x128xf32>
    %563 = arith.index_cast %c6_i32_164 : i32 to index
    %c0_171 = arith.constant 0 : index
    %c0_172 = arith.constant 0 : index
    %564 = vector.load %arg8[%563, %c0_171, %c0_172] : memref<8x8x128xf32, #tpu.memory_space<vmem>>, vector<1x8x128xf32>
    %565 = vector.shape_cast %564 : vector<1x8x128xf32> to vector<8x128xf32>
    %566 = vector.shape_cast %562 : vector<8x128xf32> to vector<1x8x128xf32>
    tpu.vector_store %arg8[%563, %c0_171, %c0_172], %566 {strides = array<i32>} : memref<8x8x128xf32, #tpu.memory_space<vmem>>, vector<1x8x128xf32>,
    %c7_i32_173 = arith.constant 7 : i32
    %567 = arith.index_cast %c7_i32_173 : i32 to index
    %c0_174 = arith.constant 0 : index
    %c0_175 = arith.constant 0 : index
    %568 = vector.load %arg11[%567, %c0_174, %c0_175] : memref<8x8x512xf32, #tpu.memory_space<vmem>>, vector<1x8x512xf32>
    %569 = vector.shape_cast %568 : vector<1x8x512xf32> to vector<8x512xf32>
    %570 = arith.truncf %562 : vector<8x128xf32> to vector<8x128xbf16>
    %cst_176 = arith.constant dense<0.000000e+00> : vector<8x512xf32>
    %571 = tpu.matmul %570, %317, %cst_176 {dimension_numbers = #tpu.dot_dimension_numbers<[1], [0], [0], [1], [0, 0, 1, 1], [], []>} : vector<8x128xbf16>, vector<128x512xbf16>, vector<8x512xf32> -> vector<8x512xf32>
    %572 = arith.addf %569, %571 : vector<8x512xf32>
    %573 = vector.extract_strided_slice %572 {offsets = [0, 0], sizes = [8, 128], strides = [1, 1]} : vector<8x512xf32> to vector<8x128xf32>
    %574 = arith.negf %573 : vector<8x128xf32>
    %575 = math.exp %574 : vector<8x128xf32>
    %cst_177 = arith.constant 1.000000e+00 : f32
    %576 = vector.broadcast %cst_177 : f32 to vector<8x128xf32>
    %577 = arith.addf %576, %575 : vector<8x128xf32>
    %578 = arith.divf %576, %577 : vector<8x128xf32>
    %579 = vector.extract_strided_slice %572 {offsets = [0, 128], sizes = [8, 128], strides = [1, 1]} : vector<8x512xf32> to vector<8x128xf32>
    %580 = arith.negf %579 : vector<8x128xf32>
    %581 = math.exp %580 : vector<8x128xf32>
    %cst_178 = arith.constant 1.000000e+00 : f32
    %582 = vector.broadcast %cst_178 : f32 to vector<8x128xf32>
    %583 = arith.addf %582, %581 : vector<8x128xf32>
    %584 = arith.divf %582, %583 : vector<8x128xf32>
    %585 = vector.extract_strided_slice %572 {offsets = [0, 256], sizes = [8, 128], strides = [1, 1]} : vector<8x512xf32> to vector<8x128xf32>
    %586 = math.tanh %585 : vector<8x128xf32>
    %587 = vector.extract_strided_slice %572 {offsets = [0, 384], sizes = [8, 128], strides = [1, 1]} : vector<8x512xf32> to vector<8x128xf32>
    %588 = arith.negf %587 : vector<8x128xf32>
    %589 = math.exp %588 : vector<8x128xf32>
    %cst_179 = arith.constant 1.000000e+00 : f32
    %590 = vector.broadcast %cst_179 : f32 to vector<8x128xf32>
    %591 = arith.addf %590, %589 : vector<8x128xf32>
    %592 = arith.divf %590, %591 : vector<8x128xf32>
    %593 = arith.mulf %584, %560 : vector<8x128xf32>
    %594 = arith.mulf %578, %586 : vector<8x128xf32>
    %595 = arith.addf %593, %594 : vector<8x128xf32>
    %596 = math.tanh %595 : vector<8x128xf32>
    %597 = arith.mulf %592, %596 : vector<8x128xf32>
    %598 = arith.index_cast %c7_i32_173 : i32 to index
    %c0_180 = arith.constant 0 : index
    %c0_181 = arith.constant 0 : index
    %599 = vector.load %arg8[%598, %c0_180, %c0_181] : memref<8x8x128xf32, #tpu.memory_space<vmem>>, vector<1x8x128xf32>
    %600 = vector.shape_cast %599 : vector<1x8x128xf32> to vector<8x128xf32>
    %601 = vector.shape_cast %597 : vector<8x128xf32> to vector<1x8x128xf32>
    tpu.vector_store %arg8[%598, %c0_180, %c0_181], %601 {strides = array<i32>} : memref<8x8x128xf32, #tpu.memory_space<vmem>>, vector<1x8x128xf32>,
    %c8_i32_182 = arith.constant 8 : i32
    %c1_183 = arith.constant 1 : index
    %c0_184 = arith.constant 0 : index
    %c0_185 = arith.constant 0 : index
    %602 = vector.load %arg9[%c1_183, %c0_184, %c0_185] : memref<2x8x128xf32, #tpu.memory_space<vmem>>, vector<1x8x128xf32>
    %603 = vector.shape_cast %602 : vector<1x8x128xf32> to vector<8x128xf32>
    %604 = vector.shape_cast %597 : vector<8x128xf32> to vector<1x8x128xf32>
    tpu.vector_store %arg9[%c1_183, %c0_184, %c0_185], %604 {strides = array<i32>} : memref<2x8x128xf32, #tpu.memory_space<vmem>>, vector<1x8x128xf32>,
    %c1_186 = arith.constant 1 : index
    %c0_187 = arith.constant 0 : index
    %c0_188 = arith.constant 0 : index
    %605 = vector.load %arg10[%c1_186, %c0_187, %c0_188] : memref<2x8x128xf32, #tpu.memory_space<vmem>>, vector<1x8x128xf32>
    %606 = vector.shape_cast %605 : vector<1x8x128xf32> to vector<8x128xf32>
    %607 = vector.shape_cast %595 : vector<8x128xf32> to vector<1x8x128xf32>
    tpu.vector_store %arg10[%c1_186, %c0_187, %c0_188], %607 {strides = array<i32>} : memref<2x8x128xf32, #tpu.memory_space<vmem>>, vector<1x8x128xf32>,
    return
  }
  func.func @transform_0(%arg0: i32) -> (i32, i32, i32) {
    %c0_i32 = arith.constant 0 : i32
    %c0_i32_0 = arith.constant 0 : i32
    %c0_i32_1 = arith.constant 0 : i32
    return %c0_i32, %arg0, %c0_i32_0 : i32, i32, i32
  }
  func.func @transform_1(%arg0: i32) -> (i32, i32) {
    %c0_i32 = arith.constant 0 : i32
    %c0_i32_0 = arith.constant 0 : i32
    %c0_i32_1 = arith.constant 0 : i32
    return %c0_i32, %c0_i32_0 : i32, i32
  }
  func.func @transform_2(%arg0: i32) -> (i32, i32, i32) {
    %c0_i32 = arith.constant 0 : i32
    %c0_i32_0 = arith.constant 0 : i32
    %c0_i32_1 = arith.constant 0 : i32
    %c0_i32_2 = arith.constant 0 : i32
    return %c0_i32, %c0_i32_0, %c0_i32_1 : i32, i32, i32
  }
  func.func @transform_3(%arg0: i32) -> (i32, i32, i32) {
    %c0_i32 = arith.constant 0 : i32
    %c0_i32_0 = arith.constant 0 : i32
    %c0_i32_1 = arith.constant 0 : i32
    %c0_i32_2 = arith.constant 0 : i32
    return %c0_i32, %c0_i32_0, %c0_i32_1 : i32, i32, i32
  }
  func.func @transform_4(%arg0: i32) -> (i32, i32, i32) {
    %c0_i32 = arith.constant 0 : i32
    %c0_i32_0 = arith.constant 0 : i32
    %c0_i32_1 = arith.constant 0 : i32
    %c0_i32_2 = arith.constant 0 : i32
    return %c0_i32, %c0_i32_0, %c0_i32_1 : i32, i32, i32
  }
  func.func @transform_5(%arg0: i32) -> (i32, i32, i32) {
    %c0_i32 = arith.constant 0 : i32
    %c0_i32_0 = arith.constant 0 : i32
    %c0_i32_1 = arith.constant 0 : i32
    return %c0_i32, %arg0, %c0_i32_0 : i32, i32, i32
  }
  func.func @transform_6(%arg0: i32) -> (i32, i32, i32) {
    %c0_i32 = arith.constant 0 : i32
    %c0_i32_0 = arith.constant 0 : i32
    %c0_i32_1 = arith.constant 0 : i32
    return %c0_i32, %arg0, %c0_i32_0 : i32, i32, i32
  }
  func.func @transform_7(%arg0: i32) -> (i32, i32, i32) {
    %c0_i32 = arith.constant 0 : i32
    %c0_i32_0 = arith.constant 0 : i32
    %c0_i32_1 = arith.constant 0 : i32
    return %c0_i32, %arg0, %c0_i32_0 : i32, i32, i32
  }
  func.func @transform_8(%arg0: i32) -> (i32, i32, i32) {
    %c0_i32 = arith.constant 0 : i32
    %c0_i32_0 = arith.constant 0 : i32
    %c0_i32_1 = arith.constant 0 : i32
    return %c0_i32, %arg0, %c0_i32_0 : i32, i32, i32
  }
  func.func @transform_9(%arg0: i32) -> (i32, i32, i32) {
    %c0_i32 = arith.constant 0 : i32
    %c0_i32_0 = arith.constant 0 : i32
    %c0_i32_1 = arith.constant 0 : i32
    return %c0_i32, %arg0, %c0_i32_0 : i32, i32, i32
  }
}

module attributes {stable_mosaic.version = 11 : i64} {
  func.func @_fused_lstm_kernel(%arg0: i32, %arg1: memref<8x8x64xbf16, #tpu.memory_space<vmem>>, %arg2: memref<64x512xbf16, #tpu.memory_space<vmem>>, %arg3: memref<1x128x512xbf16, #tpu.memory_space<vmem>>, %arg4: memref<2x128x512xbf16, #tpu.memory_space<vmem>>, %arg5: memref<2x1x512xf32, #tpu.memory_space<vmem>>, %arg6: memref<2x8x128xf32, #tpu.memory_space<vmem>>, %arg7: memref<2x8x128xf32, #tpu.memory_space<vmem>>, %arg8: memref<8x8x128xf32, #tpu.memory_space<vmem>>, %arg9: memref<2x8x128xf32, #tpu.memory_space<vmem>>, %arg10: memref<2x8x128xf32, #tpu.memory_space<vmem>>, %arg11: memref<8x8x512xf32, #tpu.memory_space<vmem>>) attributes {dimension_semantics = [#tpu.dimension_semantics<parallel>], iteration_bounds = array<i64: 1>, scalar_prefetch = 0 : i64, scratch_operands = 1 : i64, tpu.core_type = #tpu.core_type<tc>, window_params = [{transform_indices = @transform_0, window_bounds = array<i64: 8, 8, 64>}, {pipeline_mode = #tpu.pipeline_mode<synchronous>, transform_indices = @transform_1, window_bounds = array<i64: 64, 512>}, {pipeline_mode = #tpu.pipeline_mode<synchronous>, transform_indices = @transform_2, window_bounds = array<i64: 1, 128, 512>}, {pipeline_mode = #tpu.pipeline_mode<synchronous>, transform_indices = @transform_3, window_bounds = array<i64: 2, 128, 512>}, {pipeline_mode = #tpu.pipeline_mode<synchronous>, transform_indices = @transform_4, window_bounds = array<i64: 2, 1, 512>}, {transform_indices = @transform_5, window_bounds = array<i64: 2, 8, 128>}, {transform_indices = @transform_6, window_bounds = array<i64: 2, 8, 128>}, {transform_indices = @transform_7, window_bounds = array<i64: 8, 8, 128>}, {transform_indices = @transform_8, window_bounds = array<i64: 2, 8, 128>}, {transform_indices = @transform_9, window_bounds = array<i64: 2, 8, 128>}]} {
    %c0 = arith.constant 0 : index
    %c0_0 = arith.constant 0 : index
    %c0_1 = arith.constant 0 : index
    %0 = vector.load %arg1[%c0, %c0_0, %c0_1] : memref<8x8x64xbf16, #tpu.memory_space<vmem>>, vector<8x8x64xbf16>
    %1 = vector.shape_cast %0 : vector<8x8x64xbf16> to vector<64x64xbf16>
    %c0_2 = arith.constant 0 : index
    %c0_3 = arith.constant 0 : index
    %2 = vector.load %arg2[%c0_2, %c0_3] : memref<64x512xbf16, #tpu.memory_space<vmem>>, vector<64x512xbf16>
    %cst = arith.constant dense<0.000000e+00> : vector<64x512xf32>
    %3 = tpu.matmul %1, %2, %cst {dimension_numbers = #tpu.dot_dimension_numbers<[1], [0], [0], [1], [0, 0, 1, 1], [], []>} : vector<64x64xbf16>, vector<64x512xbf16>, vector<64x512xf32> -> vector<64x512xf32>
    %4 = vector.shape_cast %3 : vector<64x512xf32> to vector<8x8x512xf32>
    %c0_4 = arith.constant 0 : index
    %c0_5 = arith.constant 0 : index
    %c0_6 = arith.constant 0 : index
    %5 = vector.load %arg5[%c0_4, %c0_5, %c0_6] : memref<2x1x512xf32, #tpu.memory_space<vmem>>, vector<1x1x512xf32>
    %6 = vector.shape_cast %5 : vector<1x1x512xf32> to vector<1x512xf32>
    %7 = vector.shape_cast %6 : vector<1x512xf32> to vector<1x1x512xf32>
    %8 = vector.broadcast %7 : vector<1x1x512xf32> to vector<8x8x512xf32>
    %9 = arith.addf %4, %8 : vector<8x8x512xf32>
    %c0_7 = arith.constant 0 : index
    %c0_8 = arith.constant 0 : index
    %c0_9 = arith.constant 0 : index
    %10 = vector.load %arg11[%c0_7, %c0_8, %c0_9] : memref<8x8x512xf32, #tpu.memory_space<vmem>>, vector<8x8x512xf32>
    tpu.vector_store %arg11[%c0_7, %c0_8, %c0_9], %9 {strides = array<i32>} : memref<8x8x512xf32, #tpu.memory_space<vmem>>, vector<8x8x512xf32>,
    %c0_10 = arith.constant 0 : index
    %c0_11 = arith.constant 0 : index
    %c0_12 = arith.constant 0 : index
    %11 = vector.load %arg4[%c0_10, %c0_11, %c0_12] : memref<2x128x512xbf16, #tpu.memory_space<vmem>>, vector<1x128x512xbf16>
    %12 = vector.shape_cast %11 : vector<1x128x512xbf16> to vector<128x512xbf16>
    %c0_13 = arith.constant 0 : index
    %c0_14 = arith.constant 0 : index
    %c0_15 = arith.constant 0 : index
    %13 = vector.load %arg6[%c0_13, %c0_14, %c0_15] : memref<2x8x128xf32, #tpu.memory_space<vmem>>, vector<1x8x128xf32>
    %14 = vector.shape_cast %13 : vector<1x8x128xf32> to vector<8x128xf32>
    %c0_16 = arith.constant 0 : index
    %c0_17 = arith.constant 0 : index
    %c0_18 = arith.constant 0 : index
    %15 = vector.load %arg7[%c0_16, %c0_17, %c0_18] : memref<2x8x128xf32, #tpu.memory_space<vmem>>, vector<1x8x128xf32>
    %16 = vector.shape_cast %15 : vector<1x8x128xf32> to vector<8x128xf32>
    %c0_i32 = arith.constant 0 : i32
    %17 = arith.index_cast %c0_i32 : i32 to index
    %c0_19 = arith.constant 0 : index
    %c0_20 = arith.constant 0 : index
    %18 = vector.load %arg11[%17, %c0_19, %c0_20] : memref<8x8x512xf32, #tpu.memory_space<vmem>>, vector<1x8x512xf32>
    %19 = vector.shape_cast %18 : vector<1x8x512xf32> to vector<8x512xf32>
    %20 = arith.truncf %14 : vector<8x128xf32> to vector<8x128xbf16>
    %cst_21 = arith.constant dense<0.000000e+00> : vector<8x512xf32>
    %21 = tpu.matmul %20, %12, %cst_21 {dimension_numbers = #tpu.dot_dimension_numbers<[1], [0], [0], [1], [0, 0, 1, 1], [], []>} : vector<8x128xbf16>, vector<128x512xbf16>, vector<8x512xf32> -> vector<8x512xf32>
    %22 = arith.addf %19, %21 : vector<8x512xf32>
    %23 = vector.extract_strided_slice %22 {offsets = [0, 0], sizes = [8, 128], strides = [1, 1]} : vector<8x512xf32> to vector<8x128xf32>
    %24 = arith.negf %23 : vector<8x128xf32>
    %25 = math.exp %24 : vector<8x128xf32>
    %cst_22 = arith.constant 1.000000e+00 : f32
    %26 = vector.broadcast %cst_22 : f32 to vector<8x128xf32>
    %27 = arith.addf %26, %25 : vector<8x128xf32>
    %28 = arith.divf %26, %27 : vector<8x128xf32>
    %29 = vector.extract_strided_slice %22 {offsets = [0, 128], sizes = [8, 128], strides = [1, 1]} : vector<8x512xf32> to vector<8x128xf32>
    %30 = arith.negf %29 : vector<8x128xf32>
    %31 = math.exp %30 : vector<8x128xf32>
    %cst_23 = arith.constant 1.000000e+00 : f32
    %32 = vector.broadcast %cst_23 : f32 to vector<8x128xf32>
    %33 = arith.addf %32, %31 : vector<8x128xf32>
    %34 = arith.divf %32, %33 : vector<8x128xf32>
    %35 = vector.extract_strided_slice %22 {offsets = [0, 256], sizes = [8, 128], strides = [1, 1]} : vector<8x512xf32> to vector<8x128xf32>
    %36 = math.tanh %35 : vector<8x128xf32>
    %37 = vector.extract_strided_slice %22 {offsets = [0, 384], sizes = [8, 128], strides = [1, 1]} : vector<8x512xf32> to vector<8x128xf32>
    %38 = arith.negf %37 : vector<8x128xf32>
    %39 = math.exp %38 : vector<8x128xf32>
    %cst_24 = arith.constant 1.000000e+00 : f32
    %40 = vector.broadcast %cst_24 : f32 to vector<8x128xf32>
    %41 = arith.addf %40, %39 : vector<8x128xf32>
    %42 = arith.divf %40, %41 : vector<8x128xf32>
    %43 = arith.mulf %34, %16 : vector<8x128xf32>
    %44 = arith.mulf %28, %36 : vector<8x128xf32>
    %45 = arith.addf %43, %44 : vector<8x128xf32>
    %46 = math.tanh %45 : vector<8x128xf32>
    %47 = arith.mulf %42, %46 : vector<8x128xf32>
    %48 = arith.index_cast %c0_i32 : i32 to index
    %c0_25 = arith.constant 0 : index
    %c0_26 = arith.constant 0 : index
    %49 = vector.load %arg8[%48, %c0_25, %c0_26] : memref<8x8x128xf32, #tpu.memory_space<vmem>>, vector<1x8x128xf32>
    %50 = vector.shape_cast %49 : vector<1x8x128xf32> to vector<8x128xf32>
    %51 = vector.shape_cast %47 : vector<8x128xf32> to vector<1x8x128xf32>
    tpu.vector_store %arg8[%48, %c0_25, %c0_26], %51 {strides = array<i32>} : memref<8x8x128xf32, #tpu.memory_space<vmem>>, vector<1x8x128xf32>,
    %c1_i32 = arith.constant 1 : i32
    %52 = arith.index_cast %c1_i32 : i32 to index
    %c0_27 = arith.constant 0 : index
    %c0_28 = arith.constant 0 : index
    %53 = vector.load %arg11[%52, %c0_27, %c0_28] : memref<8x8x512xf32, #tpu.memory_space<vmem>>, vector<1x8x512xf32>
    %54 = vector.shape_cast %53 : vector<1x8x512xf32> to vector<8x512xf32>
    %55 = arith.truncf %47 : vector<8x128xf32> to vector<8x128xbf16>
    %cst_29 = arith.constant dense<0.000000e+00> : vector<8x512xf32>
    %56 = tpu.matmul %55, %12, %cst_29 {dimension_numbers = #tpu.dot_dimension_numbers<[1], [0], [0], [1], [0, 0, 1, 1], [], []>} : vector<8x128xbf16>, vector<128x512xbf16>, vector<8x512xf32> -> vector<8x512xf32>
    %57 = arith.addf %54, %56 : vector<8x512xf32>
    %58 = vector.extract_strided_slice %57 {offsets = [0, 0], sizes = [8, 128], strides = [1, 1]} : vector<8x512xf32> to vector<8x128xf32>
    %59 = arith.negf %58 : vector<8x128xf32>
    %60 = math.exp %59 : vector<8x128xf32>
    %cst_30 = arith.constant 1.000000e+00 : f32
    %61 = vector.broadcast %cst_30 : f32 to vector<8x128xf32>
    %62 = arith.addf %61, %60 : vector<8x128xf32>
    %63 = arith.divf %61, %62 : vector<8x128xf32>
    %64 = vector.extract_strided_slice %57 {offsets = [0, 128], sizes = [8, 128], strides = [1, 1]} : vector<8x512xf32> to vector<8x128xf32>
    %65 = arith.negf %64 : vector<8x128xf32>
    %66 = math.exp %65 : vector<8x128xf32>
    %cst_31 = arith.constant 1.000000e+00 : f32
    %67 = vector.broadcast %cst_31 : f32 to vector<8x128xf32>
    %68 = arith.addf %67, %66 : vector<8x128xf32>
    %69 = arith.divf %67, %68 : vector<8x128xf32>
    %70 = vector.extract_strided_slice %57 {offsets = [0, 256], sizes = [8, 128], strides = [1, 1]} : vector<8x512xf32> to vector<8x128xf32>
    %71 = math.tanh %70 : vector<8x128xf32>
    %72 = vector.extract_strided_slice %57 {offsets = [0, 384], sizes = [8, 128], strides = [1, 1]} : vector<8x512xf32> to vector<8x128xf32>
    %73 = arith.negf %72 : vector<8x128xf32>
    %74 = math.exp %73 : vector<8x128xf32>
    %cst_32 = arith.constant 1.000000e+00 : f32
    %75 = vector.broadcast %cst_32 : f32 to vector<8x128xf32>
    %76 = arith.addf %75, %74 : vector<8x128xf32>
    %77 = arith.divf %75, %76 : vector<8x128xf32>
    %78 = arith.mulf %69, %45 : vector<8x128xf32>
    %79 = arith.mulf %63, %71 : vector<8x128xf32>
    %80 = arith.addf %78, %79 : vector<8x128xf32>
    %81 = math.tanh %80 : vector<8x128xf32>
    %82 = arith.mulf %77, %81 : vector<8x128xf32>
    %83 = arith.index_cast %c1_i32 : i32 to index
    %c0_33 = arith.constant 0 : index
    %c0_34 = arith.constant 0 : index
    %84 = vector.load %arg8[%83, %c0_33, %c0_34] : memref<8x8x128xf32, #tpu.memory_space<vmem>>, vector<1x8x128xf32>
    %85 = vector.shape_cast %84 : vector<1x8x128xf32> to vector<8x128xf32>
    %86 = vector.shape_cast %82 : vector<8x128xf32> to vector<1x8x128xf32>
    tpu.vector_store %arg8[%83, %c0_33, %c0_34], %86 {strides = array<i32>} : memref<8x8x128xf32, #tpu.memory_space<vmem>>, vector<1x8x128xf32>,
    %c2_i32 = arith.constant 2 : i32
    %87 = arith.index_cast %c2_i32 : i32 to index
    %c0_35 = arith.constant 0 : index
    %c0_36 = arith.constant 0 : index
    %88 = vector.load %arg11[%87, %c0_35, %c0_36] : memref<8x8x512xf32, #tpu.memory_space<vmem>>, vector<1x8x512xf32>
    %89 = vector.shape_cast %88 : vector<1x8x512xf32> to vector<8x512xf32>
    %90 = arith.truncf %82 : vector<8x128xf32> to vector<8x128xbf16>
    %cst_37 = arith.constant dense<0.000000e+00> : vector<8x512xf32>
    %91 = tpu.matmul %90, %12, %cst_37 {dimension_numbers = #tpu.dot_dimension_numbers<[1], [0], [0], [1], [0, 0, 1, 1], [], []>} : vector<8x128xbf16>, vector<128x512xbf16>, vector<8x512xf32> -> vector<8x512xf32>
    %92 = arith.addf %89, %91 : vector<8x512xf32>
    %93 = vector.extract_strided_slice %92 {offsets = [0, 0], sizes = [8, 128], strides = [1, 1]} : vector<8x512xf32> to vector<8x128xf32>
    %94 = arith.negf %93 : vector<8x128xf32>
    %95 = math.exp %94 : vector<8x128xf32>
    %cst_38 = arith.constant 1.000000e+00 : f32
    %96 = vector.broadcast %cst_38 : f32 to vector<8x128xf32>
    %97 = arith.addf %96, %95 : vector<8x128xf32>
    %98 = arith.divf %96, %97 : vector<8x128xf32>
    %99 = vector.extract_strided_slice %92 {offsets = [0, 128], sizes = [8, 128], strides = [1, 1]} : vector<8x512xf32> to vector<8x128xf32>
    %100 = arith.negf %99 : vector<8x128xf32>
    %101 = math.exp %100 : vector<8x128xf32>
    %cst_39 = arith.constant 1.000000e+00 : f32
    %102 = vector.broadcast %cst_39 : f32 to vector<8x128xf32>
    %103 = arith.addf %102, %101 : vector<8x128xf32>
    %104 = arith.divf %102, %103 : vector<8x128xf32>
    %105 = vector.extract_strided_slice %92 {offsets = [0, 256], sizes = [8, 128], strides = [1, 1]} : vector<8x512xf32> to vector<8x128xf32>
    %106 = math.tanh %105 : vector<8x128xf32>
    %107 = vector.extract_strided_slice %92 {offsets = [0, 384], sizes = [8, 128], strides = [1, 1]} : vector<8x512xf32> to vector<8x128xf32>
    %108 = arith.negf %107 : vector<8x128xf32>
    %109 = math.exp %108 : vector<8x128xf32>
    %cst_40 = arith.constant 1.000000e+00 : f32
    %110 = vector.broadcast %cst_40 : f32 to vector<8x128xf32>
    %111 = arith.addf %110, %109 : vector<8x128xf32>
    %112 = arith.divf %110, %111 : vector<8x128xf32>
    %113 = arith.mulf %104, %80 : vector<8x128xf32>
    %114 = arith.mulf %98, %106 : vector<8x128xf32>
    %115 = arith.addf %113, %114 : vector<8x128xf32>
    %116 = math.tanh %115 : vector<8x128xf32>
    %117 = arith.mulf %112, %116 : vector<8x128xf32>
    %118 = arith.index_cast %c2_i32 : i32 to index
    %c0_41 = arith.constant 0 : index
    %c0_42 = arith.constant 0 : index
    %119 = vector.load %arg8[%118, %c0_41, %c0_42] : memref<8x8x128xf32, #tpu.memory_space<vmem>>, vector<1x8x128xf32>
    %120 = vector.shape_cast %119 : vector<1x8x128xf32> to vector<8x128xf32>
    %121 = vector.shape_cast %117 : vector<8x128xf32> to vector<1x8x128xf32>
    tpu.vector_store %arg8[%118, %c0_41, %c0_42], %121 {strides = array<i32>} : memref<8x8x128xf32, #tpu.memory_space<vmem>>, vector<1x8x128xf32>,
    %c3_i32 = arith.constant 3 : i32
    %122 = arith.index_cast %c3_i32 : i32 to index
    %c0_43 = arith.constant 0 : index
    %c0_44 = arith.constant 0 : index
    %123 = vector.load %arg11[%122, %c0_43, %c0_44] : memref<8x8x512xf32, #tpu.memory_space<vmem>>, vector<1x8x512xf32>
    %124 = vector.shape_cast %123 : vector<1x8x512xf32> to vector<8x512xf32>
    %125 = arith.truncf %117 : vector<8x128xf32> to vector<8x128xbf16>
    %cst_45 = arith.constant dense<0.000000e+00> : vector<8x512xf32>
    %126 = tpu.matmul %125, %12, %cst_45 {dimension_numbers = #tpu.dot_dimension_numbers<[1], [0], [0], [1], [0, 0, 1, 1], [], []>} : vector<8x128xbf16>, vector<128x512xbf16>, vector<8x512xf32> -> vector<8x512xf32>
    %127 = arith.addf %124, %126 : vector<8x512xf32>
    %128 = vector.extract_strided_slice %127 {offsets = [0, 0], sizes = [8, 128], strides = [1, 1]} : vector<8x512xf32> to vector<8x128xf32>
    %129 = arith.negf %128 : vector<8x128xf32>
    %130 = math.exp %129 : vector<8x128xf32>
    %cst_46 = arith.constant 1.000000e+00 : f32
    %131 = vector.broadcast %cst_46 : f32 to vector<8x128xf32>
    %132 = arith.addf %131, %130 : vector<8x128xf32>
    %133 = arith.divf %131, %132 : vector<8x128xf32>
    %134 = vector.extract_strided_slice %127 {offsets = [0, 128], sizes = [8, 128], strides = [1, 1]} : vector<8x512xf32> to vector<8x128xf32>
    %135 = arith.negf %134 : vector<8x128xf32>
    %136 = math.exp %135 : vector<8x128xf32>
    %cst_47 = arith.constant 1.000000e+00 : f32
    %137 = vector.broadcast %cst_47 : f32 to vector<8x128xf32>
    %138 = arith.addf %137, %136 : vector<8x128xf32>
    %139 = arith.divf %137, %138 : vector<8x128xf32>
    %140 = vector.extract_strided_slice %127 {offsets = [0, 256], sizes = [8, 128], strides = [1, 1]} : vector<8x512xf32> to vector<8x128xf32>
    %141 = math.tanh %140 : vector<8x128xf32>
    %142 = vector.extract_strided_slice %127 {offsets = [0, 384], sizes = [8, 128], strides = [1, 1]} : vector<8x512xf32> to vector<8x128xf32>
    %143 = arith.negf %142 : vector<8x128xf32>
    %144 = math.exp %143 : vector<8x128xf32>
    %cst_48 = arith.constant 1.000000e+00 : f32
    %145 = vector.broadcast %cst_48 : f32 to vector<8x128xf32>
    %146 = arith.addf %145, %144 : vector<8x128xf32>
    %147 = arith.divf %145, %146 : vector<8x128xf32>
    %148 = arith.mulf %139, %115 : vector<8x128xf32>
    %149 = arith.mulf %133, %141 : vector<8x128xf32>
    %150 = arith.addf %148, %149 : vector<8x128xf32>
    %151 = math.tanh %150 : vector<8x128xf32>
    %152 = arith.mulf %147, %151 : vector<8x128xf32>
    %153 = arith.index_cast %c3_i32 : i32 to index
    %c0_49 = arith.constant 0 : index
    %c0_50 = arith.constant 0 : index
    %154 = vector.load %arg8[%153, %c0_49, %c0_50] : memref<8x8x128xf32, #tpu.memory_space<vmem>>, vector<1x8x128xf32>
    %155 = vector.shape_cast %154 : vector<1x8x128xf32> to vector<8x128xf32>
    %156 = vector.shape_cast %152 : vector<8x128xf32> to vector<1x8x128xf32>
    tpu.vector_store %arg8[%153, %c0_49, %c0_50], %156 {strides = array<i32>} : memref<8x8x128xf32, #tpu.memory_space<vmem>>, vector<1x8x128xf32>,
    %c4_i32 = arith.constant 4 : i32
    %157 = arith.index_cast %c4_i32 : i32 to index
    %c0_51 = arith.constant 0 : index
    %c0_52 = arith.constant 0 : index
    %158 = vector.load %arg11[%157, %c0_51, %c0_52] : memref<8x8x512xf32, #tpu.memory_space<vmem>>, vector<1x8x512xf32>
    %159 = vector.shape_cast %158 : vector<1x8x512xf32> to vector<8x512xf32>
    %160 = arith.truncf %152 : vector<8x128xf32> to vector<8x128xbf16>
    %cst_53 = arith.constant dense<0.000000e+00> : vector<8x512xf32>
    %161 = tpu.matmul %160, %12, %cst_53 {dimension_numbers = #tpu.dot_dimension_numbers<[1], [0], [0], [1], [0, 0, 1, 1], [], []>} : vector<8x128xbf16>, vector<128x512xbf16>, vector<8x512xf32> -> vector<8x512xf32>
    %162 = arith.addf %159, %161 : vector<8x512xf32>
    %163 = vector.extract_strided_slice %162 {offsets = [0, 0], sizes = [8, 128], strides = [1, 1]} : vector<8x512xf32> to vector<8x128xf32>
    %164 = arith.negf %163 : vector<8x128xf32>
    %165 = math.exp %164 : vector<8x128xf32>
    %cst_54 = arith.constant 1.000000e+00 : f32
    %166 = vector.broadcast %cst_54 : f32 to vector<8x128xf32>
    %167 = arith.addf %166, %165 : vector<8x128xf32>
    %168 = arith.divf %166, %167 : vector<8x128xf32>
    %169 = vector.extract_strided_slice %162 {offsets = [0, 128], sizes = [8, 128], strides = [1, 1]} : vector<8x512xf32> to vector<8x128xf32>
    %170 = arith.negf %169 : vector<8x128xf32>
    %171 = math.exp %170 : vector<8x128xf32>
    %cst_55 = arith.constant 1.000000e+00 : f32
    %172 = vector.broadcast %cst_55 : f32 to vector<8x128xf32>
    %173 = arith.addf %172, %171 : vector<8x128xf32>
    %174 = arith.divf %172, %173 : vector<8x128xf32>
    %175 = vector.extract_strided_slice %162 {offsets = [0, 256], sizes = [8, 128], strides = [1, 1]} : vector<8x512xf32> to vector<8x128xf32>
    %176 = math.tanh %175 : vector<8x128xf32>
    %177 = vector.extract_strided_slice %162 {offsets = [0, 384], sizes = [8, 128], strides = [1, 1]} : vector<8x512xf32> to vector<8x128xf32>
    %178 = arith.negf %177 : vector<8x128xf32>
    %179 = math.exp %178 : vector<8x128xf32>
    %cst_56 = arith.constant 1.000000e+00 : f32
    %180 = vector.broadcast %cst_56 : f32 to vector<8x128xf32>
    %181 = arith.addf %180, %179 : vector<8x128xf32>
    %182 = arith.divf %180, %181 : vector<8x128xf32>
    %183 = arith.mulf %174, %150 : vector<8x128xf32>
    %184 = arith.mulf %168, %176 : vector<8x128xf32>
    %185 = arith.addf %183, %184 : vector<8x128xf32>
    %186 = math.tanh %185 : vector<8x128xf32>
    %187 = arith.mulf %182, %186 : vector<8x128xf32>
    %188 = arith.index_cast %c4_i32 : i32 to index
    %c0_57 = arith.constant 0 : index
    %c0_58 = arith.constant 0 : index
    %189 = vector.load %arg8[%188, %c0_57, %c0_58] : memref<8x8x128xf32, #tpu.memory_space<vmem>>, vector<1x8x128xf32>
    %190 = vector.shape_cast %189 : vector<1x8x128xf32> to vector<8x128xf32>
    %191 = vector.shape_cast %187 : vector<8x128xf32> to vector<1x8x128xf32>
    tpu.vector_store %arg8[%188, %c0_57, %c0_58], %191 {strides = array<i32>} : memref<8x8x128xf32, #tpu.memory_space<vmem>>, vector<1x8x128xf32>,
    %c5_i32 = arith.constant 5 : i32
    %192 = arith.index_cast %c5_i32 : i32 to index
    %c0_59 = arith.constant 0 : index
    %c0_60 = arith.constant 0 : index
    %193 = vector.load %arg11[%192, %c0_59, %c0_60] : memref<8x8x512xf32, #tpu.memory_space<vmem>>, vector<1x8x512xf32>
    %194 = vector.shape_cast %193 : vector<1x8x512xf32> to vector<8x512xf32>
    %195 = arith.truncf %187 : vector<8x128xf32> to vector<8x128xbf16>
    %cst_61 = arith.constant dense<0.000000e+00> : vector<8x512xf32>
    %196 = tpu.matmul %195, %12, %cst_61 {dimension_numbers = #tpu.dot_dimension_numbers<[1], [0], [0], [1], [0, 0, 1, 1], [], []>} : vector<8x128xbf16>, vector<128x512xbf16>, vector<8x512xf32> -> vector<8x512xf32>
    %197 = arith.addf %194, %196 : vector<8x512xf32>
    %198 = vector.extract_strided_slice %197 {offsets = [0, 0], sizes = [8, 128], strides = [1, 1]} : vector<8x512xf32> to vector<8x128xf32>
    %199 = arith.negf %198 : vector<8x128xf32>
    %200 = math.exp %199 : vector<8x128xf32>
    %cst_62 = arith.constant 1.000000e+00 : f32
    %201 = vector.broadcast %cst_62 : f32 to vector<8x128xf32>
    %202 = arith.addf %201, %200 : vector<8x128xf32>
    %203 = arith.divf %201, %202 : vector<8x128xf32>
    %204 = vector.extract_strided_slice %197 {offsets = [0, 128], sizes = [8, 128], strides = [1, 1]} : vector<8x512xf32> to vector<8x128xf32>
    %205 = arith.negf %204 : vector<8x128xf32>
    %206 = math.exp %205 : vector<8x128xf32>
    %cst_63 = arith.constant 1.000000e+00 : f32
    %207 = vector.broadcast %cst_63 : f32 to vector<8x128xf32>
    %208 = arith.addf %207, %206 : vector<8x128xf32>
    %209 = arith.divf %207, %208 : vector<8x128xf32>
    %210 = vector.extract_strided_slice %197 {offsets = [0, 256], sizes = [8, 128], strides = [1, 1]} : vector<8x512xf32> to vector<8x128xf32>
    %211 = math.tanh %210 : vector<8x128xf32>
    %212 = vector.extract_strided_slice %197 {offsets = [0, 384], sizes = [8, 128], strides = [1, 1]} : vector<8x512xf32> to vector<8x128xf32>
    %213 = arith.negf %212 : vector<8x128xf32>
    %214 = math.exp %213 : vector<8x128xf32>
    %cst_64 = arith.constant 1.000000e+00 : f32
    %215 = vector.broadcast %cst_64 : f32 to vector<8x128xf32>
    %216 = arith.addf %215, %214 : vector<8x128xf32>
    %217 = arith.divf %215, %216 : vector<8x128xf32>
    %218 = arith.mulf %209, %185 : vector<8x128xf32>
    %219 = arith.mulf %203, %211 : vector<8x128xf32>
    %220 = arith.addf %218, %219 : vector<8x128xf32>
    %221 = math.tanh %220 : vector<8x128xf32>
    %222 = arith.mulf %217, %221 : vector<8x128xf32>
    %223 = arith.index_cast %c5_i32 : i32 to index
    %c0_65 = arith.constant 0 : index
    %c0_66 = arith.constant 0 : index
    %224 = vector.load %arg8[%223, %c0_65, %c0_66] : memref<8x8x128xf32, #tpu.memory_space<vmem>>, vector<1x8x128xf32>
    %225 = vector.shape_cast %224 : vector<1x8x128xf32> to vector<8x128xf32>
    %226 = vector.shape_cast %222 : vector<8x128xf32> to vector<1x8x128xf32>
    tpu.vector_store %arg8[%223, %c0_65, %c0_66], %226 {strides = array<i32>} : memref<8x8x128xf32, #tpu.memory_space<vmem>>, vector<1x8x128xf32>,
    %c6_i32 = arith.constant 6 : i32
    %227 = arith.index_cast %c6_i32 : i32 to index
    %c0_67 = arith.constant 0 : index
    %c0_68 = arith.constant 0 : index
    %228 = vector.load %arg11[%227, %c0_67, %c0_68] : memref<8x8x512xf32, #tpu.memory_space<vmem>>, vector<1x8x512xf32>
    %229 = vector.shape_cast %228 : vector<1x8x512xf32> to vector<8x512xf32>
    %230 = arith.truncf %222 : vector<8x128xf32> to vector<8x128xbf16>
    %cst_69 = arith.constant dense<0.000000e+00> : vector<8x512xf32>
    %231 = tpu.matmul %230, %12, %cst_69 {dimension_numbers = #tpu.dot_dimension_numbers<[1], [0], [0], [1], [0, 0, 1, 1], [], []>} : vector<8x128xbf16>, vector<128x512xbf16>, vector<8x512xf32> -> vector<8x512xf32>
    %232 = arith.addf %229, %231 : vector<8x512xf32>
    %233 = vector.extract_strided_slice %232 {offsets = [0, 0], sizes = [8, 128], strides = [1, 1]} : vector<8x512xf32> to vector<8x128xf32>
    %234 = arith.negf %233 : vector<8x128xf32>
    %235 = math.exp %234 : vector<8x128xf32>
    %cst_70 = arith.constant 1.000000e+00 : f32
    %236 = vector.broadcast %cst_70 : f32 to vector<8x128xf32>
    %237 = arith.addf %236, %235 : vector<8x128xf32>
    %238 = arith.divf %236, %237 : vector<8x128xf32>
    %239 = vector.extract_strided_slice %232 {offsets = [0, 128], sizes = [8, 128], strides = [1, 1]} : vector<8x512xf32> to vector<8x128xf32>
    %240 = arith.negf %239 : vector<8x128xf32>
    %241 = math.exp %240 : vector<8x128xf32>
    %cst_71 = arith.constant 1.000000e+00 : f32
    %242 = vector.broadcast %cst_71 : f32 to vector<8x128xf32>
    %243 = arith.addf %242, %241 : vector<8x128xf32>
    %244 = arith.divf %242, %243 : vector<8x128xf32>
    %245 = vector.extract_strided_slice %232 {offsets = [0, 256], sizes = [8, 128], strides = [1, 1]} : vector<8x512xf32> to vector<8x128xf32>
    %246 = math.tanh %245 : vector<8x128xf32>
    %247 = vector.extract_strided_slice %232 {offsets = [0, 384], sizes = [8, 128], strides = [1, 1]} : vector<8x512xf32> to vector<8x128xf32>
    %248 = arith.negf %247 : vector<8x128xf32>
    %249 = math.exp %248 : vector<8x128xf32>
    %cst_72 = arith.constant 1.000000e+00 : f32
    %250 = vector.broadcast %cst_72 : f32 to vector<8x128xf32>
    %251 = arith.addf %250, %249 : vector<8x128xf32>
    %252 = arith.divf %250, %251 : vector<8x128xf32>
    %253 = arith.mulf %244, %220 : vector<8x128xf32>
    %254 = arith.mulf %238, %246 : vector<8x128xf32>
    %255 = arith.addf %253, %254 : vector<8x128xf32>
    %256 = math.tanh %255 : vector<8x128xf32>
    %257 = arith.mulf %252, %256 : vector<8x128xf32>
    %258 = arith.index_cast %c6_i32 : i32 to index
    %c0_73 = arith.constant 0 : index
    %c0_74 = arith.constant 0 : index
    %259 = vector.load %arg8[%258, %c0_73, %c0_74] : memref<8x8x128xf32, #tpu.memory_space<vmem>>, vector<1x8x128xf32>
    %260 = vector.shape_cast %259 : vector<1x8x128xf32> to vector<8x128xf32>
    %261 = vector.shape_cast %257 : vector<8x128xf32> to vector<1x8x128xf32>
    tpu.vector_store %arg8[%258, %c0_73, %c0_74], %261 {strides = array<i32>} : memref<8x8x128xf32, #tpu.memory_space<vmem>>, vector<1x8x128xf32>,
    %c7_i32 = arith.constant 7 : i32
    %262 = arith.index_cast %c7_i32 : i32 to index
    %c0_75 = arith.constant 0 : index
    %c0_76 = arith.constant 0 : index
    %263 = vector.load %arg11[%262, %c0_75, %c0_76] : memref<8x8x512xf32, #tpu.memory_space<vmem>>, vector<1x8x512xf32>
    %264 = vector.shape_cast %263 : vector<1x8x512xf32> to vector<8x512xf32>
    %265 = arith.truncf %257 : vector<8x128xf32> to vector<8x128xbf16>
    %cst_77 = arith.constant dense<0.000000e+00> : vector<8x512xf32>
    %266 = tpu.matmul %265, %12, %cst_77 {dimension_numbers = #tpu.dot_dimension_numbers<[1], [0], [0], [1], [0, 0, 1, 1], [], []>} : vector<8x128xbf16>, vector<128x512xbf16>, vector<8x512xf32> -> vector<8x512xf32>
    %267 = arith.addf %264, %266 : vector<8x512xf32>
    %268 = vector.extract_strided_slice %267 {offsets = [0, 0], sizes = [8, 128], strides = [1, 1]} : vector<8x512xf32> to vector<8x128xf32>
    %269 = arith.negf %268 : vector<8x128xf32>
    %270 = math.exp %269 : vector<8x128xf32>
    %cst_78 = arith.constant 1.000000e+00 : f32
    %271 = vector.broadcast %cst_78 : f32 to vector<8x128xf32>
    %272 = arith.addf %271, %270 : vector<8x128xf32>
    %273 = arith.divf %271, %272 : vector<8x128xf32>
    %274 = vector.extract_strided_slice %267 {offsets = [0, 128], sizes = [8, 128], strides = [1, 1]} : vector<8x512xf32> to vector<8x128xf32>
    %275 = arith.negf %274 : vector<8x128xf32>
    %276 = math.exp %275 : vector<8x128xf32>
    %cst_79 = arith.constant 1.000000e+00 : f32
    %277 = vector.broadcast %cst_79 : f32 to vector<8x128xf32>
    %278 = arith.addf %277, %276 : vector<8x128xf32>
    %279 = arith.divf %277, %278 : vector<8x128xf32>
    %280 = vector.extract_strided_slice %267 {offsets = [0, 256], sizes = [8, 128], strides = [1, 1]} : vector<8x512xf32> to vector<8x128xf32>
    %281 = math.tanh %280 : vector<8x128xf32>
    %282 = vector.extract_strided_slice %267 {offsets = [0, 384], sizes = [8, 128], strides = [1, 1]} : vector<8x512xf32> to vector<8x128xf32>
    %283 = arith.negf %282 : vector<8x128xf32>
    %284 = math.exp %283 : vector<8x128xf32>
    %cst_80 = arith.constant 1.000000e+00 : f32
    %285 = vector.broadcast %cst_80 : f32 to vector<8x128xf32>
    %286 = arith.addf %285, %284 : vector<8x128xf32>
    %287 = arith.divf %285, %286 : vector<8x128xf32>
    %288 = arith.mulf %279, %255 : vector<8x128xf32>
    %289 = arith.mulf %273, %281 : vector<8x128xf32>
    %290 = arith.addf %288, %289 : vector<8x128xf32>
    %291 = math.tanh %290 : vector<8x128xf32>
    %292 = arith.mulf %287, %291 : vector<8x128xf32>
    %293 = arith.index_cast %c7_i32 : i32 to index
    %c0_81 = arith.constant 0 : index
    %c0_82 = arith.constant 0 : index
    %294 = vector.load %arg8[%293, %c0_81, %c0_82] : memref<8x8x128xf32, #tpu.memory_space<vmem>>, vector<1x8x128xf32>
    %295 = vector.shape_cast %294 : vector<1x8x128xf32> to vector<8x128xf32>
    %296 = vector.shape_cast %292 : vector<8x128xf32> to vector<1x8x128xf32>
    tpu.vector_store %arg8[%293, %c0_81, %c0_82], %296 {strides = array<i32>} : memref<8x8x128xf32, #tpu.memory_space<vmem>>, vector<1x8x128xf32>,
    %c8_i32 = arith.constant 8 : i32
    %c0_83 = arith.constant 0 : index
    %c0_84 = arith.constant 0 : index
    %c0_85 = arith.constant 0 : index
    %297 = vector.load %arg9[%c0_83, %c0_84, %c0_85] : memref<2x8x128xf32, #tpu.memory_space<vmem>>, vector<1x8x128xf32>
    %298 = vector.shape_cast %297 : vector<1x8x128xf32> to vector<8x128xf32>
    %299 = vector.shape_cast %292 : vector<8x128xf32> to vector<1x8x128xf32>
    tpu.vector_store %arg9[%c0_83, %c0_84, %c0_85], %299 {strides = array<i32>} : memref<2x8x128xf32, #tpu.memory_space<vmem>>, vector<1x8x128xf32>,
    %c0_86 = arith.constant 0 : index
    %c0_87 = arith.constant 0 : index
    %c0_88 = arith.constant 0 : index
    %300 = vector.load %arg10[%c0_86, %c0_87, %c0_88] : memref<2x8x128xf32, #tpu.memory_space<vmem>>, vector<1x8x128xf32>
    %301 = vector.shape_cast %300 : vector<1x8x128xf32> to vector<8x128xf32>
    %302 = vector.shape_cast %290 : vector<8x128xf32> to vector<1x8x128xf32>
    tpu.vector_store %arg10[%c0_86, %c0_87, %c0_88], %302 {strides = array<i32>} : memref<2x8x128xf32, #tpu.memory_space<vmem>>, vector<1x8x128xf32>,
    %c0_89 = arith.constant 0 : index
    %c0_90 = arith.constant 0 : index
    %c0_91 = arith.constant 0 : index
    %303 = vector.load %arg8[%c0_89, %c0_90, %c0_91] : memref<8x8x128xf32, #tpu.memory_space<vmem>>, vector<8x8x128xf32>
    %304 = vector.shape_cast %303 : vector<8x8x128xf32> to vector<64x128xf32>
    %305 = arith.truncf %304 : vector<64x128xf32> to vector<64x128xbf16>
    %c0_92 = arith.constant 0 : index
    %c0_93 = arith.constant 0 : index
    %c0_94 = arith.constant 0 : index
    %306 = vector.load %arg3[%c0_92, %c0_93, %c0_94] : memref<1x128x512xbf16, #tpu.memory_space<vmem>>, vector<1x128x512xbf16>
    %307 = vector.shape_cast %306 : vector<1x128x512xbf16> to vector<128x512xbf16>
    %cst_95 = arith.constant dense<0.000000e+00> : vector<64x512xf32>
    %308 = tpu.matmul %305, %307, %cst_95 {dimension_numbers = #tpu.dot_dimension_numbers<[1], [0], [0], [1], [0, 0, 1, 1], [], []>} : vector<64x128xbf16>, vector<128x512xbf16>, vector<64x512xf32> -> vector<64x512xf32>
    %309 = vector.shape_cast %308 : vector<64x512xf32> to vector<8x8x512xf32>
    %c1 = arith.constant 1 : index
    %c0_96 = arith.constant 0 : index
    %c0_97 = arith.constant 0 : index
    %310 = vector.load %arg5[%c1, %c0_96, %c0_97] : memref<2x1x512xf32, #tpu.memory_space<vmem>>, vector<1x1x512xf32>
    %311 = vector.shape_cast %310 : vector<1x1x512xf32> to vector<1x512xf32>
    %312 = vector.shape_cast %311 : vector<1x512xf32> to vector<1x1x512xf32>
    %313 = vector.broadcast %312 : vector<1x1x512xf32> to vector<8x8x512xf32>
    %314 = arith.addf %309, %313 : vector<8x8x512xf32>
    %c0_98 = arith.constant 0 : index
    %c0_99 = arith.constant 0 : index
    %c0_100 = arith.constant 0 : index
    %315 = vector.load %arg11[%c0_98, %c0_99, %c0_100] : memref<8x8x512xf32, #tpu.memory_space<vmem>>, vector<8x8x512xf32>
    tpu.vector_store %arg11[%c0_98, %c0_99, %c0_100], %314 {strides = array<i32>} : memref<8x8x512xf32, #tpu.memory_space<vmem>>, vector<8x8x512xf32>,
    %c1_101 = arith.constant 1 : index
    %c0_102 = arith.constant 0 : index
    %c0_103 = arith.constant 0 : index
    %316 = vector.load %arg4[%c1_101, %c0_102, %c0_103] : memref<2x128x512xbf16, #tpu.memory_space<vmem>>, vector<1x128x512xbf16>
    %317 = vector.shape_cast %316 : vector<1x128x512xbf16> to vector<128x512xbf16>
    %c1_104 = arith.constant 1 : index
    %c0_105 = arith.constant 0 : index
    %c0_106 = arith.constant 0 : index
    %318 = vector.load %arg6[%c1_104, %c0_105, %c0_106] : memref<2x8x128xf32, #tpu.memory_space<vmem>>, vector<1x8x128xf32>
    %319 = vector.shape_cast %318 : vector<1x8x128xf32> to vector<8x128xf32>
    %c1_107 = arith.constant 1 : index
    %c0_108 = arith.constant 0 : index
    %c0_109 = arith.constant 0 : index
    %320 = vector.load %arg7[%c1_107, %c0_108, %c0_109] : memref<2x8x128xf32, #tpu.memory_space<vmem>>, vector<1x8x128xf32>
    %321 = vector.shape_cast %320 : vector<1x8x128xf32> to vector<8x128xf32>
    %c0_i32_110 = arith.constant 0 : i32
    %322 = arith.index_cast %c0_i32_110 : i32 to index
    %c0_111 = arith.constant 0 : index
    %c0_112 = arith.constant 0 : index
    %323 = vector.load %arg11[%322, %c0_111, %c0_112] : memref<8x8x512xf32, #tpu.memory_space<vmem>>, vector<1x8x512xf32>
    %324 = vector.shape_cast %323 : vector<1x8x512xf32> to vector<8x512xf32>
    %325 = arith.truncf %319 : vector<8x128xf32> to vector<8x128xbf16>
    %cst_113 = arith.constant dense<0.000000e+00> : vector<8x512xf32>
    %326 = tpu.matmul %325, %317, %cst_113 {dimension_numbers = #tpu.dot_dimension_numbers<[1], [0], [0], [1], [0, 0, 1, 1], [], []>} : vector<8x128xbf16>, vector<128x512xbf16>, vector<8x512xf32> -> vector<8x512xf32>
    %327 = arith.addf %324, %326 : vector<8x512xf32>
    %328 = vector.extract_strided_slice %327 {offsets = [0, 0], sizes = [8, 128], strides = [1, 1]} : vector<8x512xf32> to vector<8x128xf32>
    %329 = arith.negf %328 : vector<8x128xf32>
    %330 = math.exp %329 : vector<8x128xf32>
    %cst_114 = arith.constant 1.000000e+00 : f32
    %331 = vector.broadcast %cst_114 : f32 to vector<8x128xf32>
    %332 = arith.addf %331, %330 : vector<8x128xf32>
    %333 = arith.divf %331, %332 : vector<8x128xf32>
    %334 = vector.extract_strided_slice %327 {offsets = [0, 128], sizes = [8, 128], strides = [1, 1]} : vector<8x512xf32> to vector<8x128xf32>
    %335 = arith.negf %334 : vector<8x128xf32>
    %336 = math.exp %335 : vector<8x128xf32>
    %cst_115 = arith.constant 1.000000e+00 : f32
    %337 = vector.broadcast %cst_115 : f32 to vector<8x128xf32>
    %338 = arith.addf %337, %336 : vector<8x128xf32>
    %339 = arith.divf %337, %338 : vector<8x128xf32>
    %340 = vector.extract_strided_slice %327 {offsets = [0, 256], sizes = [8, 128], strides = [1, 1]} : vector<8x512xf32> to vector<8x128xf32>
    %341 = math.tanh %340 : vector<8x128xf32>
    %342 = vector.extract_strided_slice %327 {offsets = [0, 384], sizes = [8, 128], strides = [1, 1]} : vector<8x512xf32> to vector<8x128xf32>
    %343 = arith.negf %342 : vector<8x128xf32>
    %344 = math.exp %343 : vector<8x128xf32>
    %cst_116 = arith.constant 1.000000e+00 : f32
    %345 = vector.broadcast %cst_116 : f32 to vector<8x128xf32>
    %346 = arith.addf %345, %344 : vector<8x128xf32>
    %347 = arith.divf %345, %346 : vector<8x128xf32>
    %348 = arith.mulf %339, %321 : vector<8x128xf32>
    %349 = arith.mulf %333, %341 : vector<8x128xf32>
    %350 = arith.addf %348, %349 : vector<8x128xf32>
    %351 = math.tanh %350 : vector<8x128xf32>
    %352 = arith.mulf %347, %351 : vector<8x128xf32>
    %353 = arith.index_cast %c0_i32_110 : i32 to index
    %c0_117 = arith.constant 0 : index
    %c0_118 = arith.constant 0 : index
    %354 = vector.load %arg8[%353, %c0_117, %c0_118] : memref<8x8x128xf32, #tpu.memory_space<vmem>>, vector<1x8x128xf32>
    %355 = vector.shape_cast %354 : vector<1x8x128xf32> to vector<8x128xf32>
    %356 = vector.shape_cast %352 : vector<8x128xf32> to vector<1x8x128xf32>
    tpu.vector_store %arg8[%353, %c0_117, %c0_118], %356 {strides = array<i32>} : memref<8x8x128xf32, #tpu.memory_space<vmem>>, vector<1x8x128xf32>,
    %c1_i32_119 = arith.constant 1 : i32
    %357 = arith.index_cast %c1_i32_119 : i32 to index
    %c0_120 = arith.constant 0 : index
    %c0_121 = arith.constant 0 : index
    %358 = vector.load %arg11[%357, %c0_120, %c0_121] : memref<8x8x512xf32, #tpu.memory_space<vmem>>, vector<1x8x512xf32>
    %359 = vector.shape_cast %358 : vector<1x8x512xf32> to vector<8x512xf32>
    %360 = arith.truncf %352 : vector<8x128xf32> to vector<8x128xbf16>
    %cst_122 = arith.constant dense<0.000000e+00> : vector<8x512xf32>
    %361 = tpu.matmul %360, %317, %cst_122 {dimension_numbers = #tpu.dot_dimension_numbers<[1], [0], [0], [1], [0, 0, 1, 1], [], []>} : vector<8x128xbf16>, vector<128x512xbf16>, vector<8x512xf32> -> vector<8x512xf32>
    %362 = arith.addf %359, %361 : vector<8x512xf32>
    %363 = vector.extract_strided_slice %362 {offsets = [0, 0], sizes = [8, 128], strides = [1, 1]} : vector<8x512xf32> to vector<8x128xf32>
    %364 = arith.negf %363 : vector<8x128xf32>
    %365 = math.exp %364 : vector<8x128xf32>
    %cst_123 = arith.constant 1.000000e+00 : f32
    %366 = vector.broadcast %cst_123 : f32 to vector<8x128xf32>
    %367 = arith.addf %366, %365 : vector<8x128xf32>
    %368 = arith.divf %366, %367 : vector<8x128xf32>
    %369 = vector.extract_strided_slice %362 {offsets = [0, 128], sizes = [8, 128], strides = [1, 1]} : vector<8x512xf32> to vector<8x128xf32>
    %370 = arith.negf %369 : vector<8x128xf32>
    %371 = math.exp %370 : vector<8x128xf32>
    %cst_124 = arith.constant 1.000000e+00 : f32
    %372 = vector.broadcast %cst_124 : f32 to vector<8x128xf32>
    %373 = arith.addf %372, %371 : vector<8x128xf32>
    %374 = arith.divf %372, %373 : vector<8x128xf32>
    %375 = vector.extract_strided_slice %362 {offsets = [0, 256], sizes = [8, 128], strides = [1, 1]} : vector<8x512xf32> to vector<8x128xf32>
    %376 = math.tanh %375 : vector<8x128xf32>
    %377 = vector.extract_strided_slice %362 {offsets = [0, 384], sizes = [8, 128], strides = [1, 1]} : vector<8x512xf32> to vector<8x128xf32>
    %378 = arith.negf %377 : vector<8x128xf32>
    %379 = math.exp %378 : vector<8x128xf32>
    %cst_125 = arith.constant 1.000000e+00 : f32
    %380 = vector.broadcast %cst_125 : f32 to vector<8x128xf32>
    %381 = arith.addf %380, %379 : vector<8x128xf32>
    %382 = arith.divf %380, %381 : vector<8x128xf32>
    %383 = arith.mulf %374, %350 : vector<8x128xf32>
    %384 = arith.mulf %368, %376 : vector<8x128xf32>
    %385 = arith.addf %383, %384 : vector<8x128xf32>
    %386 = math.tanh %385 : vector<8x128xf32>
    %387 = arith.mulf %382, %386 : vector<8x128xf32>
    %388 = arith.index_cast %c1_i32_119 : i32 to index
    %c0_126 = arith.constant 0 : index
    %c0_127 = arith.constant 0 : index
    %389 = vector.load %arg8[%388, %c0_126, %c0_127] : memref<8x8x128xf32, #tpu.memory_space<vmem>>, vector<1x8x128xf32>
    %390 = vector.shape_cast %389 : vector<1x8x128xf32> to vector<8x128xf32>
    %391 = vector.shape_cast %387 : vector<8x128xf32> to vector<1x8x128xf32>
    tpu.vector_store %arg8[%388, %c0_126, %c0_127], %391 {strides = array<i32>} : memref<8x8x128xf32, #tpu.memory_space<vmem>>, vector<1x8x128xf32>,
    %c2_i32_128 = arith.constant 2 : i32
    %392 = arith.index_cast %c2_i32_128 : i32 to index
    %c0_129 = arith.constant 0 : index
    %c0_130 = arith.constant 0 : index
    %393 = vector.load %arg11[%392, %c0_129, %c0_130] : memref<8x8x512xf32, #tpu.memory_space<vmem>>, vector<1x8x512xf32>
    %394 = vector.shape_cast %393 : vector<1x8x512xf32> to vector<8x512xf32>
    %395 = arith.truncf %387 : vector<8x128xf32> to vector<8x128xbf16>
    %cst_131 = arith.constant dense<0.000000e+00> : vector<8x512xf32>
    %396 = tpu.matmul %395, %317, %cst_131 {dimension_numbers = #tpu.dot_dimension_numbers<[1], [0], [0], [1], [0, 0, 1, 1], [], []>} : vector<8x128xbf16>, vector<128x512xbf16>, vector<8x512xf32> -> vector<8x512xf32>
    %397 = arith.addf %394, %396 : vector<8x512xf32>
    %398 = vector.extract_strided_slice %397 {offsets = [0, 0], sizes = [8, 128], strides = [1, 1]} : vector<8x512xf32> to vector<8x128xf32>
    %399 = arith.negf %398 : vector<8x128xf32>
    %400 = math.exp %399 : vector<8x128xf32>
    %cst_132 = arith.constant 1.000000e+00 : f32
    %401 = vector.broadcast %cst_132 : f32 to vector<8x128xf32>
    %402 = arith.addf %401, %400 : vector<8x128xf32>
    %403 = arith.divf %401, %402 : vector<8x128xf32>
    %404 = vector.extract_strided_slice %397 {offsets = [0, 128], sizes = [8, 128], strides = [1, 1]} : vector<8x512xf32> to vector<8x128xf32>
    %405 = arith.negf %404 : vector<8x128xf32>
    %406 = math.exp %405 : vector<8x128xf32>
    %cst_133 = arith.constant 1.000000e+00 : f32
    %407 = vector.broadcast %cst_133 : f32 to vector<8x128xf32>
    %408 = arith.addf %407, %406 : vector<8x128xf32>
    %409 = arith.divf %407, %408 : vector<8x128xf32>
    %410 = vector.extract_strided_slice %397 {offsets = [0, 256], sizes = [8, 128], strides = [1, 1]} : vector<8x512xf32> to vector<8x128xf32>
    %411 = math.tanh %410 : vector<8x128xf32>
    %412 = vector.extract_strided_slice %397 {offsets = [0, 384], sizes = [8, 128], strides = [1, 1]} : vector<8x512xf32> to vector<8x128xf32>
    %413 = arith.negf %412 : vector<8x128xf32>
    %414 = math.exp %413 : vector<8x128xf32>
    %cst_134 = arith.constant 1.000000e+00 : f32
    %415 = vector.broadcast %cst_134 : f32 to vector<8x128xf32>
    %416 = arith.addf %415, %414 : vector<8x128xf32>
    %417 = arith.divf %415, %416 : vector<8x128xf32>
    %418 = arith.mulf %409, %385 : vector<8x128xf32>
    %419 = arith.mulf %403, %411 : vector<8x128xf32>
    %420 = arith.addf %418, %419 : vector<8x128xf32>
    %421 = math.tanh %420 : vector<8x128xf32>
    %422 = arith.mulf %417, %421 : vector<8x128xf32>
    %423 = arith.index_cast %c2_i32_128 : i32 to index
    %c0_135 = arith.constant 0 : index
    %c0_136 = arith.constant 0 : index
    %424 = vector.load %arg8[%423, %c0_135, %c0_136] : memref<8x8x128xf32, #tpu.memory_space<vmem>>, vector<1x8x128xf32>
    %425 = vector.shape_cast %424 : vector<1x8x128xf32> to vector<8x128xf32>
    %426 = vector.shape_cast %422 : vector<8x128xf32> to vector<1x8x128xf32>
    tpu.vector_store %arg8[%423, %c0_135, %c0_136], %426 {strides = array<i32>} : memref<8x8x128xf32, #tpu.memory_space<vmem>>, vector<1x8x128xf32>,
    %c3_i32_137 = arith.constant 3 : i32
    %427 = arith.index_cast %c3_i32_137 : i32 to index
    %c0_138 = arith.constant 0 : index
    %c0_139 = arith.constant 0 : index
    %428 = vector.load %arg11[%427, %c0_138, %c0_139] : memref<8x8x512xf32, #tpu.memory_space<vmem>>, vector<1x8x512xf32>
    %429 = vector.shape_cast %428 : vector<1x8x512xf32> to vector<8x512xf32>
    %430 = arith.truncf %422 : vector<8x128xf32> to vector<8x128xbf16>
    %cst_140 = arith.constant dense<0.000000e+00> : vector<8x512xf32>
    %431 = tpu.matmul %430, %317, %cst_140 {dimension_numbers = #tpu.dot_dimension_numbers<[1], [0], [0], [1], [0, 0, 1, 1], [], []>} : vector<8x128xbf16>, vector<128x512xbf16>, vector<8x512xf32> -> vector<8x512xf32>
    %432 = arith.addf %429, %431 : vector<8x512xf32>
    %433 = vector.extract_strided_slice %432 {offsets = [0, 0], sizes = [8, 128], strides = [1, 1]} : vector<8x512xf32> to vector<8x128xf32>
    %434 = arith.negf %433 : vector<8x128xf32>
    %435 = math.exp %434 : vector<8x128xf32>
    %cst_141 = arith.constant 1.000000e+00 : f32
    %436 = vector.broadcast %cst_141 : f32 to vector<8x128xf32>
    %437 = arith.addf %436, %435 : vector<8x128xf32>
    %438 = arith.divf %436, %437 : vector<8x128xf32>
    %439 = vector.extract_strided_slice %432 {offsets = [0, 128], sizes = [8, 128], strides = [1, 1]} : vector<8x512xf32> to vector<8x128xf32>
    %440 = arith.negf %439 : vector<8x128xf32>
    %441 = math.exp %440 : vector<8x128xf32>
    %cst_142 = arith.constant 1.000000e+00 : f32
    %442 = vector.broadcast %cst_142 : f32 to vector<8x128xf32>
    %443 = arith.addf %442, %441 : vector<8x128xf32>
    %444 = arith.divf %442, %443 : vector<8x128xf32>
    %445 = vector.extract_strided_slice %432 {offsets = [0, 256], sizes = [8, 128], strides = [1, 1]} : vector<8x512xf32> to vector<8x128xf32>
    %446 = math.tanh %445 : vector<8x128xf32>
    %447 = vector.extract_strided_slice %432 {offsets = [0, 384], sizes = [8, 128], strides = [1, 1]} : vector<8x512xf32> to vector<8x128xf32>
    %448 = arith.negf %447 : vector<8x128xf32>
    %449 = math.exp %448 : vector<8x128xf32>
    %cst_143 = arith.constant 1.000000e+00 : f32
    %450 = vector.broadcast %cst_143 : f32 to vector<8x128xf32>
    %451 = arith.addf %450, %449 : vector<8x128xf32>
    %452 = arith.divf %450, %451 : vector<8x128xf32>
    %453 = arith.mulf %444, %420 : vector<8x128xf32>
    %454 = arith.mulf %438, %446 : vector<8x128xf32>
    %455 = arith.addf %453, %454 : vector<8x128xf32>
    %456 = math.tanh %455 : vector<8x128xf32>
    %457 = arith.mulf %452, %456 : vector<8x128xf32>
    %458 = arith.index_cast %c3_i32_137 : i32 to index
    %c0_144 = arith.constant 0 : index
    %c0_145 = arith.constant 0 : index
    %459 = vector.load %arg8[%458, %c0_144, %c0_145] : memref<8x8x128xf32, #tpu.memory_space<vmem>>, vector<1x8x128xf32>
    %460 = vector.shape_cast %459 : vector<1x8x128xf32> to vector<8x128xf32>
    %461 = vector.shape_cast %457 : vector<8x128xf32> to vector<1x8x128xf32>
    tpu.vector_store %arg8[%458, %c0_144, %c0_145], %461 {strides = array<i32>} : memref<8x8x128xf32, #tpu.memory_space<vmem>>, vector<1x8x128xf32>,
    %c4_i32_146 = arith.constant 4 : i32
    %462 = arith.index_cast %c4_i32_146 : i32 to index
    %c0_147 = arith.constant 0 : index
    %c0_148 = arith.constant 0 : index
    %463 = vector.load %arg11[%462, %c0_147, %c0_148] : memref<8x8x512xf32, #tpu.memory_space<vmem>>, vector<1x8x512xf32>
    %464 = vector.shape_cast %463 : vector<1x8x512xf32> to vector<8x512xf32>
    %465 = arith.truncf %457 : vector<8x128xf32> to vector<8x128xbf16>
    %cst_149 = arith.constant dense<0.000000e+00> : vector<8x512xf32>
    %466 = tpu.matmul %465, %317, %cst_149 {dimension_numbers = #tpu.dot_dimension_numbers<[1], [0], [0], [1], [0, 0, 1, 1], [], []>} : vector<8x128xbf16>, vector<128x512xbf16>, vector<8x512xf32> -> vector<8x512xf32>
    %467 = arith.addf %464, %466 : vector<8x512xf32>
    %468 = vector.extract_strided_slice %467 {offsets = [0, 0], sizes = [8, 128], strides = [1, 1]} : vector<8x512xf32> to vector<8x128xf32>
    %469 = arith.negf %468 : vector<8x128xf32>
    %470 = math.exp %469 : vector<8x128xf32>
    %cst_150 = arith.constant 1.000000e+00 : f32
    %471 = vector.broadcast %cst_150 : f32 to vector<8x128xf32>
    %472 = arith.addf %471, %470 : vector<8x128xf32>
    %473 = arith.divf %471, %472 : vector<8x128xf32>
    %474 = vector.extract_strided_slice %467 {offsets = [0, 128], sizes = [8, 128], strides = [1, 1]} : vector<8x512xf32> to vector<8x128xf32>
    %475 = arith.negf %474 : vector<8x128xf32>
    %476 = math.exp %475 : vector<8x128xf32>
    %cst_151 = arith.constant 1.000000e+00 : f32
    %477 = vector.broadcast %cst_151 : f32 to vector<8x128xf32>
    %478 = arith.addf %477, %476 : vector<8x128xf32>
    %479 = arith.divf %477, %478 : vector<8x128xf32>
    %480 = vector.extract_strided_slice %467 {offsets = [0, 256], sizes = [8, 128], strides = [1, 1]} : vector<8x512xf32> to vector<8x128xf32>
    %481 = math.tanh %480 : vector<8x128xf32>
    %482 = vector.extract_strided_slice %467 {offsets = [0, 384], sizes = [8, 128], strides = [1, 1]} : vector<8x512xf32> to vector<8x128xf32>
    %483 = arith.negf %482 : vector<8x128xf32>
    %484 = math.exp %483 : vector<8x128xf32>
    %cst_152 = arith.constant 1.000000e+00 : f32
    %485 = vector.broadcast %cst_152 : f32 to vector<8x128xf32>
    %486 = arith.addf %485, %484 : vector<8x128xf32>
    %487 = arith.divf %485, %486 : vector<8x128xf32>
    %488 = arith.mulf %479, %455 : vector<8x128xf32>
    %489 = arith.mulf %473, %481 : vector<8x128xf32>
    %490 = arith.addf %488, %489 : vector<8x128xf32>
    %491 = math.tanh %490 : vector<8x128xf32>
    %492 = arith.mulf %487, %491 : vector<8x128xf32>
    %493 = arith.index_cast %c4_i32_146 : i32 to index
    %c0_153 = arith.constant 0 : index
    %c0_154 = arith.constant 0 : index
    %494 = vector.load %arg8[%493, %c0_153, %c0_154] : memref<8x8x128xf32, #tpu.memory_space<vmem>>, vector<1x8x128xf32>
    %495 = vector.shape_cast %494 : vector<1x8x128xf32> to vector<8x128xf32>
    %496 = vector.shape_cast %492 : vector<8x128xf32> to vector<1x8x128xf32>
    tpu.vector_store %arg8[%493, %c0_153, %c0_154], %496 {strides = array<i32>} : memref<8x8x128xf32, #tpu.memory_space<vmem>>, vector<1x8x128xf32>,
    %c5_i32_155 = arith.constant 5 : i32
    %497 = arith.index_cast %c5_i32_155 : i32 to index
    %c0_156 = arith.constant 0 : index
    %c0_157 = arith.constant 0 : index
    %498 = vector.load %arg11[%497, %c0_156, %c0_157] : memref<8x8x512xf32, #tpu.memory_space<vmem>>, vector<1x8x512xf32>
    %499 = vector.shape_cast %498 : vector<1x8x512xf32> to vector<8x512xf32>
    %500 = arith.truncf %492 : vector<8x128xf32> to vector<8x128xbf16>
    %cst_158 = arith.constant dense<0.000000e+00> : vector<8x512xf32>
    %501 = tpu.matmul %500, %317, %cst_158 {dimension_numbers = #tpu.dot_dimension_numbers<[1], [0], [0], [1], [0, 0, 1, 1], [], []>} : vector<8x128xbf16>, vector<128x512xbf16>, vector<8x512xf32> -> vector<8x512xf32>
    %502 = arith.addf %499, %501 : vector<8x512xf32>
    %503 = vector.extract_strided_slice %502 {offsets = [0, 0], sizes = [8, 128], strides = [1, 1]} : vector<8x512xf32> to vector<8x128xf32>
    %504 = arith.negf %503 : vector<8x128xf32>
    %505 = math.exp %504 : vector<8x128xf32>
    %cst_159 = arith.constant 1.000000e+00 : f32
    %506 = vector.broadcast %cst_159 : f32 to vector<8x128xf32>
    %507 = arith.addf %506, %505 : vector<8x128xf32>
    %508 = arith.divf %506, %507 : vector<8x128xf32>
    %509 = vector.extract_strided_slice %502 {offsets = [0, 128], sizes = [8, 128], strides = [1, 1]} : vector<8x512xf32> to vector<8x128xf32>
    %510 = arith.negf %509 : vector<8x128xf32>
    %511 = math.exp %510 : vector<8x128xf32>
    %cst_160 = arith.constant 1.000000e+00 : f32
    %512 = vector.broadcast %cst_160 : f32 to vector<8x128xf32>
    %513 = arith.addf %512, %511 : vector<8x128xf32>
    %514 = arith.divf %512, %513 : vector<8x128xf32>
    %515 = vector.extract_strided_slice %502 {offsets = [0, 256], sizes = [8, 128], strides = [1, 1]} : vector<8x512xf32> to vector<8x128xf32>
    %516 = math.tanh %515 : vector<8x128xf32>
    %517 = vector.extract_strided_slice %502 {offsets = [0, 384], sizes = [8, 128], strides = [1, 1]} : vector<8x512xf32> to vector<8x128xf32>
    %518 = arith.negf %517 : vector<8x128xf32>
    %519 = math.exp %518 : vector<8x128xf32>
    %cst_161 = arith.constant 1.000000e+00 : f32
    %520 = vector.broadcast %cst_161 : f32 to vector<8x128xf32>
    %521 = arith.addf %520, %519 : vector<8x128xf32>
    %522 = arith.divf %520, %521 : vector<8x128xf32>
    %523 = arith.mulf %514, %490 : vector<8x128xf32>
    %524 = arith.mulf %508, %516 : vector<8x128xf32>
    %525 = arith.addf %523, %524 : vector<8x128xf32>
    %526 = math.tanh %525 : vector<8x128xf32>
    %527 = arith.mulf %522, %526 : vector<8x128xf32>
    %528 = arith.index_cast %c5_i32_155 : i32 to index
    %c0_162 = arith.constant 0 : index
    %c0_163 = arith.constant 0 : index
    %529 = vector.load %arg8[%528, %c0_162, %c0_163] : memref<8x8x128xf32, #tpu.memory_space<vmem>>, vector<1x8x128xf32>
    %530 = vector.shape_cast %529 : vector<1x8x128xf32> to vector<8x128xf32>
    %531 = vector.shape_cast %527 : vector<8x128xf32> to vector<1x8x128xf32>
    tpu.vector_store %arg8[%528, %c0_162, %c0_163], %531 {strides = array<i32>} : memref<8x8x128xf32, #tpu.memory_space<vmem>>, vector<1x8x128xf32>,
    %c6_i32_164 = arith.constant 6 : i32
    %532 = arith.index_cast %c6_i32_164 : i32 to index
    %c0_165 = arith.constant 0 : index
    %c0_166 = arith.constant 0 : index
    %533 = vector.load %arg11[%532, %c0_165, %c0_166] : memref<8x8x512xf32, #tpu.memory_space<vmem>>, vector<1x8x512xf32>
    %534 = vector.shape_cast %533 : vector<1x8x512xf32> to vector<8x512xf32>
    %535 = arith.truncf %527 : vector<8x128xf32> to vector<8x128xbf16>
    %cst_167 = arith.constant dense<0.000000e+00> : vector<8x512xf32>
    %536 = tpu.matmul %535, %317, %cst_167 {dimension_numbers = #tpu.dot_dimension_numbers<[1], [0], [0], [1], [0, 0, 1, 1], [], []>} : vector<8x128xbf16>, vector<128x512xbf16>, vector<8x512xf32> -> vector<8x512xf32>
    %537 = arith.addf %534, %536 : vector<8x512xf32>
    %538 = vector.extract_strided_slice %537 {offsets = [0, 0], sizes = [8, 128], strides = [1, 1]} : vector<8x512xf32> to vector<8x128xf32>
    %539 = arith.negf %538 : vector<8x128xf32>
    %540 = math.exp %539 : vector<8x128xf32>
    %cst_168 = arith.constant 1.000000e+00 : f32
    %541 = vector.broadcast %cst_168 : f32 to vector<8x128xf32>
    %542 = arith.addf %541, %540 : vector<8x128xf32>
    %543 = arith.divf %541, %542 : vector<8x128xf32>
    %544 = vector.extract_strided_slice %537 {offsets = [0, 128], sizes = [8, 128], strides = [1, 1]} : vector<8x512xf32> to vector<8x128xf32>
    %545 = arith.negf %544 : vector<8x128xf32>
    %546 = math.exp %545 : vector<8x128xf32>
    %cst_169 = arith.constant 1.000000e+00 : f32
    %547 = vector.broadcast %cst_169 : f32 to vector<8x128xf32>
    %548 = arith.addf %547, %546 : vector<8x128xf32>
    %549 = arith.divf %547, %548 : vector<8x128xf32>
    %550 = vector.extract_strided_slice %537 {offsets = [0, 256], sizes = [8, 128], strides = [1, 1]} : vector<8x512xf32> to vector<8x128xf32>
    %551 = math.tanh %550 : vector<8x128xf32>
    %552 = vector.extract_strided_slice %537 {offsets = [0, 384], sizes = [8, 128], strides = [1, 1]} : vector<8x512xf32> to vector<8x128xf32>
    %553 = arith.negf %552 : vector<8x128xf32>
    %554 = math.exp %553 : vector<8x128xf32>
    %cst_170 = arith.constant 1.000000e+00 : f32
    %555 = vector.broadcast %cst_170 : f32 to vector<8x128xf32>
    %556 = arith.addf %555, %554 : vector<8x128xf32>
    %557 = arith.divf %555, %556 : vector<8x128xf32>
    %558 = arith.mulf %549, %525 : vector<8x128xf32>
    %559 = arith.mulf %543, %551 : vector<8x128xf32>
    %560 = arith.addf %558, %559 : vector<8x128xf32>
    %561 = math.tanh %560 : vector<8x128xf32>
    %562 = arith.mulf %557, %561 : vector<8x128xf32>
    %563 = arith.index_cast %c6_i32_164 : i32 to index
    %c0_171 = arith.constant 0 : index
    %c0_172 = arith.constant 0 : index
    %564 = vector.load %arg8[%563, %c0_171, %c0_172] : memref<8x8x128xf32, #tpu.memory_space<vmem>>, vector<1x8x128xf32>
    %565 = vector.shape_cast %564 : vector<1x8x128xf32> to vector<8x128xf32>
    %566 = vector.shape_cast %562 : vector<8x128xf32> to vector<1x8x128xf32>
    tpu.vector_store %arg8[%563, %c0_171, %c0_172], %566 {strides = array<i32>} : memref<8x8x128xf32, #tpu.memory_space<vmem>>, vector<1x8x128xf32>,
    %c7_i32_173 = arith.constant 7 : i32
    %567 = arith.index_cast %c7_i32_173 : i32 to index
    %c0_174 = arith.constant 0 : index
    %c0_175 = arith.constant 0 : index
    %568 = vector.load %arg11[%567, %c0_174, %c0_175] : memref<8x8x512xf32, #tpu.memory_space<vmem>>, vector<1x8x512xf32>
    %569 = vector.shape_cast %568 : vector<1x8x512xf32> to vector<8x512xf32>
    %570 = arith.truncf %562 : vector<8x128xf32> to vector<8x128xbf16>
    %cst_176 = arith.constant dense<0.000000e+00> : vector<8x512xf32>
    %571 = tpu.matmul %570, %317, %cst_176 {dimension_numbers = #tpu.dot_dimension_numbers<[1], [0], [0], [1], [0, 0, 1, 1], [], []>} : vector<8x128xbf16>, vector<128x512xbf16>, vector<8x512xf32> -> vector<8x512xf32>
    %572 = arith.addf %569, %571 : vector<8x512xf32>
    %573 = vector.extract_strided_slice %572 {offsets = [0, 0], sizes = [8, 128], strides = [1, 1]} : vector<8x512xf32> to vector<8x128xf32>
    %574 = arith.negf %573 : vector<8x128xf32>
    %575 = math.exp %574 : vector<8x128xf32>
    %cst_177 = arith.constant 1.000000e+00 : f32
    %576 = vector.broadcast %cst_177 : f32 to vector<8x128xf32>
    %577 = arith.addf %576, %575 : vector<8x128xf32>
    %578 = arith.divf %576, %577 : vector<8x128xf32>
    %579 = vector.extract_strided_slice %572 {offsets = [0, 128], sizes = [8, 128], strides = [1, 1]} : vector<8x512xf32> to vector<8x128xf32>
    %580 = arith.negf %579 : vector<8x128xf32>
    %581 = math.exp %580 : vector<8x128xf32>
    %cst_178 = arith.constant 1.000000e+00 : f32
    %582 = vector.broadcast %cst_178 : f32 to vector<8x128xf32>
    %583 = arith.addf %582, %581 : vector<8x128xf32>
    %584 = arith.divf %582, %583 : vector<8x128xf32>
    %585 = vector.extract_strided_slice %572 {offsets = [0, 256], sizes = [8, 128], strides = [1, 1]} : vector<8x512xf32> to vector<8x128xf32>
    %586 = math.tanh %585 : vector<8x128xf32>
    %587 = vector.extract_strided_slice %572 {offsets = [0, 384], sizes = [8, 128], strides = [1, 1]} : vector<8x512xf32> to vector<8x128xf32>
    %588 = arith.negf %587 : vector<8x128xf32>
    %589 = math.exp %588 : vector<8x128xf32>
    %cst_179 = arith.constant 1.000000e+00 : f32
    %590 = vector.broadcast %cst_179 : f32 to vector<8x128xf32>
    %591 = arith.addf %590, %589 : vector<8x128xf32>
    %592 = arith.divf %590, %591 : vector<8x128xf32>
    %593 = arith.mulf %584, %560 : vector<8x128xf32>
    %594 = arith.mulf %578, %586 : vector<8x128xf32>
    %595 = arith.addf %593, %594 : vector<8x128xf32>
    %596 = math.tanh %595 : vector<8x128xf32>
    %597 = arith.mulf %592, %596 : vector<8x128xf32>
    %598 = arith.index_cast %c7_i32_173 : i32 to index
    %c0_180 = arith.constant 0 : index
    %c0_181 = arith.constant 0 : index
    %599 = vector.load %arg8[%598, %c0_180, %c0_181] : memref<8x8x128xf32, #tpu.memory_space<vmem>>, vector<1x8x128xf32>
    %600 = vector.shape_cast %599 : vector<1x8x128xf32> to vector<8x128xf32>
    %601 = vector.shape_cast %597 : vector<8x128xf32> to vector<1x8x128xf32>
    tpu.vector_store %arg8[%598, %c0_180, %c0_181], %601 {strides = array<i32>} : memref<8x8x128xf32, #tpu.memory_space<vmem>>, vector<1x8x128xf32>,
    %c8_i32_182 = arith.constant 8 : i32
    %c1_183 = arith.constant 1 : index
    %c0_184 = arith.constant 0 : index
    %c0_185 = arith.constant 0 : index
    %602 = vector.load %arg9[%c1_183, %c0_184, %c0_185] : memref<2x8x128xf32, #tpu.memory_space<vmem>>, vector<1x8x128xf32>
    %603 = vector.shape_cast %602 : vector<1x8x128xf32> to vector<8x128xf32>
    %604 = vector.shape_cast %597 : vector<8x128xf32> to vector<1x8x128xf32>
    tpu.vector_store %arg9[%c1_183, %c0_184, %c0_185], %604 {strides = array<i32>} : memref<2x8x128xf32, #tpu.memory_space<vmem>>, vector<1x8x128xf32>,
    %c1_186 = arith.constant 1 : index
    %c0_187 = arith.constant 0 : index
    %c0_188 = arith.constant 0 : index
    %605 = vector.load %arg10[%c1_186, %c0_187, %c0_188] : memref<2x8x128xf32, #tpu.memory_space<vmem>>, vector<1x8x128xf32>
    %606 = vector.shape_cast %605 : vector<1x8x128xf32> to vector<8x128xf32>
    %607 = vector.shape_cast %595 : vector<8x128xf32> to vector<1x8x128xf32>
    tpu.vector_store %arg10[%c1_186, %c0_187, %c0_188], %607 {strides = array<i32>} : memref<2x8x128xf32, #tpu.memory_space<vmem>>, vector<1x8x128xf32>,
    return
  }
  func.func @transform_0(%arg0: i32) -> (i32, i32, i32) {
    %c0_i32 = arith.constant 0 : i32
    %c0_i32_0 = arith.constant 0 : i32
    %c0_i32_1 = arith.constant 0 : i32
    return %c0_i32, %arg0, %c0_i32_0 : i32, i32, i32
  }
  func.func @transform_1(%arg0: i32) -> (i32, i32) {
    %c0_i32 = arith.constant 0 : i32
    %c0_i32_0 = arith.constant 0 : i32
    %c0_i32_1 = arith.constant 0 : i32
    return %c0_i32, %c0_i32_0 : i32, i32
  }
  func.func @transform_2(%arg0: i32) -> (i32, i32, i32) {
    %c0_i32 = arith.constant 0 : i32
    %c0_i32_0 = arith.constant 0 : i32
    %c0_i32_1 = arith.constant 0 : i32
    %c0_i32_2 = arith.constant 0 : i32
    return %c0_i32, %c0_i32_0, %c0_i32_1 : i32, i32, i32
  }
  func.func @transform_3(%arg0: i32) -> (i32, i32, i32) {
    %c0_i32 = arith.constant 0 : i32
    %c0_i32_0 = arith.constant 0 : i32
    %c0_i32_1 = arith.constant 0 : i32
    %c0_i32_2 = arith.constant 0 : i32
    return %c0_i32, %c0_i32_0, %c0_i32_1 : i32, i32, i32
  }
  func.func @transform_4(%arg0: i32) -> (i32, i32, i32) {
    %c0_i32 = arith.constant 0 : i32
    %c0_i32_0 = arith.constant 0 : i32
    %c0_i32_1 = arith.constant 0 : i32
    %c0_i32_2 = arith.constant 0 : i32
    return %c0_i32, %c0_i32_0, %c0_i32_1 : i32, i32, i32
  }
  func.func @transform_5(%arg0: i32) -> (i32, i32, i32) {
    %c0_i32 = arith.constant 0 : i32
    %c0_i32_0 = arith.constant 0 : i32
    %c0_i32_1 = arith.constant 0 : i32
    return %c0_i32, %arg0, %c0_i32_0 : i32, i32, i32
  }
  func.func @transform_6(%arg0: i32) -> (i32, i32, i32) {
    %c0_i32 = arith.constant 0 : i32
    %c0_i32_0 = arith.constant 0 : i32
    %c0_i32_1 = arith.constant 0 : i32
    return %c0_i32, %arg0, %c0_i32_0 : i32, i32, i32
  }
  func.func @transform_7(%arg0: i32) -> (i32, i32, i32) {
    %c0_i32 = arith.constant 0 : i32
    %c0_i32_0 = arith.constant 0 : i32
    %c0_i32_1 = arith.constant 0 : i32
    return %c0_i32, %arg0, %c0_i32_0 : i32, i32, i32
  }
  func.func @transform_8(%arg0: i32) -> (i32, i32, i32) {
    %c0_i32 = arith.constant 0 : i32
    %c0_i32_0 = arith.constant 0 : i32
    %c0_i32_1 = arith.constant 0 : i32
    return %c0_i32, %arg0, %c0_i32_0 : i32, i32, i32
  }
  func.func @transform_9(%arg0: i32) -> (i32, i32, i32) {
    %c0_i32 = arith.constant 0 : i32
    %c0_i32_0 = arith.constant 0 : i32
    %c0_i32_1 = arith.constant 0 : i32
    return %c0_i32, %arg0, %c0_i32_0 : i32, i32, i32
  }
}

</mosaic_0001>

<llo_original>
// kernel: encoder_decoder_forward.5
$region0: #{encoder_decoder_forward.5}
  #allocation0 [shape = 'u32[]', space=smem, size = 0x4, offset = 0x4, fixed_abs, tag = 'smem constant byte address 0x4 - core index']
  #allocation1 [shape = 'u32[144,128]{1,0:T(1,128)}', space=vmem, size = 0x12000, scoped, tag = 'internal scratch']
  %s0 = inlined_call_operand.vmem [shape: bf16[64,128], index: 0, kind: input, shape index: {}]
  %s1 = inlined_call_operand.vmem [shape: bf16[128,128], index: 1, kind: input, shape index: {}]
  %s2 = inlined_call_operand.vmem [shape: f32[1,128], index: 2, kind: input, shape index: {}]
  %s3 = inlined_call_operand.vmem [shape: bf16[64,128], index: 3, kind: output, shape index: {}]
  %s4 = sld [smem:[#allocation0]]
  $region22: #{encoder_decoder_forward.5} parent=0
    _
  %s6 = ssub.s32 1, %s4
  %s7 = scalar_select 0, %s6, %s4
  // Predicated region
  $region2: #{encoder_decoder_forward.5} parent=0 // pred_check
    _
  $region3: #{encoder_decoder_forward.5} parent=0 // pred_check_branch
    %9 = sbr.rel (0) target = $region5
  $region4: #{encoder_decoder_forward.5} parent=0 // pred_region
    _
  $region5: #{encoder_decoder_forward.5} parent=0 // pred_fallthru
    _
  // Predicated region
  $region6: #{encoder_decoder_forward.5} parent=0 // pred_check
    _
  $region7: #{encoder_decoder_forward.5} parent=0 // pred_check_branch
    %11 = sbr.rel (0) target = $region9
  $region8: #{encoder_decoder_forward.5} parent=0 // pred_region
    _
  $region9: #{encoder_decoder_forward.5} parent=0 // pred_fallthru
    _
  // Predicated region
  $region10: #{encoder_decoder_forward.5} parent=0 // pred_check
    _
  $region11: #{encoder_decoder_forward.5} parent=0 // pred_check_branch
    %13 = sbr.rel (0) target = $region13
  $region12: #{encoder_decoder_forward.5} parent=0 // pred_region
    _
  $region13: #{encoder_decoder_forward.5} parent=0 // pred_fallthru
    _
  %v15 = vld [vmem:[%s0] sm:$0xf]
  %v16 = vld [vmem:[%s0 + $0x4] sm:$0xf]
  %v17 = vld [vmem:[%s0 + $0x8] sm:$0xf]
  %v18 = vld [vmem:[%s0 + $0xc] sm:$0xf]
  %v19 = vld [vmem:[%s0 + $0x10] sm:$0xf]
  %v20 = vld [vmem:[%s0 + $0x14] sm:$0xf]
  %v21 = vld [vmem:[%s0 + $0x18] sm:$0xf]
  %v22 = vld [vmem:[%s0 + $0x1c] sm:$0xf]
  %v23 = vld [vmem:[%s1] sm:$0xf]
  %v24 = vld [vmem:[%s1 + $0x4] sm:$0xf]
  %v25 = vld [vmem:[%s1 + $0x8] sm:$0xf]
  %v26 = vld [vmem:[%s1 + $0xc] sm:$0xf]
  %v27 = vld [vmem:[%s1 + $0x10] sm:$0xf]
  %v28 = vld [vmem:[%s1 + $0x14] sm:$0xf]
  %v29 = vld [vmem:[%s1 + $0x18] sm:$0xf]
  %v30 = vld [vmem:[%s1 + $0x1c] sm:$0xf]
  %v31 = vld [vmem:[%s1 + $0x20] sm:$0xf]
  %v32 = vld [vmem:[%s1 + $0x24] sm:$0xf]
  %v33 = vld [vmem:[%s1 + $0x28] sm:$0xf]
  %v34 = vld [vmem:[%s1 + $0x2c] sm:$0xf]
  %v35 = vld [vmem:[%s1 + $0x30] sm:$0xf]
  %v36 = vld [vmem:[%s1 + $0x34] sm:$0xf]
  %v37 = vld [vmem:[%s1 + $0x38] sm:$0xf]
  %v38 = vld [vmem:[%s1 + $0x3c] sm:$0xf]
  %v39 = vld [vmem:[%s2] sm:$0x1]
  %v41 = vlaneseq
  %v42 = vshrl.u32 %v41, 7
  %v43 = vsub.s32 0, %v42
  %v44 = vrot.slane %v39, %v43
  %v54 = vunpack.c.l.b16 %v15
  %v55 = vunpack.c.l.b16 %v16
  %v56 = vunpack.c.l.b16 %v17
  %v57 = vunpack.c.l.b16 %v18
  %v58 = vunpack.c.l.b16 %v19
  %v59 = vunpack.c.l.b16 %v20
  %v60 = vunpack.c.l.b16 %v21
  %v61 = vunpack.c.l.b16 %v22
  %v62 = vpack.c.b16 %v55, %v54
  %v63 = vpack.c.b16 %v57, %v56
  %v64 = vpack.c.b16 %v59, %v58
  %v65 = vpack.c.b16 %v61, %v60
  %v86 = vunpack.c.l.b16 %v23
  %v87 = vunpack.c.l.b16 %v24
  %v88 = vunpack.c.l.b16 %v25
  %v89 = vunpack.c.l.b16 %v26
  %v90 = vunpack.c.l.b16 %v27
  %v91 = vunpack.c.l.b16 %v28
  %v92 = vunpack.c.l.b16 %v29
  %v93 = vunpack.c.l.b16 %v30
  %v94 = vunpack.c.l.b16 %v31
  %v95 = vunpack.c.l.b16 %v32
  %v96 = vunpack.c.l.b16 %v33
  %v97 = vunpack.c.l.b16 %v34
  %v98 = vunpack.c.l.b16 %v35
  %v99 = vunpack.c.l.b16 %v36
  %v100 = vunpack.c.l.b16 %v37
  %v101 = vunpack.c.l.b16 %v38
  %v102 = vpack.c.b16 %v87, %v86
  %v103 = vpack.c.b16 %v89, %v88
  %v104 = vpack.c.b16 %v91, %v90
  %v105 = vpack.c.b16 %v93, %v92
  %v106 = vpack.c.b16 %v95, %v94
  %v107 = vpack.c.b16 %v97, %v96
  %v108 = vpack.c.b16 %v99, %v98
  %v109 = vpack.c.b16 %v101, %v100
  %118 = vmatprep.subr.bf16.mxu0 0
  %119 = vmatpush1.bf16.msra.mxu0 %v109
  %120 = vmatprep.subr.bf16.mxu0 0
  %121 = vmatpush1.bf16.msra.mxu0 %v108
  %122 = vmatprep.subr.bf16.mxu0 0
  %123 = vmatpush1.bf16.msra.mxu0 %v107
  %124 = vmatprep.subr.bf16.mxu0 0
  %125 = vmatpush1.bf16.msra.mxu0 %v106
  %126 = vmatprep.subr.bf16.mxu0 0
  %127 = vmatpush1.bf16.msra.mxu0 %v105
  %128 = vmatprep.subr.bf16.mxu0 0
  %129 = vmatpush1.bf16.msra.mxu0 %v104
  %130 = vmatprep.subr.bf16.mxu0 0
  %131 = vmatpush1.bf16.msra.mxu0 %v103
  %132 = vmatprep.subr.bf16.mxu0 0
  %133 = vmatpush1.bf16.msra.mxu0 %v102
  %134 = vmatprep.subr.bf16.mxu0 0
  %135 = vmatpush2.bf16.msra.mxu0 0
  %136 = vmatprep.subr.bf16.mxu0 0
  %137 = vmatpush2.bf16.msra.mxu0 0
  %138 = vmatprep.subr.bf16.mxu0 0
  %139 = vmatpush2.bf16.msra.mxu0 0
  %140 = vmatprep.subr.bf16.mxu0 0
  %141 = vmatpush2.bf16.msra.mxu0 0
  %142 = vmatprep.subr.bf16.mxu0 0
  %143 = vmatpush2.bf16.msra.mxu0 0
  %144 = vmatprep.subr.bf16.mxu0 0
  %145 = vmatpush2.bf16.msra.mxu0 0
  %146 = vmatprep.subr.bf16.mxu0 0
  %147 = vmatpush2.bf16.msra.mxu0 0
  %148 = vmatprep.subr.bf16.mxu0 0
  %149 = vmatpush2.bf16.msra.mxu0 0
  %150 = vmatprep.mubr.bf16.mxu0 0
  %151 = vmatmul.mubr.bf16.gmra.mxu0 %v62
  %v152 = vpop.f32.mrf.mxu0
  %v153 = vadd.f32 %v44, %v152
  %v154 = vpop.f32.mrf.mxu0
  %v155 = vpop.f32.mrf.mxu0
  %v156 = vadd.f32 %v44, %v155
  %v157 = vpop.f32.mrf.mxu0
  %158 = vmatprep.mubr.bf16.mxu0 0
  %159 = vmatmul.mubr.bf16.gmra.mxu0 %v63
  %v160 = vpop.f32.mrf.mxu0
  %v161 = vadd.f32 %v44, %v160
  %v162 = vpop.f32.mrf.mxu0
  %v163 = vpop.f32.mrf.mxu0
  %v164 = vadd.f32 %v44, %v163
  %v165 = vpop.f32.mrf.mxu0
  %166 = vmatprep.mubr.bf16.mxu0 0
  %167 = vmatmul.mubr.bf16.gmra.mxu0 %v64
  %v168 = vpop.f32.mrf.mxu0
  %v169 = vadd.f32 %v44, %v168
  %v170 = vpop.f32.mrf.mxu0
  %v171 = vpop.f32.mrf.mxu0
  %v172 = vadd.f32 %v44, %v171
  %v173 = vpop.f32.mrf.mxu0
  %174 = vmatprep.mubr.bf16.mxu0 0
  %175 = vmatmul.mubr.bf16.gmra.mxu0 %v65
  %v176 = vpop.f32.mrf.mxu0
  %v177 = vadd.f32 %v44, %v176
  %v178 = vpop.f32.mrf.mxu0
  %v179 = vpop.f32.mrf.mxu0
  %v180 = vadd.f32 %v44, %v179
  %v181 = vpop.f32.mrf.mxu0
  %182 = vdwg.mxu0
  %v183 = vpack.c.bf16 %v156, %v153
  %v184 = vpack.c.bf16 %v164, %v161
  %v185 = vpack.c.bf16 %v172, %v169
  %v186 = vpack.c.bf16 %v180, %v177
  %v191 = vunpack.c.l.b16 %v183
  %v192 = vunpack.c.h.b16 %v183
  %v193 = vunpack.c.l.b16 %v184
  %v194 = vunpack.c.h.b16 %v184
  %v195 = vunpack.c.l.b16 %v185
  %v196 = vunpack.c.h.b16 %v185
  %v197 = vunpack.c.l.b16 %v186
  %v198 = vunpack.c.h.b16 %v186
  %v199 = vpack.c.b16 %v191, %v191
  %v200 = vpack.c.b16 %v192, %v192
  %v201 = vpack.c.b16 %v193, %v193
  %v202 = vpack.c.b16 %v194, %v194
  %v203 = vpack.c.b16 %v195, %v195
  %v204 = vpack.c.b16 %v196, %v196
  %v205 = vpack.c.b16 %v197, %v197
  %v206 = vpack.c.b16 %v198, %v198
  %215 = vst [vmem:[%s3] sm:$0xf] %v199
  %216 = vst [vmem:[%s3 + $0x4] sm:$0xf] %v200
  %217 = vst [vmem:[%s3 + $0x8] sm:$0xf] %v201
  %218 = vst [vmem:[%s3 + $0xc] sm:$0xf] %v202
  %219 = vst [vmem:[%s3 + $0x10] sm:$0xf] %v203
  %220 = vst [vmem:[%s3 + $0x14] sm:$0xf] %v204
  %221 = vst [vmem:[%s3 + $0x18] sm:$0xf] %v205
  %222 = vst [vmem:[%s3 + $0x1c] sm:$0xf] %v206
  // Predicated region
  $region14: #{encoder_decoder_forward.5} parent=0 // pred_check
    _
  $region15: #{encoder_decoder_forward.5} parent=0 // pred_check_branch
    %224 = sbr.rel (0) target = $region17
  $region16: #{encoder_decoder_forward.5} parent=0 // pred_region
    _
  $region17: #{encoder_decoder_forward.5} parent=0 // pred_fallthru
    _
  // Predicated region
  $region18: #{encoder_decoder_forward.5} parent=0 // pred_check
    _
  $region19: #{encoder_decoder_forward.5} parent=0 // pred_check_branch
    %226 = sbr.rel (0) target = $region21
  $region20: #{encoder_decoder_forward.5} parent=0 // pred_region
    _
  $region21: #{encoder_decoder_forward.5} parent=0 // pred_fallthru
    _

// kernel: encoder_decoder_forward.4
$region0: #{encoder_decoder_forward.4}
  #allocation0 [shape = 'u32[]', space=smem, size = 0x4, offset = 0x4, fixed_abs, tag = 'smem constant byte address 0x4 - core index']
  #allocation1 [shape = 'u32[144,128]{1,0:T(1,128)}', space=vmem, size = 0x12000, scoped, tag = 'internal scratch']
  #allocation2 [shape = 'f32[8,8,512]{2,1,0:T(8,128)}', space=vmem, size = 0x20000, scoped, tag = 'scratch operand']
  %s0 = inlined_call_operand.vmem [shape: bf16[8,8,64], index: 0, kind: input, shape index: {}]
  %s1 = inlined_call_operand.vmem [shape: bf16[64,512], index: 1, kind: input, shape index: {}]
  %s2 = inlined_call_operand.vmem [shape: bf16[1,128,512], index: 2, kind: input, shape index: {}]
  %s3 = inlined_call_operand.vmem [shape: bf16[2,128,512], index: 3, kind: input, shape index: {}]
  %s4 = inlined_call_operand.vmem [shape: f32[2,1,512], index: 4, kind: input, shape index: {}]
  %s5 = inlined_call_operand.vmem [shape: f32[2,8,128], index: 5, kind: input, shape index: {}]
  %s6 = inlined_call_operand.vmem [shape: f32[2,8,128], index: 6, kind: input, shape index: {}]
  %s7 = inlined_call_operand.vmem [shape: f32[8,8,128], index: 7, kind: output, shape index: {0}]
  %s8 = inlined_call_operand.hbm [shape: f32[2,8,128], index: 8, kind: output, shape index: {1}]
  %s9 = inlined_call_operand.hbm [shape: f32[2,8,128], index: 9, kind: output, shape index: {2}]
  %10 = xla_tuple %s7, %s8, %s9
  %s11 = sld [smem:[#allocation0]]
  $region54: #{encoder_decoder_forward.4} parent=0
    _
  %s13 = ssub.s32 1, %s11
  %s14 = scalar_select 0, %s13, %s11
  $region1: #{encoder_decoder_forward.4} parent=0
    #allocation3 [shape = 'u8[8192]{0}', space=vmem, size = 0x2000, scoped, tag = 'output window, operand 1, single buffered']
    #allocation4 [shape = 's32[1]{0}', space=sflag, size = 0x4, scoped, tag = 'scoped memory for encoder_decoder_forward.4']
    #allocation5 [shape = 'u8[8192]{0}', space=vmem, size = 0x2000, scoped, tag = 'output window, operand 2, single buffered']
    #allocation6 [shape = 's32[1]{0}', space=sflag, size = 0x4, scoped, tag = 'scoped memory for encoder_decoder_forward.4']
    %15 = vsyncpa [#allocation4], 0
    %16 = vsyncpa [#allocation6], 0
    // Predicated region
    $region2: #{encoder_decoder_forward.4} parent=1 // pred_check
      _
    $region3: #{encoder_decoder_forward.4} parent=1 // pred_check_branch
      %18 = sbr.rel (0) target = $region5
    $region4: #{encoder_decoder_forward.4} parent=1 // pred_region
      _
    $region5: #{encoder_decoder_forward.4} parent=1 // pred_fallthru
      _
    // Predicated region
    $region6: #{encoder_decoder_forward.4} parent=1 // pred_check
      _
    $region7: #{encoder_decoder_forward.4} parent=1 // pred_check_branch
      %20 = sbr.rel (0) target = $region9
    $region8: #{encoder_decoder_forward.4} parent=1 // pred_region
      _
    $region9: #{encoder_decoder_forward.4} parent=1 // pred_fallthru
      _
    // Predicated region
    $region10: #{encoder_decoder_forward.4} parent=1 // pred_check
      _
    $region11: #{encoder_decoder_forward.4} parent=1 // pred_check_branch
      %22 = sbr.rel (0) target = $region13
    $region12: #{encoder_decoder_forward.4} parent=1 // pred_region
      _
    $region13: #{encoder_decoder_forward.4} parent=1 // pred_fallthru
      _
    // Predicated region
    $region14: #{encoder_decoder_forward.4} parent=1 // pred_check
      _
    $region15: #{encoder_decoder_forward.4} parent=1 // pred_check_branch
      %24 = sbr.rel (0) target = $region17
    $region16: #{encoder_decoder_forward.4} parent=1 // pred_region
      _
    $region17: #{encoder_decoder_forward.4} parent=1 // pred_fallthru
      _
    // Predicated region
    $region18: #{encoder_decoder_forward.4} parent=1 // pred_check
      _
    $region19: #{encoder_decoder_forward.4} parent=1 // pred_check_branch
      %26 = sbr.rel (0) target = $region21
    $region20: #{encoder_decoder_forward.4} parent=1 // pred_region
      _
    $region21: #{encoder_decoder_forward.4} parent=1 // pred_fallthru
      _
    // Predicated region
    $region22: #{encoder_decoder_forward.4} parent=1 // pred_check
      _
    $region23: #{encoder_decoder_forward.4} parent=1 // pred_check_branch
      %28 = sbr.rel (0) target = $region25
    $region24: #{encoder_decoder_forward.4} parent=1 // pred_region
      _
    $region25: #{encoder_decoder_forward.4} parent=1 // pred_fallthru
      _
    // Predicated region
    $region26: #{encoder_decoder_forward.4} parent=1 // pred_check
      _
    $region27: #{encoder_decoder_forward.4} parent=1 // pred_check_branch
      %30 = sbr.rel (0) target = $region29
    $region28: #{encoder_decoder_forward.4} parent=1 // pred_region
      _
    $region29: #{encoder_decoder_forward.4} parent=1 // pred_fallthru
      _
    %v32 = vld [vmem:[%s0] sm:$0xf]
    %v33 = vld [vmem:[%s0 + $0x4] sm:$0xf]
    %v34 = vld [vmem:[%s0 + $0x8] sm:$0xf]
    %v35 = vld [vmem:[%s0 + $0xc] sm:$0xf]
    %v36 = vld [vmem:[%s0 + $0x10] sm:$0xf]
    %v37 = vld [vmem:[%s0 + $0x14] sm:$0xf]
    %v38 = vld [vmem:[%s0 + $0x18] sm:$0xf]
    %v39 = vld [vmem:[%s0 + $0x1c] sm:$0xf]
    %v40 = vld [vmem:[%s1] sm:$0xff]
    %v41 = vld [vmem:[%s1 + $0x8] sm:$0xff]
    %v42 = vld [vmem:[%s1 + $0x10] sm:$0xff]
    %v43 = vld [vmem:[%s1 + $0x18] sm:$0xff]
    %v44 = vld [vmem:[%s1 + $0x20] sm:$0xff]
    %v45 = vld [vmem:[%s1 + $0x28] sm:$0xff]
    %v46 = vld [vmem:[%s1 + $0x30] sm:$0xff]
    %v47 = vld [vmem:[%s1 + $0x38] sm:$0xff]
    %v48 = vld [vmem:[%s1 + $0x40] sm:$0xff]
    %v49 = vld [vmem:[%s1 + $0x48] sm:$0xff]
    %v50 = vld [vmem:[%s1 + $0x50] sm:$0xff]
    %v51 = vld [vmem:[%s1 + $0x58] sm:$0xff]
    %v52 = vld [vmem:[%s1 + $0x60] sm:$0xff]
    %v53 = vld [vmem:[%s1 + $0x68] sm:$0xff]
    %v54 = vld [vmem:[%s1 + $0x70] sm:$0xff]
    %v55 = vld [vmem:[%s1 + $0x78] sm:$0xff]
    %v64 = vunpack.c.l.b16 %v32
    %v65 = vunpack.c.l.b16 %v33
    %v66 = vunpack.c.l.b16 %v34
    %v67 = vunpack.c.l.b16 %v35
    %v68 = vunpack.c.l.b16 %v36
    %v69 = vunpack.c.l.b16 %v37
    %v70 = vunpack.c.l.b16 %v38
    %v71 = vunpack.c.l.b16 %v39
    %v72 = vpack.c.b16 %v65, %v64
    %v73 = vpack.c.b16 %v67, %v66
    %v74 = vpack.c.b16 %v69, %v68
    %v75 = vpack.c.b16 %v71, %v70
    %v92 = vunpack.c.l.b16 %v40
    %v93 = vunpack.c.h.b16 %v40
    %v94 = vunpack.c.l.b16 %v41
    %v95 = vunpack.c.h.b16 %v41
    %v96 = vunpack.c.l.b16 %v42
    %v97 = vunpack.c.h.b16 %v42
    %v98 = vunpack.c.l.b16 %v43
    %v99 = vunpack.c.h.b16 %v43
    %v100 = vunpack.c.l.b16 %v44
    %v101 = vunpack.c.h.b16 %v44
    %v102 = vunpack.c.l.b16 %v45
    %v103 = vunpack.c.h.b16 %v45
    %v104 = vunpack.c.l.b16 %v46
    %v105 = vunpack.c.h.b16 %v46
    %v106 = vunpack.c.l.b16 %v47
    %v107 = vunpack.c.h.b16 %v47
    %v108 = vunpack.c.l.b16 %v48
    %v109 = vunpack.c.h.b16 %v48
    %v110 = vunpack.c.l.b16 %v49
    %v111 = vunpack.c.h.b16 %v49
    %v112 = vunpack.c.l.b16 %v50
    %v113 = vunpack.c.h.b16 %v50
    %v114 = vunpack.c.l.b16 %v51
    %v115 = vunpack.c.h.b16 %v51
    %v116 = vunpack.c.l.b16 %v52
    %v117 = vunpack.c.h.b16 %v52
    %v118 = vunpack.c.l.b16 %v53
    %v119 = vunpack.c.h.b16 %v53
    %v120 = vunpack.c.l.b16 %v54
    %v121 = vunpack.c.h.b16 %v54
    %v122 = vunpack.c.l.b16 %v55
    %v123 = vunpack.c.h.b16 %v55
    %v124 = vpack.c.b16 %v96, %v92
    %v125 = vpack.c.b16 %v97, %v93
    %v126 = vpack.c.b16 %v98, %v94
    %v127 = vpack.c.b16 %v99, %v95
    %v128 = vpack.c.b16 %v104, %v100
    %v129 = vpack.c.b16 %v105, %v101
    %v130 = vpack.c.b16 %v106, %v102
    %v131 = vpack.c.b16 %v107, %v103
    %v132 = vpack.c.b16 %v112, %v108
    %v133 = vpack.c.b16 %v113, %v109
    %v134 = vpack.c.b16 %v114, %v110
    %v135 = vpack.c.b16 %v115, %v111
    %v136 = vpack.c.b16 %v120, %v116
    %v137 = vpack.c.b16 %v121, %v117
    %v138 = vpack.c.b16 %v122, %v118
    %v139 = vpack.c.b16 %v123, %v119
    %vm156 = vcmask 523264
    %v158 = vsel %vm156, %v72, 0
    %v161 = vsel %vm156, %v73, 0
    %v164 = vsel %vm156, %v74, 0
    %v167 = vsel %vm156, %v75, 0
    %169 = vmatprep.subr.bf16.mxu0 0
    %170 = vmatpush1.bf16.msra.mxu0 0
    %171 = vmatprep.subr.bf16.mxu0 0
    %172 = vmatpush1.bf16.msra.mxu0 0
    %173 = vmatprep.subr.bf16.mxu0 0
    %174 = vmatpush1.bf16.msra.mxu0 0
    %175 = vmatprep.subr.bf16.mxu0 0
    %176 = vmatpush1.bf16.msra.mxu0 0
    %177 = vmatprep.subr.bf16.mxu0 %v137
    %178 = vmatpush1.bf16.msra.mxu0 %v136
    %179 = vmatprep.subr.bf16.mxu0 %v133
    %180 = vmatpush1.bf16.msra.mxu0 %v132
    %181 = vmatprep.subr.bf16.mxu0 %v129
    %182 = vmatpush1.bf16.msra.mxu0 %v128
    %183 = vmatprep.subr.bf16.mxu0 %v125
    %184 = vmatpush1.bf16.msra.mxu0 %v124
    %185 = vmatprep.subr.bf16.mxu0 0
    %186 = vmatpush2.bf16.msra.mxu0 0
    %187 = vmatprep.subr.bf16.mxu0 0
    %188 = vmatpush2.bf16.msra.mxu0 0
    %189 = vmatprep.subr.bf16.mxu0 0
    %190 = vmatpush2.bf16.msra.mxu0 0
    %191 = vmatprep.subr.bf16.mxu0 0
    %192 = vmatpush2.bf16.msra.mxu0 0
    %193 = vmatprep.subr.bf16.mxu0 0
    %194 = vmatpush2.bf16.msra.mxu0 0
    %195 = vmatprep.subr.bf16.mxu0 0
    %196 = vmatpush2.bf16.msra.mxu0 0
    %197 = vmatprep.subr.bf16.mxu0 0
    %198 = vmatpush2.bf16.msra.mxu0 0
    %199 = vmatprep.subr.bf16.mxu0 0
    %200 = vmatpush2.bf16.msra.mxu0 0
    %201 = vmatprep.mubr.bf16.mxu0 0
    %202 = vmatmul.mubr.bf16.gmra.mxu0 %v158
    %v203 = vpop.f32.mrf.mxu0
    %v204 = vadd.f32 0.0, %v203
    %v205 = vpop.f32.mrf.mxu0
    %v206 = vadd.f32 0.0, %v205
    %v207 = vpop.f32.mrf.mxu0
    %v208 = vadd.f32 0.0, %v207
    %v209 = vpop.f32.mrf.mxu0
    %v210 = vadd.f32 0.0, %v209
    %211 = vmatprep.mubr.bf16.mxu0 0
    %212 = vmatmul.mubr.bf16.gmra.mxu0 %v161
    %v213 = vpop.f32.mrf.mxu0
    %v214 = vadd.f32 0.0, %v213
    %v215 = vpop.f32.mrf.mxu0
    %v216 = vadd.f32 0.0, %v215
    %v217 = vpop.f32.mrf.mxu0
    %v218 = vadd.f32 0.0, %v217
    %v219 = vpop.f32.mrf.mxu0
    %v220 = vadd.f32 0.0, %v219
    %221 = vmatprep.mubr.bf16.mxu0 0
    %222 = vmatmul.mubr.bf16.gmra.mxu0 %v164
    %v223 = vpop.f32.mrf.mxu0
    %v224 = vadd.f32 0.0, %v223
    %v225 = vpop.f32.mrf.mxu0
    %v226 = vadd.f32 0.0, %v225
    %v227 = vpop.f32.mrf.mxu0
    %v228 = vadd.f32 0.0, %v227
    %v229 = vpop.f32.mrf.mxu0
    %v230 = vadd.f32 0.0, %v229
    %231 = vmatprep.mubr.bf16.mxu0 0
    %232 = vmatmul.mubr.bf16.gmra.mxu0 %v167
    %v233 = vpop.f32.mrf.mxu0
    %v234 = vadd.f32 0.0, %v233
    %v235 = vpop.f32.mrf.mxu0
    %v236 = vadd.f32 0.0, %v235
    %v237 = vpop.f32.mrf.mxu0
    %v238 = vadd.f32 0.0, %v237
    %v239 = vpop.f32.mrf.mxu0
    %v240 = vadd.f32 0.0, %v239
    %241 = vdwg.mxu0
    %242 = vmatprep.subr.bf16.mxu0 0
    %243 = vmatpush1.bf16.msra.mxu0 0
    %244 = vmatprep.subr.bf16.mxu0 0
    %245 = vmatpush1.bf16.msra.mxu0 0
    %246 = vmatprep.subr.bf16.mxu0 0
    %247 = vmatpush1.bf16.msra.mxu0 0
    %248 = vmatprep.subr.bf16.mxu0 0
    %249 = vmatpush1.bf16.msra.mxu0 0
    %250 = vmatprep.subr.bf16.mxu0 %v139
    %251 = vmatpush1.bf16.msra.mxu0 %v138
    %252 = vmatprep.subr.bf16.mxu0 %v135
    %253 = vmatpush1.bf16.msra.mxu0 %v134
    %254 = vmatprep.subr.bf16.mxu0 %v131
    %255 = vmatpush1.bf16.msra.mxu0 %v130
    %256 = vmatprep.subr.bf16.mxu0 %v127
    %257 = vmatpush1.bf16.msra.mxu0 %v126
    %258 = vmatprep.subr.bf16.mxu0 0
    %259 = vmatpush2.bf16.msra.mxu0 0
    %260 = vmatprep.subr.bf16.mxu0 0
    %261 = vmatpush2.bf16.msra.mxu0 0
    %262 = vmatprep.subr.bf16.mxu0 0
    %263 = vmatpush2.bf16.msra.mxu0 0
    %264 = vmatprep.subr.bf16.mxu0 0
    %265 = vmatpush2.bf16.msra.mxu0 0
    %266 = vmatprep.subr.bf16.mxu0 0
    %267 = vmatpush2.bf16.msra.mxu0 0
    %268 = vmatprep.subr.bf16.mxu0 0
    %269 = vmatpush2.bf16.msra.mxu0 0
    %270 = vmatprep.subr.bf16.mxu0 0
    %271 = vmatpush2.bf16.msra.mxu0 0
    %272 = vmatprep.subr.bf16.mxu0 0
    %273 = vmatpush2.bf16.msra.mxu0 0
    %274 = vmatprep.mubr.bf16.mxu0 0
    %275 = vmatmul.mubr.bf16.gmra.mxu0 %v158
    %v276 = vpop.f32.mrf.mxu0
    %v277 = vadd.f32 0.0, %v276
    %v278 = vpop.f32.mrf.mxu0
    %v279 = vadd.f32 0.0, %v278
    %v280 = vpop.f32.mrf.mxu0
    %v281 = vadd.f32 0.0, %v280
    %v282 = vpop.f32.mrf.mxu0
    %v283 = vadd.f32 0.0, %v282
    %284 = vmatprep.mubr.bf16.mxu0 0
    %285 = vmatmul.mubr.bf16.gmra.mxu0 %v161
    %v286 = vpop.f32.mrf.mxu0
    %v287 = vadd.f32 0.0, %v286
    %v288 = vpop.f32.mrf.mxu0
    %v289 = vadd.f32 0.0, %v288
    %v290 = vpop.f32.mrf.mxu0
    %v291 = vadd.f32 0.0, %v290
    %v292 = vpop.f32.mrf.mxu0
    %v293 = vadd.f32 0.0, %v292
    %294 = vmatprep.mubr.bf16.mxu0 0
    %295 = vmatmul.mubr.bf16.gmra.mxu0 %v164
    %v296 = vpop.f32.mrf.mxu0
    %v297 = vadd.f32 0.0, %v296
    %v298 = vpop.f32.mrf.mxu0
    %v299 = vadd.f32 0.0, %v298
    %v300 = vpop.f32.mrf.mxu0
    %v301 = vadd.f32 0.0, %v300
    %v302 = vpop.f32.mrf.mxu0
    %v303 = vadd.f32 0.0, %v302
    %304 = vmatprep.mubr.bf16.mxu0 0
    %305 = vmatmul.mubr.bf16.gmra.mxu0 %v167
    %v306 = vpop.f32.mrf.mxu0
    %v307 = vadd.f32 0.0, %v306
    %v308 = vpop.f32.mrf.mxu0
    %v309 = vadd.f32 0.0, %v308
    %v310 = vpop.f32.mrf.mxu0
    %v311 = vadd.f32 0.0, %v310
    %v312 = vpop.f32.mrf.mxu0
    %v313 = vadd.f32 0.0, %v312
    %314 = vdwg.mxu0
    %v315 = vld [vmem:[%s4] sm:$0xf]
    %v317 = vlaneseq
    %v318 = vshrl.u32 %v317, 7
    %v319 = vsub.s32 0, %v318
    %v320 = vrot.slane %v315, %v319
    %v321 = vlaneseq
    %v322 = vshrl.u32 %v321, 7
    %v323 = vsub.s32 1, %v322
    %v324 = vrot.slane %v315, %v323
    %v325 = vlaneseq
    %v326 = vshrl.u32 %v325, 7
    %v327 = vsub.s32 2, %v326
    %v328 = vrot.slane %v315, %v327
    %v329 = vlaneseq
    %v330 = vshrl.u32 %v329, 7
    %v331 = vsub.s32 3, %v330
    %v332 = vrot.slane %v315, %v331
    %v337 = vadd.f32 %v204, %v320
    %v338 = vadd.f32 %v206, %v324
    %v339 = vadd.f32 %v277, %v328
    %v340 = vadd.f32 %v279, %v332
    %v341 = vadd.f32 %v208, %v320
    %v342 = vadd.f32 %v210, %v324
    %v343 = vadd.f32 %v281, %v328
    %v344 = vadd.f32 %v283, %v332
    %v345 = vadd.f32 %v214, %v320
    %v346 = vadd.f32 %v216, %v324
    %v347 = vadd.f32 %v287, %v328
    %v348 = vadd.f32 %v289, %v332
    %v349 = vadd.f32 %v218, %v320
    %v350 = vadd.f32 %v220, %v324
    %v351 = vadd.f32 %v291, %v328
    %v352 = vadd.f32 %v293, %v332
    %v353 = vadd.f32 %v224, %v320
    %v354 = vadd.f32 %v226, %v324
    %v355 = vadd.f32 %v297, %v328
    %v356 = vadd.f32 %v299, %v332
    %v357 = vadd.f32 %v228, %v320
    %v358 = vadd.f32 %v230, %v324
    %v359 = vadd.f32 %v301, %v328
    %v360 = vadd.f32 %v303, %v332
    %v361 = vadd.f32 %v234, %v320
    %v362 = vadd.f32 %v236, %v324
    %v363 = vadd.f32 %v307, %v328
    %v364 = vadd.f32 %v309, %v332
    %v365 = vadd.f32 %v238, %v320
    %v366 = vadd.f32 %v240, %v324
    %v367 = vadd.f32 %v311, %v328
    %v368 = vadd.f32 %v313, %v332
    %369 = vst [vmem:[#allocation2] sm:$0xff] %v337
    %370 = vst [vmem:[#allocation2 + $0x8] sm:$0xff] %v338
    %371 = vst [vmem:[#allocation2 + $0x10] sm:$0xff] %v339
    %372 = vst [vmem:[#allocation2 + $0x18] sm:$0xff] %v340
    %373 = vst [vmem:[#allocation2 + $0x20] sm:$0xff] %v341
    %374 = vst [vmem:[#allocation2 + $0x28] sm:$0xff] %v342
    %375 = vst [vmem:[#allocation2 + $0x30] sm:$0xff] %v343
    %376 = vst [vmem:[#allocation2 + $0x38] sm:$0xff] %v344
    %377 = vst [vmem:[#allocation2 + $0x40] sm:$0xff] %v345
    %378 = vst [vmem:[#allocation2 + $0x48] sm:$0xff] %v346
    %379 = vst [vmem:[#allocation2 + $0x50] sm:$0xff] %v347
    %380 = vst [vmem:[#allocation2 + $0x58] sm:$0xff] %v348
    %381 = vst [vmem:[#allocation2 + $0x60] sm:$0xff] %v349
    %382 = vst [vmem:[#allocation2 + $0x68] sm:$0xff] %v350
    %383 = vst [vmem:[#allocation2 + $0x70] sm:$0xff] %v351
    %384 = vst [vmem:[#allocation2 + $0x78] sm:$0xff] %v352
    %385 = vst [vmem:[#allocation2 + $0x80] sm:$0xff] %v353
    %386 = vst [vmem:[#allocation2 + $0x88] sm:$0xff] %v354
    %387 = vst [vmem:[#allocation2 + $0x90] sm:$0xff] %v355
    %388 = vst [vmem:[#allocation2 + $0x98] sm:$0xff] %v356
    %389 = vst [vmem:[#allocation2 + $0xa0] sm:$0xff] %v357
    %390 = vst [vmem:[#allocation2 + $0xa8] sm:$0xff] %v358
    %391 = vst [vmem:[#allocation2 + $0xb0] sm:$0xff] %v359
    %392 = vst [vmem:[#allocation2 + $0xb8] sm:$0xff] %v360
    %393 = vst [vmem:[#allocation2 + $0xc0] sm:$0xff] %v361
    %394 = vst [vmem:[#allocation2 + $0xc8] sm:$0xff] %v362
    %395 = vst [vmem:[#allocation2 + $0xd0] sm:$0xff] %v363
    %396 = vst [vmem:[#allocation2 + $0xd8] sm:$0xff] %v364
    %397 = vst [vmem:[#allocation2 + $0xe0] sm:$0xff] %v365
    %398 = vst [vmem:[#allocation2 + $0xe8] sm:$0xff] %v366
    %399 = vst [vmem:[#allocation2 + $0xf0] sm:$0xff] %v367
    %400 = vst [vmem:[#allocation2 + $0xf8] sm:$0xff] %v368
    %v401 = vld [vmem:[%s3] sm:$0xff]
    %v402 = vld [vmem:[%s3 + $0x8] sm:$0xff]
    %v403 = vld [vmem:[%s3 + $0x10] sm:$0xff]
    %v404 = vld [vmem:[%s3 + $0x18] sm:$0xff]
    %v405 = vld [vmem:[%s3 + $0x20] sm:$0xff]
    %v406 = vld [vmem:[%s3 + $0x28] sm:$0xff]
    %v407 = vld [vmem:[%s3 + $0x30] sm:$0xff]
    %v408 = vld [vmem:[%s3 + $0x38] sm:$0xff]
    %v409 = vld [vmem:[%s3 + $0x40] sm:$0xff]
    %v410 = vld [vmem:[%s3 + $0x48] sm:$0xff]
    %v411 = vld [vmem:[%s3 + $0x50] sm:$0xff]
    %v412 = vld [vmem:[%s3 + $0x58] sm:$0xff]
    %v413 = vld [vmem:[%s3 + $0x60] sm:$0xff]
    %v414 = vld [vmem:[%s3 + $0x68] sm:$0xff]
    %v415 = vld [vmem:[%s3 + $0x70] sm:$0xff]
    %v416 = vld [vmem:[%s3 + $0x78] sm:$0xff]
    %v417 = vld [vmem:[%s3 + $0x80] sm:$0xff]
    %v418 = vld [vmem:[%s3 + $0x88] sm:$0xff]
    %v419 = vld [vmem:[%s3 + $0x90] sm:$0xff]
    %v420 = vld [vmem:[%s3 + $0x98] sm:$0xff]
    %v421 = vld [vmem:[%s3 + $0xa0] sm:$0xff]
    %v422 = vld [vmem:[%s3 + $0xa8] sm:$0xff]
    %v423 = vld [vmem:[%s3 + $0xb0] sm:$0xff]
    %v424 = vld [vmem:[%s3 + $0xb8] sm:$0xff]
    %v425 = vld [vmem:[%s3 + $0xc0] sm:$0xff]
    %v426 = vld [vmem:[%s3 + $0xc8] sm:$0xff]
    %v427 = vld [vmem:[%s3 + $0xd0] sm:$0xff]
    %v428 = vld [vmem:[%s3 + $0xd8] sm:$0xff]
    %v429 = vld [vmem:[%s3 + $0xe0] sm:$0xff]
    %v430 = vld [vmem:[%s3 + $0xe8] sm:$0xff]
    %v431 = vld [vmem:[%s3 + $0xf0] sm:$0xff]
    %v432 = vld [vmem:[%s3 + $0xf8] sm:$0xff]
    %v433 = vld [vmem:[%s5] sm:$0xff]
    %v434 = vld [vmem:[%s6] sm:$0xff]
    %v435 = vld [vmem:[#allocation2] sm:$0xff]
    %v436 = vld [vmem:[#allocation2 + $0x8] sm:$0xff]
    %v437 = vld [vmem:[#allocation2 + $0x10] sm:$0xff]
    %v438 = vld [vmem:[#allocation2 + $0x18] sm:$0xff]
    %v439 = vpack.c.bf16 %v433, %v433
    %v472 = vunpack.c.l.b16 %v401
    %v473 = vunpack.c.h.b16 %v401
    %v474 = vunpack.c.l.b16 %v402
    %v475 = vunpack.c.h.b16 %v402
    %v476 = vunpack.c.l.b16 %v403
    %v477 = vunpack.c.h.b16 %v403
    %v478 = vunpack.c.l.b16 %v404
    %v479 = vunpack.c.h.b16 %v404
    %v480 = vunpack.c.l.b16 %v405
    %v481 = vunpack.c.h.b16 %v405
    %v482 = vunpack.c.l.b16 %v406
    %v483 = vunpack.c.h.b16 %v406
    %v484 = vunpack.c.l.b16 %v407
    %v485 = vunpack.c.h.b16 %v407
    %v486 = vunpack.c.l.b16 %v408
    %v487 = vunpack.c.h.b16 %v408
    %v488 = vunpack.c.l.b16 %v409
    %v489 = vunpack.c.h.b16 %v409
    %v490 = vunpack.c.l.b16 %v410
    %v491 = vunpack.c.h.b16 %v410
    %v492 = vunpack.c.l.b16 %v411
    %v493 = vunpack.c.h.b16 %v411
    %v494 = vunpack.c.l.b16 %v412
    %v495 = vunpack.c.h.b16 %v412
    %v496 = vunpack.c.l.b16 %v413
    %v497 = vunpack.c.h.b16 %v413
    %v498 = vunpack.c.l.b16 %v414
    %v499 = vunpack.c.h.b16 %v414
    %v500 = vunpack.c.l.b16 %v415
    %v501 = vunpack.c.h.b16 %v415
    %v502 = vunpack.c.l.b16 %v416
    %v503 = vunpack.c.h.b16 %v416
    %v504 = vunpack.c.l.b16 %v417
    %v505 = vunpack.c.h.b16 %v417
    %v506 = vunpack.c.l.b16 %v418
    %v507 = vunpack.c.h.b16 %v418
    %v508 = vunpack.c.l.b16 %v419
    %v509 = vunpack.c.h.b16 %v419
    %v510 = vunpack.c.l.b16 %v420
    %v511 = vunpack.c.h.b16 %v420
    %v512 = vunpack.c.l.b16 %v421
    %v513 = vunpack.c.h.b16 %v421
    %v514 = vunpack.c.l.b16 %v422
    %v515 = vunpack.c.h.b16 %v422
    %v516 = vunpack.c.l.b16 %v423
    %v517 = vunpack.c.h.b16 %v423
    %v518 = vunpack.c.l.b16 %v424
    %v519 = vunpack.c.h.b16 %v424
    %v520 = vunpack.c.l.b16 %v425
    %v521 = vunpack.c.h.b16 %v425
    %v522 = vunpack.c.l.b16 %v426
    %v523 = vunpack.c.h.b16 %v426
    %v524 = vunpack.c.l.b16 %v427
    %v525 = vunpack.c.h.b16 %v427
    %v526 = vunpack.c.l.b16 %v428
    %v527 = vunpack.c.h.b16 %v428
    %v528 = vunpack.c.l.b16 %v429
    %v529 = vunpack.c.h.b16 %v429
    %v530 = vunpack.c.l.b16 %v430
    %v531 = vunpack.c.h.b16 %v430
    %v532 = vunpack.c.l.b16 %v431
    %v533 = vunpack.c.h.b16 %v431
    %v534 = vunpack.c.l.b16 %v432
    %v535 = vunpack.c.h.b16 %v432
    %v536 = vpack.c.b16 %v476, %v472
    %v537 = vpack.c.b16 %v477, %v473
    %v538 = vpack.c.b16 %v478, %v474
    %v539 = vpack.c.b16 %v479, %v475
    %v540 = vpack.c.b16 %v484, %v480
    %v541 = vpack.c.b16 %v485, %v481
    %v542 = vpack.c.b16 %v486, %v482
    %v543 = vpack.c.b16 %v487, %v483
    %v544 = vpack.c.b16 %v492, %v488
    %v545 = vpack.c.b16 %v493, %v489
    %v546 = vpack.c.b16 %v494, %v490
    %v547 = vpack.c.b16 %v495, %v491
    %v548 = vpack.c.b16 %v500, %v496
    %v549 = vpack.c.b16 %v501, %v497
    %v550 = vpack.c.b16 %v502, %v498
    %v551 = vpack.c.b16 %v503, %v499
    %v552 = vpack.c.b16 %v508, %v504
    %v553 = vpack.c.b16 %v509, %v505
    %v554 = vpack.c.b16 %v510, %v506
    %v555 = vpack.c.b16 %v511, %v507
    %v556 = vpack.c.b16 %v516, %v512
    %v557 = vpack.c.b16 %v517, %v513
    %v558 = vpack.c.b16 %v518, %v514
    %v559 = vpack.c.b16 %v519, %v515
    %v560 = vpack.c.b16 %v524, %v520
    %v561 = vpack.c.b16 %v525, %v521
    %v562 = vpack.c.b16 %v526, %v522
    %v563 = vpack.c.b16 %v527, %v523
    %v564 = vpack.c.b16 %v532, %v528
    %v565 = vpack.c.b16 %v533, %v529
    %v566 = vpack.c.b16 %v534, %v530
    %v567 = vpack.c.b16 %v535, %v531
    %600 = vmatprep.subr.bf16.mxu0 %v565
    %601 = vmatpush1.bf16.msra.mxu0 %v564
    %602 = vmatprep.subr.bf16.mxu0 %v561
    %603 = vmatpush1.bf16.msra.mxu0 %v560
    %604 = vmatprep.subr.bf16.mxu0 %v557
    %605 = vmatpush1.bf16.msra.mxu0 %v556
    %606 = vmatprep.subr.bf16.mxu0 %v553
    %607 = vmatpush1.bf16.msra.mxu0 %v552
    %608 = vmatprep.subr.bf16.mxu0 %v549
    %609 = vmatpush1.bf16.msra.mxu0 %v548
    %610 = vmatprep.subr.bf16.mxu0 %v545
    %611 = vmatpush1.bf16.msra.mxu0 %v544
    %612 = vmatprep.subr.bf16.mxu0 %v541
    %613 = vmatpush1.bf16.msra.mxu0 %v540
    %614 = vmatprep.subr.bf16.mxu0 %v537
    %615 = vmatpush1.bf16.msra.mxu0 %v536
    %616 = vmatprep.subr.bf16.mxu0 0
    %617 = vmatpush2.bf16.msra.mxu0 0
    %618 = vmatprep.subr.bf16.mxu0 0
    %619 = vmatpush2.bf16.msra.mxu0 0
    %620 = vmatprep.subr.bf16.mxu0 0
    %621 = vmatpush2.bf16.msra.mxu0 0
    %622 = vmatprep.subr.bf16.mxu0 0
    %623 = vmatpush2.bf16.msra.mxu0 0
    %624 = vmatprep.subr.bf16.mxu0 0
    %625 = vmatpush2.bf16.msra.mxu0 0
    %626 = vmatprep.subr.bf16.mxu0 0
    %627 = vmatpush2.bf16.msra.mxu0 0
    %628 = vmatprep.subr.bf16.mxu0 0
    %629 = vmatpush2.bf16.msra.mxu0 0
    %630 = vmatprep.subr.bf16.mxu0 0
    %631 = vmatpush2.bf16.msra.mxu0 0
    %632 = vmatprep.mubr.bf16.mxu0 0
    %633 = vmatmul.mubr.bf16.gmra.mxu0 %v439
    %v634 = vpop.f32.mrf.mxu0
    %v635 = vadd.f32 0.0, %v634
    %v636 = vpop.f32.mrf.mxu0
    %v637 = vadd.f32 0.0, %v636
    %v638 = vpop.f32.mrf.mxu0
    %v639 = vpop.f32.mrf.mxu0
    %640 = vdwg.mxu0
    %641 = vmatprep.subr.bf16.mxu0 %v567
    %642 = vmatpush1.bf16.msra.mxu0 %v566
    %643 = vmatprep.subr.bf16.mxu0 %v563
    %644 = vmatpush1.bf16.msra.mxu0 %v562
    %645 = vmatprep.subr.bf16.mxu0 %v559
    %646 = vmatpush1.bf16.msra.mxu0 %v558
    %647 = vmatprep.subr.bf16.mxu0 %v555
    %648 = vmatpush1.bf16.msra.mxu0 %v554
    %649 = vmatprep.subr.bf16.mxu0 %v551
    %650 = vmatpush1.bf16.msra.mxu0 %v550
    %651 = vmatprep.subr.bf16.mxu0 %v547
    %652 = vmatpush1.bf16.msra.mxu0 %v546
    %653 = vmatprep.subr.bf16.mxu0 %v543
    %654 = vmatpush1.bf16.msra.mxu0 %v542
    %655 = vmatprep.subr.bf16.mxu0 %v539
    %656 = vmatpush1.bf16.msra.mxu0 %v538
    %657 = vmatprep.subr.bf16.mxu0 0
    %658 = vmatpush2.bf16.msra.mxu0 0
    %659 = vmatprep.subr.bf16.mxu0 0
    %660 = vmatpush2.bf16.msra.mxu0 0
    %661 = vmatprep.subr.bf16.mxu0 0
    %662 = vmatpush2.bf16.msra.mxu0 0
    %663 = vmatprep.subr.bf16.mxu0 0
    %664 = vmatpush2.bf16.msra.mxu0 0
    %665 = vmatprep.subr.bf16.mxu0 0
    %666 = vmatpush2.bf16.msra.mxu0 0
    %667 = vmatprep.subr.bf16.mxu0 0
    %668 = vmatpush2.bf16.msra.mxu0 0
    %669 = vmatprep.subr.bf16.mxu0 0
    %670 = vmatpush2.bf16.msra.mxu0 0
    %671 = vmatprep.subr.bf16.mxu0 0
    %672 = vmatpush2.bf16.msra.mxu0 0
    %673 = vmatprep.mubr.bf16.mxu0 0
    %674 = vmatmul.mubr.bf16.gmra.mxu0 %v439
    %v675 = vpop.f32.mrf.mxu0
    %v676 = vadd.f32 0.0, %v675
    %v677 = vpop.f32.mrf.mxu0
    %v678 = vadd.f32 0.0, %v677
    %v679 = vpop.f32.mrf.mxu0
    %v680 = vpop.f32.mrf.mxu0
    %681 = vdwg.mxu0
    %v682 = vadd.f32 %v435, %v635
    %v683 = vadd.f32 %v436, %v637
    %v684 = vadd.f32 %v437, %v676
    %v685 = vadd.f32 %v438, %v678
    %v686 = vxor.u32 %v682, 2147483648
    %v687 = vmul.f32 %v686, 1.442695
    %v688 = vpow.pop %v687
    %v689 = vadd.f32 %v688, 1.0
    %v690 = vrcp.pop %v689
    %v691 = vmul.f32 1.0, %v690
    %v692 = vxor.u32 %v683, 2147483648
    %v693 = vmul.f32 %v692, 1.442695
    %v694 = vpow.pop %v693
    %v695 = vadd.f32 %v694, 1.0
    %v696 = vrcp.pop %v695
    %v697 = vmul.f32 1.0, %v696
    %v698 = vtanh.pop %v684
    %v699 = vxor.u32 %v685, 2147483648
    %v700 = vmul.f32 %v699, 1.442695
    %v701 = vpow.pop %v700
    %v702 = vadd.f32 %v701, 1.0
    %v703 = vrcp.pop %v702
    %v704 = vmul.f32 1.0, %v703
    %v705 = vmul.f32 %v697, %v434
    %v706 = vmul.f32 %v691, %v698
    %v707 = vadd.f32 %v705, %v706
    %v708 = vtanh.pop %v707
    %v709 = vmul.f32 %v704, %v708
    %710 = vst [vmem:[%s7] sm:$0xff] %v709
    %s711 = scalar_lea.vmem [#allocation2], 32
    %v712 = vld [vmem:[%s711] sm:$0xff]
    %v713 = vld [vmem:[%s711 + $0x8] sm:$0xff]
    %v714 = vld [vmem:[%s711 + $0x10] sm:$0xff]
    %v715 = vld [vmem:[%s711 + $0x18] sm:$0xff]
    %v716 = vpack.c.bf16 %v709, %v709
    %717 = vmatprep.subr.bf16.mxu0 %v565
    %718 = vmatpush1.bf16.msra.mxu0 %v564
    %719 = vmatprep.subr.bf16.mxu0 %v561
    %720 = vmatpush1.bf16.msra.mxu0 %v560
    %721 = vmatprep.subr.bf16.mxu0 %v557
    %722 = vmatpush1.bf16.msra.mxu0 %v556
    %723 = vmatprep.subr.bf16.mxu0 %v553
    %724 = vmatpush1.bf16.msra.mxu0 %v552
    %725 = vmatprep.subr.bf16.mxu0 %v549
    %726 = vmatpush1.bf16.msra.mxu0 %v548
    %727 = vmatprep.subr.bf16.mxu0 %v545
    %728 = vmatpush1.bf16.msra.mxu0 %v544
    %729 = vmatprep.subr.bf16.mxu0 %v541
    %730 = vmatpush1.bf16.msra.mxu0 %v540
    %731 = vmatprep.subr.bf16.mxu0 %v537
    %732 = vmatpush1.bf16.msra.mxu0 %v536
    %733 = vmatprep.subr.bf16.mxu0 0
    %734 = vmatpush2.bf16.msra.mxu0 0
    %735 = vmatprep.subr.bf16.mxu0 0
    %736 = vmatpush2.bf16.msra.mxu0 0
    %737 = vmatprep.subr.bf16.mxu0 0
    %738 = vmatpush2.bf16.msra.mxu0 0
    %739 = vmatprep.subr.bf16.mxu0 0
    %740 = vmatpush2.bf16.msra.mxu0 0
    %741 = vmatprep.subr.bf16.mxu0 0
    %742 = vmatpush2.bf16.msra.mxu0 0
    %743 = vmatprep.subr.bf16.mxu0 0
    %744 = vmatpush2.bf16.msra.mxu0 0
    %745 = vmatprep.subr.bf16.mxu0 0
    %746 = vmatpush2.bf16.msra.mxu0 0
    %747 = vmatprep.subr.bf16.mxu0 0
    %748 = vmatpush2.bf16.msra.mxu0 0
    %749 = vmatprep.mubr.bf16.mxu0 0
    %750 = vmatmul.mubr.bf16.gmra.mxu0 %v716
    %v751 = vpop.f32.mrf.mxu0
    %v752 = vadd.f32 0.0, %v751
    %v753 = vpop.f32.mrf.mxu0
    %v754 = vadd.f32 0.0, %v753
    %v755 = vpop.f32.mrf.mxu0
    %v756 = vpop.f32.mrf.mxu0
    %757 = vdwg.mxu0
    %758 = vmatprep.subr.bf16.mxu0 %v567
    %759 = vmatpush1.bf16.msra.mxu0 %v566
    %760 = vmatprep.subr.bf16.mxu0 %v563
    %761 = vmatpush1.bf16.msra.mxu0 %v562
    %762 = vmatprep.subr.bf16.mxu0 %v559
    %763 = vmatpush1.bf16.msra.mxu0 %v558
    %764 = vmatprep.subr.bf16.mxu0 %v555
    %765 = vmatpush1.bf16.msra.mxu0 %v554
    %766 = vmatprep.subr.bf16.mxu0 %v551
    %767 = vmatpush1.bf16.msra.mxu0 %v550
    %768 = vmatprep.subr.bf16.mxu0 %v547
    %769 = vmatpush1.bf16.msra.mxu0 %v546
    %770 = vmatprep.subr.bf16.mxu0 %v543
    %771 = vmatpush1.bf16.msra.mxu0 %v542
    %772 = vmatprep.subr.bf16.mxu0 %v539
    %773 = vmatpush1.bf16.msra.mxu0 %v538
    %774 = vmatprep.subr.bf16.mxu0 0
    %775 = vmatpush2.bf16.msra.mxu0 0
    %776 = vmatprep.subr.bf16.mxu0 0
    %777 = vmatpush2.bf16.msra.mxu0 0
    %778 = vmatprep.subr.bf16.mxu0 0
    %779 = vmatpush2.bf16.msra.mxu0 0
    %780 = vmatprep.subr.bf16.mxu0 0
    %781 = vmatpush2.bf16.msra.mxu0 0
    %782 = vmatprep.subr.bf16.mxu0 0
    %783 = vmatpush2.bf16.msra.mxu0 0
    %784 = vmatprep.subr.bf16.mxu0 0
    %785 = vmatpush2.bf16.msra.mxu0 0
    %786 = vmatprep.subr.bf16.mxu0 0
    %787 = vmatpush2.bf16.msra.mxu0 0
    %788 = vmatprep.subr.bf16.mxu0 0
    %789 = vmatpush2.bf16.msra.mxu0 0
    %790 = vmatprep.mubr.bf16.mxu0 0
    %791 = vmatmul.mubr.bf16.gmra.mxu0 %v716
    %v792 = vpop.f32.mrf.mxu0
    %v793 = vadd.f32 0.0, %v792
    %v794 = vpop.f32.mrf.mxu0
    %v795 = vadd.f32 0.0, %v794
    %v796 = vpop.f32.mrf.mxu0
    %v797 = vpop.f32.mrf.mxu0
    %798 = vdwg.mxu0
    %v799 = vadd.f32 %v712, %v752
    %v800 = vadd.f32 %v713, %v754
    %v801 = vadd.f32 %v714, %v793
    %v802 = vadd.f32 %v715, %v795
    %v803 = vxor.u32 %v799, 2147483648
    %v804 = vmul.f32 %v803, 1.442695
    %v805 = vpow.pop %v804
    %v806 = vadd.f32 %v805, 1.0
    %v807 = vrcp.pop %v806
    %v808 = vmul.f32 1.0, %v807
    %v809 = vxor.u32 %v800, 2147483648
    %v810 = vmul.f32 %v809, 1.442695
    %v811 = vpow.pop %v810
    %v812 = vadd.f32 %v811, 1.0
    %v813 = vrcp.pop %v812
    %v814 = vmul.f32 1.0, %v813
    %v815 = vtanh.pop %v801
    %v816 = vxor.u32 %v802, 2147483648
    %v817 = vmul.f32 %v816, 1.442695
    %v818 = vpow.pop %v817
    %v819 = vadd.f32 %v818, 1.0
    %v820 = vrcp.pop %v819
    %v821 = vmul.f32 1.0, %v820
    %v822 = vmul.f32 %v814, %v707
    %v823 = vmul.f32 %v808, %v815
    %v824 = vadd.f32 %v822, %v823
    %v825 = vtanh.pop %v824
    %v826 = vmul.f32 %v821, %v825
    %s827 = scalar_lea.vmem %s7, 8
    %828 = vst [vmem:[%s827] sm:$0xff] %v826
    %s829 = scalar_lea.vmem [#allocation2], 64
    %v830 = vld [vmem:[%s829] sm:$0xff]
    %v831 = vld [vmem:[%s829 + $0x8] sm:$0xff]
    %v832 = vld [vmem:[%s829 + $0x10] sm:$0xff]
    %v833 = vld [vmem:[%s829 + $0x18] sm:$0xff]
    %v834 = vpack.c.bf16 %v826, %v826
    %835 = vmatprep.subr.bf16.mxu0 %v565
    %836 = vmatpush1.bf16.msra.mxu0 %v564
    %837 = vmatprep.subr.bf16.mxu0 %v561
    %838 = vmatpush1.bf16.msra.mxu0 %v560
    %839 = vmatprep.subr.bf16.mxu0 %v557
    %840 = vmatpush1.bf16.msra.mxu0 %v556
    %841 = vmatprep.subr.bf16.mxu0 %v553
    %842 = vmatpush1.bf16.msra.mxu0 %v552
    %843 = vmatprep.subr.bf16.mxu0 %v549
    %844 = vmatpush1.bf16.msra.mxu0 %v548
    %845 = vmatprep.subr.bf16.mxu0 %v545
    %846 = vmatpush1.bf16.msra.mxu0 %v544
    %847 = vmatprep.subr.bf16.mxu0 %v541
    %848 = vmatpush1.bf16.msra.mxu0 %v540
    %849 = vmatprep.subr.bf16.mxu0 %v537
    %850 = vmatpush1.bf16.msra.mxu0 %v536
    %851 = vmatprep.subr.bf16.mxu0 0
    %852 = vmatpush2.bf16.msra.mxu0 0
    %853 = vmatprep.subr.bf16.mxu0 0
    %854 = vmatpush2.bf16.msra.mxu0 0
    %855 = vmatprep.subr.bf16.mxu0 0
    %856 = vmatpush2.bf16.msra.mxu0 0
    %857 = vmatprep.subr.bf16.mxu0 0
    %858 = vmatpush2.bf16.msra.mxu0 0
    %859 = vmatprep.subr.bf16.mxu0 0
    %860 = vmatpush2.bf16.msra.mxu0 0
    %861 = vmatprep.subr.bf16.mxu0 0
    %862 = vmatpush2.bf16.msra.mxu0 0
    %863 = vmatprep.subr.bf16.mxu0 0
    %864 = vmatpush2.bf16.msra.mxu0 0
    %865 = vmatprep.subr.bf16.mxu0 0
    %866 = vmatpush2.bf16.msra.mxu0 0
    %867 = vmatprep.mubr.bf16.mxu0 0
    %868 = vmatmul.mubr.bf16.gmra.mxu0 %v834
    %v869 = vpop.f32.mrf.mxu0
    %v870 = vadd.f32 0.0, %v869
    %v871 = vpop.f32.mrf.mxu0
    %v872 = vadd.f32 0.0, %v871
    %v873 = vpop.f32.mrf.mxu0
    %v874 = vpop.f32.mrf.mxu0
    %875 = vdwg.mxu0
    %876 = vmatprep.subr.bf16.mxu0 %v567
    %877 = vmatpush1.bf16.msra.mxu0 %v566
    %878 = vmatprep.subr.bf16.mxu0 %v563
    %879 = vmatpush1.bf16.msra.mxu0 %v562
    %880 = vmatprep.subr.bf16.mxu0 %v559
    %881 = vmatpush1.bf16.msra.mxu0 %v558
    %882 = vmatprep.subr.bf16.mxu0 %v555
    %883 = vmatpush1.bf16.msra.mxu0 %v554
    %884 = vmatprep.subr.bf16.mxu0 %v551
    %885 = vmatpush1.bf16.msra.mxu0 %v550
    %886 = vmatprep.subr.bf16.mxu0 %v547
    %887 = vmatpush1.bf16.msra.mxu0 %v546
    %888 = vmatprep.subr.bf16.mxu0 %v543
    %889 = vmatpush1.bf16.msra.mxu0 %v542
    %890 = vmatprep.subr.bf16.mxu0 %v539
    %891 = vmatpush1.bf16.msra.mxu0 %v538
    %892 = vmatprep.subr.bf16.mxu0 0
    %893 = vmatpush2.bf16.msra.mxu0 0
    %894 = vmatprep.subr.bf16.mxu0 0
    %895 = vmatpush2.bf16.msra.mxu0 0
    %896 = vmatprep.subr.bf16.mxu0 0
    %897 = vmatpush2.bf16.msra.mxu0 0
    %898 = vmatprep.subr.bf16.mxu0 0
    %899 = vmatpush2.bf16.msra.mxu0 0
    %900 = vmatprep.subr.bf16.mxu0 0
    %901 = vmatpush2.bf16.msra.mxu0 0
    %902 = vmatprep.subr.bf16.mxu0 0
    %903 = vmatpush2.bf16.msra.mxu0 0
    %904 = vmatprep.subr.bf16.mxu0 0
    %905 = vmatpush2.bf16.msra.mxu0 0
    %906 = vmatprep.subr.bf16.mxu0 0
    %907 = vmatpush2.bf16.msra.mxu0 0
    %908 = vmatprep.mubr.bf16.mxu0 0
    %909 = vmatmul.mubr.bf16.gmra.mxu0 %v834
    %v910 = vpop.f32.mrf.mxu0
    %v911 = vadd.f32 0.0, %v910
    %v912 = vpop.f32.mrf.mxu0
    %v913 = vadd.f32 0.0, %v912
    %v914 = vpop.f32.mrf.mxu0
    %v915 = vpop.f32.mrf.mxu0
    %916 = vdwg.mxu0
    %v917 = vadd.f32 %v830, %v870
    %v918 = vadd.f32 %v831, %v872
    %v919 = vadd.f32 %v832, %v911
    %v920 = vadd.f32 %v833, %v913
    %v921 = vxor.u32 %v917, 2147483648
    %v922 = vmul.f32 %v921, 1.442695
    %v923 = vpow.pop %v922
    %v924 = vadd.f32 %v923, 1.0
    %v925 = vrcp.pop %v924
    %v926 = vmul.f32 1.0, %v925
    %v927 = vxor.u32 %v918, 2147483648
    %v928 = vmul.f32 %v927, 1.442695
    %v929 = vpow.pop %v928
    %v930 = vadd.f32 %v929, 1.0
    %v931 = vrcp.pop %v930
    %v932 = vmul.f32 1.0, %v931
    %v933 = vtanh.pop %v919
    %v934 = vxor.u32 %v920, 2147483648
    %v935 = vmul.f32 %v934, 1.442695
    %v936 = vpow.pop %v935
    %v937 = vadd.f32 %v936, 1.0
    %v938 = vrcp.pop %v937
    %v939 = vmul.f32 1.0, %v938
    %v940 = vmul.f32 %v932, %v824
    %v941 = vmul.f32 %v926, %v933
    %v942 = vadd.f32 %v940, %v941
    %v943 = vtanh.pop %v942
    %v944 = vmul.f32 %v939, %v943
    %s945 = scalar_lea.vmem %s7, 16
    %946 = vst [vmem:[%s945] sm:$0xff] %v944
    %s947 = scalar_lea.vmem [#allocation2], 96
    %v948 = vld [vmem:[%s947] sm:$0xff]
    %v949 = vld [vmem:[%s947 + $0x8] sm:$0xff]
    %v950 = vld [vmem:[%s947 + $0x10] sm:$0xff]
    %v951 = vld [vmem:[%s947 + $0x18] sm:$0xff]
    %v952 = vpack.c.bf16 %v944, %v944
    %953 = vmatprep.subr.bf16.mxu0 %v565
    %954 = vmatpush1.bf16.msra.mxu0 %v564
    %955 = vmatprep.subr.bf16.mxu0 %v561
    %956 = vmatpush1.bf16.msra.mxu0 %v560
    %957 = vmatprep.subr.bf16.mxu0 %v557
    %958 = vmatpush1.bf16.msra.mxu0 %v556
    %959 = vmatprep.subr.bf16.mxu0 %v553
    %960 = vmatpush1.bf16.msra.mxu0 %v552
    %961 = vmatprep.subr.bf16.mxu0 %v549
    %962 = vmatpush1.bf16.msra.mxu0 %v548
    %963 = vmatprep.subr.bf16.mxu0 %v545
    %964 = vmatpush1.bf16.msra.mxu0 %v544
    %965 = vmatprep.subr.bf16.mxu0 %v541
    %966 = vmatpush1.bf16.msra.mxu0 %v540
    %967 = vmatprep.subr.bf16.mxu0 %v537
    %968 = vmatpush1.bf16.msra.mxu0 %v536
    %969 = vmatprep.subr.bf16.mxu0 0
    %970 = vmatpush2.bf16.msra.mxu0 0
    %971 = vmatprep.subr.bf16.mxu0 0
    %972 = vmatpush2.bf16.msra.mxu0 0
    %973 = vmatprep.subr.bf16.mxu0 0
    %974 = vmatpush2.bf16.msra.mxu0 0
    %975 = vmatprep.subr.bf16.mxu0 0
    %976 = vmatpush2.bf16.msra.mxu0 0
    %977 = vmatprep.subr.bf16.mxu0 0
    %978 = vmatpush2.bf16.msra.mxu0 0
    %979 = vmatprep.subr.bf16.mxu0 0
    %980 = vmatpush2.bf16.msra.mxu0 0
    %981 = vmatprep.subr.bf16.mxu0 0
    %982 = vmatpush2.bf16.msra.mxu0 0
    %983 = vmatprep.subr.bf16.mxu0 0
    %984 = vmatpush2.bf16.msra.mxu0 0
    %985 = vmatprep.mubr.bf16.mxu0 0
    %986 = vmatmul.mubr.bf16.gmra.mxu0 %v952
    %v987 = vpop.f32.mrf.mxu0
    %v988 = vadd.f32 0.0, %v987
    %v989 = vpop.f32.mrf.mxu0
    %v990 = vadd.f32 0.0, %v989
    %v991 = vpop.f32.mrf.mxu0
    %v992 = vpop.f32.mrf.mxu0
    %993 = vdwg.mxu0
    %994 = vmatprep.subr.bf16.mxu0 %v567
    %995 = vmatpush1.bf16.msra.mxu0 %v566
    %996 = vmatprep.subr.bf16.mxu0 %v563
    %997 = vmatpush1.bf16.msra.mxu0 %v562
    %998 = vmatprep.subr.bf16.mxu0 %v559
    %999 = vmatpush1.bf16.msra.mxu0 %v558
    %1000 = vmatprep.subr.bf16.mxu0 %v555
    %1001 = vmatpush1.bf16.msra.mxu0 %v554
    %1002 = vmatprep.subr.bf16.mxu0 %v551
    %1003 = vmatpush1.bf16.msra.mxu0 %v550
    %1004 = vmatprep.subr.bf16.mxu0 %v547
    %1005 = vmatpush1.bf16.msra.mxu0 %v546
    %1006 = vmatprep.subr.bf16.mxu0 %v543
    %1007 = vmatpush1.bf16.msra.mxu0 %v542
    %1008 = vmatprep.subr.bf16.mxu0 %v539
    %1009 = vmatpush1.bf16.msra.mxu0 %v538
    %1010 = vmatprep.subr.bf16.mxu0 0
    %1011 = vmatpush2.bf16.msra.mxu0 0
    %1012 = vmatprep.subr.bf16.mxu0 0
    %1013 = vmatpush2.bf16.msra.mxu0 0
    %1014 = vmatprep.subr.bf16.mxu0 0
    %1015 = vmatpush2.bf16.msra.mxu0 0
    %1016 = vmatprep.subr.bf16.mxu0 0
    %1017 = vmatpush2.bf16.msra.mxu0 0
    %1018 = vmatprep.subr.bf16.mxu0 0
    %1019 = vmatpush2.bf16.msra.mxu0 0
    %1020 = vmatprep.subr.bf16.mxu0 0
    %1021 = vmatpush2.bf16.msra.mxu0 0
    %1022 = vmatprep.subr.bf16.mxu0 0
    %1023 = vmatpush2.bf16.msra.mxu0 0
    %1024 = vmatprep.subr.bf16.mxu0 0
    %1025 = vmatpush2.bf16.msra.mxu0 0
    %1026 = vmatprep.mubr.bf16.mxu0 0
    %1027 = vmatmul.mubr.bf16.gmra.mxu0 %v952
    %v1028 = vpop.f32.mrf.mxu0
    %v1029 = vadd.f32 0.0, %v1028
    %v1030 = vpop.f32.mrf.mxu0
    %v1031 = vadd.f32 0.0, %v1030
    %v1032 = vpop.f32.mrf.mxu0
    %v1033 = vpop.f32.mrf.mxu0
    %1034 = vdwg.mxu0
    %v1035 = vadd.f32 %v948, %v988
    %v1036 = vadd.f32 %v949, %v990
    %v1037 = vadd.f32 %v950, %v1029
    %v1038 = vadd.f32 %v951, %v1031
    %v1039 = vxor.u32 %v1035, 2147483648
    %v1040 = vmul.f32 %v1039, 1.442695
    %v1041 = vpow.pop %v1040
    %v1042 = vadd.f32 %v1041, 1.0
    %v1043 = vrcp.pop %v1042
    %v1044 = vmul.f32 1.0, %v1043
    %v1045 = vxor.u32 %v1036, 2147483648
    %v1046 = vmul.f32 %v1045, 1.442695
    %v1047 = vpow.pop %v1046
    %v1048 = vadd.f32 %v1047, 1.0
    %v1049 = vrcp.pop %v1048
    %v1050 = vmul.f32 1.0, %v1049
    %v1051 = vtanh.pop %v1037
    %v1052 = vxor.u32 %v1038, 2147483648
    %v1053 = vmul.f32 %v1052, 1.442695
    %v1054 = vpow.pop %v1053
    %v1055 = vadd.f32 %v1054, 1.0
    %v1056 = vrcp.pop %v1055
    %v1057 = vmul.f32 1.0, %v1056
    %v1058 = vmul.f32 %v1050, %v942
    %v1059 = vmul.f32 %v1044, %v1051
    %v1060 = vadd.f32 %v1058, %v1059
    %v1061 = vtanh.pop %v1060
    %v1062 = vmul.f32 %v1057, %v1061
    %s1063 = scalar_lea.vmem %s7, 24
    %1064 = vst [vmem:[%s1063] sm:$0xff] %v1062
    %s1065 = scalar_lea.vmem [#allocation2], 128
    %v1066 = vld [vmem:[%s1065] sm:$0xff]
    %v1067 = vld [vmem:[%s1065 + $0x8] sm:$0xff]
    %v1068 = vld [vmem:[%s1065 + $0x10] sm:$0xff]
    %v1069 = vld [vmem:[%s1065 + $0x18] sm:$0xff]
    %v1070 = vpack.c.bf16 %v1062, %v1062
    %1071 = vmatprep.subr.bf16.mxu0 %v565
    %1072 = vmatpush1.bf16.msra.mxu0 %v564
    %1073 = vmatprep.subr.bf16.mxu0 %v561
    %1074 = vmatpush1.bf16.msra.mxu0 %v560
    %1075 = vmatprep.subr.bf16.mxu0 %v557
    %1076 = vmatpush1.bf16.msra.mxu0 %v556
    %1077 = vmatprep.subr.bf16.mxu0 %v553
    %1078 = vmatpush1.bf16.msra.mxu0 %v552
    %1079 = vmatprep.subr.bf16.mxu0 %v549
    %1080 = vmatpush1.bf16.msra.mxu0 %v548
    %1081 = vmatprep.subr.bf16.mxu0 %v545
    %1082 = vmatpush1.bf16.msra.mxu0 %v544
    %1083 = vmatprep.subr.bf16.mxu0 %v541
    %1084 = vmatpush1.bf16.msra.mxu0 %v540
    %1085 = vmatprep.subr.bf16.mxu0 %v537
    %1086 = vmatpush1.bf16.msra.mxu0 %v536
    %1087 = vmatprep.subr.bf16.mxu0 0
    %1088 = vmatpush2.bf16.msra.mxu0 0
    %1089 = vmatprep.subr.bf16.mxu0 0
    %1090 = vmatpush2.bf16.msra.mxu0 0
    %1091 = vmatprep.subr.bf16.mxu0 0
    %1092 = vmatpush2.bf16.msra.mxu0 0
    %1093 = vmatprep.subr.bf16.mxu0 0
    %1094 = vmatpush2.bf16.msra.mxu0 0
    %1095 = vmatprep.subr.bf16.mxu0 0
    %1096 = vmatpush2.bf16.msra.mxu0 0
    %1097 = vmatprep.subr.bf16.mxu0 0
    %1098 = vmatpush2.bf16.msra.mxu0 0
    %1099 = vmatprep.subr.bf16.mxu0 0
    %1100 = vmatpush2.bf16.msra.mxu0 0
    %1101 = vmatprep.subr.bf16.mxu0 0
    %1102 = vmatpush2.bf16.msra.mxu0 0
    %1103 = vmatprep.mubr.bf16.mxu0 0
    %1104 = vmatmul.mubr.bf16.gmra.mxu0 %v1070
    %v1105 = vpop.f32.mrf.mxu0
    %v1106 = vadd.f32 0.0, %v1105
    %v1107 = vpop.f32.mrf.mxu0
    %v1108 = vadd.f32 0.0, %v1107
    %v1109 = vpop.f32.mrf.mxu0
    %v1110 = vpop.f32.mrf.mxu0
    %1111 = vdwg.mxu0
    %1112 = vmatprep.subr.bf16.mxu0 %v567
    %1113 = vmatpush1.bf16.msra.mxu0 %v566
    %1114 = vmatprep.subr.bf16.mxu0 %v563
    %1115 = vmatpush1.bf16.msra.mxu0 %v562
    %1116 = vmatprep.subr.bf16.mxu0 %v559
    %1117 = vmatpush1.bf16.msra.mxu0 %v558
    %1118 = vmatprep.subr.bf16.mxu0 %v555
    %1119 = vmatpush1.bf16.msra.mxu0 %v554
    %1120 = vmatprep.subr.bf16.mxu0 %v551
    %1121 = vmatpush1.bf16.msra.mxu0 %v550
    %1122 = vmatprep.subr.bf16.mxu0 %v547
    %1123 = vmatpush1.bf16.msra.mxu0 %v546
    %1124 = vmatprep.subr.bf16.mxu0 %v543
    %1125 = vmatpush1.bf16.msra.mxu0 %v542
    %1126 = vmatprep.subr.bf16.mxu0 %v539
    %1127 = vmatpush1.bf16.msra.mxu0 %v538
    %1128 = vmatprep.subr.bf16.mxu0 0
    %1129 = vmatpush2.bf16.msra.mxu0 0
    %1130 = vmatprep.subr.bf16.mxu0 0
    %1131 = vmatpush2.bf16.msra.mxu0 0
    %1132 = vmatprep.subr.bf16.mxu0 0
    %1133 = vmatpush2.bf16.msra.mxu0 0
    %1134 = vmatprep.subr.bf16.mxu0 0
    %1135 = vmatpush2.bf16.msra.mxu0 0
    %1136 = vmatprep.subr.bf16.mxu0 0
    %1137 = vmatpush2.bf16.msra.mxu0 0
    %1138 = vmatprep.subr.bf16.mxu0 0
    %1139 = vmatpush2.bf16.msra.mxu0 0
    %1140 = vmatprep.subr.bf16.mxu0 0
    %1141 = vmatpush2.bf16.msra.mxu0 0
    %1142 = vmatprep.subr.bf16.mxu0 0
    %1143 = vmatpush2.bf16.msra.mxu0 0
    %1144 = vmatprep.mubr.bf16.mxu0 0
    %1145 = vmatmul.mubr.bf16.gmra.mxu0 %v1070
    %v1146 = vpop.f32.mrf.mxu0
    %v1147 = vadd.f32 0.0, %v1146
    %v1148 = vpop.f32.mrf.mxu0
    %v1149 = vadd.f32 0.0, %v1148
    %v1150 = vpop.f32.mrf.mxu0
    %v1151 = vpop.f32.mrf.mxu0
    %1152 = vdwg.mxu0
    %v1153 = vadd.f32 %v1066, %v1106
    %v1154 = vadd.f32 %v1067, %v1108
    %v1155 = vadd.f32 %v1068, %v1147
    %v1156 = vadd.f32 %v1069, %v1149
    %v1157 = vxor.u32 %v1153, 2147483648
    %v1158 = vmul.f32 %v1157, 1.442695
    %v1159 = vpow.pop %v1158
    %v1160 = vadd.f32 %v1159, 1.0
    %v1161 = vrcp.pop %v1160
    %v1162 = vmul.f32 1.0, %v1161
    %v1163 = vxor.u32 %v1154, 2147483648
    %v1164 = vmul.f32 %v1163, 1.442695
    %v1165 = vpow.pop %v1164
    %v1166 = vadd.f32 %v1165, 1.0
    %v1167 = vrcp.pop %v1166
    %v1168 = vmul.f32 1.0, %v1167
    %v1169 = vtanh.pop %v1155
    %v1170 = vxor.u32 %v1156, 2147483648
    %v1171 = vmul.f32 %v1170, 1.442695
    %v1172 = vpow.pop %v1171
    %v1173 = vadd.f32 %v1172, 1.0
    %v1174 = vrcp.pop %v1173
    %v1175 = vmul.f32 1.0, %v1174
    %v1176 = vmul.f32 %v1168, %v1060
    %v1177 = vmul.f32 %v1162, %v1169
    %v1178 = vadd.f32 %v1176, %v1177
    %v1179 = vtanh.pop %v1178
    %v1180 = vmul.f32 %v1175, %v1179
    %s1181 = scalar_lea.vmem %s7, 32
    %1182 = vst [vmem:[%s1181] sm:$0xff] %v1180
    %s1183 = scalar_lea.vmem [#allocation2], 160
    %v1184 = vld [vmem:[%s1183] sm:$0xff]
    %v1185 = vld [vmem:[%s1183 + $0x8] sm:$0xff]
    %v1186 = vld [vmem:[%s1183 + $0x10] sm:$0xff]
    %v1187 = vld [vmem:[%s1183 + $0x18] sm:$0xff]
    %v1188 = vpack.c.bf16 %v1180, %v1180
    %1189 = vmatprep.subr.bf16.mxu0 %v565
    %1190 = vmatpush1.bf16.msra.mxu0 %v564
    %1191 = vmatprep.subr.bf16.mxu0 %v561
    %1192 = vmatpush1.bf16.msra.mxu0 %v560
    %1193 = vmatprep.subr.bf16.mxu0 %v557
    %1194 = vmatpush1.bf16.msra.mxu0 %v556
    %1195 = vmatprep.subr.bf16.mxu0 %v553
    %1196 = vmatpush1.bf16.msra.mxu0 %v552
    %1197 = vmatprep.subr.bf16.mxu0 %v549
    %1198 = vmatpush1.bf16.msra.mxu0 %v548
    %1199 = vmatprep.subr.bf16.mxu0 %v545
    %1200 = vmatpush1.bf16.msra.mxu0 %v544
    %1201 = vmatprep.subr.bf16.mxu0 %v541
    %1202 = vmatpush1.bf16.msra.mxu0 %v540
    %1203 = vmatprep.subr.bf16.mxu0 %v537
    %1204 = vmatpush1.bf16.msra.mxu0 %v536
    %1205 = vmatprep.subr.bf16.mxu0 0
    %1206 = vmatpush2.bf16.msra.mxu0 0
    %1207 = vmatprep.subr.bf16.mxu0 0
    %1208 = vmatpush2.bf16.msra.mxu0 0
    %1209 = vmatprep.subr.bf16.mxu0 0
    %1210 = vmatpush2.bf16.msra.mxu0 0
    %1211 = vmatprep.subr.bf16.mxu0 0
    %1212 = vmatpush2.bf16.msra.mxu0 0
    %1213 = vmatprep.subr.bf16.mxu0 0
    %1214 = vmatpush2.bf16.msra.mxu0 0
    %1215 = vmatprep.subr.bf16.mxu0 0
    %1216 = vmatpush2.bf16.msra.mxu0 0
    %1217 = vmatprep.subr.bf16.mxu0 0
    %1218 = vmatpush2.bf16.msra.mxu0 0
    %1219 = vmatprep.subr.bf16.mxu0 0
    %1220 = vmatpush2.bf16.msra.mxu0 0
    %1221 = vmatprep.mubr.bf16.mxu0 0
    %1222 = vmatmul.mubr.bf16.gmra.mxu0 %v1188
    %v1223 = vpop.f32.mrf.mxu0
    %v1224 = vadd.f32 0.0, %v1223
    %v1225 = vpop.f32.mrf.mxu0
    %v1226 = vadd.f32 0.0, %v1225
    %v1227 = vpop.f32.mrf.mxu0
    %v1228 = vpop.f32.mrf.mxu0
    %1229 = vdwg.mxu0
    %1230 = vmatprep.subr.bf16.mxu0 %v567
    %1231 = vmatpush1.bf16.msra.mxu0 %v566
    %1232 = vmatprep.subr.bf16.mxu0 %v563
    %1233 = vmatpush1.bf16.msra.mxu0 %v562
    %1234 = vmatprep.subr.bf16.mxu0 %v559
    %1235 = vmatpush1.bf16.msra.mxu0 %v558
    %1236 = vmatprep.subr.bf16.mxu0 %v555
    %1237 = vmatpush1.bf16.msra.mxu0 %v554
    %1238 = vmatprep.subr.bf16.mxu0 %v551
    %1239 = vmatpush1.bf16.msra.mxu0 %v550
    %1240 = vmatprep.subr.bf16.mxu0 %v547
    %1241 = vmatpush1.bf16.msra.mxu0 %v546
    %1242 = vmatprep.subr.bf16.mxu0 %v543
    %1243 = vmatpush1.bf16.msra.mxu0 %v542
    %1244 = vmatprep.subr.bf16.mxu0 %v539
    %1245 = vmatpush1.bf16.msra.mxu0 %v538
    %1246 = vmatprep.subr.bf16.mxu0 0
    %1247 = vmatpush2.bf16.msra.mxu0 0
    %1248 = vmatprep.subr.bf16.mxu0 0
    %1249 = vmatpush2.bf16.msra.mxu0 0
    %1250 = vmatprep.subr.bf16.mxu0 0
    %1251 = vmatpush2.bf16.msra.mxu0 0
    %1252 = vmatprep.subr.bf16.mxu0 0
    %1253 = vmatpush2.bf16.msra.mxu0 0
    %1254 = vmatprep.subr.bf16.mxu0 0
    %1255 = vmatpush2.bf16.msra.mxu0 0
    %1256 = vmatprep.subr.bf16.mxu0 0
    %1257 = vmatpush2.bf16.msra.mxu0 0
    %1258 = vmatprep.subr.bf16.mxu0 0
    %1259 = vmatpush2.bf16.msra.mxu0 0
    %1260 = vmatprep.subr.bf16.mxu0 0
    %1261 = vmatpush2.bf16.msra.mxu0 0
    %1262 = vmatprep.mubr.bf16.mxu0 0
    %1263 = vmatmul.mubr.bf16.gmra.mxu0 %v1188
    %v1264 = vpop.f32.mrf.mxu0
    %v1265 = vadd.f32 0.0, %v1264
    %v1266 = vpop.f32.mrf.mxu0
    %v1267 = vadd.f32 0.0, %v1266
    %v1268 = vpop.f32.mrf.mxu0
    %v1269 = vpop.f32.mrf.mxu0
    %1270 = vdwg.mxu0
    %v1271 = vadd.f32 %v1184, %v1224
    %v1272 = vadd.f32 %v1185, %v1226
    %v1273 = vadd.f32 %v1186, %v1265
    %v1274 = vadd.f32 %v1187, %v1267
    %v1275 = vxor.u32 %v1271, 2147483648
    %v1276 = vmul.f32 %v1275, 1.442695
    %v1277 = vpow.pop %v1276
    %v1278 = vadd.f32 %v1277, 1.0
    %v1279 = vrcp.pop %v1278
    %v1280 = vmul.f32 1.0, %v1279
    %v1281 = vxor.u32 %v1272, 2147483648
    %v1282 = vmul.f32 %v1281, 1.442695
    %v1283 = vpow.pop %v1282
    %v1284 = vadd.f32 %v1283, 1.0
    %v1285 = vrcp.pop %v1284
    %v1286 = vmul.f32 1.0, %v1285
    %v1287 = vtanh.pop %v1273
    %v1288 = vxor.u32 %v1274, 2147483648
    %v1289 = vmul.f32 %v1288, 1.442695
    %v1290 = vpow.pop %v1289
    %v1291 = vadd.f32 %v1290, 1.0
    %v1292 = vrcp.pop %v1291
    %v1293 = vmul.f32 1.0, %v1292
    %v1294 = vmul.f32 %v1286, %v1178
    %v1295 = vmul.f32 %v1280, %v1287
    %v1296 = vadd.f32 %v1294, %v1295
    %v1297 = vtanh.pop %v1296
    %v1298 = vmul.f32 %v1293, %v1297
    %s1299 = scalar_lea.vmem %s7, 40
    %1300 = vst [vmem:[%s1299] sm:$0xff] %v1298
    %s1301 = scalar_lea.vmem [#allocation2], 192
    %v1302 = vld [vmem:[%s1301] sm:$0xff]
    %v1303 = vld [vmem:[%s1301 + $0x8] sm:$0xff]
    %v1304 = vld [vmem:[%s1301 + $0x10] sm:$0xff]
    %v1305 = vld [vmem:[%s1301 + $0x18] sm:$0xff]
    %v1306 = vpack.c.bf16 %v1298, %v1298
    %1307 = vmatprep.subr.bf16.mxu0 %v565
    %1308 = vmatpush1.bf16.msra.mxu0 %v564
    %1309 = vmatprep.subr.bf16.mxu0 %v561
    %1310 = vmatpush1.bf16.msra.mxu0 %v560
    %1311 = vmatprep.subr.bf16.mxu0 %v557
    %1312 = vmatpush1.bf16.msra.mxu0 %v556
    %1313 = vmatprep.subr.bf16.mxu0 %v553
    %1314 = vmatpush1.bf16.msra.mxu0 %v552
    %1315 = vmatprep.subr.bf16.mxu0 %v549
    %1316 = vmatpush1.bf16.msra.mxu0 %v548
    %1317 = vmatprep.subr.bf16.mxu0 %v545
    %1318 = vmatpush1.bf16.msra.mxu0 %v544
    %1319 = vmatprep.subr.bf16.mxu0 %v541
    %1320 = vmatpush1.bf16.msra.mxu0 %v540
    %1321 = vmatprep.subr.bf16.mxu0 %v537
    %1322 = vmatpush1.bf16.msra.mxu0 %v536
    %1323 = vmatprep.subr.bf16.mxu0 0
    %1324 = vmatpush2.bf16.msra.mxu0 0
    %1325 = vmatprep.subr.bf16.mxu0 0
    %1326 = vmatpush2.bf16.msra.mxu0 0
    %1327 = vmatprep.subr.bf16.mxu0 0
    %1328 = vmatpush2.bf16.msra.mxu0 0
    %1329 = vmatprep.subr.bf16.mxu0 0
    %1330 = vmatpush2.bf16.msra.mxu0 0
    %1331 = vmatprep.subr.bf16.mxu0 0
    %1332 = vmatpush2.bf16.msra.mxu0 0
    %1333 = vmatprep.subr.bf16.mxu0 0
    %1334 = vmatpush2.bf16.msra.mxu0 0
    %1335 = vmatprep.subr.bf16.mxu0 0
    %1336 = vmatpush2.bf16.msra.mxu0 0
    %1337 = vmatprep.subr.bf16.mxu0 0
    %1338 = vmatpush2.bf16.msra.mxu0 0
    %1339 = vmatprep.mubr.bf16.mxu0 0
    %1340 = vmatmul.mubr.bf16.gmra.mxu0 %v1306
    %v1341 = vpop.f32.mrf.mxu0
    %v1342 = vadd.f32 0.0, %v1341
    %v1343 = vpop.f32.mrf.mxu0
    %v1344 = vadd.f32 0.0, %v1343
    %v1345 = vpop.f32.mrf.mxu0
    %v1346 = vpop.f32.mrf.mxu0
    %1347 = vdwg.mxu0
    %1348 = vmatprep.subr.bf16.mxu0 %v567
    %1349 = vmatpush1.bf16.msra.mxu0 %v566
    %1350 = vmatprep.subr.bf16.mxu0 %v563
    %1351 = vmatpush1.bf16.msra.mxu0 %v562
    %1352 = vmatprep.subr.bf16.mxu0 %v559
    %1353 = vmatpush1.bf16.msra.mxu0 %v558
    %1354 = vmatprep.subr.bf16.mxu0 %v555
    %1355 = vmatpush1.bf16.msra.mxu0 %v554
    %1356 = vmatprep.subr.bf16.mxu0 %v551
    %1357 = vmatpush1.bf16.msra.mxu0 %v550
    %1358 = vmatprep.subr.bf16.mxu0 %v547
    %1359 = vmatpush1.bf16.msra.mxu0 %v546
    %1360 = vmatprep.subr.bf16.mxu0 %v543
    %1361 = vmatpush1.bf16.msra.mxu0 %v542
    %1362 = vmatprep.subr.bf16.mxu0 %v539
    %1363 = vmatpush1.bf16.msra.mxu0 %v538
    %1364 = vmatprep.subr.bf16.mxu0 0
    %1365 = vmatpush2.bf16.msra.mxu0 0
    %1366 = vmatprep.subr.bf16.mxu0 0
    %1367 = vmatpush2.bf16.msra.mxu0 0
    %1368 = vmatprep.subr.bf16.mxu0 0
    %1369 = vmatpush2.bf16.msra.mxu0 0
    %1370 = vmatprep.subr.bf16.mxu0 0
    %1371 = vmatpush2.bf16.msra.mxu0 0
    %1372 = vmatprep.subr.bf16.mxu0 0
    %1373 = vmatpush2.bf16.msra.mxu0 0
    %1374 = vmatprep.subr.bf16.mxu0 0
    %1375 = vmatpush2.bf16.msra.mxu0 0
    %1376 = vmatprep.subr.bf16.mxu0 0
    %1377 = vmatpush2.bf16.msra.mxu0 0
    %1378 = vmatprep.subr.bf16.mxu0 0
    %1379 = vmatpush2.bf16.msra.mxu0 0
    %1380 = vmatprep.mubr.bf16.mxu0 0
    %1381 = vmatmul.mubr.bf16.gmra.mxu0 %v1306
    %v1382 = vpop.f32.mrf.mxu0
    %v1383 = vadd.f32 0.0, %v1382
    %v1384 = vpop.f32.mrf.mxu0
    %v1385 = vadd.f32 0.0, %v1384
    %v1386 = vpop.f32.mrf.mxu0
    %v1387 = vpop.f32.mrf.mxu0
    %1388 = vdwg.mxu0
    %v1389 = vadd.f32 %v1302, %v1342
    %v1390 = vadd.f32 %v1303, %v1344
    %v1391 = vadd.f32 %v1304, %v1383
    %v1392 = vadd.f32 %v1305, %v1385
    %v1393 = vxor.u32 %v1389, 2147483648
    %v1394 = vmul.f32 %v1393, 1.442695
    %v1395 = vpow.pop %v1394
    %v1396 = vadd.f32 %v1395, 1.0
    %v1397 = vrcp.pop %v1396
    %v1398 = vmul.f32 1.0, %v1397
    %v1399 = vxor.u32 %v1390, 2147483648
    %v1400 = vmul.f32 %v1399, 1.442695
    %v1401 = vpow.pop %v1400
    %v1402 = vadd.f32 %v1401, 1.0
    %v1403 = vrcp.pop %v1402
    %v1404 = vmul.f32 1.0, %v1403
    %v1405 = vtanh.pop %v1391
    %v1406 = vxor.u32 %v1392, 2147483648
    %v1407 = vmul.f32 %v1406, 1.442695
    %v1408 = vpow.pop %v1407
    %v1409 = vadd.f32 %v1408, 1.0
    %v1410 = vrcp.pop %v1409
    %v1411 = vmul.f32 1.0, %v1410
    %v1412 = vmul.f32 %v1404, %v1296
    %v1413 = vmul.f32 %v1398, %v1405
    %v1414 = vadd.f32 %v1412, %v1413
    %v1415 = vtanh.pop %v1414
    %v1416 = vmul.f32 %v1411, %v1415
    %s1417 = scalar_lea.vmem %s7, 48
    %1418 = vst [vmem:[%s1417] sm:$0xff] %v1416
    %s1419 = scalar_lea.vmem [#allocation2], 224
    %v1420 = vld [vmem:[%s1419] sm:$0xff]
    %v1421 = vld [vmem:[%s1419 + $0x8] sm:$0xff]
    %v1422 = vld [vmem:[%s1419 + $0x10] sm:$0xff]
    %v1423 = vld [vmem:[%s1419 + $0x18] sm:$0xff]
    %v1424 = vpack.c.bf16 %v1416, %v1416
    %1425 = vmatprep.subr.bf16.mxu0 %v565
    %1426 = vmatpush1.bf16.msra.mxu0 %v564
    %1427 = vmatprep.subr.bf16.mxu0 %v561
    %1428 = vmatpush1.bf16.msra.mxu0 %v560
    %1429 = vmatprep.subr.bf16.mxu0 %v557
    %1430 = vmatpush1.bf16.msra.mxu0 %v556
    %1431 = vmatprep.subr.bf16.mxu0 %v553
    %1432 = vmatpush1.bf16.msra.mxu0 %v552
    %1433 = vmatprep.subr.bf16.mxu0 %v549
    %1434 = vmatpush1.bf16.msra.mxu0 %v548
    %1435 = vmatprep.subr.bf16.mxu0 %v545
    %1436 = vmatpush1.bf16.msra.mxu0 %v544
    %1437 = vmatprep.subr.bf16.mxu0 %v541
    %1438 = vmatpush1.bf16.msra.mxu0 %v540
    %1439 = vmatprep.subr.bf16.mxu0 %v537
    %1440 = vmatpush1.bf16.msra.mxu0 %v536
    %1441 = vmatprep.subr.bf16.mxu0 0
    %1442 = vmatpush2.bf16.msra.mxu0 0
    %1443 = vmatprep.subr.bf16.mxu0 0
    %1444 = vmatpush2.bf16.msra.mxu0 0
    %1445 = vmatprep.subr.bf16.mxu0 0
    %1446 = vmatpush2.bf16.msra.mxu0 0
    %1447 = vmatprep.subr.bf16.mxu0 0
    %1448 = vmatpush2.bf16.msra.mxu0 0
    %1449 = vmatprep.subr.bf16.mxu0 0
    %1450 = vmatpush2.bf16.msra.mxu0 0
    %1451 = vmatprep.subr.bf16.mxu0 0
    %1452 = vmatpush2.bf16.msra.mxu0 0
    %1453 = vmatprep.subr.bf16.mxu0 0
    %1454 = vmatpush2.bf16.msra.mxu0 0
    %1455 = vmatprep.subr.bf16.mxu0 0
    %1456 = vmatpush2.bf16.msra.mxu0 0
    %1457 = vmatprep.mubr.bf16.mxu0 0
    %1458 = vmatmul.mubr.bf16.gmra.mxu0 %v1424
    %v1459 = vpop.f32.mrf.mxu0
    %v1460 = vadd.f32 0.0, %v1459
    %v1461 = vpop.f32.mrf.mxu0
    %v1462 = vadd.f32 0.0, %v1461
    %v1463 = vpop.f32.mrf.mxu0
    %v1464 = vpop.f32.mrf.mxu0
    %1465 = vdwg.mxu0
    %1466 = vmatprep.subr.bf16.mxu0 %v567
    %1467 = vmatpush1.bf16.msra.mxu0 %v566
    %1468 = vmatprep.subr.bf16.mxu0 %v563
    %1469 = vmatpush1.bf16.msra.mxu0 %v562
    %1470 = vmatprep.subr.bf16.mxu0 %v559
    %1471 = vmatpush1.bf16.msra.mxu0 %v558
    %1472 = vmatprep.subr.bf16.mxu0 %v555
    %1473 = vmatpush1.bf16.msra.mxu0 %v554
    %1474 = vmatprep.subr.bf16.mxu0 %v551
    %1475 = vmatpush1.bf16.msra.mxu0 %v550
    %1476 = vmatprep.subr.bf16.mxu0 %v547
    %1477 = vmatpush1.bf16.msra.mxu0 %v546
    %1478 = vmatprep.subr.bf16.mxu0 %v543
    %1479 = vmatpush1.bf16.msra.mxu0 %v542
    %1480 = vmatprep.subr.bf16.mxu0 %v539
    %1481 = vmatpush1.bf16.msra.mxu0 %v538
    %1482 = vmatprep.subr.bf16.mxu0 0
    %1483 = vmatpush2.bf16.msra.mxu0 0
    %1484 = vmatprep.subr.bf16.mxu0 0
    %1485 = vmatpush2.bf16.msra.mxu0 0
    %1486 = vmatprep.subr.bf16.mxu0 0
    %1487 = vmatpush2.bf16.msra.mxu0 0
    %1488 = vmatprep.subr.bf16.mxu0 0
    %1489 = vmatpush2.bf16.msra.mxu0 0
    %1490 = vmatprep.subr.bf16.mxu0 0
    %1491 = vmatpush2.bf16.msra.mxu0 0
    %1492 = vmatprep.subr.bf16.mxu0 0
    %1493 = vmatpush2.bf16.msra.mxu0 0
    %1494 = vmatprep.subr.bf16.mxu0 0
    %1495 = vmatpush2.bf16.msra.mxu0 0
    %1496 = vmatprep.subr.bf16.mxu0 0
    %1497 = vmatpush2.bf16.msra.mxu0 0
    %1498 = vmatprep.mubr.bf16.mxu0 0
    %1499 = vmatmul.mubr.bf16.gmra.mxu0 %v1424
    %v1500 = vpop.f32.mrf.mxu0
    %v1501 = vadd.f32 0.0, %v1500
    %v1502 = vpop.f32.mrf.mxu0
    %v1503 = vadd.f32 0.0, %v1502
    %v1504 = vpop.f32.mrf.mxu0
    %v1505 = vpop.f32.mrf.mxu0
    %1506 = vdwg.mxu0
    %v1507 = vadd.f32 %v1420, %v1460
    %v1508 = vadd.f32 %v1421, %v1462
    %v1509 = vadd.f32 %v1422, %v1501
    %v1510 = vadd.f32 %v1423, %v1503
    %v1511 = vxor.u32 %v1507, 2147483648
    %v1512 = vmul.f32 %v1511, 1.442695
    %v1513 = vpow.pop %v1512
    %v1514 = vadd.f32 %v1513, 1.0
    %v1515 = vrcp.pop %v1514
    %v1516 = vmul.f32 1.0, %v1515
    %v1517 = vxor.u32 %v1508, 2147483648
    %v1518 = vmul.f32 %v1517, 1.442695
    %v1519 = vpow.pop %v1518
    %v1520 = vadd.f32 %v1519, 1.0
    %v1521 = vrcp.pop %v1520
    %v1522 = vmul.f32 1.0, %v1521
    %v1523 = vtanh.pop %v1509
    %v1524 = vxor.u32 %v1510, 2147483648
    %v1525 = vmul.f32 %v1524, 1.442695
    %v1526 = vpow.pop %v1525
    %v1527 = vadd.f32 %v1526, 1.0
    %v1528 = vrcp.pop %v1527
    %v1529 = vmul.f32 1.0, %v1528
    %v1530 = vmul.f32 %v1522, %v1414
    %v1531 = vmul.f32 %v1516, %v1523
    %v1532 = vadd.f32 %v1530, %v1531
    %v1533 = vtanh.pop %v1532
    %v1534 = vmul.f32 %v1529, %v1533
    %s1535 = scalar_lea.vmem %s7, 56
    %1536 = vst [vmem:[%s1535] sm:$0xff] %v1534
    %1537 = vst [vmem:[#allocation3] sm:$0xff] %v1534
    %1538 = vst [vmem:[#allocation5] sm:$0xff] %v1532
    %v1539 = vld [vmem:[%s7] sm:$0xff]
    %v1540 = vld [vmem:[%s7 + $0x8] sm:$0xff]
    %v1541 = vld [vmem:[%s7 + $0x10] sm:$0xff]
    %v1542 = vld [vmem:[%s7 + $0x18] sm:$0xff]
    %v1543 = vld [vmem:[%s7 + $0x20] sm:$0xff]
    %v1544 = vld [vmem:[%s7 + $0x28] sm:$0xff]
    %v1545 = vld [vmem:[%s7 + $0x30] sm:$0xff]
    %v1546 = vld [vmem:[%s7 + $0x38] sm:$0xff]
    %v1547 = vpack.c.bf16 %v1540, %v1539
    %v1548 = vpack.c.bf16 %v1542, %v1541
    %v1549 = vpack.c.bf16 %v1544, %v1543
    %v1550 = vpack.c.bf16 %v1546, %v1545
    %v1551 = vld [vmem:[%s2] sm:$0xff]
    %v1552 = vld [vmem:[%s2 + $0x8] sm:$0xff]
    %v1553 = vld [vmem:[%s2 + $0x10] sm:$0xff]
    %v1554 = vld [vmem:[%s2 + $0x18] sm:$0xff]
    %v1555 = vld [vmem:[%s2 + $0x20] sm:$0xff]
    %v1556 = vld [vmem:[%s2 + $0x28] sm:$0xff]
    %v1557 = vld [vmem:[%s2 + $0x30] sm:$0xff]
    %v1558 = vld [vmem:[%s2 + $0x38] sm:$0xff]
    %v1559 = vld [vmem:[%s2 + $0x40] sm:$0xff]
    %v1560 = vld [vmem:[%s2 + $0x48] sm:$0xff]
    %v1561 = vld [vmem:[%s2 + $0x50] sm:$0xff]
    %v1562 = vld [vmem:[%s2 + $0x58] sm:$0xff]
    %v1563 = vld [vmem:[%s2 + $0x60] sm:$0xff]
    %v1564 = vld [vmem:[%s2 + $0x68] sm:$0xff]
    %v1565 = vld [vmem:[%s2 + $0x70] sm:$0xff]
    %v1566 = vld [vmem:[%s2 + $0x78] sm:$0xff]
    %v1567 = vld [vmem:[%s2 + $0x80] sm:$0xff]
    %v1568 = vld [vmem:[%s2 + $0x88] sm:$0xff]
    %v1569 = vld [vmem:[%s2 + $0x90] sm:$0xff]
    %v1570 = vld [vmem:[%s2 + $0x98] sm:$0xff]
    %v1571 = vld [vmem:[%s2 + $0xa0] sm:$0xff]
    %v1572 = vld [vmem:[%s2 + $0xa8] sm:$0xff]
    %v1573 = vld [vmem:[%s2 + $0xb0] sm:$0xff]
    %v1574 = vld [vmem:[%s2 + $0xb8] sm:$0xff]
    %v1575 = vld [vmem:[%s2 + $0xc0] sm:$0xff]
    %v1576 = vld [vmem:[%s2 + $0xc8] sm:$0xff]
    %v1577 = vld [vmem:[%s2 + $0xd0] sm:$0xff]
    %v1578 = vld [vmem:[%s2 + $0xd8] sm:$0xff]
    %v1579 = vld [vmem:[%s2 + $0xe0] sm:$0xff]
    %v1580 = vld [vmem:[%s2 + $0xe8] sm:$0xff]
    %v1581 = vld [vmem:[%s2 + $0xf0] sm:$0xff]
    %v1582 = vld [vmem:[%s2 + $0xf8] sm:$0xff]
    %v1615 = vunpack.c.l.b16 %v1551
    %v1616 = vunpack.c.h.b16 %v1551
    %v1617 = vunpack.c.l.b16 %v1552
    %v1618 = vunpack.c.h.b16 %v1552
    %v1619 = vunpack.c.l.b16 %v1553
    %v1620 = vunpack.c.h.b16 %v1553
    %v1621 = vunpack.c.l.b16 %v1554
    %v1622 = vunpack.c.h.b16 %v1554
    %v1623 = vunpack.c.l.b16 %v1555
    %v1624 = vunpack.c.h.b16 %v1555
    %v1625 = vunpack.c.l.b16 %v1556
    %v1626 = vunpack.c.h.b16 %v1556
    %v1627 = vunpack.c.l.b16 %v1557
    %v1628 = vunpack.c.h.b16 %v1557
    %v1629 = vunpack.c.l.b16 %v1558
    %v1630 = vunpack.c.h.b16 %v1558
    %v1631 = vunpack.c.l.b16 %v1559
    %v1632 = vunpack.c.h.b16 %v1559
    %v1633 = vunpack.c.l.b16 %v1560
    %v1634 = vunpack.c.h.b16 %v1560
    %v1635 = vunpack.c.l.b16 %v1561
    %v1636 = vunpack.c.h.b16 %v1561
    %v1637 = vunpack.c.l.b16 %v1562
    %v1638 = vunpack.c.h.b16 %v1562
    %v1639 = vunpack.c.l.b16 %v1563
    %v1640 = vunpack.c.h.b16 %v1563
    %v1641 = vunpack.c.l.b16 %v1564
    %v1642 = vunpack.c.h.b16 %v1564
    %v1643 = vunpack.c.l.b16 %v1565
    %v1644 = vunpack.c.h.b16 %v1565
    %v1645 = vunpack.c.l.b16 %v1566
    %v1646 = vunpack.c.h.b16 %v1566
    %v1647 = vunpack.c.l.b16 %v1567
    %v1648 = vunpack.c.h.b16 %v1567
    %v1649 = vunpack.c.l.b16 %v1568
    %v1650 = vunpack.c.h.b16 %v1568
    %v1651 = vunpack.c.l.b16 %v1569
    %v1652 = vunpack.c.h.b16 %v1569
    %v1653 = vunpack.c.l.b16 %v1570
    %v1654 = vunpack.c.h.b16 %v1570
    %v1655 = vunpack.c.l.b16 %v1571
    %v1656 = vunpack.c.h.b16 %v1571
    %v1657 = vunpack.c.l.b16 %v1572
    %v1658 = vunpack.c.h.b16 %v1572
    %v1659 = vunpack.c.l.b16 %v1573
    %v1660 = vunpack.c.h.b16 %v1573
    %v1661 = vunpack.c.l.b16 %v1574
    %v1662 = vunpack.c.h.b16 %v1574
    %v1663 = vunpack.c.l.b16 %v1575
    %v1664 = vunpack.c.h.b16 %v1575
    %v1665 = vunpack.c.l.b16 %v1576
    %v1666 = vunpack.c.h.b16 %v1576
    %v1667 = vunpack.c.l.b16 %v1577
    %v1668 = vunpack.c.h.b16 %v1577
    %v1669 = vunpack.c.l.b16 %v1578
    %v1670 = vunpack.c.h.b16 %v1578
    %v1671 = vunpack.c.l.b16 %v1579
    %v1672 = vunpack.c.h.b16 %v1579
    %v1673 = vunpack.c.l.b16 %v1580
    %v1674 = vunpack.c.h.b16 %v1580
    %v1675 = vunpack.c.l.b16 %v1581
    %v1676 = vunpack.c.h.b16 %v1581
    %v1677 = vunpack.c.l.b16 %v1582
    %v1678 = vunpack.c.h.b16 %v1582
    %v1679 = vpack.c.b16 %v1619, %v1615
    %v1680 = vpack.c.b16 %v1620, %v1616
    %v1681 = vpack.c.b16 %v1621, %v1617
    %v1682 = vpack.c.b16 %v1622, %v1618
    %v1683 = vpack.c.b16 %v1627, %v1623
    %v1684 = vpack.c.b16 %v1628, %v1624
    %v1685 = vpack.c.b16 %v1629, %v1625
    %v1686 = vpack.c.b16 %v1630, %v1626
    %v1687 = vpack.c.b16 %v1635, %v1631
    %v1688 = vpack.c.b16 %v1636, %v1632
    %v1689 = vpack.c.b16 %v1637, %v1633
    %v1690 = vpack.c.b16 %v1638, %v1634
    %v1691 = vpack.c.b16 %v1643, %v1639
    %v1692 = vpack.c.b16 %v1644, %v1640
    %v1693 = vpack.c.b16 %v1645, %v1641
    %v1694 = vpack.c.b16 %v1646, %v1642
    %v1695 = vpack.c.b16 %v1651, %v1647
    %v1696 = vpack.c.b16 %v1652, %v1648
    %v1697 = vpack.c.b16 %v1653, %v1649
    %v1698 = vpack.c.b16 %v1654, %v1650
    %v1699 = vpack.c.b16 %v1659, %v1655
    %v1700 = vpack.c.b16 %v1660, %v1656
    %v1701 = vpack.c.b16 %v1661, %v1657
    %v1702 = vpack.c.b16 %v1662, %v1658
    %v1703 = vpack.c.b16 %v1667, %v1663
    %v1704 = vpack.c.b16 %v1668, %v1664
    %v1705 = vpack.c.b16 %v1669, %v1665
    %v1706 = vpack.c.b16 %v1670, %v1666
    %v1707 = vpack.c.b16 %v1675, %v1671
    %v1708 = vpack.c.b16 %v1676, %v1672
    %v1709 = vpack.c.b16 %v1677, %v1673
    %v1710 = vpack.c.b16 %v1678, %v1674
    %1743 = vmatprep.subr.bf16.mxu0 %v1708
    %1744 = vmatpush1.bf16.msra.mxu0 %v1707
    %1745 = vmatprep.subr.bf16.mxu0 %v1704
    %1746 = vmatpush1.bf16.msra.mxu0 %v1703
    %1747 = vmatprep.subr.bf16.mxu0 %v1700
    %1748 = vmatpush1.bf16.msra.mxu0 %v1699
    %1749 = vmatprep.subr.bf16.mxu0 %v1696
    %1750 = vmatpush1.bf16.msra.mxu0 %v1695
    %1751 = vmatprep.subr.bf16.mxu0 %v1692
    %1752 = vmatpush1.bf16.msra.mxu0 %v1691
    %1753 = vmatprep.subr.bf16.mxu0 %v1688
    %1754 = vmatpush1.bf16.msra.mxu0 %v1687
    %1755 = vmatprep.subr.bf16.mxu0 %v1684
    %1756 = vmatpush1.bf16.msra.mxu0 %v1683
    %1757 = vmatprep.subr.bf16.mxu0 %v1680
    %1758 = vmatpush1.bf16.msra.mxu0 %v1679
    %1759 = vmatprep.subr.bf16.mxu0 0
    %1760 = vmatpush2.bf16.msra.mxu0 0
    %1761 = vmatprep.subr.bf16.mxu0 0
    %1762 = vmatpush2.bf16.msra.mxu0 0
    %1763 = vmatprep.subr.bf16.mxu0 0
    %1764 = vmatpush2.bf16.msra.mxu0 0
    %1765 = vmatprep.subr.bf16.mxu0 0
    %1766 = vmatpush2.bf16.msra.mxu0 0
    %1767 = vmatprep.subr.bf16.mxu0 0
    %1768 = vmatpush2.bf16.msra.mxu0 0
    %1769 = vmatprep.subr.bf16.mxu0 0
    %1770 = vmatpush2.bf16.msra.mxu0 0
    %1771 = vmatprep.subr.bf16.mxu0 0
    %1772 = vmatpush2.bf16.msra.mxu0 0
    %1773 = vmatprep.subr.bf16.mxu0 0
    %1774 = vmatpush2.bf16.msra.mxu0 0
    %1775 = vmatprep.mubr.bf16.mxu0 0
    %1776 = vmatmul.mubr.bf16.gmra.mxu0 %v1547
    %v1777 = vpop.f32.mrf.mxu0
    %v1778 = vadd.f32 0.0, %v1777
    %v1779 = vpop.f32.mrf.mxu0
    %v1780 = vadd.f32 0.0, %v1779
    %v1781 = vpop.f32.mrf.mxu0
    %v1782 = vadd.f32 0.0, %v1781
    %v1783 = vpop.f32.mrf.mxu0
    %v1784 = vadd.f32 0.0, %v1783
    %1785 = vmatprep.mubr.bf16.mxu0 0
    %1786 = vmatmul.mubr.bf16.gmra.mxu0 %v1548
    %v1787 = vpop.f32.mrf.mxu0
    %v1788 = vadd.f32 0.0, %v1787
    %v1789 = vpop.f32.mrf.mxu0
    %v1790 = vadd.f32 0.0, %v1789
    %v1791 = vpop.f32.mrf.mxu0
    %v1792 = vadd.f32 0.0, %v1791
    %v1793 = vpop.f32.mrf.mxu0
    %v1794 = vadd.f32 0.0, %v1793
    %1795 = vmatprep.mubr.bf16.mxu0 0
    %1796 = vmatmul.mubr.bf16.gmra.mxu0 %v1549
    %v1797 = vpop.f32.mrf.mxu0
    %v1798 = vadd.f32 0.0, %v1797
    %v1799 = vpop.f32.mrf.mxu0
    %v1800 = vadd.f32 0.0, %v1799
    %v1801 = vpop.f32.mrf.mxu0
    %v1802 = vadd.f32 0.0, %v1801
    %v1803 = vpop.f32.mrf.mxu0
    %v1804 = vadd.f32 0.0, %v1803
    %1805 = vmatprep.mubr.bf16.mxu0 0
    %1806 = vmatmul.mubr.bf16.gmra.mxu0 %v1550
    %v1807 = vpop.f32.mrf.mxu0
    %v1808 = vadd.f32 0.0, %v1807
    %v1809 = vpop.f32.mrf.mxu0
    %v1810 = vadd.f32 0.0, %v1809
    %v1811 = vpop.f32.mrf.mxu0
    %v1812 = vadd.f32 0.0, %v1811
    %v1813 = vpop.f32.mrf.mxu0
    %v1814 = vadd.f32 0.0, %v1813
    %1815 = vdwg.mxu0
    %1816 = vmatprep.subr.bf16.mxu0 %v1710
    %1817 = vmatpush1.bf16.msra.mxu0 %v1709
    %1818 = vmatprep.subr.bf16.mxu0 %v1706
    %1819 = vmatpush1.bf16.msra.mxu0 %v1705
    %1820 = vmatprep.subr.bf16.mxu0 %v1702
    %1821 = vmatpush1.bf16.msra.mxu0 %v1701
    %1822 = vmatprep.subr.bf16.mxu0 %v1698
    %1823 = vmatpush1.bf16.msra.mxu0 %v1697
    %1824 = vmatprep.subr.bf16.mxu0 %v1694
    %1825 = vmatpush1.bf16.msra.mxu0 %v1693
    %1826 = vmatprep.subr.bf16.mxu0 %v1690
    %1827 = vmatpush1.bf16.msra.mxu0 %v1689
    %1828 = vmatprep.subr.bf16.mxu0 %v1686
    %1829 = vmatpush1.bf16.msra.mxu0 %v1685
    %1830 = vmatprep.subr.bf16.mxu0 %v1682
    %1831 = vmatpush1.bf16.msra.mxu0 %v1681
    %1832 = vmatprep.subr.bf16.mxu0 0
    %1833 = vmatpush2.bf16.msra.mxu0 0
    %1834 = vmatprep.subr.bf16.mxu0 0
    %1835 = vmatpush2.bf16.msra.mxu0 0
    %1836 = vmatprep.subr.bf16.mxu0 0
    %1837 = vmatpush2.bf16.msra.mxu0 0
    %1838 = vmatprep.subr.bf16.mxu0 0
    %1839 = vmatpush2.bf16.msra.mxu0 0
    %1840 = vmatprep.subr.bf16.mxu0 0
    %1841 = vmatpush2.bf16.msra.mxu0 0
    %1842 = vmatprep.subr.bf16.mxu0 0
    %1843 = vmatpush2.bf16.msra.mxu0 0
    %1844 = vmatprep.subr.bf16.mxu0 0
    %1845 = vmatpush2.bf16.msra.mxu0 0
    %1846 = vmatprep.subr.bf16.mxu0 0
    %1847 = vmatpush2.bf16.msra.mxu0 0
    %1848 = vmatprep.mubr.bf16.mxu0 0
    %1849 = vmatmul.mubr.bf16.gmra.mxu0 %v1547
    %v1850 = vpop.f32.mrf.mxu0
    %v1851 = vadd.f32 0.0, %v1850
    %v1852 = vpop.f32.mrf.mxu0
    %v1853 = vadd.f32 0.0, %v1852
    %v1854 = vpop.f32.mrf.mxu0
    %v1855 = vadd.f32 0.0, %v1854
    %v1856 = vpop.f32.mrf.mxu0
    %v1857 = vadd.f32 0.0, %v1856
    %1858 = vmatprep.mubr.bf16.mxu0 0
    %1859 = vmatmul.mubr.bf16.gmra.mxu0 %v1548
    %v1860 = vpop.f32.mrf.mxu0
    %v1861 = vadd.f32 0.0, %v1860
    %v1862 = vpop.f32.mrf.mxu0
    %v1863 = vadd.f32 0.0, %v1862
    %v1864 = vpop.f32.mrf.mxu0
    %v1865 = vadd.f32 0.0, %v1864
    %v1866 = vpop.f32.mrf.mxu0
    %v1867 = vadd.f32 0.0, %v1866
    %1868 = vmatprep.mubr.bf16.mxu0 0
    %1869 = vmatmul.mubr.bf16.gmra.mxu0 %v1549
    %v1870 = vpop.f32.mrf.mxu0
    %v1871 = vadd.f32 0.0, %v1870
    %v1872 = vpop.f32.mrf.mxu0
    %v1873 = vadd.f32 0.0, %v1872
    %v1874 = vpop.f32.mrf.mxu0
    %v1875 = vadd.f32 0.0, %v1874
    %v1876 = vpop.f32.mrf.mxu0
    %v1877 = vadd.f32 0.0, %v1876
    %1878 = vmatprep.mubr.bf16.mxu0 0
    %1879 = vmatmul.mubr.bf16.gmra.mxu0 %v1550
    %v1880 = vpop.f32.mrf.mxu0
    %v1881 = vadd.f32 0.0, %v1880
    %v1882 = vpop.f32.mrf.mxu0
    %v1883 = vadd.f32 0.0, %v1882
    %v1884 = vpop.f32.mrf.mxu0
    %v1885 = vadd.f32 0.0, %v1884
    %v1886 = vpop.f32.mrf.mxu0
    %v1887 = vadd.f32 0.0, %v1886
    %1888 = vdwg.mxu0
    %s1889 = scalar_lea.vmem %s4, 4
    %v1890 = vld [vmem:[%s1889] sm:$0xf]
    %v1892 = vlaneseq
    %v1893 = vshrl.u32 %v1892, 7
    %v1894 = vsub.s32 0, %v1893
    %v1895 = vrot.slane %v1890, %v1894
    %v1896 = vlaneseq
    %v1897 = vshrl.u32 %v1896, 7
    %v1898 = vsub.s32 1, %v1897
    %v1899 = vrot.slane %v1890, %v1898
    %v1900 = vlaneseq
    %v1901 = vshrl.u32 %v1900, 7
    %v1902 = vsub.s32 2, %v1901
    %v1903 = vrot.slane %v1890, %v1902
    %v1904 = vlaneseq
    %v1905 = vshrl.u32 %v1904, 7
    %v1906 = vsub.s32 3, %v1905
    %v1907 = vrot.slane %v1890, %v1906
    %v1912 = vadd.f32 %v1778, %v1895
    %v1913 = vadd.f32 %v1780, %v1899
    %v1914 = vadd.f32 %v1851, %v1903
    %v1915 = vadd.f32 %v1853, %v1907
    %v1916 = vadd.f32 %v1782, %v1895
    %v1917 = vadd.f32 %v1784, %v1899
    %v1918 = vadd.f32 %v1855, %v1903
    %v1919 = vadd.f32 %v1857, %v1907
    %v1920 = vadd.f32 %v1788, %v1895
    %v1921 = vadd.f32 %v1790, %v1899
    %v1922 = vadd.f32 %v1861, %v1903
    %v1923 = vadd.f32 %v1863, %v1907
    %v1924 = vadd.f32 %v1792, %v1895
    %v1925 = vadd.f32 %v1794, %v1899
    %v1926 = vadd.f32 %v1865, %v1903
    %v1927 = vadd.f32 %v1867, %v1907
    %v1928 = vadd.f32 %v1798, %v1895
    %v1929 = vadd.f32 %v1800, %v1899
    %v1930 = vadd.f32 %v1871, %v1903
    %v1931 = vadd.f32 %v1873, %v1907
    %v1932 = vadd.f32 %v1802, %v1895
    %v1933 = vadd.f32 %v1804, %v1899
    %v1934 = vadd.f32 %v1875, %v1903
    %v1935 = vadd.f32 %v1877, %v1907
    %v1936 = vadd.f32 %v1808, %v1895
    %v1937 = vadd.f32 %v1810, %v1899
    %v1938 = vadd.f32 %v1881, %v1903
    %v1939 = vadd.f32 %v1883, %v1907
    %v1940 = vadd.f32 %v1812, %v1895
    %v1941 = vadd.f32 %v1814, %v1899
    %v1942 = vadd.f32 %v1885, %v1903
    %v1943 = vadd.f32 %v1887, %v1907
    %1944 = vst [vmem:[#allocation2] sm:$0xff] %v1912
    %1945 = vst [vmem:[#allocation2 + $0x8] sm:$0xff] %v1913
    %1946 = vst [vmem:[#allocation2 + $0x10] sm:$0xff] %v1914
    %1947 = vst [vmem:[#allocation2 + $0x18] sm:$0xff] %v1915
    %1948 = vst [vmem:[#allocation2 + $0x20] sm:$0xff] %v1916
    %1949 = vst [vmem:[#allocation2 + $0x28] sm:$0xff] %v1917
    %1950 = vst [vmem:[#allocation2 + $0x30] sm:$0xff] %v1918
    %1951 = vst [vmem:[#allocation2 + $0x38] sm:$0xff] %v1919
    %1952 = vst [vmem:[#allocation2 + $0x40] sm:$0xff] %v1920
    %1953 = vst [vmem:[#allocation2 + $0x48] sm:$0xff] %v1921
    %1954 = vst [vmem:[#allocation2 + $0x50] sm:$0xff] %v1922
    %1955 = vst [vmem:[#allocation2 + $0x58] sm:$0xff] %v1923
    %1956 = vst [vmem:[#allocation2 + $0x60] sm:$0xff] %v1924
    %1957 = vst [vmem:[#allocation2 + $0x68] sm:$0xff] %v1925
    %1958 = vst [vmem:[#allocation2 + $0x70] sm:$0xff] %v1926
    %1959 = vst [vmem:[#allocation2 + $0x78] sm:$0xff] %v1927
    %1960 = vst [vmem:[#allocation2 + $0x80] sm:$0xff] %v1928
    %1961 = vst [vmem:[#allocation2 + $0x88] sm:$0xff] %v1929
    %1962 = vst [vmem:[#allocation2 + $0x90] sm:$0xff] %v1930
    %1963 = vst [vmem:[#allocation2 + $0x98] sm:$0xff] %v1931
    %1964 = vst [vmem:[#allocation2 + $0xa0] sm:$0xff] %v1932
    %1965 = vst [vmem:[#allocation2 + $0xa8] sm:$0xff] %v1933
    %1966 = vst [vmem:[#allocation2 + $0xb0] sm:$0xff] %v1934
    %1967 = vst [vmem:[#allocation2 + $0xb8] sm:$0xff] %v1935
    %1968 = vst [vmem:[#allocation2 + $0xc0] sm:$0xff] %v1936
    %1969 = vst [vmem:[#allocation2 + $0xc8] sm:$0xff] %v1937
    %1970 = vst [vmem:[#allocation2 + $0xd0] sm:$0xff] %v1938
    %1971 = vst [vmem:[#allocation2 + $0xd8] sm:$0xff] %v1939
    %1972 = vst [vmem:[#allocation2 + $0xe0] sm:$0xff] %v1940
    %1973 = vst [vmem:[#allocation2 + $0xe8] sm:$0xff] %v1941
    %1974 = vst [vmem:[#allocation2 + $0xf0] sm:$0xff] %v1942
    %1975 = vst [vmem:[#allocation2 + $0xf8] sm:$0xff] %v1943
    %s1976 = scalar_lea.vmem %s3, 256
    %v1977 = vld [vmem:[%s1976] sm:$0xff]
    %v1978 = vld [vmem:[%s1976 + $0x8] sm:$0xff]
    %v1979 = vld [vmem:[%s1976 + $0x10] sm:$0xff]
    %v1980 = vld [vmem:[%s1976 + $0x18] sm:$0xff]
    %v1981 = vld [vmem:[%s1976 + $0x20] sm:$0xff]
    %v1982 = vld [vmem:[%s1976 + $0x28] sm:$0xff]
    %v1983 = vld [vmem:[%s1976 + $0x30] sm:$0xff]
    %v1984 = vld [vmem:[%s1976 + $0x38] sm:$0xff]
    %v1985 = vld [vmem:[%s1976 + $0x40] sm:$0xff]
    %v1986 = vld [vmem:[%s1976 + $0x48] sm:$0xff]
    %v1987 = vld [vmem:[%s1976 + $0x50] sm:$0xff]
    %v1988 = vld [vmem:[%s1976 + $0x58] sm:$0xff]
    %v1989 = vld [vmem:[%s1976 + $0x60] sm:$0xff]
    %v1990 = vld [vmem:[%s1976 + $0x68] sm:$0xff]
    %v1991 = vld [vmem:[%s1976 + $0x70] sm:$0xff]
    %v1992 = vld [vmem:[%s1976 + $0x78] sm:$0xff]
    %v1993 = vld [vmem:[%s1976 + $0x80] sm:$0xff]
    %v1994 = vld [vmem:[%s1976 + $0x88] sm:$0xff]
    %v1995 = vld [vmem:[%s1976 + $0x90] sm:$0xff]
    %v1996 = vld [vmem:[%s1976 + $0x98] sm:$0xff]
    %v1997 = vld [vmem:[%s1976 + $0xa0] sm:$0xff]
    %v1998 = vld [vmem:[%s1976 + $0xa8] sm:$0xff]
    %v1999 = vld [vmem:[%s1976 + $0xb0] sm:$0xff]
    %v2000 = vld [vmem:[%s1976 + $0xb8] sm:$0xff]
    %v2001 = vld [vmem:[%s1976 + $0xc0] sm:$0xff]
    %v2002 = vld [vmem:[%s1976 + $0xc8] sm:$0xff]
    %v2003 = vld [vmem:[%s1976 + $0xd0] sm:$0xff]
    %v2004 = vld [vmem:[%s1976 + $0xd8] sm:$0xff]
    %v2005 = vld [vmem:[%s1976 + $0xe0] sm:$0xff]
    %v2006 = vld [vmem:[%s1976 + $0xe8] sm:$0xff]
    %v2007 = vld [vmem:[%s1976 + $0xf0] sm:$0xff]
    %v2008 = vld [vmem:[%s1976 + $0xf8] sm:$0xff]
    %s2009 = scalar_lea.vmem %s5, 8
    %v2010 = vld [vmem:[%s2009] sm:$0xff]
    %s2011 = scalar_lea.vmem %s6, 8
    %v2012 = vld [vmem:[%s2011] sm:$0xff]
    %v2013 = vld [vmem:[#allocation2] sm:$0xff]
    %v2014 = vld [vmem:[#allocation2 + $0x8] sm:$0xff]
    %v2015 = vld [vmem:[#allocation2 + $0x10] sm:$0xff]
    %v2016 = vld [vmem:[#allocation2 + $0x18] sm:$0xff]
    %v2017 = vpack.c.bf16 %v2010, %v2010
    %v2050 = vunpack.c.l.b16 %v1977
    %v2051 = vunpack.c.h.b16 %v1977
    %v2052 = vunpack.c.l.b16 %v1978
    %v2053 = vunpack.c.h.b16 %v1978
    %v2054 = vunpack.c.l.b16 %v1979
    %v2055 = vunpack.c.h.b16 %v1979
    %v2056 = vunpack.c.l.b16 %v1980
    %v2057 = vunpack.c.h.b16 %v1980
    %v2058 = vunpack.c.l.b16 %v1981
    %v2059 = vunpack.c.h.b16 %v1981
    %v2060 = vunpack.c.l.b16 %v1982
    %v2061 = vunpack.c.h.b16 %v1982
    %v2062 = vunpack.c.l.b16 %v1983
    %v2063 = vunpack.c.h.b16 %v1983
    %v2064 = vunpack.c.l.b16 %v1984
    %v2065 = vunpack.c.h.b16 %v1984
    %v2066 = vunpack.c.l.b16 %v1985
    %v2067 = vunpack.c.h.b16 %v1985
    %v2068 = vunpack.c.l.b16 %v1986
    %v2069 = vunpack.c.h.b16 %v1986
    %v2070 = vunpack.c.l.b16 %v1987
    %v2071 = vunpack.c.h.b16 %v1987
    %v2072 = vunpack.c.l.b16 %v1988
    %v2073 = vunpack.c.h.b16 %v1988
    %v2074 = vunpack.c.l.b16 %v1989
    %v2075 = vunpack.c.h.b16 %v1989
    %v2076 = vunpack.c.l.b16 %v1990
    %v2077 = vunpack.c.h.b16 %v1990
    %v2078 = vunpack.c.l.b16 %v1991
    %v2079 = vunpack.c.h.b16 %v1991
    %v2080 = vunpack.c.l.b16 %v1992
    %v2081 = vunpack.c.h.b16 %v1992
    %v2082 = vunpack.c.l.b16 %v1993
    %v2083 = vunpack.c.h.b16 %v1993
    %v2084 = vunpack.c.l.b16 %v1994
    %v2085 = vunpack.c.h.b16 %v1994
    %v2086 = vunpack.c.l.b16 %v1995
    %v2087 = vunpack.c.h.b16 %v1995
    %v2088 = vunpack.c.l.b16 %v1996
    %v2089 = vunpack.c.h.b16 %v1996
    %v2090 = vunpack.c.l.b16 %v1997
    %v2091 = vunpack.c.h.b16 %v1997
    %v2092 = vunpack.c.l.b16 %v1998
    %v2093 = vunpack.c.h.b16 %v1998
    %v2094 = vunpack.c.l.b16 %v1999
    %v2095 = vunpack.c.h.b16 %v1999
    %v2096 = vunpack.c.l.b16 %v2000
    %v2097 = vunpack.c.h.b16 %v2000
    %v2098 = vunpack.c.l.b16 %v2001
    %v2099 = vunpack.c.h.b16 %v2001
    %v2100 = vunpack.c.l.b16 %v2002
    %v2101 = vunpack.c.h.b16 %v2002
    %v2102 = vunpack.c.l.b16 %v2003
    %v2103 = vunpack.c.h.b16 %v2003
    %v2104 = vunpack.c.l.b16 %v2004
    %v2105 = vunpack.c.h.b16 %v2004
    %v2106 = vunpack.c.l.b16 %v2005
    %v2107 = vunpack.c.h.b16 %v2005
    %v2108 = vunpack.c.l.b16 %v2006
    %v2109 = vunpack.c.h.b16 %v2006
    %v2110 = vunpack.c.l.b16 %v2007
    %v2111 = vunpack.c.h.b16 %v2007
    %v2112 = vunpack.c.l.b16 %v2008
    %v2113 = vunpack.c.h.b16 %v2008
    %v2114 = vpack.c.b16 %v2054, %v2050
    %v2115 = vpack.c.b16 %v2055, %v2051
    %v2116 = vpack.c.b16 %v2056, %v2052
    %v2117 = vpack.c.b16 %v2057, %v2053
    %v2118 = vpack.c.b16 %v2062, %v2058
    %v2119 = vpack.c.b16 %v2063, %v2059
    %v2120 = vpack.c.b16 %v2064, %v2060
    %v2121 = vpack.c.b16 %v2065, %v2061
    %v2122 = vpack.c.b16 %v2070, %v2066
    %v2123 = vpack.c.b16 %v2071, %v2067
    %v2124 = vpack.c.b16 %v2072, %v2068
    %v2125 = vpack.c.b16 %v2073, %v2069
    %v2126 = vpack.c.b16 %v2078, %v2074
    %v2127 = vpack.c.b16 %v2079, %v2075
    %v2128 = vpack.c.b16 %v2080, %v2076
    %v2129 = vpack.c.b16 %v2081, %v2077
    %v2130 = vpack.c.b16 %v2086, %v2082
    %v2131 = vpack.c.b16 %v2087, %v2083
    %v2132 = vpack.c.b16 %v2088, %v2084
    %v2133 = vpack.c.b16 %v2089, %v2085
    %v2134 = vpack.c.b16 %v2094, %v2090
    %v2135 = vpack.c.b16 %v2095, %v2091
    %v2136 = vpack.c.b16 %v2096, %v2092
    %v2137 = vpack.c.b16 %v2097, %v2093
    %v2138 = vpack.c.b16 %v2102, %v2098
    %v2139 = vpack.c.b16 %v2103, %v2099
    %v2140 = vpack.c.b16 %v2104, %v2100
    %v2141 = vpack.c.b16 %v2105, %v2101
    %v2142 = vpack.c.b16 %v2110, %v2106
    %v2143 = vpack.c.b16 %v2111, %v2107
    %v2144 = vpack.c.b16 %v2112, %v2108
    %v2145 = vpack.c.b16 %v2113, %v2109
    %2178 = vmatprep.subr.bf16.mxu0 %v2143
    %2179 = vmatpush1.bf16.msra.mxu0 %v2142
    %2180 = vmatprep.subr.bf16.mxu0 %v2139
    %2181 = vmatpush1.bf16.msra.mxu0 %v2138
    %2182 = vmatprep.subr.bf16.mxu0 %v2135
    %2183 = vmatpush1.bf16.msra.mxu0 %v2134
    %2184 = vmatprep.subr.bf16.mxu0 %v2131
    %2185 = vmatpush1.bf16.msra.mxu0 %v2130
    %2186 = vmatprep.subr.bf16.mxu0 %v2127
    %2187 = vmatpush1.bf16.msra.mxu0 %v2126
    %2188 = vmatprep.subr.bf16.mxu0 %v2123
    %2189 = vmatpush1.bf16.msra.mxu0 %v2122
    %2190 = vmatprep.subr.bf16.mxu0 %v2119
    %2191 = vmatpush1.bf16.msra.mxu0 %v2118
    %2192 = vmatprep.subr.bf16.mxu0 %v2115
    %2193 = vmatpush1.bf16.msra.mxu0 %v2114
    %2194 = vmatprep.subr.bf16.mxu0 0
    %2195 = vmatpush2.bf16.msra.mxu0 0
    %2196 = vmatprep.subr.bf16.mxu0 0
    %2197 = vmatpush2.bf16.msra.mxu0 0
    %2198 = vmatprep.subr.bf16.mxu0 0
    %2199 = vmatpush2.bf16.msra.mxu0 0
    %2200 = vmatprep.subr.bf16.mxu0 0
    %2201 = vmatpush2.bf16.msra.mxu0 0
    %2202 = vmatprep.subr.bf16.mxu0 0
    %2203 = vmatpush2.bf16.msra.mxu0 0
    %2204 = vmatprep.subr.bf16.mxu0 0
    %2205 = vmatpush2.bf16.msra.mxu0 0
    %2206 = vmatprep.subr.bf16.mxu0 0
    %2207 = vmatpush2.bf16.msra.mxu0 0
    %2208 = vmatprep.subr.bf16.mxu0 0
    %2209 = vmatpush2.bf16.msra.mxu0 0
    %2210 = vmatprep.mubr.bf16.mxu0 0
    %2211 = vmatmul.mubr.bf16.gmra.mxu0 %v2017
    %v2212 = vpop.f32.mrf.mxu0
    %v2213 = vadd.f32 0.0, %v2212
    %v2214 = vpop.f32.mrf.mxu0
    %v2215 = vadd.f32 0.0, %v2214
    %v2216 = vpop.f32.mrf.mxu0
    %v2217 = vpop.f32.mrf.mxu0
    %2218 = vdwg.mxu0
    %2219 = vmatprep.subr.bf16.mxu0 %v2145
    %2220 = vmatpush1.bf16.msra.mxu0 %v2144
    %2221 = vmatprep.subr.bf16.mxu0 %v2141
    %2222 = vmatpush1.bf16.msra.mxu0 %v2140
    %2223 = vmatprep.subr.bf16.mxu0 %v2137
    %2224 = vmatpush1.bf16.msra.mxu0 %v2136
    %2225 = vmatprep.subr.bf16.mxu0 %v2133
    %2226 = vmatpush1.bf16.msra.mxu0 %v2132
    %2227 = vmatprep.subr.bf16.mxu0 %v2129
    %2228 = vmatpush1.bf16.msra.mxu0 %v2128
    %2229 = vmatprep.subr.bf16.mxu0 %v2125
    %2230 = vmatpush1.bf16.msra.mxu0 %v2124
    %2231 = vmatprep.subr.bf16.mxu0 %v2121
    %2232 = vmatpush1.bf16.msra.mxu0 %v2120
    %2233 = vmatprep.subr.bf16.mxu0 %v2117
    %2234 = vmatpush1.bf16.msra.mxu0 %v2116
    %2235 = vmatprep.subr.bf16.mxu0 0
    %2236 = vmatpush2.bf16.msra.mxu0 0
    %2237 = vmatprep.subr.bf16.mxu0 0
    %2238 = vmatpush2.bf16.msra.mxu0 0
    %2239 = vmatprep.subr.bf16.mxu0 0
    %2240 = vmatpush2.bf16.msra.mxu0 0
    %2241 = vmatprep.subr.bf16.mxu0 0
    %2242 = vmatpush2.bf16.msra.mxu0 0
    %2243 = vmatprep.subr.bf16.mxu0 0
    %2244 = vmatpush2.bf16.msra.mxu0 0
    %2245 = vmatprep.subr.bf16.mxu0 0
    %2246 = vmatpush2.bf16.msra.mxu0 0
    %2247 = vmatprep.subr.bf16.mxu0 0
    %2248 = vmatpush2.bf16.msra.mxu0 0
    %2249 = vmatprep.subr.bf16.mxu0 0
    %2250 = vmatpush2.bf16.msra.mxu0 0
    %2251 = vmatprep.mubr.bf16.mxu0 0
    %2252 = vmatmul.mubr.bf16.gmra.mxu0 %v2017
    %v2253 = vpop.f32.mrf.mxu0
    %v2254 = vadd.f32 0.0, %v2253
    %v2255 = vpop.f32.mrf.mxu0
    %v2256 = vadd.f32 0.0, %v2255
    %v2257 = vpop.f32.mrf.mxu0
    %v2258 = vpop.f32.mrf.mxu0
    %2259 = vdwg.mxu0
    %v2260 = vadd.f32 %v2013, %v2213
    %v2261 = vadd.f32 %v2014, %v2215
    %v2262 = vadd.f32 %v2015, %v2254
    %v2263 = vadd.f32 %v2016, %v2256
    %v2264 = vxor.u32 %v2260, 2147483648
    %v2265 = vmul.f32 %v2264, 1.442695
    %v2266 = vpow.pop %v2265
    %v2267 = vadd.f32 %v2266, 1.0
    %v2268 = vrcp.pop %v2267
    %v2269 = vmul.f32 1.0, %v2268
    %v2270 = vxor.u32 %v2261, 2147483648
    %v2271 = vmul.f32 %v2270, 1.442695
    %v2272 = vpow.pop %v2271
    %v2273 = vadd.f32 %v2272, 1.0
    %v2274 = vrcp.pop %v2273
    %v2275 = vmul.f32 1.0, %v2274
    %v2276 = vtanh.pop %v2262
    %v2277 = vxor.u32 %v2263, 2147483648
    %v2278 = vmul.f32 %v2277, 1.442695
    %v2279 = vpow.pop %v2278
    %v2280 = vadd.f32 %v2279, 1.0
    %v2281 = vrcp.pop %v2280
    %v2282 = vmul.f32 1.0, %v2281
    %v2283 = vmul.f32 %v2275, %v2012
    %v2284 = vmul.f32 %v2269, %v2276
    %v2285 = vadd.f32 %v2283, %v2284
    %v2286 = vtanh.pop %v2285
    %v2287 = vmul.f32 %v2282, %v2286
    %2288 = vst [vmem:[%s7] sm:$0xff] %v2287
    %v2289 = vld [vmem:[%s711] sm:$0xff]
    %v2290 = vld [vmem:[%s711 + $0x8] sm:$0xff]
    %v2291 = vld [vmem:[%s711 + $0x10] sm:$0xff]
    %v2292 = vld [vmem:[%s711 + $0x18] sm:$0xff]
    %v2293 = vpack.c.bf16 %v2287, %v2287
    %2294 = vmatprep.subr.bf16.mxu0 %v2143
    %2295 = vmatpush1.bf16.msra.mxu0 %v2142
    %2296 = vmatprep.subr.bf16.mxu0 %v2139
    %2297 = vmatpush1.bf16.msra.mxu0 %v2138
    %2298 = vmatprep.subr.bf16.mxu0 %v2135
    %2299 = vmatpush1.bf16.msra.mxu0 %v2134
    %2300 = vmatprep.subr.bf16.mxu0 %v2131
    %2301 = vmatpush1.bf16.msra.mxu0 %v2130
    %2302 = vmatprep.subr.bf16.mxu0 %v2127
    %2303 = vmatpush1.bf16.msra.mxu0 %v2126
    %2304 = vmatprep.subr.bf16.mxu0 %v2123
    %2305 = vmatpush1.bf16.msra.mxu0 %v2122
    %2306 = vmatprep.subr.bf16.mxu0 %v2119
    %2307 = vmatpush1.bf16.msra.mxu0 %v2118
    %2308 = vmatprep.subr.bf16.mxu0 %v2115
    %2309 = vmatpush1.bf16.msra.mxu0 %v2114
    %2310 = vmatprep.subr.bf16.mxu0 0
    %2311 = vmatpush2.bf16.msra.mxu0 0
    %2312 = vmatprep.subr.bf16.mxu0 0
    %2313 = vmatpush2.bf16.msra.mxu0 0
    %2314 = vmatprep.subr.bf16.mxu0 0
    %2315 = vmatpush2.bf16.msra.mxu0 0
    %2316 = vmatprep.subr.bf16.mxu0 0
    %2317 = vmatpush2.bf16.msra.mxu0 0
    %2318 = vmatprep.subr.bf16.mxu0 0
    %2319 = vmatpush2.bf16.msra.mxu0 0
    %2320 = vmatprep.subr.bf16.mxu0 0
    %2321 = vmatpush2.bf16.msra.mxu0 0
    %2322 = vmatprep.subr.bf16.mxu0 0
    %2323 = vmatpush2.bf16.msra.mxu0 0
    %2324 = vmatprep.subr.bf16.mxu0 0
    %2325 = vmatpush2.bf16.msra.mxu0 0
    %2326 = vmatprep.mubr.bf16.mxu0 0
    %2327 = vmatmul.mubr.bf16.gmra.mxu0 %v2293
    %v2328 = vpop.f32.mrf.mxu0
    %v2329 = vadd.f32 0.0, %v2328
    %v2330 = vpop.f32.mrf.mxu0
    %v2331 = vadd.f32 0.0, %v2330
    %v2332 = vpop.f32.mrf.mxu0
    %v2333 = vpop.f32.mrf.mxu0
    %2334 = vdwg.mxu0
    %2335 = vmatprep.subr.bf16.mxu0 %v2145
    %2336 = vmatpush1.bf16.msra.mxu0 %v2144
    %2337 = vmatprep.subr.bf16.mxu0 %v2141
    %2338 = vmatpush1.bf16.msra.mxu0 %v2140
    %2339 = vmatprep.subr.bf16.mxu0 %v2137
    %2340 = vmatpush1.bf16.msra.mxu0 %v2136
    %2341 = vmatprep.subr.bf16.mxu0 %v2133
    %2342 = vmatpush1.bf16.msra.mxu0 %v2132
    %2343 = vmatprep.subr.bf16.mxu0 %v2129
    %2344 = vmatpush1.bf16.msra.mxu0 %v2128
    %2345 = vmatprep.subr.bf16.mxu0 %v2125
    %2346 = vmatpush1.bf16.msra.mxu0 %v2124
    %2347 = vmatprep.subr.bf16.mxu0 %v2121
    %2348 = vmatpush1.bf16.msra.mxu0 %v2120
    %2349 = vmatprep.subr.bf16.mxu0 %v2117
    %2350 = vmatpush1.bf16.msra.mxu0 %v2116
    %2351 = vmatprep.subr.bf16.mxu0 0
    %2352 = vmatpush2.bf16.msra.mxu0 0
    %2353 = vmatprep.subr.bf16.mxu0 0
    %2354 = vmatpush2.bf16.msra.mxu0 0
    %2355 = vmatprep.subr.bf16.mxu0 0
    %2356 = vmatpush2.bf16.msra.mxu0 0
    %2357 = vmatprep.subr.bf16.mxu0 0
    %2358 = vmatpush2.bf16.msra.mxu0 0
    %2359 = vmatprep.subr.bf16.mxu0 0
    %2360 = vmatpush2.bf16.msra.mxu0 0
    %2361 = vmatprep.subr.bf16.mxu0 0
    %2362 = vmatpush2.bf16.msra.mxu0 0
    %2363 = vmatprep.subr.bf16.mxu0 0
    %2364 = vmatpush2.bf16.msra.mxu0 0
    %2365 = vmatprep.subr.bf16.mxu0 0
    %2366 = vmatpush2.bf16.msra.mxu0 0
    %2367 = vmatprep.mubr.bf16.mxu0 0
    %2368 = vmatmul.mubr.bf16.gmra.mxu0 %v2293
    %v2369 = vpop.f32.mrf.mxu0
    %v2370 = vadd.f32 0.0, %v2369
    %v2371 = vpop.f32.mrf.mxu0
    %v2372 = vadd.f32 0.0, %v2371
    %v2373 = vpop.f32.mrf.mxu0
    %v2374 = vpop.f32.mrf.mxu0
    %2375 = vdwg.mxu0
    %v2376 = vadd.f32 %v2289, %v2329
    %v2377 = vadd.f32 %v2290, %v2331
    %v2378 = vadd.f32 %v2291, %v2370
    %v2379 = vadd.f32 %v2292, %v2372
    %v2380 = vxor.u32 %v2376, 2147483648
    %v2381 = vmul.f32 %v2380, 1.442695
    %v2382 = vpow.pop %v2381
    %v2383 = vadd.f32 %v2382, 1.0
    %v2384 = vrcp.pop %v2383
    %v2385 = vmul.f32 1.0, %v2384
    %v2386 = vxor.u32 %v2377, 2147483648
    %v2387 = vmul.f32 %v2386, 1.442695
    %v2388 = vpow.pop %v2387
    %v2389 = vadd.f32 %v2388, 1.0
    %v2390 = vrcp.pop %v2389
    %v2391 = vmul.f32 1.0, %v2390
    %v2392 = vtanh.pop %v2378
    %v2393 = vxor.u32 %v2379, 2147483648
    %v2394 = vmul.f32 %v2393, 1.442695
    %v2395 = vpow.pop %v2394
    %v2396 = vadd.f32 %v2395, 1.0
    %v2397 = vrcp.pop %v2396
    %v2398 = vmul.f32 1.0, %v2397
    %v2399 = vmul.f32 %v2391, %v2285
    %v2400 = vmul.f32 %v2385, %v2392
    %v2401 = vadd.f32 %v2399, %v2400
    %v2402 = vtanh.pop %v2401
    %v2403 = vmul.f32 %v2398, %v2402
    %2404 = vst [vmem:[%s827] sm:$0xff] %v2403
    %v2405 = vld [vmem:[%s829] sm:$0xff]
    %v2406 = vld [vmem:[%s829 + $0x8] sm:$0xff]
    %v2407 = vld [vmem:[%s829 + $0x10] sm:$0xff]
    %v2408 = vld [vmem:[%s829 + $0x18] sm:$0xff]
    %v2409 = vpack.c.bf16 %v2403, %v2403
    %2410 = vmatprep.subr.bf16.mxu0 %v2143
    %2411 = vmatpush1.bf16.msra.mxu0 %v2142
    %2412 = vmatprep.subr.bf16.mxu0 %v2139
    %2413 = vmatpush1.bf16.msra.mxu0 %v2138
    %2414 = vmatprep.subr.bf16.mxu0 %v2135
    %2415 = vmatpush1.bf16.msra.mxu0 %v2134
    %2416 = vmatprep.subr.bf16.mxu0 %v2131
    %2417 = vmatpush1.bf16.msra.mxu0 %v2130
    %2418 = vmatprep.subr.bf16.mxu0 %v2127
    %2419 = vmatpush1.bf16.msra.mxu0 %v2126
    %2420 = vmatprep.subr.bf16.mxu0 %v2123
    %2421 = vmatpush1.bf16.msra.mxu0 %v2122
    %2422 = vmatprep.subr.bf16.mxu0 %v2119
    %2423 = vmatpush1.bf16.msra.mxu0 %v2118
    %2424 = vmatprep.subr.bf16.mxu0 %v2115
    %2425 = vmatpush1.bf16.msra.mxu0 %v2114
    %2426 = vmatprep.subr.bf16.mxu0 0
    %2427 = vmatpush2.bf16.msra.mxu0 0
    %2428 = vmatprep.subr.bf16.mxu0 0
    %2429 = vmatpush2.bf16.msra.mxu0 0
    %2430 = vmatprep.subr.bf16.mxu0 0
    %2431 = vmatpush2.bf16.msra.mxu0 0
    %2432 = vmatprep.subr.bf16.mxu0 0
    %2433 = vmatpush2.bf16.msra.mxu0 0
    %2434 = vmatprep.subr.bf16.mxu0 0
    %2435 = vmatpush2.bf16.msra.mxu0 0
    %2436 = vmatprep.subr.bf16.mxu0 0
    %2437 = vmatpush2.bf16.msra.mxu0 0
    %2438 = vmatprep.subr.bf16.mxu0 0
    %2439 = vmatpush2.bf16.msra.mxu0 0
    %2440 = vmatprep.subr.bf16.mxu0 0
    %2441 = vmatpush2.bf16.msra.mxu0 0
    %2442 = vmatprep.mubr.bf16.mxu0 0
    %2443 = vmatmul.mubr.bf16.gmra.mxu0 %v2409
    %v2444 = vpop.f32.mrf.mxu0
    %v2445 = vadd.f32 0.0, %v2444
    %v2446 = vpop.f32.mrf.mxu0
    %v2447 = vadd.f32 0.0, %v2446
    %v2448 = vpop.f32.mrf.mxu0
    %v2449 = vpop.f32.mrf.mxu0
    %2450 = vdwg.mxu0
    %2451 = vmatprep.subr.bf16.mxu0 %v2145
    %2452 = vmatpush1.bf16.msra.mxu0 %v2144
    %2453 = vmatprep.subr.bf16.mxu0 %v2141
    %2454 = vmatpush1.bf16.msra.mxu0 %v2140
    %2455 = vmatprep.subr.bf16.mxu0 %v2137
    %2456 = vmatpush1.bf16.msra.mxu0 %v2136
    %2457 = vmatprep.subr.bf16.mxu0 %v2133
    %2458 = vmatpush1.bf16.msra.mxu0 %v2132
    %2459 = vmatprep.subr.bf16.mxu0 %v2129
    %2460 = vmatpush1.bf16.msra.mxu0 %v2128
    %2461 = vmatprep.subr.bf16.mxu0 %v2125
    %2462 = vmatpush1.bf16.msra.mxu0 %v2124
    %2463 = vmatprep.subr.bf16.mxu0 %v2121
    %2464 = vmatpush1.bf16.msra.mxu0 %v2120
    %2465 = vmatprep.subr.bf16.mxu0 %v2117
    %2466 = vmatpush1.bf16.msra.mxu0 %v2116
    %2467 = vmatprep.subr.bf16.mxu0 0
    %2468 = vmatpush2.bf16.msra.mxu0 0
    %2469 = vmatprep.subr.bf16.mxu0 0
    %2470 = vmatpush2.bf16.msra.mxu0 0
    %2471 = vmatprep.subr.bf16.mxu0 0
    %2472 = vmatpush2.bf16.msra.mxu0 0
    %2473 = vmatprep.subr.bf16.mxu0 0
    %2474 = vmatpush2.bf16.msra.mxu0 0
    %2475 = vmatprep.subr.bf16.mxu0 0
    %2476 = vmatpush2.bf16.msra.mxu0 0
    %2477 = vmatprep.subr.bf16.mxu0 0
    %2478 = vmatpush2.bf16.msra.mxu0 0
    %2479 = vmatprep.subr.bf16.mxu0 0
    %2480 = vmatpush2.bf16.msra.mxu0 0
    %2481 = vmatprep.subr.bf16.mxu0 0
    %2482 = vmatpush2.bf16.msra.mxu0 0
    %2483 = vmatprep.mubr.bf16.mxu0 0
    %2484 = vmatmul.mubr.bf16.gmra.mxu0 %v2409
    %v2485 = vpop.f32.mrf.mxu0
    %v2486 = vadd.f32 0.0, %v2485
    %v2487 = vpop.f32.mrf.mxu0
    %v2488 = vadd.f32 0.0, %v2487
    %v2489 = vpop.f32.mrf.mxu0
    %v2490 = vpop.f32.mrf.mxu0
    %2491 = vdwg.mxu0
    %v2492 = vadd.f32 %v2405, %v2445
    %v2493 = vadd.f32 %v2406, %v2447
    %v2494 = vadd.f32 %v2407, %v2486
    %v2495 = vadd.f32 %v2408, %v2488
    %v2496 = vxor.u32 %v2492, 2147483648
    %v2497 = vmul.f32 %v2496, 1.442695
    %v2498 = vpow.pop %v2497
    %v2499 = vadd.f32 %v2498, 1.0
    %v2500 = vrcp.pop %v2499
    %v2501 = vmul.f32 1.0, %v2500
    %v2502 = vxor.u32 %v2493, 2147483648
    %v2503 = vmul.f32 %v2502, 1.442695
    %v2504 = vpow.pop %v2503
    %v2505 = vadd.f32 %v2504, 1.0
    %v2506 = vrcp.pop %v2505
    %v2507 = vmul.f32 1.0, %v2506
    %v2508 = vtanh.pop %v2494
    %v2509 = vxor.u32 %v2495, 2147483648
    %v2510 = vmul.f32 %v2509, 1.442695
    %v2511 = vpow.pop %v2510
    %v2512 = vadd.f32 %v2511, 1.0
    %v2513 = vrcp.pop %v2512
    %v2514 = vmul.f32 1.0, %v2513
    %v2515 = vmul.f32 %v2507, %v2401
    %v2516 = vmul.f32 %v2501, %v2508
    %v2517 = vadd.f32 %v2515, %v2516
    %v2518 = vtanh.pop %v2517
    %v2519 = vmul.f32 %v2514, %v2518
    %2520 = vst [vmem:[%s945] sm:$0xff] %v2519
    %v2521 = vld [vmem:[%s947] sm:$0xff]
    %v2522 = vld [vmem:[%s947 + $0x8] sm:$0xff]
    %v2523 = vld [vmem:[%s947 + $0x10] sm:$0xff]
    %v2524 = vld [vmem:[%s947 + $0x18] sm:$0xff]
    %v2525 = vpack.c.bf16 %v2519, %v2519
    %2526 = vmatprep.subr.bf16.mxu0 %v2143
    %2527 = vmatpush1.bf16.msra.mxu0 %v2142
    %2528 = vmatprep.subr.bf16.mxu0 %v2139
    %2529 = vmatpush1.bf16.msra.mxu0 %v2138
    %2530 = vmatprep.subr.bf16.mxu0 %v2135
    %2531 = vmatpush1.bf16.msra.mxu0 %v2134
    %2532 = vmatprep.subr.bf16.mxu0 %v2131
    %2533 = vmatpush1.bf16.msra.mxu0 %v2130
    %2534 = vmatprep.subr.bf16.mxu0 %v2127
    %2535 = vmatpush1.bf16.msra.mxu0 %v2126
    %2536 = vmatprep.subr.bf16.mxu0 %v2123
    %2537 = vmatpush1.bf16.msra.mxu0 %v2122
    %2538 = vmatprep.subr.bf16.mxu0 %v2119
    %2539 = vmatpush1.bf16.msra.mxu0 %v2118
    %2540 = vmatprep.subr.bf16.mxu0 %v2115
    %2541 = vmatpush1.bf16.msra.mxu0 %v2114
    %2542 = vmatprep.subr.bf16.mxu0 0
    %2543 = vmatpush2.bf16.msra.mxu0 0
    %2544 = vmatprep.subr.bf16.mxu0 0
    %2545 = vmatpush2.bf16.msra.mxu0 0
    %2546 = vmatprep.subr.bf16.mxu0 0
    %2547 = vmatpush2.bf16.msra.mxu0 0
    %2548 = vmatprep.subr.bf16.mxu0 0
    %2549 = vmatpush2.bf16.msra.mxu0 0
    %2550 = vmatprep.subr.bf16.mxu0 0
    %2551 = vmatpush2.bf16.msra.mxu0 0
    %2552 = vmatprep.subr.bf16.mxu0 0
    %2553 = vmatpush2.bf16.msra.mxu0 0
    %2554 = vmatprep.subr.bf16.mxu0 0
    %2555 = vmatpush2.bf16.msra.mxu0 0
    %2556 = vmatprep.subr.bf16.mxu0 0
    %2557 = vmatpush2.bf16.msra.mxu0 0
    %2558 = vmatprep.mubr.bf16.mxu0 0
    %2559 = vmatmul.mubr.bf16.gmra.mxu0 %v2525
    %v2560 = vpop.f32.mrf.mxu0
    %v2561 = vadd.f32 0.0, %v2560
    %v2562 = vpop.f32.mrf.mxu0
    %v2563 = vadd.f32 0.0, %v2562
    %v2564 = vpop.f32.mrf.mxu0
    %v2565 = vpop.f32.mrf.mxu0
    %2566 = vdwg.mxu0
    %2567 = vmatprep.subr.bf16.mxu0 %v2145
    %2568 = vmatpush1.bf16.msra.mxu0 %v2144
    %2569 = vmatprep.subr.bf16.mxu0 %v2141
    %2570 = vmatpush1.bf16.msra.mxu0 %v2140
    %2571 = vmatprep.subr.bf16.mxu0 %v2137
    %2572 = vmatpush1.bf16.msra.mxu0 %v2136
    %2573 = vmatprep.subr.bf16.mxu0 %v2133
    %2574 = vmatpush1.bf16.msra.mxu0 %v2132
    %2575 = vmatprep.subr.bf16.mxu0 %v2129
    %2576 = vmatpush1.bf16.msra.mxu0 %v2128
    %2577 = vmatprep.subr.bf16.mxu0 %v2125
    %2578 = vmatpush1.bf16.msra.mxu0 %v2124
    %2579 = vmatprep.subr.bf16.mxu0 %v2121
    %2580 = vmatpush1.bf16.msra.mxu0 %v2120
    %2581 = vmatprep.subr.bf16.mxu0 %v2117
    %2582 = vmatpush1.bf16.msra.mxu0 %v2116
    %2583 = vmatprep.subr.bf16.mxu0 0
    %2584 = vmatpush2.bf16.msra.mxu0 0
    %2585 = vmatprep.subr.bf16.mxu0 0
    %2586 = vmatpush2.bf16.msra.mxu0 0
    %2587 = vmatprep.subr.bf16.mxu0 0
    %2588 = vmatpush2.bf16.msra.mxu0 0
    %2589 = vmatprep.subr.bf16.mxu0 0
    %2590 = vmatpush2.bf16.msra.mxu0 0
    %2591 = vmatprep.subr.bf16.mxu0 0
    %2592 = vmatpush2.bf16.msra.mxu0 0
    %2593 = vmatprep.subr.bf16.mxu0 0
    %2594 = vmatpush2.bf16.msra.mxu0 0
    %2595 = vmatprep.subr.bf16.mxu0 0
    %2596 = vmatpush2.bf16.msra.mxu0 0
    %2597 = vmatprep.subr.bf16.mxu0 0
    %2598 = vmatpush2.bf16.msra.mxu0 0
    %2599 = vmatprep.mubr.bf16.mxu0 0
    %2600 = vmatmul.mubr.bf16.gmra.mxu0 %v2525
    %v2601 = vpop.f32.mrf.mxu0
    %v2602 = vadd.f32 0.0, %v2601
    %v2603 = vpop.f32.mrf.mxu0
    %v2604 = vadd.f32 0.0, %v2603
    %v2605 = vpop.f32.mrf.mxu0
    %v2606 = vpop.f32.mrf.mxu0
    %2607 = vdwg.mxu0
    %v2608 = vadd.f32 %v2521, %v2561
    %v2609 = vadd.f32 %v2522, %v2563
    %v2610 = vadd.f32 %v2523, %v2602
    %v2611 = vadd.f32 %v2524, %v2604
    %v2612 = vxor.u32 %v2608, 2147483648
    %v2613 = vmul.f32 %v2612, 1.442695
    %v2614 = vpow.pop %v2613
    %v2615 = vadd.f32 %v2614, 1.0
    %v2616 = vrcp.pop %v2615
    %v2617 = vmul.f32 1.0, %v2616
    %v2618 = vxor.u32 %v2609, 2147483648
    %v2619 = vmul.f32 %v2618, 1.442695
    %v2620 = vpow.pop %v2619
    %v2621 = vadd.f32 %v2620, 1.0
    %v2622 = vrcp.pop %v2621
    %v2623 = vmul.f32 1.0, %v2622
    %v2624 = vtanh.pop %v2610
    %v2625 = vxor.u32 %v2611, 2147483648
    %v2626 = vmul.f32 %v2625, 1.442695
    %v2627 = vpow.pop %v2626
    %v2628 = vadd.f32 %v2627, 1.0
    %v2629 = vrcp.pop %v2628
    %v2630 = vmul.f32 1.0, %v2629
    %v2631 = vmul.f32 %v2623, %v2517
    %v2632 = vmul.f32 %v2617, %v2624
    %v2633 = vadd.f32 %v2631, %v2632
    %v2634 = vtanh.pop %v2633
    %v2635 = vmul.f32 %v2630, %v2634
    %2636 = vst [vmem:[%s1063] sm:$0xff] %v2635
    %v2637 = vld [vmem:[%s1065] sm:$0xff]
    %v2638 = vld [vmem:[%s1065 + $0x8] sm:$0xff]
    %v2639 = vld [vmem:[%s1065 + $0x10] sm:$0xff]
    %v2640 = vld [vmem:[%s1065 + $0x18] sm:$0xff]
    %v2641 = vpack.c.bf16 %v2635, %v2635
    %2642 = vmatprep.subr.bf16.mxu0 %v2143
    %2643 = vmatpush1.bf16.msra.mxu0 %v2142
    %2644 = vmatprep.subr.bf16.mxu0 %v2139
    %2645 = vmatpush1.bf16.msra.mxu0 %v2138
    %2646 = vmatprep.subr.bf16.mxu0 %v2135
    %2647 = vmatpush1.bf16.msra.mxu0 %v2134
    %2648 = vmatprep.subr.bf16.mxu0 %v2131
    %2649 = vmatpush1.bf16.msra.mxu0 %v2130
    %2650 = vmatprep.subr.bf16.mxu0 %v2127
    %2651 = vmatpush1.bf16.msra.mxu0 %v2126
    %2652 = vmatprep.subr.bf16.mxu0 %v2123
    %2653 = vmatpush1.bf16.msra.mxu0 %v2122
    %2654 = vmatprep.subr.bf16.mxu0 %v2119
    %2655 = vmatpush1.bf16.msra.mxu0 %v2118
    %2656 = vmatprep.subr.bf16.mxu0 %v2115
    %2657 = vmatpush1.bf16.msra.mxu0 %v2114
    %2658 = vmatprep.subr.bf16.mxu0 0
    %2659 = vmatpush2.bf16.msra.mxu0 0
    %2660 = vmatprep.subr.bf16.mxu0 0
    %2661 = vmatpush2.bf16.msra.mxu0 0
    %2662 = vmatprep.subr.bf16.mxu0 0
    %2663 = vmatpush2.bf16.msra.mxu0 0
    %2664 = vmatprep.subr.bf16.mxu0 0
    %2665 = vmatpush2.bf16.msra.mxu0 0
    %2666 = vmatprep.subr.bf16.mxu0 0
    %2667 = vmatpush2.bf16.msra.mxu0 0
    %2668 = vmatprep.subr.bf16.mxu0 0
    %2669 = vmatpush2.bf16.msra.mxu0 0
    %2670 = vmatprep.subr.bf16.mxu0 0
    %2671 = vmatpush2.bf16.msra.mxu0 0
    %2672 = vmatprep.subr.bf16.mxu0 0
    %2673 = vmatpush2.bf16.msra.mxu0 0
    %2674 = vmatprep.mubr.bf16.mxu0 0
    %2675 = vmatmul.mubr.bf16.gmra.mxu0 %v2641
    %v2676 = vpop.f32.mrf.mxu0
    %v2677 = vadd.f32 0.0, %v2676
    %v2678 = vpop.f32.mrf.mxu0
    %v2679 = vadd.f32 0.0, %v2678
    %v2680 = vpop.f32.mrf.mxu0
    %v2681 = vpop.f32.mrf.mxu0
    %2682 = vdwg.mxu0
    %2683 = vmatprep.subr.bf16.mxu0 %v2145
    %2684 = vmatpush1.bf16.msra.mxu0 %v2144
    %2685 = vmatprep.subr.bf16.mxu0 %v2141
    %2686 = vmatpush1.bf16.msra.mxu0 %v2140
    %2687 = vmatprep.subr.bf16.mxu0 %v2137
    %2688 = vmatpush1.bf16.msra.mxu0 %v2136
    %2689 = vmatprep.subr.bf16.mxu0 %v2133
    %2690 = vmatpush1.bf16.msra.mxu0 %v2132
    %2691 = vmatprep.subr.bf16.mxu0 %v2129
    %2692 = vmatpush1.bf16.msra.mxu0 %v2128
    %2693 = vmatprep.subr.bf16.mxu0 %v2125
    %2694 = vmatpush1.bf16.msra.mxu0 %v2124
    %2695 = vmatprep.subr.bf16.mxu0 %v2121
    %2696 = vmatpush1.bf16.msra.mxu0 %v2120
    %2697 = vmatprep.subr.bf16.mxu0 %v2117
    %2698 = vmatpush1.bf16.msra.mxu0 %v2116
    %2699 = vmatprep.subr.bf16.mxu0 0
    %2700 = vmatpush2.bf16.msra.mxu0 0
    %2701 = vmatprep.subr.bf16.mxu0 0
    %2702 = vmatpush2.bf16.msra.mxu0 0
    %2703 = vmatprep.subr.bf16.mxu0 0
    %2704 = vmatpush2.bf16.msra.mxu0 0
    %2705 = vmatprep.subr.bf16.mxu0 0
    %2706 = vmatpush2.bf16.msra.mxu0 0
    %2707 = vmatprep.subr.bf16.mxu0 0
    %2708 = vmatpush2.bf16.msra.mxu0 0
    %2709 = vmatprep.subr.bf16.mxu0 0
    %2710 = vmatpush2.bf16.msra.mxu0 0
    %2711 = vmatprep.subr.bf16.mxu0 0
    %2712 = vmatpush2.bf16.msra.mxu0 0
    %2713 = vmatprep.subr.bf16.mxu0 0
    %2714 = vmatpush2.bf16.msra.mxu0 0
    %2715 = vmatprep.mubr.bf16.mxu0 0
    %2716 = vmatmul.mubr.bf16.gmra.mxu0 %v2641
    %v2717 = vpop.f32.mrf.mxu0
    %v2718 = vadd.f32 0.0, %v2717
    %v2719 = vpop.f32.mrf.mxu0
    %v2720 = vadd.f32 0.0, %v2719
    %v2721 = vpop.f32.mrf.mxu0
    %v2722 = vpop.f32.mrf.mxu0
    %2723 = vdwg.mxu0
    %v2724 = vadd.f32 %v2637, %v2677
    %v2725 = vadd.f32 %v2638, %v2679
    %v2726 = vadd.f32 %v2639, %v2718
    %v2727 = vadd.f32 %v2640, %v2720
    %v2728 = vxor.u32 %v2724, 2147483648
    %v2729 = vmul.f32 %v2728, 1.442695
    %v2730 = vpow.pop %v2729
    %v2731 = vadd.f32 %v2730, 1.0
    %v2732 = vrcp.pop %v2731
    %v2733 = vmul.f32 1.0, %v2732
    %v2734 = vxor.u32 %v2725, 2147483648
    %v2735 = vmul.f32 %v2734, 1.442695
    %v2736 = vpow.pop %v2735
    %v2737 = vadd.f32 %v2736, 1.0
    %v2738 = vrcp.pop %v2737
    %v2739 = vmul.f32 1.0, %v2738
    %v2740 = vtanh.pop %v2726
    %v2741 = vxor.u32 %v2727, 2147483648
    %v2742 = vmul.f32 %v2741, 1.442695
    %v2743 = vpow.pop %v2742
    %v2744 = vadd.f32 %v2743, 1.0
    %v2745 = vrcp.pop %v2744
    %v2746 = vmul.f32 1.0, %v2745
    %v2747 = vmul.f32 %v2739, %v2633
    %v2748 = vmul.f32 %v2733, %v2740
    %v2749 = vadd.f32 %v2747, %v2748
    %v2750 = vtanh.pop %v2749
    %v2751 = vmul.f32 %v2746, %v2750
    %2752 = vst [vmem:[%s1181] sm:$0xff] %v2751
    %v2753 = vld [vmem:[%s1183] sm:$0xff]
    %v2754 = vld [vmem:[%s1183 + $0x8] sm:$0xff]
    %v2755 = vld [vmem:[%s1183 + $0x10] sm:$0xff]
    %v2756 = vld [vmem:[%s1183 + $0x18] sm:$0xff]
    %v2757 = vpack.c.bf16 %v2751, %v2751
    %2758 = vmatprep.subr.bf16.mxu0 %v2143
    %2759 = vmatpush1.bf16.msra.mxu0 %v2142
    %2760 = vmatprep.subr.bf16.mxu0 %v2139
    %2761 = vmatpush1.bf16.msra.mxu0 %v2138
    %2762 = vmatprep.subr.bf16.mxu0 %v2135
    %2763 = vmatpush1.bf16.msra.mxu0 %v2134
    %2764 = vmatprep.subr.bf16.mxu0 %v2131
    %2765 = vmatpush1.bf16.msra.mxu0 %v2130
    %2766 = vmatprep.subr.bf16.mxu0 %v2127
    %2767 = vmatpush1.bf16.msra.mxu0 %v2126
    %2768 = vmatprep.subr.bf16.mxu0 %v2123
    %2769 = vmatpush1.bf16.msra.mxu0 %v2122
    %2770 = vmatprep.subr.bf16.mxu0 %v2119
    %2771 = vmatpush1.bf16.msra.mxu0 %v2118
    %2772 = vmatprep.subr.bf16.mxu0 %v2115
    %2773 = vmatpush1.bf16.msra.mxu0 %v2114
    %2774 = vmatprep.subr.bf16.mxu0 0
    %2775 = vmatpush2.bf16.msra.mxu0 0
    %2776 = vmatprep.subr.bf16.mxu0 0
    %2777 = vmatpush2.bf16.msra.mxu0 0
    %2778 = vmatprep.subr.bf16.mxu0 0
    %2779 = vmatpush2.bf16.msra.mxu0 0
    %2780 = vmatprep.subr.bf16.mxu0 0
    %2781 = vmatpush2.bf16.msra.mxu0 0
    %2782 = vmatprep.subr.bf16.mxu0 0
    %2783 = vmatpush2.bf16.msra.mxu0 0
    %2784 = vmatprep.subr.bf16.mxu0 0
    %2785 = vmatpush2.bf16.msra.mxu0 0
    %2786 = vmatprep.subr.bf16.mxu0 0
    %2787 = vmatpush2.bf16.msra.mxu0 0
    %2788 = vmatprep.subr.bf16.mxu0 0
    %2789 = vmatpush2.bf16.msra.mxu0 0
    %2790 = vmatprep.mubr.bf16.mxu0 0
    %2791 = vmatmul.mubr.bf16.gmra.mxu0 %v2757
    %v2792 = vpop.f32.mrf.mxu0
    %v2793 = vadd.f32 0.0, %v2792
    %v2794 = vpop.f32.mrf.mxu0
    %v2795 = vadd.f32 0.0, %v2794
    %v2796 = vpop.f32.mrf.mxu0
    %v2797 = vpop.f32.mrf.mxu0
    %2798 = vdwg.mxu0
    %2799 = vmatprep.subr.bf16.mxu0 %v2145
    %2800 = vmatpush1.bf16.msra.mxu0 %v2144
    %2801 = vmatprep.subr.bf16.mxu0 %v2141
    %2802 = vmatpush1.bf16.msra.mxu0 %v2140
    %2803 = vmatprep.subr.bf16.mxu0 %v2137
    %2804 = vmatpush1.bf16.msra.mxu0 %v2136
    %2805 = vmatprep.subr.bf16.mxu0 %v2133
    %2806 = vmatpush1.bf16.msra.mxu0 %v2132
    %2807 = vmatprep.subr.bf16.mxu0 %v2129
    %2808 = vmatpush1.bf16.msra.mxu0 %v2128
    %2809 = vmatprep.subr.bf16.mxu0 %v2125
    %2810 = vmatpush1.bf16.msra.mxu0 %v2124
    %2811 = vmatprep.subr.bf16.mxu0 %v2121
    %2812 = vmatpush1.bf16.msra.mxu0 %v2120
    %2813 = vmatprep.subr.bf16.mxu0 %v2117
    %2814 = vmatpush1.bf16.msra.mxu0 %v2116
    %2815 = vmatprep.subr.bf16.mxu0 0
    %2816 = vmatpush2.bf16.msra.mxu0 0
    %2817 = vmatprep.subr.bf16.mxu0 0
    %2818 = vmatpush2.bf16.msra.mxu0 0
    %2819 = vmatprep.subr.bf16.mxu0 0
    %2820 = vmatpush2.bf16.msra.mxu0 0
    %2821 = vmatprep.subr.bf16.mxu0 0
    %2822 = vmatpush2.bf16.msra.mxu0 0
    %2823 = vmatprep.subr.bf16.mxu0 0
    %2824 = vmatpush2.bf16.msra.mxu0 0
    %2825 = vmatprep.subr.bf16.mxu0 0
    %2826 = vmatpush2.bf16.msra.mxu0 0
    %2827 = vmatprep.subr.bf16.mxu0 0
    %2828 = vmatpush2.bf16.msra.mxu0 0
    %2829 = vmatprep.subr.bf16.mxu0 0
    %2830 = vmatpush2.bf16.msra.mxu0 0
    %2831 = vmatprep.mubr.bf16.mxu0 0
    %2832 = vmatmul.mubr.bf16.gmra.mxu0 %v2757
    %v2833 = vpop.f32.mrf.mxu0
    %v2834 = vadd.f32 0.0, %v2833
    %v2835 = vpop.f32.mrf.mxu0
    %v2836 = vadd.f32 0.0, %v2835
    %v2837 = vpop.f32.mrf.mxu0
    %v2838 = vpop.f32.mrf.mxu0
    %2839 = vdwg.mxu0
    %v2840 = vadd.f32 %v2753, %v2793
    %v2841 = vadd.f32 %v2754, %v2795
    %v2842 = vadd.f32 %v2755, %v2834
    %v2843 = vadd.f32 %v2756, %v2836
    %v2844 = vxor.u32 %v2840, 2147483648
    %v2845 = vmul.f32 %v2844, 1.442695
    %v2846 = vpow.pop %v2845
    %v2847 = vadd.f32 %v2846, 1.0
    %v2848 = vrcp.pop %v2847
    %v2849 = vmul.f32 1.0, %v2848
    %v2850 = vxor.u32 %v2841, 2147483648
    %v2851 = vmul.f32 %v2850, 1.442695
    %v2852 = vpow.pop %v2851
    %v2853 = vadd.f32 %v2852, 1.0
    %v2854 = vrcp.pop %v2853
    %v2855 = vmul.f32 1.0, %v2854
    %v2856 = vtanh.pop %v2842
    %v2857 = vxor.u32 %v2843, 2147483648
    %v2858 = vmul.f32 %v2857, 1.442695
    %v2859 = vpow.pop %v2858
    %v2860 = vadd.f32 %v2859, 1.0
    %v2861 = vrcp.pop %v2860
    %v2862 = vmul.f32 1.0, %v2861
    %v2863 = vmul.f32 %v2855, %v2749
    %v2864 = vmul.f32 %v2849, %v2856
    %v2865 = vadd.f32 %v2863, %v2864
    %v2866 = vtanh.pop %v2865
    %v2867 = vmul.f32 %v2862, %v2866
    %2868 = vst [vmem:[%s1299] sm:$0xff] %v2867
    %v2869 = vld [vmem:[%s1301] sm:$0xff]
    %v2870 = vld [vmem:[%s1301 + $0x8] sm:$0xff]
    %v2871 = vld [vmem:[%s1301 + $0x10] sm:$0xff]
    %v2872 = vld [vmem:[%s1301 + $0x18] sm:$0xff]
    %v2873 = vpack.c.bf16 %v2867, %v2867
    %2874 = vmatprep.subr.bf16.mxu0 %v2143
    %2875 = vmatpush1.bf16.msra.mxu0 %v2142
    %2876 = vmatprep.subr.bf16.mxu0 %v2139
    %2877 = vmatpush1.bf16.msra.mxu0 %v2138
    %2878 = vmatprep.subr.bf16.mxu0 %v2135
    %2879 = vmatpush1.bf16.msra.mxu0 %v2134
    %2880 = vmatprep.subr.bf16.mxu0 %v2131
    %2881 = vmatpush1.bf16.msra.mxu0 %v2130
    %2882 = vmatprep.subr.bf16.mxu0 %v2127
    %2883 = vmatpush1.bf16.msra.mxu0 %v2126
    %2884 = vmatprep.subr.bf16.mxu0 %v2123
    %2885 = vmatpush1.bf16.msra.mxu0 %v2122
    %2886 = vmatprep.subr.bf16.mxu0 %v2119
    %2887 = vmatpush1.bf16.msra.mxu0 %v2118
    %2888 = vmatprep.subr.bf16.mxu0 %v2115
    %2889 = vmatpush1.bf16.msra.mxu0 %v2114
    %2890 = vmatprep.subr.bf16.mxu0 0
    %2891 = vmatpush2.bf16.msra.mxu0 0
    %2892 = vmatprep.subr.bf16.mxu0 0
    %2893 = vmatpush2.bf16.msra.mxu0 0
    %2894 = vmatprep.subr.bf16.mxu0 0
    %2895 = vmatpush2.bf16.msra.mxu0 0
    %2896 = vmatprep.subr.bf16.mxu0 0
    %2897 = vmatpush2.bf16.msra.mxu0 0
    %2898 = vmatprep.subr.bf16.mxu0 0
    %2899 = vmatpush2.bf16.msra.mxu0 0
    %2900 = vmatprep.subr.bf16.mxu0 0
    %2901 = vmatpush2.bf16.msra.mxu0 0
    %2902 = vmatprep.subr.bf16.mxu0 0
    %2903 = vmatpush2.bf16.msra.mxu0 0
    %2904 = vmatprep.subr.bf16.mxu0 0
    %2905 = vmatpush2.bf16.msra.mxu0 0
    %2906 = vmatprep.mubr.bf16.mxu0 0
    %2907 = vmatmul.mubr.bf16.gmra.mxu0 %v2873
    %v2908 = vpop.f32.mrf.mxu0
    %v2909 = vadd.f32 0.0, %v2908
    %v2910 = vpop.f32.mrf.mxu0
    %v2911 = vadd.f32 0.0, %v2910
    %v2912 = vpop.f32.mrf.mxu0
    %v2913 = vpop.f32.mrf.mxu0
    %2914 = vdwg.mxu0
    %2915 = vmatprep.subr.bf16.mxu0 %v2145
    %2916 = vmatpush1.bf16.msra.mxu0 %v2144
    %2917 = vmatprep.subr.bf16.mxu0 %v2141
    %2918 = vmatpush1.bf16.msra.mxu0 %v2140
    %2919 = vmatprep.subr.bf16.mxu0 %v2137
    %2920 = vmatpush1.bf16.msra.mxu0 %v2136
    %2921 = vmatprep.subr.bf16.mxu0 %v2133
    %2922 = vmatpush1.bf16.msra.mxu0 %v2132
    %2923 = vmatprep.subr.bf16.mxu0 %v2129
    %2924 = vmatpush1.bf16.msra.mxu0 %v2128
    %2925 = vmatprep.subr.bf16.mxu0 %v2125
    %2926 = vmatpush1.bf16.msra.mxu0 %v2124
    %2927 = vmatprep.subr.bf16.mxu0 %v2121
    %2928 = vmatpush1.bf16.msra.mxu0 %v2120
    %2929 = vmatprep.subr.bf16.mxu0 %v2117
    %2930 = vmatpush1.bf16.msra.mxu0 %v2116
    %2931 = vmatprep.subr.bf16.mxu0 0
    %2932 = vmatpush2.bf16.msra.mxu0 0
    %2933 = vmatprep.subr.bf16.mxu0 0
    %2934 = vmatpush2.bf16.msra.mxu0 0
    %2935 = vmatprep.subr.bf16.mxu0 0
    %2936 = vmatpush2.bf16.msra.mxu0 0
    %2937 = vmatprep.subr.bf16.mxu0 0
    %2938 = vmatpush2.bf16.msra.mxu0 0
    %2939 = vmatprep.subr.bf16.mxu0 0
    %2940 = vmatpush2.bf16.msra.mxu0 0
    %2941 = vmatprep.subr.bf16.mxu0 0
    %2942 = vmatpush2.bf16.msra.mxu0 0
    %2943 = vmatprep.subr.bf16.mxu0 0
    %2944 = vmatpush2.bf16.msra.mxu0 0
    %2945 = vmatprep.subr.bf16.mxu0 0
    %2946 = vmatpush2.bf16.msra.mxu0 0
    %2947 = vmatprep.mubr.bf16.mxu0 0
    %2948 = vmatmul.mubr.bf16.gmra.mxu0 %v2873
    %v2949 = vpop.f32.mrf.mxu0
    %v2950 = vadd.f32 0.0, %v2949
    %v2951 = vpop.f32.mrf.mxu0
    %v2952 = vadd.f32 0.0, %v2951
    %v2953 = vpop.f32.mrf.mxu0
    %v2954 = vpop.f32.mrf.mxu0
    %2955 = vdwg.mxu0
    %v2956 = vadd.f32 %v2869, %v2909
    %v2957 = vadd.f32 %v2870, %v2911
    %v2958 = vadd.f32 %v2871, %v2950
    %v2959 = vadd.f32 %v2872, %v2952
    %v2960 = vxor.u32 %v2956, 2147483648
    %v2961 = vmul.f32 %v2960, 1.442695
    %v2962 = vpow.pop %v2961
    %v2963 = vadd.f32 %v2962, 1.0
    %v2964 = vrcp.pop %v2963
    %v2965 = vmul.f32 1.0, %v2964
    %v2966 = vxor.u32 %v2957, 2147483648
    %v2967 = vmul.f32 %v2966, 1.442695
    %v2968 = vpow.pop %v2967
    %v2969 = vadd.f32 %v2968, 1.0
    %v2970 = vrcp.pop %v2969
    %v2971 = vmul.f32 1.0, %v2970
    %v2972 = vtanh.pop %v2958
    %v2973 = vxor.u32 %v2959, 2147483648
    %v2974 = vmul.f32 %v2973, 1.442695
    %v2975 = vpow.pop %v2974
    %v2976 = vadd.f32 %v2975, 1.0
    %v2977 = vrcp.pop %v2976
    %v2978 = vmul.f32 1.0, %v2977
    %v2979 = vmul.f32 %v2971, %v2865
    %v2980 = vmul.f32 %v2965, %v2972
    %v2981 = vadd.f32 %v2979, %v2980
    %v2982 = vtanh.pop %v2981
    %v2983 = vmul.f32 %v2978, %v2982
    %2984 = vst [vmem:[%s1417] sm:$0xff] %v2983
    %v2985 = vld [vmem:[%s1419] sm:$0xff]
    %v2986 = vld [vmem:[%s1419 + $0x8] sm:$0xff]
    %v2987 = vld [vmem:[%s1419 + $0x10] sm:$0xff]
    %v2988 = vld [vmem:[%s1419 + $0x18] sm:$0xff]
    %v2989 = vpack.c.bf16 %v2983, %v2983
    %2990 = vmatprep.subr.bf16.mxu0 %v2143
    %2991 = vmatpush1.bf16.msra.mxu0 %v2142
    %2992 = vmatprep.subr.bf16.mxu0 %v2139
    %2993 = vmatpush1.bf16.msra.mxu0 %v2138
    %2994 = vmatprep.subr.bf16.mxu0 %v2135
    %2995 = vmatpush1.bf16.msra.mxu0 %v2134
    %2996 = vmatprep.subr.bf16.mxu0 %v2131
    %2997 = vmatpush1.bf16.msra.mxu0 %v2130
    %2998 = vmatprep.subr.bf16.mxu0 %v2127
    %2999 = vmatpush1.bf16.msra.mxu0 %v2126
    %3000 = vmatprep.subr.bf16.mxu0 %v2123
    %3001 = vmatpush1.bf16.msra.mxu0 %v2122
    %3002 = vmatprep.subr.bf16.mxu0 %v2119
    %3003 = vmatpush1.bf16.msra.mxu0 %v2118
    %3004 = vmatprep.subr.bf16.mxu0 %v2115
    %3005 = vmatpush1.bf16.msra.mxu0 %v2114
    %3006 = vmatprep.subr.bf16.mxu0 0
    %3007 = vmatpush2.bf16.msra.mxu0 0
    %3008 = vmatprep.subr.bf16.mxu0 0
    %3009 = vmatpush2.bf16.msra.mxu0 0
    %3010 = vmatprep.subr.bf16.mxu0 0
    %3011 = vmatpush2.bf16.msra.mxu0 0
    %3012 = vmatprep.subr.bf16.mxu0 0
    %3013 = vmatpush2.bf16.msra.mxu0 0
    %3014 = vmatprep.subr.bf16.mxu0 0
    %3015 = vmatpush2.bf16.msra.mxu0 0
    %3016 = vmatprep.subr.bf16.mxu0 0
    %3017 = vmatpush2.bf16.msra.mxu0 0
    %3018 = vmatprep.subr.bf16.mxu0 0
    %3019 = vmatpush2.bf16.msra.mxu0 0
    %3020 = vmatprep.subr.bf16.mxu0 0
    %3021 = vmatpush2.bf16.msra.mxu0 0
    %3022 = vmatprep.mubr.bf16.mxu0 0
    %3023 = vmatmul.mubr.bf16.gmra.mxu0 %v2989
    %v3024 = vpop.f32.mrf.mxu0
    %v3025 = vadd.f32 0.0, %v3024
    %v3026 = vpop.f32.mrf.mxu0
    %v3027 = vadd.f32 0.0, %v3026
    %v3028 = vpop.f32.mrf.mxu0
    %v3029 = vpop.f32.mrf.mxu0
    %3030 = vdwg.mxu0
    %3031 = vmatprep.subr.bf16.mxu0 %v2145
    %3032 = vmatpush1.bf16.msra.mxu0 %v2144
    %3033 = vmatprep.subr.bf16.mxu0 %v2141
    %3034 = vmatpush1.bf16.msra.mxu0 %v2140
    %3035 = vmatprep.subr.bf16.mxu0 %v2137
    %3036 = vmatpush1.bf16.msra.mxu0 %v2136
    %3037 = vmatprep.subr.bf16.mxu0 %v2133
    %3038 = vmatpush1.bf16.msra.mxu0 %v2132
    %3039 = vmatprep.subr.bf16.mxu0 %v2129
    %3040 = vmatpush1.bf16.msra.mxu0 %v2128
    %3041 = vmatprep.subr.bf16.mxu0 %v2125
    %3042 = vmatpush1.bf16.msra.mxu0 %v2124
    %3043 = vmatprep.subr.bf16.mxu0 %v2121
    %3044 = vmatpush1.bf16.msra.mxu0 %v2120
    %3045 = vmatprep.subr.bf16.mxu0 %v2117
    %3046 = vmatpush1.bf16.msra.mxu0 %v2116
    %3047 = vmatprep.subr.bf16.mxu0 0
    %3048 = vmatpush2.bf16.msra.mxu0 0
    %3049 = vmatprep.subr.bf16.mxu0 0
    %3050 = vmatpush2.bf16.msra.mxu0 0
    %3051 = vmatprep.subr.bf16.mxu0 0
    %3052 = vmatpush2.bf16.msra.mxu0 0
    %3053 = vmatprep.subr.bf16.mxu0 0
    %3054 = vmatpush2.bf16.msra.mxu0 0
    %3055 = vmatprep.subr.bf16.mxu0 0
    %3056 = vmatpush2.bf16.msra.mxu0 0
    %3057 = vmatprep.subr.bf16.mxu0 0
    %3058 = vmatpush2.bf16.msra.mxu0 0
    %3059 = vmatprep.subr.bf16.mxu0 0
    %3060 = vmatpush2.bf16.msra.mxu0 0
    %3061 = vmatprep.subr.bf16.mxu0 0
    %3062 = vmatpush2.bf16.msra.mxu0 0
    %3063 = vmatprep.mubr.bf16.mxu0 0
    %3064 = vmatmul.mubr.bf16.gmra.mxu0 %v2989
    %v3065 = vpop.f32.mrf.mxu0
    %v3066 = vadd.f32 0.0, %v3065
    %v3067 = vpop.f32.mrf.mxu0
    %v3068 = vadd.f32 0.0, %v3067
    %v3069 = vpop.f32.mrf.mxu0
    %v3070 = vpop.f32.mrf.mxu0
    %3071 = vdwg.mxu0
    %v3072 = vadd.f32 %v2985, %v3025
    %v3073 = vadd.f32 %v2986, %v3027
    %v3074 = vadd.f32 %v2987, %v3066
    %v3075 = vadd.f32 %v2988, %v3068
    %v3076 = vxor.u32 %v3072, 2147483648
    %v3077 = vmul.f32 %v3076, 1.442695
    %v3078 = vpow.pop %v3077
    %v3079 = vadd.f32 %v3078, 1.0
    %v3080 = vrcp.pop %v3079
    %v3081 = vmul.f32 1.0, %v3080
    %v3082 = vxor.u32 %v3073, 2147483648
    %v3083 = vmul.f32 %v3082, 1.442695
    %v3084 = vpow.pop %v3083
    %v3085 = vadd.f32 %v3084, 1.0
    %v3086 = vrcp.pop %v3085
    %v3087 = vmul.f32 1.0, %v3086
    %v3088 = vtanh.pop %v3074
    %v3089 = vxor.u32 %v3075, 2147483648
    %v3090 = vmul.f32 %v3089, 1.442695
    %v3091 = vpow.pop %v3090
    %v3092 = vadd.f32 %v3091, 1.0
    %v3093 = vrcp.pop %v3092
    %v3094 = vmul.f32 1.0, %v3093
    %v3095 = vmul.f32 %v3087, %v2981
    %v3096 = vmul.f32 %v3081, %v3088
    %v3097 = vadd.f32 %v3095, %v3096
    %v3098 = vtanh.pop %v3097
    %v3099 = vmul.f32 %v3094, %v3098
    %3100 = vst [vmem:[%s1535] sm:$0xff] %v3099
    %s3101 = scalar_lea.vmem [#allocation3], 8
    %3102 = vst [vmem:[%s3101] sm:$0xff] %v3099
    %s3103 = scalar_lea.vmem [#allocation5], 8
    %3104 = vst [vmem:[%s3103] sm:$0xff] %v3097
    // Predicated region
    $region30: #{encoder_decoder_forward.4} parent=1 // pred_check
      _
    $region31: #{encoder_decoder_forward.4} parent=1 // pred_check_branch
      %3106 = sbr.rel (0) target = $region33
    $region32: #{encoder_decoder_forward.4} parent=1 // pred_region
      _
    $region33: #{encoder_decoder_forward.4} parent=1 // pred_fallthru
      _
    // Predicated region
    $region34: #{encoder_decoder_forward.4} parent=1 // pred_check
      _
    $region35: #{encoder_decoder_forward.4} parent=1 // pred_check_branch
      %3108 = sbr.rel (0) target = $region37
    $region36: #{encoder_decoder_forward.4} parent=1 // pred_region
      %s3110 = ssub.s32 256, 256
      %3111 = vsyncadd [#allocation4], %s3110
      %s3112 = sshll.u32 [#allocation3], 4
      %s3113 = int_to_ptr.vmem [resolvable:$true] %s3112
      %3118 = dma.vmem_to_hbm [thread:$0]  %s3113, 256, %s8, [#allocation4], 128, 128, 8
    $region37: #{encoder_decoder_forward.4} parent=1 // pred_fallthru
      _
    // Predicated region
    $region38: #{encoder_decoder_forward.4} parent=1 // pred_check
      _
    $region39: #{encoder_decoder_forward.4} parent=1 // pred_check_branch
      %3120 = sbr.rel (0) target = $region41
    $region40: #{encoder_decoder_forward.4} parent=1 // pred_region
      %s3122 = ssub.s32 256, 256
      %3123 = vsyncadd [#allocation6], %s3122
      %s3124 = sshll.u32 [#allocation5], 4
      %s3125 = int_to_ptr.vmem [resolvable:$true] %s3124
      %3130 = dma.vmem_to_hbm [thread:$0]  %s3125, 256, %s9, [#allocation6], 128, 128, 8
    $region41: #{encoder_decoder_forward.4} parent=1 // pred_fallthru
      _
    // Predicated region
    $region42: #{encoder_decoder_forward.4} parent=1 // pred_check
      _
    $region43: #{encoder_decoder_forward.4} parent=1 // pred_check_branch
      %3132 = sbr.rel (0) target = $region45
    $region44: #{encoder_decoder_forward.4} parent=1 // pred_region
      _
    $region45: #{encoder_decoder_forward.4} parent=1 // pred_fallthru
      _
    // Predicated region
    $region46: #{encoder_decoder_forward.4} parent=1 // pred_check
      _
    $region47: #{encoder_decoder_forward.4} parent=1 // pred_check_branch
      %3134 = sbr.rel (0) target = $region49
    $region48: #{encoder_decoder_forward.4} parent=1 // pred_region
      %3135 = dma.done [#allocation4], 256
    $region49: #{encoder_decoder_forward.4} parent=1 // pred_fallthru
      _
    // Predicated region
    $region50: #{encoder_decoder_forward.4} parent=1 // pred_check
      _
    $region51: #{encoder_decoder_forward.4} parent=1 // pred_check_branch
      %3137 = sbr.rel (0) target = $region53
    $region52: #{encoder_decoder_forward.4} parent=1 // pred_region
      %3138 = dma.done [#allocation6], 256
    $region53: #{encoder_decoder_forward.4} parent=1 // pred_fallthru
      _
    %3139 = vsyncpa [#allocation4], 1
    %3140 = vsyncpa [#allocation6], 1

// kernel: encoder_decoder_forward.3
$region0: #{encoder_decoder_forward.3}
  #allocation0 [shape = 'u32[]', space=smem, size = 0x4, offset = 0x4, fixed_abs, tag = 'smem constant byte address 0x4 - core index']
  #allocation1 [shape = 'u32[144,128]{1,0:T(1,128)}', space=vmem, size = 0x12000, scoped, tag = 'internal scratch']
  #allocation2 [shape = 'f32[8,8,512]{2,1,0:T(8,128)}', space=vmem, size = 0x20000, scoped, tag = 'scratch operand']
  %s0 = inlined_call_operand.vmem [shape: bf16[8,8,64], index: 0, kind: input, shape index: {}]
  %s1 = inlined_call_operand.vmem [shape: bf16[64,512], index: 1, kind: input, shape index: {}]
  %s2 = inlined_call_operand.vmem [shape: bf16[1,128,512], index: 2, kind: input, shape index: {}]
  %s3 = inlined_call_operand.hbm [shape: bf16[2,128,512], index: 3, kind: input, shape index: {}]
  %s4 = inlined_call_operand.vmem [shape: f32[2,1,512], index: 4, kind: input, shape index: {}]
  %s5 = inlined_call_operand.vmem [shape: f32[2,8,128], index: 5, kind: input, shape index: {}, may-alias: {5,6}]
  %s6 = inlined_call_operand.vmem [shape: f32[2,8,128], index: 6, kind: input, shape index: {}, may-alias: {5,6}]
  %s7 = inlined_call_operand.hbm [shape: f32[8,8,128], index: 7, kind: output, shape index: {0}]
  %s8 = inlined_call_operand.vmem [shape: f32[2,8,128], index: 8, kind: output, shape index: {1}]
  %s9 = inlined_call_operand.vmem [shape: f32[2,8,128], index: 9, kind: output, shape index: {2}]
  %10 = xla_tuple %s7, %s8, %s9
  %s11 = sld [smem:[#allocation0]]
  $region58: #{encoder_decoder_forward.3} parent=0
    _
  %s13 = ssub.s32 1, %s11
  %s14 = scalar_select 0, %s13, %s11
  $region1: #{encoder_decoder_forward.3} parent=0
    #allocation3 [shape = 'u8[262144]{0}', space=vmem, size = 0x40000, scoped, tag = 'input window, operand 3, single buffered']
    #allocation4 [shape = 's32[1]{0}', space=sflag, size = 0x4, scoped, tag = 'scoped memory for encoder_decoder_forward.3']
    #allocation5 [shape = 's32[1]{0}', space=sflag, size = 0x4, scoped, tag = 'scoped memory for encoder_decoder_forward.3']
    #allocation6 [shape = 'u8[32768]{0}', space=vmem, size = 0x8000, scoped, tag = 'output window, operand 0, single buffered']
    %15 = vsyncpa [#allocation4], 0
    %16 = vsyncpa [#allocation5], 0
    // Predicated region
    $region2: #{encoder_decoder_forward.3} parent=1 // pred_check
      _
    $region3: #{encoder_decoder_forward.3} parent=1 // pred_check_branch
      %18 = sbr.rel (0) target = $region5
    $region4: #{encoder_decoder_forward.3} parent=1 // pred_region
      _
    $region5: #{encoder_decoder_forward.3} parent=1 // pred_fallthru
      _
    // Predicated region
    $region6: #{encoder_decoder_forward.3} parent=1 // pred_check
      _
    $region7: #{encoder_decoder_forward.3} parent=1 // pred_check_branch
      %20 = sbr.rel (0) target = $region9
    $region8: #{encoder_decoder_forward.3} parent=1 // pred_region
      _
    $region9: #{encoder_decoder_forward.3} parent=1 // pred_fallthru
      _
    // Predicated region
    $region10: #{encoder_decoder_forward.3} parent=1 // pred_check
      _
    $region11: #{encoder_decoder_forward.3} parent=1 // pred_check_branch
      %22 = sbr.rel (0) target = $region13
    $region12: #{encoder_decoder_forward.3} parent=1 // pred_region
      _
    $region13: #{encoder_decoder_forward.3} parent=1 // pred_fallthru
      _
    // Predicated region
    $region14: #{encoder_decoder_forward.3} parent=1 // pred_check
      _
    $region15: #{encoder_decoder_forward.3} parent=1 // pred_check_branch
      %24 = sbr.rel (0) target = $region17
    $region16: #{encoder_decoder_forward.3} parent=1 // pred_region
      %s26 = ssub.s32 8192, 8192
      %27 = vsyncadd [#allocation4], %s26
      %s28 = sshll.u32 [#allocation3], 4
      %s29 = int_to_ptr.vmem [resolvable:$true] %s28
      %34 = dma.hbm_to_vmem [thread:$0]  %s3, 8192, %s29, [#allocation4], 256, 256, 16
    $region17: #{encoder_decoder_forward.3} parent=1 // pred_fallthru
      _
    // Predicated region
    $region18: #{encoder_decoder_forward.3} parent=1 // pred_check
      _
    $region19: #{encoder_decoder_forward.3} parent=1 // pred_check_branch
      %36 = sbr.rel (0) target = $region21
    $region20: #{encoder_decoder_forward.3} parent=1 // pred_region
      _
    $region21: #{encoder_decoder_forward.3} parent=1 // pred_fallthru
      _
    // Predicated region
    $region22: #{encoder_decoder_forward.3} parent=1 // pred_check
      _
    $region23: #{encoder_decoder_forward.3} parent=1 // pred_check_branch
      %38 = sbr.rel (0) target = $region25
    $region24: #{encoder_decoder_forward.3} parent=1 // pred_region
      _
    $region25: #{encoder_decoder_forward.3} parent=1 // pred_fallthru
      _
    // Predicated region
    $region26: #{encoder_decoder_forward.3} parent=1 // pred_check
      _
    $region27: #{encoder_decoder_forward.3} parent=1 // pred_check_branch
      %40 = sbr.rel (0) target = $region29
    $region28: #{encoder_decoder_forward.3} parent=1 // pred_region
      _
    $region29: #{encoder_decoder_forward.3} parent=1 // pred_fallthru
      _
    // Predicated region
    $region30: #{encoder_decoder_forward.3} parent=1 // pred_check
      _
    $region31: #{encoder_decoder_forward.3} parent=1 // pred_check_branch
      %42 = sbr.rel (0) target = $region33
    $region32: #{encoder_decoder_forward.3} parent=1 // pred_region
      %43 = dma.done [#allocation4], 8192
    $region33: #{encoder_decoder_forward.3} parent=1 // pred_fallthru
      _
    %v45 = vld [vmem:[%s0] sm:$0xf]
    %v46 = vld [vmem:[%s0 + $0x4] sm:$0xf]
    %v47 = vld [vmem:[%s0 + $0x8] sm:$0xf]
    %v48 = vld [vmem:[%s0 + $0xc] sm:$0xf]
    %v49 = vld [vmem:[%s0 + $0x10] sm:$0xf]
    %v50 = vld [vmem:[%s0 + $0x14] sm:$0xf]
    %v51 = vld [vmem:[%s0 + $0x18] sm:$0xf]
    %v52 = vld [vmem:[%s0 + $0x1c] sm:$0xf]
    %v53 = vld [vmem:[%s1] sm:$0xff]
    %v54 = vld [vmem:[%s1 + $0x8] sm:$0xff]
    %v55 = vld [vmem:[%s1 + $0x10] sm:$0xff]
    %v56 = vld [vmem:[%s1 + $0x18] sm:$0xff]
    %v57 = vld [vmem:[%s1 + $0x20] sm:$0xff]
    %v58 = vld [vmem:[%s1 + $0x28] sm:$0xff]
    %v59 = vld [vmem:[%s1 + $0x30] sm:$0xff]
    %v60 = vld [vmem:[%s1 + $0x38] sm:$0xff]
    %v61 = vld [vmem:[%s1 + $0x40] sm:$0xff]
    %v62 = vld [vmem:[%s1 + $0x48] sm:$0xff]
    %v63 = vld [vmem:[%s1 + $0x50] sm:$0xff]
    %v64 = vld [vmem:[%s1 + $0x58] sm:$0xff]
    %v65 = vld [vmem:[%s1 + $0x60] sm:$0xff]
    %v66 = vld [vmem:[%s1 + $0x68] sm:$0xff]
    %v67 = vld [vmem:[%s1 + $0x70] sm:$0xff]
    %v68 = vld [vmem:[%s1 + $0x78] sm:$0xff]
    %v77 = vunpack.c.l.b16 %v45
    %v78 = vunpack.c.l.b16 %v46
    %v79 = vunpack.c.l.b16 %v47
    %v80 = vunpack.c.l.b16 %v48
    %v81 = vunpack.c.l.b16 %v49
    %v82 = vunpack.c.l.b16 %v50
    %v83 = vunpack.c.l.b16 %v51
    %v84 = vunpack.c.l.b16 %v52
    %v85 = vpack.c.b16 %v78, %v77
    %v86 = vpack.c.b16 %v80, %v79
    %v87 = vpack.c.b16 %v82, %v81
    %v88 = vpack.c.b16 %v84, %v83
    %v105 = vunpack.c.l.b16 %v53
    %v106 = vunpack.c.h.b16 %v53
    %v107 = vunpack.c.l.b16 %v54
    %v108 = vunpack.c.h.b16 %v54
    %v109 = vunpack.c.l.b16 %v55
    %v110 = vunpack.c.h.b16 %v55
    %v111 = vunpack.c.l.b16 %v56
    %v112 = vunpack.c.h.b16 %v56
    %v113 = vunpack.c.l.b16 %v57
    %v114 = vunpack.c.h.b16 %v57
    %v115 = vunpack.c.l.b16 %v58
    %v116 = vunpack.c.h.b16 %v58
    %v117 = vunpack.c.l.b16 %v59
    %v118 = vunpack.c.h.b16 %v59
    %v119 = vunpack.c.l.b16 %v60
    %v120 = vunpack.c.h.b16 %v60
    %v121 = vunpack.c.l.b16 %v61
    %v122 = vunpack.c.h.b16 %v61
    %v123 = vunpack.c.l.b16 %v62
    %v124 = vunpack.c.h.b16 %v62
    %v125 = vunpack.c.l.b16 %v63
    %v126 = vunpack.c.h.b16 %v63
    %v127 = vunpack.c.l.b16 %v64
    %v128 = vunpack.c.h.b16 %v64
    %v129 = vunpack.c.l.b16 %v65
    %v130 = vunpack.c.h.b16 %v65
    %v131 = vunpack.c.l.b16 %v66
    %v132 = vunpack.c.h.b16 %v66
    %v133 = vunpack.c.l.b16 %v67
    %v134 = vunpack.c.h.b16 %v67
    %v135 = vunpack.c.l.b16 %v68
    %v136 = vunpack.c.h.b16 %v68
    %v137 = vpack.c.b16 %v109, %v105
    %v138 = vpack.c.b16 %v110, %v106
    %v139 = vpack.c.b16 %v111, %v107
    %v140 = vpack.c.b16 %v112, %v108
    %v141 = vpack.c.b16 %v117, %v113
    %v142 = vpack.c.b16 %v118, %v114
    %v143 = vpack.c.b16 %v119, %v115
    %v144 = vpack.c.b16 %v120, %v116
    %v145 = vpack.c.b16 %v125, %v121
    %v146 = vpack.c.b16 %v126, %v122
    %v147 = vpack.c.b16 %v127, %v123
    %v148 = vpack.c.b16 %v128, %v124
    %v149 = vpack.c.b16 %v133, %v129
    %v150 = vpack.c.b16 %v134, %v130
    %v151 = vpack.c.b16 %v135, %v131
    %v152 = vpack.c.b16 %v136, %v132
    %vm169 = vcmask 523264
    %v171 = vsel %vm169, %v85, 0
    %v174 = vsel %vm169, %v86, 0
    %v177 = vsel %vm169, %v87, 0
    %v180 = vsel %vm169, %v88, 0
    %182 = vmatprep.subr.bf16.mxu0 0
    %183 = vmatpush1.bf16.msra.mxu0 0
    %184 = vmatprep.subr.bf16.mxu0 0
    %185 = vmatpush1.bf16.msra.mxu0 0
    %186 = vmatprep.subr.bf16.mxu0 0
    %187 = vmatpush1.bf16.msra.mxu0 0
    %188 = vmatprep.subr.bf16.mxu0 0
    %189 = vmatpush1.bf16.msra.mxu0 0
    %190 = vmatprep.subr.bf16.mxu0 %v150
    %191 = vmatpush1.bf16.msra.mxu0 %v149
    %192 = vmatprep.subr.bf16.mxu0 %v146
    %193 = vmatpush1.bf16.msra.mxu0 %v145
    %194 = vmatprep.subr.bf16.mxu0 %v142
    %195 = vmatpush1.bf16.msra.mxu0 %v141
    %196 = vmatprep.subr.bf16.mxu0 %v138
    %197 = vmatpush1.bf16.msra.mxu0 %v137
    %198 = vmatprep.subr.bf16.mxu0 0
    %199 = vmatpush2.bf16.msra.mxu0 0
    %200 = vmatprep.subr.bf16.mxu0 0
    %201 = vmatpush2.bf16.msra.mxu0 0
    %202 = vmatprep.subr.bf16.mxu0 0
    %203 = vmatpush2.bf16.msra.mxu0 0
    %204 = vmatprep.subr.bf16.mxu0 0
    %205 = vmatpush2.bf16.msra.mxu0 0
    %206 = vmatprep.subr.bf16.mxu0 0
    %207 = vmatpush2.bf16.msra.mxu0 0
    %208 = vmatprep.subr.bf16.mxu0 0
    %209 = vmatpush2.bf16.msra.mxu0 0
    %210 = vmatprep.subr.bf16.mxu0 0
    %211 = vmatpush2.bf16.msra.mxu0 0
    %212 = vmatprep.subr.bf16.mxu0 0
    %213 = vmatpush2.bf16.msra.mxu0 0
    %214 = vmatprep.mubr.bf16.mxu0 0
    %215 = vmatmul.mubr.bf16.gmra.mxu0 %v171
    %v216 = vpop.f32.mrf.mxu0
    %v217 = vadd.f32 0.0, %v216
    %v218 = vpop.f32.mrf.mxu0
    %v219 = vadd.f32 0.0, %v218
    %v220 = vpop.f32.mrf.mxu0
    %v221 = vadd.f32 0.0, %v220
    %v222 = vpop.f32.mrf.mxu0
    %v223 = vadd.f32 0.0, %v222
    %224 = vmatprep.mubr.bf16.mxu0 0
    %225 = vmatmul.mubr.bf16.gmra.mxu0 %v174
    %v226 = vpop.f32.mrf.mxu0
    %v227 = vadd.f32 0.0, %v226
    %v228 = vpop.f32.mrf.mxu0
    %v229 = vadd.f32 0.0, %v228
    %v230 = vpop.f32.mrf.mxu0
    %v231 = vadd.f32 0.0, %v230
    %v232 = vpop.f32.mrf.mxu0
    %v233 = vadd.f32 0.0, %v232
    %234 = vmatprep.mubr.bf16.mxu0 0
    %235 = vmatmul.mubr.bf16.gmra.mxu0 %v177
    %v236 = vpop.f32.mrf.mxu0
    %v237 = vadd.f32 0.0, %v236
    %v238 = vpop.f32.mrf.mxu0
    %v239 = vadd.f32 0.0, %v238
    %v240 = vpop.f32.mrf.mxu0
    %v241 = vadd.f32 0.0, %v240
    %v242 = vpop.f32.mrf.mxu0
    %v243 = vadd.f32 0.0, %v242
    %244 = vmatprep.mubr.bf16.mxu0 0
    %245 = vmatmul.mubr.bf16.gmra.mxu0 %v180
    %v246 = vpop.f32.mrf.mxu0
    %v247 = vadd.f32 0.0, %v246
    %v248 = vpop.f32.mrf.mxu0
    %v249 = vadd.f32 0.0, %v248
    %v250 = vpop.f32.mrf.mxu0
    %v251 = vadd.f32 0.0, %v250
    %v252 = vpop.f32.mrf.mxu0
    %v253 = vadd.f32 0.0, %v252
    %254 = vdwg.mxu0
    %255 = vmatprep.subr.bf16.mxu0 0
    %256 = vmatpush1.bf16.msra.mxu0 0
    %257 = vmatprep.subr.bf16.mxu0 0
    %258 = vmatpush1.bf16.msra.mxu0 0
    %259 = vmatprep.subr.bf16.mxu0 0
    %260 = vmatpush1.bf16.msra.mxu0 0
    %261 = vmatprep.subr.bf16.mxu0 0
    %262 = vmatpush1.bf16.msra.mxu0 0
    %263 = vmatprep.subr.bf16.mxu0 %v152
    %264 = vmatpush1.bf16.msra.mxu0 %v151
    %265 = vmatprep.subr.bf16.mxu0 %v148
    %266 = vmatpush1.bf16.msra.mxu0 %v147
    %267 = vmatprep.subr.bf16.mxu0 %v144
    %268 = vmatpush1.bf16.msra.mxu0 %v143
    %269 = vmatprep.subr.bf16.mxu0 %v140
    %270 = vmatpush1.bf16.msra.mxu0 %v139
    %271 = vmatprep.subr.bf16.mxu0 0
    %272 = vmatpush2.bf16.msra.mxu0 0
    %273 = vmatprep.subr.bf16.mxu0 0
    %274 = vmatpush2.bf16.msra.mxu0 0
    %275 = vmatprep.subr.bf16.mxu0 0
    %276 = vmatpush2.bf16.msra.mxu0 0
    %277 = vmatprep.subr.bf16.mxu0 0
    %278 = vmatpush2.bf16.msra.mxu0 0
    %279 = vmatprep.subr.bf16.mxu0 0
    %280 = vmatpush2.bf16.msra.mxu0 0
    %281 = vmatprep.subr.bf16.mxu0 0
    %282 = vmatpush2.bf16.msra.mxu0 0
    %283 = vmatprep.subr.bf16.mxu0 0
    %284 = vmatpush2.bf16.msra.mxu0 0
    %285 = vmatprep.subr.bf16.mxu0 0
    %286 = vmatpush2.bf16.msra.mxu0 0
    %287 = vmatprep.mubr.bf16.mxu0 0
    %288 = vmatmul.mubr.bf16.gmra.mxu0 %v171
    %v289 = vpop.f32.mrf.mxu0
    %v290 = vadd.f32 0.0, %v289
    %v291 = vpop.f32.mrf.mxu0
    %v292 = vadd.f32 0.0, %v291
    %v293 = vpop.f32.mrf.mxu0
    %v294 = vadd.f32 0.0, %v293
    %v295 = vpop.f32.mrf.mxu0
    %v296 = vadd.f32 0.0, %v295
    %297 = vmatprep.mubr.bf16.mxu0 0
    %298 = vmatmul.mubr.bf16.gmra.mxu0 %v174
    %v299 = vpop.f32.mrf.mxu0
    %v300 = vadd.f32 0.0, %v299
    %v301 = vpop.f32.mrf.mxu0
    %v302 = vadd.f32 0.0, %v301
    %v303 = vpop.f32.mrf.mxu0
    %v304 = vadd.f32 0.0, %v303
    %v305 = vpop.f32.mrf.mxu0
    %v306 = vadd.f32 0.0, %v305
    %307 = vmatprep.mubr.bf16.mxu0 0
    %308 = vmatmul.mubr.bf16.gmra.mxu0 %v177
    %v309 = vpop.f32.mrf.mxu0
    %v310 = vadd.f32 0.0, %v309
    %v311 = vpop.f32.mrf.mxu0
    %v312 = vadd.f32 0.0, %v311
    %v313 = vpop.f32.mrf.mxu0
    %v314 = vadd.f32 0.0, %v313
    %v315 = vpop.f32.mrf.mxu0
    %v316 = vadd.f32 0.0, %v315
    %317 = vmatprep.mubr.bf16.mxu0 0
    %318 = vmatmul.mubr.bf16.gmra.mxu0 %v180
    %v319 = vpop.f32.mrf.mxu0
    %v320 = vadd.f32 0.0, %v319
    %v321 = vpop.f32.mrf.mxu0
    %v322 = vadd.f32 0.0, %v321
    %v323 = vpop.f32.mrf.mxu0
    %v324 = vadd.f32 0.0, %v323
    %v325 = vpop.f32.mrf.mxu0
    %v326 = vadd.f32 0.0, %v325
    %327 = vdwg.mxu0
    %v328 = vld [vmem:[%s4] sm:$0xf]
    %v330 = vlaneseq
    %v331 = vshrl.u32 %v330, 7
    %v332 = vsub.s32 0, %v331
    %v333 = vrot.slane %v328, %v332
    %v334 = vlaneseq
    %v335 = vshrl.u32 %v334, 7
    %v336 = vsub.s32 1, %v335
    %v337 = vrot.slane %v328, %v336
    %v338 = vlaneseq
    %v339 = vshrl.u32 %v338, 7
    %v340 = vsub.s32 2, %v339
    %v341 = vrot.slane %v328, %v340
    %v342 = vlaneseq
    %v343 = vshrl.u32 %v342, 7
    %v344 = vsub.s32 3, %v343
    %v345 = vrot.slane %v328, %v344
    %v350 = vadd.f32 %v217, %v333
    %v351 = vadd.f32 %v219, %v337
    %v352 = vadd.f32 %v290, %v341
    %v353 = vadd.f32 %v292, %v345
    %v354 = vadd.f32 %v221, %v333
    %v355 = vadd.f32 %v223, %v337
    %v356 = vadd.f32 %v294, %v341
    %v357 = vadd.f32 %v296, %v345
    %v358 = vadd.f32 %v227, %v333
    %v359 = vadd.f32 %v229, %v337
    %v360 = vadd.f32 %v300, %v341
    %v361 = vadd.f32 %v302, %v345
    %v362 = vadd.f32 %v231, %v333
    %v363 = vadd.f32 %v233, %v337
    %v364 = vadd.f32 %v304, %v341
    %v365 = vadd.f32 %v306, %v345
    %v366 = vadd.f32 %v237, %v333
    %v367 = vadd.f32 %v239, %v337
    %v368 = vadd.f32 %v310, %v341
    %v369 = vadd.f32 %v312, %v345
    %v370 = vadd.f32 %v241, %v333
    %v371 = vadd.f32 %v243, %v337
    %v372 = vadd.f32 %v314, %v341
    %v373 = vadd.f32 %v316, %v345
    %v374 = vadd.f32 %v247, %v333
    %v375 = vadd.f32 %v249, %v337
    %v376 = vadd.f32 %v320, %v341
    %v377 = vadd.f32 %v322, %v345
    %v378 = vadd.f32 %v251, %v333
    %v379 = vadd.f32 %v253, %v337
    %v380 = vadd.f32 %v324, %v341
    %v381 = vadd.f32 %v326, %v345
    %382 = vst [vmem:[#allocation2] sm:$0xff] %v350
    %383 = vst [vmem:[#allocation2 + $0x8] sm:$0xff] %v351
    %384 = vst [vmem:[#allocation2 + $0x10] sm:$0xff] %v352
    %385 = vst [vmem:[#allocation2 + $0x18] sm:$0xff] %v353
    %386 = vst [vmem:[#allocation2 + $0x20] sm:$0xff] %v354
    %387 = vst [vmem:[#allocation2 + $0x28] sm:$0xff] %v355
    %388 = vst [vmem:[#allocation2 + $0x30] sm:$0xff] %v356
    %389 = vst [vmem:[#allocation2 + $0x38] sm:$0xff] %v357
    %390 = vst [vmem:[#allocation2 + $0x40] sm:$0xff] %v358
    %391 = vst [vmem:[#allocation2 + $0x48] sm:$0xff] %v359
    %392 = vst [vmem:[#allocation2 + $0x50] sm:$0xff] %v360
    %393 = vst [vmem:[#allocation2 + $0x58] sm:$0xff] %v361
    %394 = vst [vmem:[#allocation2 + $0x60] sm:$0xff] %v362
    %395 = vst [vmem:[#allocation2 + $0x68] sm:$0xff] %v363
    %396 = vst [vmem:[#allocation2 + $0x70] sm:$0xff] %v364
    %397 = vst [vmem:[#allocation2 + $0x78] sm:$0xff] %v365
    %398 = vst [vmem:[#allocation2 + $0x80] sm:$0xff] %v366
    %399 = vst [vmem:[#allocation2 + $0x88] sm:$0xff] %v367
    %400 = vst [vmem:[#allocation2 + $0x90] sm:$0xff] %v368
    %401 = vst [vmem:[#allocation2 + $0x98] sm:$0xff] %v369
    %402 = vst [vmem:[#allocation2 + $0xa0] sm:$0xff] %v370
    %403 = vst [vmem:[#allocation2 + $0xa8] sm:$0xff] %v371
    %404 = vst [vmem:[#allocation2 + $0xb0] sm:$0xff] %v372
    %405 = vst [vmem:[#allocation2 + $0xb8] sm:$0xff] %v373
    %406 = vst [vmem:[#allocation2 + $0xc0] sm:$0xff] %v374
    %407 = vst [vmem:[#allocation2 + $0xc8] sm:$0xff] %v375
    %408 = vst [vmem:[#allocation2 + $0xd0] sm:$0xff] %v376
    %409 = vst [vmem:[#allocation2 + $0xd8] sm:$0xff] %v377
    %410 = vst [vmem:[#allocation2 + $0xe0] sm:$0xff] %v378
    %411 = vst [vmem:[#allocation2 + $0xe8] sm:$0xff] %v379
    %412 = vst [vmem:[#allocation2 + $0xf0] sm:$0xff] %v380
    %413 = vst [vmem:[#allocation2 + $0xf8] sm:$0xff] %v381
    %v414 = vld [vmem:[#allocation3] sm:$0xff]
    %v415 = vld [vmem:[#allocation3 + $0x8] sm:$0xff]
    %v416 = vld [vmem:[#allocation3 + $0x10] sm:$0xff]
    %v417 = vld [vmem:[#allocation3 + $0x18] sm:$0xff]
    %v418 = vld [vmem:[#allocation3 + $0x20] sm:$0xff]
    %v419 = vld [vmem:[#allocation3 + $0x28] sm:$0xff]
    %v420 = vld [vmem:[#allocation3 + $0x30] sm:$0xff]
    %v421 = vld [vmem:[#allocation3 + $0x38] sm:$0xff]
    %v422 = vld [vmem:[#allocation3 + $0x40] sm:$0xff]
    %v423 = vld [vmem:[#allocation3 + $0x48] sm:$0xff]
    %v424 = vld [vmem:[#allocation3 + $0x50] sm:$0xff]
    %v425 = vld [vmem:[#allocation3 + $0x58] sm:$0xff]
    %v426 = vld [vmem:[#allocation3 + $0x60] sm:$0xff]
    %v427 = vld [vmem:[#allocation3 + $0x68] sm:$0xff]
    %v428 = vld [vmem:[#allocation3 + $0x70] sm:$0xff]
    %v429 = vld [vmem:[#allocation3 + $0x78] sm:$0xff]
    %v430 = vld [vmem:[#allocation3 + $0x80] sm:$0xff]
    %v431 = vld [vmem:[#allocation3 + $0x88] sm:$0xff]
    %v432 = vld [vmem:[#allocation3 + $0x90] sm:$0xff]
    %v433 = vld [vmem:[#allocation3 + $0x98] sm:$0xff]
    %v434 = vld [vmem:[#allocation3 + $0xa0] sm:$0xff]
    %v435 = vld [vmem:[#allocation3 + $0xa8] sm:$0xff]
    %v436 = vld [vmem:[#allocation3 + $0xb0] sm:$0xff]
    %v437 = vld [vmem:[#allocation3 + $0xb8] sm:$0xff]
    %v438 = vld [vmem:[#allocation3 + $0xc0] sm:$0xff]
    %v439 = vld [vmem:[#allocation3 + $0xc8] sm:$0xff]
    %v440 = vld [vmem:[#allocation3 + $0xd0] sm:$0xff]
    %v441 = vld [vmem:[#allocation3 + $0xd8] sm:$0xff]
    %v442 = vld [vmem:[#allocation3 + $0xe0] sm:$0xff]
    %v443 = vld [vmem:[#allocation3 + $0xe8] sm:$0xff]
    %v444 = vld [vmem:[#allocation3 + $0xf0] sm:$0xff]
    %v445 = vld [vmem:[#allocation3 + $0xf8] sm:$0xff]
    %v446 = vld [vmem:[%s5] sm:$0xff]
    %v447 = vld [vmem:[%s6] sm:$0xff]
    %v448 = vld [vmem:[#allocation2] sm:$0xff]
    %v449 = vld [vmem:[#allocation2 + $0x8] sm:$0xff]
    %v450 = vld [vmem:[#allocation2 + $0x10] sm:$0xff]
    %v451 = vld [vmem:[#allocation2 + $0x18] sm:$0xff]
    %v452 = vpack.c.bf16 %v446, %v446
    %v485 = vunpack.c.l.b16 %v414
    %v486 = vunpack.c.h.b16 %v414
    %v487 = vunpack.c.l.b16 %v415
    %v488 = vunpack.c.h.b16 %v415
    %v489 = vunpack.c.l.b16 %v416
    %v490 = vunpack.c.h.b16 %v416
    %v491 = vunpack.c.l.b16 %v417
    %v492 = vunpack.c.h.b16 %v417
    %v493 = vunpack.c.l.b16 %v418
    %v494 = vunpack.c.h.b16 %v418
    %v495 = vunpack.c.l.b16 %v419
    %v496 = vunpack.c.h.b16 %v419
    %v497 = vunpack.c.l.b16 %v420
    %v498 = vunpack.c.h.b16 %v420
    %v499 = vunpack.c.l.b16 %v421
    %v500 = vunpack.c.h.b16 %v421
    %v501 = vunpack.c.l.b16 %v422
    %v502 = vunpack.c.h.b16 %v422
    %v503 = vunpack.c.l.b16 %v423
    %v504 = vunpack.c.h.b16 %v423
    %v505 = vunpack.c.l.b16 %v424
    %v506 = vunpack.c.h.b16 %v424
    %v507 = vunpack.c.l.b16 %v425
    %v508 = vunpack.c.h.b16 %v425
    %v509 = vunpack.c.l.b16 %v426
    %v510 = vunpack.c.h.b16 %v426
    %v511 = vunpack.c.l.b16 %v427
    %v512 = vunpack.c.h.b16 %v427
    %v513 = vunpack.c.l.b16 %v428
    %v514 = vunpack.c.h.b16 %v428
    %v515 = vunpack.c.l.b16 %v429
    %v516 = vunpack.c.h.b16 %v429
    %v517 = vunpack.c.l.b16 %v430
    %v518 = vunpack.c.h.b16 %v430
    %v519 = vunpack.c.l.b16 %v431
    %v520 = vunpack.c.h.b16 %v431
    %v521 = vunpack.c.l.b16 %v432
    %v522 = vunpack.c.h.b16 %v432
    %v523 = vunpack.c.l.b16 %v433
    %v524 = vunpack.c.h.b16 %v433
    %v525 = vunpack.c.l.b16 %v434
    %v526 = vunpack.c.h.b16 %v434
    %v527 = vunpack.c.l.b16 %v435
    %v528 = vunpack.c.h.b16 %v435
    %v529 = vunpack.c.l.b16 %v436
    %v530 = vunpack.c.h.b16 %v436
    %v531 = vunpack.c.l.b16 %v437
    %v532 = vunpack.c.h.b16 %v437
    %v533 = vunpack.c.l.b16 %v438
    %v534 = vunpack.c.h.b16 %v438
    %v535 = vunpack.c.l.b16 %v439
    %v536 = vunpack.c.h.b16 %v439
    %v537 = vunpack.c.l.b16 %v440
    %v538 = vunpack.c.h.b16 %v440
    %v539 = vunpack.c.l.b16 %v441
    %v540 = vunpack.c.h.b16 %v441
    %v541 = vunpack.c.l.b16 %v442
    %v542 = vunpack.c.h.b16 %v442
    %v543 = vunpack.c.l.b16 %v443
    %v544 = vunpack.c.h.b16 %v443
    %v545 = vunpack.c.l.b16 %v444
    %v546 = vunpack.c.h.b16 %v444
    %v547 = vunpack.c.l.b16 %v445
    %v548 = vunpack.c.h.b16 %v445
    %v549 = vpack.c.b16 %v489, %v485
    %v550 = vpack.c.b16 %v490, %v486
    %v551 = vpack.c.b16 %v491, %v487
    %v552 = vpack.c.b16 %v492, %v488
    %v553 = vpack.c.b16 %v497, %v493
    %v554 = vpack.c.b16 %v498, %v494
    %v555 = vpack.c.b16 %v499, %v495
    %v556 = vpack.c.b16 %v500, %v496
    %v557 = vpack.c.b16 %v505, %v501
    %v558 = vpack.c.b16 %v506, %v502
    %v559 = vpack.c.b16 %v507, %v503
    %v560 = vpack.c.b16 %v508, %v504
    %v561 = vpack.c.b16 %v513, %v509
    %v562 = vpack.c.b16 %v514, %v510
    %v563 = vpack.c.b16 %v515, %v511
    %v564 = vpack.c.b16 %v516, %v512
    %v565 = vpack.c.b16 %v521, %v517
    %v566 = vpack.c.b16 %v522, %v518
    %v567 = vpack.c.b16 %v523, %v519
    %v568 = vpack.c.b16 %v524, %v520
    %v569 = vpack.c.b16 %v529, %v525
    %v570 = vpack.c.b16 %v530, %v526
    %v571 = vpack.c.b16 %v531, %v527
    %v572 = vpack.c.b16 %v532, %v528
    %v573 = vpack.c.b16 %v537, %v533
    %v574 = vpack.c.b16 %v538, %v534
    %v575 = vpack.c.b16 %v539, %v535
    %v576 = vpack.c.b16 %v540, %v536
    %v577 = vpack.c.b16 %v545, %v541
    %v578 = vpack.c.b16 %v546, %v542
    %v579 = vpack.c.b16 %v547, %v543
    %v580 = vpack.c.b16 %v548, %v544
    %613 = vmatprep.subr.bf16.mxu0 %v578
    %614 = vmatpush1.bf16.msra.mxu0 %v577
    %615 = vmatprep.subr.bf16.mxu0 %v574
    %616 = vmatpush1.bf16.msra.mxu0 %v573
    %617 = vmatprep.subr.bf16.mxu0 %v570
    %618 = vmatpush1.bf16.msra.mxu0 %v569
    %619 = vmatprep.subr.bf16.mxu0 %v566
    %620 = vmatpush1.bf16.msra.mxu0 %v565
    %621 = vmatprep.subr.bf16.mxu0 %v562
    %622 = vmatpush1.bf16.msra.mxu0 %v561
    %623 = vmatprep.subr.bf16.mxu0 %v558
    %624 = vmatpush1.bf16.msra.mxu0 %v557
    %625 = vmatprep.subr.bf16.mxu0 %v554
    %626 = vmatpush1.bf16.msra.mxu0 %v553
    %627 = vmatprep.subr.bf16.mxu0 %v550
    %628 = vmatpush1.bf16.msra.mxu0 %v549
    %629 = vmatprep.subr.bf16.mxu0 0
    %630 = vmatpush2.bf16.msra.mxu0 0
    %631 = vmatprep.subr.bf16.mxu0 0
    %632 = vmatpush2.bf16.msra.mxu0 0
    %633 = vmatprep.subr.bf16.mxu0 0
    %634 = vmatpush2.bf16.msra.mxu0 0
    %635 = vmatprep.subr.bf16.mxu0 0
    %636 = vmatpush2.bf16.msra.mxu0 0
    %637 = vmatprep.subr.bf16.mxu0 0
    %638 = vmatpush2.bf16.msra.mxu0 0
    %639 = vmatprep.subr.bf16.mxu0 0
    %640 = vmatpush2.bf16.msra.mxu0 0
    %641 = vmatprep.subr.bf16.mxu0 0
    %642 = vmatpush2.bf16.msra.mxu0 0
    %643 = vmatprep.subr.bf16.mxu0 0
    %644 = vmatpush2.bf16.msra.mxu0 0
    %645 = vmatprep.mubr.bf16.mxu0 0
    %646 = vmatmul.mubr.bf16.gmra.mxu0 %v452
    %v647 = vpop.f32.mrf.mxu0
    %v648 = vadd.f32 0.0, %v647
    %v649 = vpop.f32.mrf.mxu0
    %v650 = vadd.f32 0.0, %v649
    %v651 = vpop.f32.mrf.mxu0
    %v652 = vpop.f32.mrf.mxu0
    %653 = vdwg.mxu0
    %654 = vmatprep.subr.bf16.mxu0 %v580
    %655 = vmatpush1.bf16.msra.mxu0 %v579
    %656 = vmatprep.subr.bf16.mxu0 %v576
    %657 = vmatpush1.bf16.msra.mxu0 %v575
    %658 = vmatprep.subr.bf16.mxu0 %v572
    %659 = vmatpush1.bf16.msra.mxu0 %v571
    %660 = vmatprep.subr.bf16.mxu0 %v568
    %661 = vmatpush1.bf16.msra.mxu0 %v567
    %662 = vmatprep.subr.bf16.mxu0 %v564
    %663 = vmatpush1.bf16.msra.mxu0 %v563
    %664 = vmatprep.subr.bf16.mxu0 %v560
    %665 = vmatpush1.bf16.msra.mxu0 %v559
    %666 = vmatprep.subr.bf16.mxu0 %v556
    %667 = vmatpush1.bf16.msra.mxu0 %v555
    %668 = vmatprep.subr.bf16.mxu0 %v552
    %669 = vmatpush1.bf16.msra.mxu0 %v551
    %670 = vmatprep.subr.bf16.mxu0 0
    %671 = vmatpush2.bf16.msra.mxu0 0
    %672 = vmatprep.subr.bf16.mxu0 0
    %673 = vmatpush2.bf16.msra.mxu0 0
    %674 = vmatprep.subr.bf16.mxu0 0
    %675 = vmatpush2.bf16.msra.mxu0 0
    %676 = vmatprep.subr.bf16.mxu0 0
    %677 = vmatpush2.bf16.msra.mxu0 0
    %678 = vmatprep.subr.bf16.mxu0 0
    %679 = vmatpush2.bf16.msra.mxu0 0
    %680 = vmatprep.subr.bf16.mxu0 0
    %681 = vmatpush2.bf16.msra.mxu0 0
    %682 = vmatprep.subr.bf16.mxu0 0
    %683 = vmatpush2.bf16.msra.mxu0 0
    %684 = vmatprep.subr.bf16.mxu0 0
    %685 = vmatpush2.bf16.msra.mxu0 0
    %686 = vmatprep.mubr.bf16.mxu0 0
    %687 = vmatmul.mubr.bf16.gmra.mxu0 %v452
    %v688 = vpop.f32.mrf.mxu0
    %v689 = vadd.f32 0.0, %v688
    %v690 = vpop.f32.mrf.mxu0
    %v691 = vadd.f32 0.0, %v690
    %v692 = vpop.f32.mrf.mxu0
    %v693 = vpop.f32.mrf.mxu0
    %694 = vdwg.mxu0
    %v695 = vadd.f32 %v448, %v648
    %v696 = vadd.f32 %v449, %v650
    %v697 = vadd.f32 %v450, %v689
    %v698 = vadd.f32 %v451, %v691
    %v699 = vxor.u32 %v695, 2147483648
    %v700 = vmul.f32 %v699, 1.442695
    %v701 = vpow.pop %v700
    %v702 = vadd.f32 %v701, 1.0
    %v703 = vrcp.pop %v702
    %v704 = vmul.f32 1.0, %v703
    %v705 = vxor.u32 %v696, 2147483648
    %v706 = vmul.f32 %v705, 1.442695
    %v707 = vpow.pop %v706
    %v708 = vadd.f32 %v707, 1.0
    %v709 = vrcp.pop %v708
    %v710 = vmul.f32 1.0, %v709
    %v711 = vtanh.pop %v697
    %v712 = vxor.u32 %v698, 2147483648
    %v713 = vmul.f32 %v712, 1.442695
    %v714 = vpow.pop %v713
    %v715 = vadd.f32 %v714, 1.0
    %v716 = vrcp.pop %v715
    %v717 = vmul.f32 1.0, %v716
    %v718 = vmul.f32 %v710, %v447
    %v719 = vmul.f32 %v704, %v711
    %v720 = vadd.f32 %v718, %v719
    %v721 = vtanh.pop %v720
    %v722 = vmul.f32 %v717, %v721
    %723 = vst [vmem:[#allocation6] sm:$0xff] %v722
    %s724 = scalar_lea.vmem [#allocation2], 32
    %v725 = vld [vmem:[%s724] sm:$0xff]
    %v726 = vld [vmem:[%s724 + $0x8] sm:$0xff]
    %v727 = vld [vmem:[%s724 + $0x10] sm:$0xff]
    %v728 = vld [vmem:[%s724 + $0x18] sm:$0xff]
    %v729 = vpack.c.bf16 %v722, %v722
    %730 = vmatprep.subr.bf16.mxu0 %v578
    %731 = vmatpush1.bf16.msra.mxu0 %v577
    %732 = vmatprep.subr.bf16.mxu0 %v574
    %733 = vmatpush1.bf16.msra.mxu0 %v573
    %734 = vmatprep.subr.bf16.mxu0 %v570
    %735 = vmatpush1.bf16.msra.mxu0 %v569
    %736 = vmatprep.subr.bf16.mxu0 %v566
    %737 = vmatpush1.bf16.msra.mxu0 %v565
    %738 = vmatprep.subr.bf16.mxu0 %v562
    %739 = vmatpush1.bf16.msra.mxu0 %v561
    %740 = vmatprep.subr.bf16.mxu0 %v558
    %741 = vmatpush1.bf16.msra.mxu0 %v557
    %742 = vmatprep.subr.bf16.mxu0 %v554
    %743 = vmatpush1.bf16.msra.mxu0 %v553
    %744 = vmatprep.subr.bf16.mxu0 %v550
    %745 = vmatpush1.bf16.msra.mxu0 %v549
    %746 = vmatprep.subr.bf16.mxu0 0
    %747 = vmatpush2.bf16.msra.mxu0 0
    %748 = vmatprep.subr.bf16.mxu0 0
    %749 = vmatpush2.bf16.msra.mxu0 0
    %750 = vmatprep.subr.bf16.mxu0 0
    %751 = vmatpush2.bf16.msra.mxu0 0
    %752 = vmatprep.subr.bf16.mxu0 0
    %753 = vmatpush2.bf16.msra.mxu0 0
    %754 = vmatprep.subr.bf16.mxu0 0
    %755 = vmatpush2.bf16.msra.mxu0 0
    %756 = vmatprep.subr.bf16.mxu0 0
    %757 = vmatpush2.bf16.msra.mxu0 0
    %758 = vmatprep.subr.bf16.mxu0 0
    %759 = vmatpush2.bf16.msra.mxu0 0
    %760 = vmatprep.subr.bf16.mxu0 0
    %761 = vmatpush2.bf16.msra.mxu0 0
    %762 = vmatprep.mubr.bf16.mxu0 0
    %763 = vmatmul.mubr.bf16.gmra.mxu0 %v729
    %v764 = vpop.f32.mrf.mxu0
    %v765 = vadd.f32 0.0, %v764
    %v766 = vpop.f32.mrf.mxu0
    %v767 = vadd.f32 0.0, %v766
    %v768 = vpop.f32.mrf.mxu0
    %v769 = vpop.f32.mrf.mxu0
    %770 = vdwg.mxu0
    %771 = vmatprep.subr.bf16.mxu0 %v580
    %772 = vmatpush1.bf16.msra.mxu0 %v579
    %773 = vmatprep.subr.bf16.mxu0 %v576
    %774 = vmatpush1.bf16.msra.mxu0 %v575
    %775 = vmatprep.subr.bf16.mxu0 %v572
    %776 = vmatpush1.bf16.msra.mxu0 %v571
    %777 = vmatprep.subr.bf16.mxu0 %v568
    %778 = vmatpush1.bf16.msra.mxu0 %v567
    %779 = vmatprep.subr.bf16.mxu0 %v564
    %780 = vmatpush1.bf16.msra.mxu0 %v563
    %781 = vmatprep.subr.bf16.mxu0 %v560
    %782 = vmatpush1.bf16.msra.mxu0 %v559
    %783 = vmatprep.subr.bf16.mxu0 %v556
    %784 = vmatpush1.bf16.msra.mxu0 %v555
    %785 = vmatprep.subr.bf16.mxu0 %v552
    %786 = vmatpush1.bf16.msra.mxu0 %v551
    %787 = vmatprep.subr.bf16.mxu0 0
    %788 = vmatpush2.bf16.msra.mxu0 0
    %789 = vmatprep.subr.bf16.mxu0 0
    %790 = vmatpush2.bf16.msra.mxu0 0
    %791 = vmatprep.subr.bf16.mxu0 0
    %792 = vmatpush2.bf16.msra.mxu0 0
    %793 = vmatprep.subr.bf16.mxu0 0
    %794 = vmatpush2.bf16.msra.mxu0 0
    %795 = vmatprep.subr.bf16.mxu0 0
    %796 = vmatpush2.bf16.msra.mxu0 0
    %797 = vmatprep.subr.bf16.mxu0 0
    %798 = vmatpush2.bf16.msra.mxu0 0
    %799 = vmatprep.subr.bf16.mxu0 0
    %800 = vmatpush2.bf16.msra.mxu0 0
    %801 = vmatprep.subr.bf16.mxu0 0
    %802 = vmatpush2.bf16.msra.mxu0 0
    %803 = vmatprep.mubr.bf16.mxu0 0
    %804 = vmatmul.mubr.bf16.gmra.mxu0 %v729
    %v805 = vpop.f32.mrf.mxu0
    %v806 = vadd.f32 0.0, %v805
    %v807 = vpop.f32.mrf.mxu0
    %v808 = vadd.f32 0.0, %v807
    %v809 = vpop.f32.mrf.mxu0
    %v810 = vpop.f32.mrf.mxu0
    %811 = vdwg.mxu0
    %v812 = vadd.f32 %v725, %v765
    %v813 = vadd.f32 %v726, %v767
    %v814 = vadd.f32 %v727, %v806
    %v815 = vadd.f32 %v728, %v808
    %v816 = vxor.u32 %v812, 2147483648
    %v817 = vmul.f32 %v816, 1.442695
    %v818 = vpow.pop %v817
    %v819 = vadd.f32 %v818, 1.0
    %v820 = vrcp.pop %v819
    %v821 = vmul.f32 1.0, %v820
    %v822 = vxor.u32 %v813, 2147483648
    %v823 = vmul.f32 %v822, 1.442695
    %v824 = vpow.pop %v823
    %v825 = vadd.f32 %v824, 1.0
    %v826 = vrcp.pop %v825
    %v827 = vmul.f32 1.0, %v826
    %v828 = vtanh.pop %v814
    %v829 = vxor.u32 %v815, 2147483648
    %v830 = vmul.f32 %v829, 1.442695
    %v831 = vpow.pop %v830
    %v832 = vadd.f32 %v831, 1.0
    %v833 = vrcp.pop %v832
    %v834 = vmul.f32 1.0, %v833
    %v835 = vmul.f32 %v827, %v720
    %v836 = vmul.f32 %v821, %v828
    %v837 = vadd.f32 %v835, %v836
    %v838 = vtanh.pop %v837
    %v839 = vmul.f32 %v834, %v838
    %s840 = scalar_lea.vmem [#allocation6], 8
    %841 = vst [vmem:[%s840] sm:$0xff] %v839
    %s842 = scalar_lea.vmem [#allocation2], 64
    %v843 = vld [vmem:[%s842] sm:$0xff]
    %v844 = vld [vmem:[%s842 + $0x8] sm:$0xff]
    %v845 = vld [vmem:[%s842 + $0x10] sm:$0xff]
    %v846 = vld [vmem:[%s842 + $0x18] sm:$0xff]
    %v847 = vpack.c.bf16 %v839, %v839
    %848 = vmatprep.subr.bf16.mxu0 %v578
    %849 = vmatpush1.bf16.msra.mxu0 %v577
    %850 = vmatprep.subr.bf16.mxu0 %v574
    %851 = vmatpush1.bf16.msra.mxu0 %v573
    %852 = vmatprep.subr.bf16.mxu0 %v570
    %853 = vmatpush1.bf16.msra.mxu0 %v569
    %854 = vmatprep.subr.bf16.mxu0 %v566
    %855 = vmatpush1.bf16.msra.mxu0 %v565
    %856 = vmatprep.subr.bf16.mxu0 %v562
    %857 = vmatpush1.bf16.msra.mxu0 %v561
    %858 = vmatprep.subr.bf16.mxu0 %v558
    %859 = vmatpush1.bf16.msra.mxu0 %v557
    %860 = vmatprep.subr.bf16.mxu0 %v554
    %861 = vmatpush1.bf16.msra.mxu0 %v553
    %862 = vmatprep.subr.bf16.mxu0 %v550
    %863 = vmatpush1.bf16.msra.mxu0 %v549
    %864 = vmatprep.subr.bf16.mxu0 0
    %865 = vmatpush2.bf16.msra.mxu0 0
    %866 = vmatprep.subr.bf16.mxu0 0
    %867 = vmatpush2.bf16.msra.mxu0 0
    %868 = vmatprep.subr.bf16.mxu0 0
    %869 = vmatpush2.bf16.msra.mxu0 0
    %870 = vmatprep.subr.bf16.mxu0 0
    %871 = vmatpush2.bf16.msra.mxu0 0
    %872 = vmatprep.subr.bf16.mxu0 0
    %873 = vmatpush2.bf16.msra.mxu0 0
    %874 = vmatprep.subr.bf16.mxu0 0
    %875 = vmatpush2.bf16.msra.mxu0 0
    %876 = vmatprep.subr.bf16.mxu0 0
    %877 = vmatpush2.bf16.msra.mxu0 0
    %878 = vmatprep.subr.bf16.mxu0 0
    %879 = vmatpush2.bf16.msra.mxu0 0
    %880 = vmatprep.mubr.bf16.mxu0 0
    %881 = vmatmul.mubr.bf16.gmra.mxu0 %v847
    %v882 = vpop.f32.mrf.mxu0
    %v883 = vadd.f32 0.0, %v882
    %v884 = vpop.f32.mrf.mxu0
    %v885 = vadd.f32 0.0, %v884
    %v886 = vpop.f32.mrf.mxu0
    %v887 = vpop.f32.mrf.mxu0
    %888 = vdwg.mxu0
    %889 = vmatprep.subr.bf16.mxu0 %v580
    %890 = vmatpush1.bf16.msra.mxu0 %v579
    %891 = vmatprep.subr.bf16.mxu0 %v576
    %892 = vmatpush1.bf16.msra.mxu0 %v575
    %893 = vmatprep.subr.bf16.mxu0 %v572
    %894 = vmatpush1.bf16.msra.mxu0 %v571
    %895 = vmatprep.subr.bf16.mxu0 %v568
    %896 = vmatpush1.bf16.msra.mxu0 %v567
    %897 = vmatprep.subr.bf16.mxu0 %v564
    %898 = vmatpush1.bf16.msra.mxu0 %v563
    %899 = vmatprep.subr.bf16.mxu0 %v560
    %900 = vmatpush1.bf16.msra.mxu0 %v559
    %901 = vmatprep.subr.bf16.mxu0 %v556
    %902 = vmatpush1.bf16.msra.mxu0 %v555
    %903 = vmatprep.subr.bf16.mxu0 %v552
    %904 = vmatpush1.bf16.msra.mxu0 %v551
    %905 = vmatprep.subr.bf16.mxu0 0
    %906 = vmatpush2.bf16.msra.mxu0 0
    %907 = vmatprep.subr.bf16.mxu0 0
    %908 = vmatpush2.bf16.msra.mxu0 0
    %909 = vmatprep.subr.bf16.mxu0 0
    %910 = vmatpush2.bf16.msra.mxu0 0
    %911 = vmatprep.subr.bf16.mxu0 0
    %912 = vmatpush2.bf16.msra.mxu0 0
    %913 = vmatprep.subr.bf16.mxu0 0
    %914 = vmatpush2.bf16.msra.mxu0 0
    %915 = vmatprep.subr.bf16.mxu0 0
    %916 = vmatpush2.bf16.msra.mxu0 0
    %917 = vmatprep.subr.bf16.mxu0 0
    %918 = vmatpush2.bf16.msra.mxu0 0
    %919 = vmatprep.subr.bf16.mxu0 0
    %920 = vmatpush2.bf16.msra.mxu0 0
    %921 = vmatprep.mubr.bf16.mxu0 0
    %922 = vmatmul.mubr.bf16.gmra.mxu0 %v847
    %v923 = vpop.f32.mrf.mxu0
    %v924 = vadd.f32 0.0, %v923
    %v925 = vpop.f32.mrf.mxu0
    %v926 = vadd.f32 0.0, %v925
    %v927 = vpop.f32.mrf.mxu0
    %v928 = vpop.f32.mrf.mxu0
    %929 = vdwg.mxu0
    %v930 = vadd.f32 %v843, %v883
    %v931 = vadd.f32 %v844, %v885
    %v932 = vadd.f32 %v845, %v924
    %v933 = vadd.f32 %v846, %v926
    %v934 = vxor.u32 %v930, 2147483648
    %v935 = vmul.f32 %v934, 1.442695
    %v936 = vpow.pop %v935
    %v937 = vadd.f32 %v936, 1.0
    %v938 = vrcp.pop %v937
    %v939 = vmul.f32 1.0, %v938
    %v940 = vxor.u32 %v931, 2147483648
    %v941 = vmul.f32 %v940, 1.442695
    %v942 = vpow.pop %v941
    %v943 = vadd.f32 %v942, 1.0
    %v944 = vrcp.pop %v943
    %v945 = vmul.f32 1.0, %v944
    %v946 = vtanh.pop %v932
    %v947 = vxor.u32 %v933, 2147483648
    %v948 = vmul.f32 %v947, 1.442695
    %v949 = vpow.pop %v948
    %v950 = vadd.f32 %v949, 1.0
    %v951 = vrcp.pop %v950
    %v952 = vmul.f32 1.0, %v951
    %v953 = vmul.f32 %v945, %v837
    %v954 = vmul.f32 %v939, %v946
    %v955 = vadd.f32 %v953, %v954
    %v956 = vtanh.pop %v955
    %v957 = vmul.f32 %v952, %v956
    %s958 = scalar_lea.vmem [#allocation6], 16
    %959 = vst [vmem:[%s958] sm:$0xff] %v957
    %s960 = scalar_lea.vmem [#allocation2], 96
    %v961 = vld [vmem:[%s960] sm:$0xff]
    %v962 = vld [vmem:[%s960 + $0x8] sm:$0xff]
    %v963 = vld [vmem:[%s960 + $0x10] sm:$0xff]
    %v964 = vld [vmem:[%s960 + $0x18] sm:$0xff]
    %v965 = vpack.c.bf16 %v957, %v957
    %966 = vmatprep.subr.bf16.mxu0 %v578
    %967 = vmatpush1.bf16.msra.mxu0 %v577
    %968 = vmatprep.subr.bf16.mxu0 %v574
    %969 = vmatpush1.bf16.msra.mxu0 %v573
    %970 = vmatprep.subr.bf16.mxu0 %v570
    %971 = vmatpush1.bf16.msra.mxu0 %v569
    %972 = vmatprep.subr.bf16.mxu0 %v566
    %973 = vmatpush1.bf16.msra.mxu0 %v565
    %974 = vmatprep.subr.bf16.mxu0 %v562
    %975 = vmatpush1.bf16.msra.mxu0 %v561
    %976 = vmatprep.subr.bf16.mxu0 %v558
    %977 = vmatpush1.bf16.msra.mxu0 %v557
    %978 = vmatprep.subr.bf16.mxu0 %v554
    %979 = vmatpush1.bf16.msra.mxu0 %v553
    %980 = vmatprep.subr.bf16.mxu0 %v550
    %981 = vmatpush1.bf16.msra.mxu0 %v549
    %982 = vmatprep.subr.bf16.mxu0 0
    %983 = vmatpush2.bf16.msra.mxu0 0
    %984 = vmatprep.subr.bf16.mxu0 0
    %985 = vmatpush2.bf16.msra.mxu0 0
    %986 = vmatprep.subr.bf16.mxu0 0
    %987 = vmatpush2.bf16.msra.mxu0 0
    %988 = vmatprep.subr.bf16.mxu0 0
    %989 = vmatpush2.bf16.msra.mxu0 0
    %990 = vmatprep.subr.bf16.mxu0 0
    %991 = vmatpush2.bf16.msra.mxu0 0
    %992 = vmatprep.subr.bf16.mxu0 0
    %993 = vmatpush2.bf16.msra.mxu0 0
    %994 = vmatprep.subr.bf16.mxu0 0
    %995 = vmatpush2.bf16.msra.mxu0 0
    %996 = vmatprep.subr.bf16.mxu0 0
    %997 = vmatpush2.bf16.msra.mxu0 0
    %998 = vmatprep.mubr.bf16.mxu0 0
    %999 = vmatmul.mubr.bf16.gmra.mxu0 %v965
    %v1000 = vpop.f32.mrf.mxu0
    %v1001 = vadd.f32 0.0, %v1000
    %v1002 = vpop.f32.mrf.mxu0
    %v1003 = vadd.f32 0.0, %v1002
    %v1004 = vpop.f32.mrf.mxu0
    %v1005 = vpop.f32.mrf.mxu0
    %1006 = vdwg.mxu0
    %1007 = vmatprep.subr.bf16.mxu0 %v580
    %1008 = vmatpush1.bf16.msra.mxu0 %v579
    %1009 = vmatprep.subr.bf16.mxu0 %v576
    %1010 = vmatpush1.bf16.msra.mxu0 %v575
    %1011 = vmatprep.subr.bf16.mxu0 %v572
    %1012 = vmatpush1.bf16.msra.mxu0 %v571
    %1013 = vmatprep.subr.bf16.mxu0 %v568
    %1014 = vmatpush1.bf16.msra.mxu0 %v567
    %1015 = vmatprep.subr.bf16.mxu0 %v564
    %1016 = vmatpush1.bf16.msra.mxu0 %v563
    %1017 = vmatprep.subr.bf16.mxu0 %v560
    %1018 = vmatpush1.bf16.msra.mxu0 %v559
    %1019 = vmatprep.subr.bf16.mxu0 %v556
    %1020 = vmatpush1.bf16.msra.mxu0 %v555
    %1021 = vmatprep.subr.bf16.mxu0 %v552
    %1022 = vmatpush1.bf16.msra.mxu0 %v551
    %1023 = vmatprep.subr.bf16.mxu0 0
    %1024 = vmatpush2.bf16.msra.mxu0 0
    %1025 = vmatprep.subr.bf16.mxu0 0
    %1026 = vmatpush2.bf16.msra.mxu0 0
    %1027 = vmatprep.subr.bf16.mxu0 0
    %1028 = vmatpush2.bf16.msra.mxu0 0
    %1029 = vmatprep.subr.bf16.mxu0 0
    %1030 = vmatpush2.bf16.msra.mxu0 0
    %1031 = vmatprep.subr.bf16.mxu0 0
    %1032 = vmatpush2.bf16.msra.mxu0 0
    %1033 = vmatprep.subr.bf16.mxu0 0
    %1034 = vmatpush2.bf16.msra.mxu0 0
    %1035 = vmatprep.subr.bf16.mxu0 0
    %1036 = vmatpush2.bf16.msra.mxu0 0
    %1037 = vmatprep.subr.bf16.mxu0 0
    %1038 = vmatpush2.bf16.msra.mxu0 0
    %1039 = vmatprep.mubr.bf16.mxu0 0
    %1040 = vmatmul.mubr.bf16.gmra.mxu0 %v965
    %v1041 = vpop.f32.mrf.mxu0
    %v1042 = vadd.f32 0.0, %v1041
    %v1043 = vpop.f32.mrf.mxu0
    %v1044 = vadd.f32 0.0, %v1043
    %v1045 = vpop.f32.mrf.mxu0
    %v1046 = vpop.f32.mrf.mxu0
    %1047 = vdwg.mxu0
    %v1048 = vadd.f32 %v961, %v1001
    %v1049 = vadd.f32 %v962, %v1003
    %v1050 = vadd.f32 %v963, %v1042
    %v1051 = vadd.f32 %v964, %v1044
    %v1052 = vxor.u32 %v1048, 2147483648
    %v1053 = vmul.f32 %v1052, 1.442695
    %v1054 = vpow.pop %v1053
    %v1055 = vadd.f32 %v1054, 1.0
    %v1056 = vrcp.pop %v1055
    %v1057 = vmul.f32 1.0, %v1056
    %v1058 = vxor.u32 %v1049, 2147483648
    %v1059 = vmul.f32 %v1058, 1.442695
    %v1060 = vpow.pop %v1059
    %v1061 = vadd.f32 %v1060, 1.0
    %v1062 = vrcp.pop %v1061
    %v1063 = vmul.f32 1.0, %v1062
    %v1064 = vtanh.pop %v1050
    %v1065 = vxor.u32 %v1051, 2147483648
    %v1066 = vmul.f32 %v1065, 1.442695
    %v1067 = vpow.pop %v1066
    %v1068 = vadd.f32 %v1067, 1.0
    %v1069 = vrcp.pop %v1068
    %v1070 = vmul.f32 1.0, %v1069
    %v1071 = vmul.f32 %v1063, %v955
    %v1072 = vmul.f32 %v1057, %v1064
    %v1073 = vadd.f32 %v1071, %v1072
    %v1074 = vtanh.pop %v1073
    %v1075 = vmul.f32 %v1070, %v1074
    %s1076 = scalar_lea.vmem [#allocation6], 24
    %1077 = vst [vmem:[%s1076] sm:$0xff] %v1075
    %s1078 = scalar_lea.vmem [#allocation2], 128
    %v1079 = vld [vmem:[%s1078] sm:$0xff]
    %v1080 = vld [vmem:[%s1078 + $0x8] sm:$0xff]
    %v1081 = vld [vmem:[%s1078 + $0x10] sm:$0xff]
    %v1082 = vld [vmem:[%s1078 + $0x18] sm:$0xff]
    %v1083 = vpack.c.bf16 %v1075, %v1075
    %1084 = vmatprep.subr.bf16.mxu0 %v578
    %1085 = vmatpush1.bf16.msra.mxu0 %v577
    %1086 = vmatprep.subr.bf16.mxu0 %v574
    %1087 = vmatpush1.bf16.msra.mxu0 %v573
    %1088 = vmatprep.subr.bf16.mxu0 %v570
    %1089 = vmatpush1.bf16.msra.mxu0 %v569
    %1090 = vmatprep.subr.bf16.mxu0 %v566
    %1091 = vmatpush1.bf16.msra.mxu0 %v565
    %1092 = vmatprep.subr.bf16.mxu0 %v562
    %1093 = vmatpush1.bf16.msra.mxu0 %v561
    %1094 = vmatprep.subr.bf16.mxu0 %v558
    %1095 = vmatpush1.bf16.msra.mxu0 %v557
    %1096 = vmatprep.subr.bf16.mxu0 %v554
    %1097 = vmatpush1.bf16.msra.mxu0 %v553
    %1098 = vmatprep.subr.bf16.mxu0 %v550
    %1099 = vmatpush1.bf16.msra.mxu0 %v549
    %1100 = vmatprep.subr.bf16.mxu0 0
    %1101 = vmatpush2.bf16.msra.mxu0 0
    %1102 = vmatprep.subr.bf16.mxu0 0
    %1103 = vmatpush2.bf16.msra.mxu0 0
    %1104 = vmatprep.subr.bf16.mxu0 0
    %1105 = vmatpush2.bf16.msra.mxu0 0
    %1106 = vmatprep.subr.bf16.mxu0 0
    %1107 = vmatpush2.bf16.msra.mxu0 0
    %1108 = vmatprep.subr.bf16.mxu0 0
    %1109 = vmatpush2.bf16.msra.mxu0 0
    %1110 = vmatprep.subr.bf16.mxu0 0
    %1111 = vmatpush2.bf16.msra.mxu0 0
    %1112 = vmatprep.subr.bf16.mxu0 0
    %1113 = vmatpush2.bf16.msra.mxu0 0
    %1114 = vmatprep.subr.bf16.mxu0 0
    %1115 = vmatpush2.bf16.msra.mxu0 0
    %1116 = vmatprep.mubr.bf16.mxu0 0
    %1117 = vmatmul.mubr.bf16.gmra.mxu0 %v1083
    %v1118 = vpop.f32.mrf.mxu0
    %v1119 = vadd.f32 0.0, %v1118
    %v1120 = vpop.f32.mrf.mxu0
    %v1121 = vadd.f32 0.0, %v1120
    %v1122 = vpop.f32.mrf.mxu0
    %v1123 = vpop.f32.mrf.mxu0
    %1124 = vdwg.mxu0
    %1125 = vmatprep.subr.bf16.mxu0 %v580
    %1126 = vmatpush1.bf16.msra.mxu0 %v579
    %1127 = vmatprep.subr.bf16.mxu0 %v576
    %1128 = vmatpush1.bf16.msra.mxu0 %v575
    %1129 = vmatprep.subr.bf16.mxu0 %v572
    %1130 = vmatpush1.bf16.msra.mxu0 %v571
    %1131 = vmatprep.subr.bf16.mxu0 %v568
    %1132 = vmatpush1.bf16.msra.mxu0 %v567
    %1133 = vmatprep.subr.bf16.mxu0 %v564
    %1134 = vmatpush1.bf16.msra.mxu0 %v563
    %1135 = vmatprep.subr.bf16.mxu0 %v560
    %1136 = vmatpush1.bf16.msra.mxu0 %v559
    %1137 = vmatprep.subr.bf16.mxu0 %v556
    %1138 = vmatpush1.bf16.msra.mxu0 %v555
    %1139 = vmatprep.subr.bf16.mxu0 %v552
    %1140 = vmatpush1.bf16.msra.mxu0 %v551
    %1141 = vmatprep.subr.bf16.mxu0 0
    %1142 = vmatpush2.bf16.msra.mxu0 0
    %1143 = vmatprep.subr.bf16.mxu0 0
    %1144 = vmatpush2.bf16.msra.mxu0 0
    %1145 = vmatprep.subr.bf16.mxu0 0
    %1146 = vmatpush2.bf16.msra.mxu0 0
    %1147 = vmatprep.subr.bf16.mxu0 0
    %1148 = vmatpush2.bf16.msra.mxu0 0
    %1149 = vmatprep.subr.bf16.mxu0 0
    %1150 = vmatpush2.bf16.msra.mxu0 0
    %1151 = vmatprep.subr.bf16.mxu0 0
    %1152 = vmatpush2.bf16.msra.mxu0 0
    %1153 = vmatprep.subr.bf16.mxu0 0
    %1154 = vmatpush2.bf16.msra.mxu0 0
    %1155 = vmatprep.subr.bf16.mxu0 0
    %1156 = vmatpush2.bf16.msra.mxu0 0
    %1157 = vmatprep.mubr.bf16.mxu0 0
    %1158 = vmatmul.mubr.bf16.gmra.mxu0 %v1083
    %v1159 = vpop.f32.mrf.mxu0
    %v1160 = vadd.f32 0.0, %v1159
    %v1161 = vpop.f32.mrf.mxu0
    %v1162 = vadd.f32 0.0, %v1161
    %v1163 = vpop.f32.mrf.mxu0
    %v1164 = vpop.f32.mrf.mxu0
    %1165 = vdwg.mxu0
    %v1166 = vadd.f32 %v1079, %v1119
    %v1167 = vadd.f32 %v1080, %v1121
    %v1168 = vadd.f32 %v1081, %v1160
    %v1169 = vadd.f32 %v1082, %v1162
    %v1170 = vxor.u32 %v1166, 2147483648
    %v1171 = vmul.f32 %v1170, 1.442695
    %v1172 = vpow.pop %v1171
    %v1173 = vadd.f32 %v1172, 1.0
    %v1174 = vrcp.pop %v1173
    %v1175 = vmul.f32 1.0, %v1174
    %v1176 = vxor.u32 %v1167, 2147483648
    %v1177 = vmul.f32 %v1176, 1.442695
    %v1178 = vpow.pop %v1177
    %v1179 = vadd.f32 %v1178, 1.0
    %v1180 = vrcp.pop %v1179
    %v1181 = vmul.f32 1.0, %v1180
    %v1182 = vtanh.pop %v1168
    %v1183 = vxor.u32 %v1169, 2147483648
    %v1184 = vmul.f32 %v1183, 1.442695
    %v1185 = vpow.pop %v1184
    %v1186 = vadd.f32 %v1185, 1.0
    %v1187 = vrcp.pop %v1186
    %v1188 = vmul.f32 1.0, %v1187
    %v1189 = vmul.f32 %v1181, %v1073
    %v1190 = vmul.f32 %v1175, %v1182
    %v1191 = vadd.f32 %v1189, %v1190
    %v1192 = vtanh.pop %v1191
    %v1193 = vmul.f32 %v1188, %v1192
    %s1194 = scalar_lea.vmem [#allocation6], 32
    %1195 = vst [vmem:[%s1194] sm:$0xff] %v1193
    %s1196 = scalar_lea.vmem [#allocation2], 160
    %v1197 = vld [vmem:[%s1196] sm:$0xff]
    %v1198 = vld [vmem:[%s1196 + $0x8] sm:$0xff]
    %v1199 = vld [vmem:[%s1196 + $0x10] sm:$0xff]
    %v1200 = vld [vmem:[%s1196 + $0x18] sm:$0xff]
    %v1201 = vpack.c.bf16 %v1193, %v1193
    %1202 = vmatprep.subr.bf16.mxu0 %v578
    %1203 = vmatpush1.bf16.msra.mxu0 %v577
    %1204 = vmatprep.subr.bf16.mxu0 %v574
    %1205 = vmatpush1.bf16.msra.mxu0 %v573
    %1206 = vmatprep.subr.bf16.mxu0 %v570
    %1207 = vmatpush1.bf16.msra.mxu0 %v569
    %1208 = vmatprep.subr.bf16.mxu0 %v566
    %1209 = vmatpush1.bf16.msra.mxu0 %v565
    %1210 = vmatprep.subr.bf16.mxu0 %v562
    %1211 = vmatpush1.bf16.msra.mxu0 %v561
    %1212 = vmatprep.subr.bf16.mxu0 %v558
    %1213 = vmatpush1.bf16.msra.mxu0 %v557
    %1214 = vmatprep.subr.bf16.mxu0 %v554
    %1215 = vmatpush1.bf16.msra.mxu0 %v553
    %1216 = vmatprep.subr.bf16.mxu0 %v550
    %1217 = vmatpush1.bf16.msra.mxu0 %v549
    %1218 = vmatprep.subr.bf16.mxu0 0
    %1219 = vmatpush2.bf16.msra.mxu0 0
    %1220 = vmatprep.subr.bf16.mxu0 0
    %1221 = vmatpush2.bf16.msra.mxu0 0
    %1222 = vmatprep.subr.bf16.mxu0 0
    %1223 = vmatpush2.bf16.msra.mxu0 0
    %1224 = vmatprep.subr.bf16.mxu0 0
    %1225 = vmatpush2.bf16.msra.mxu0 0
    %1226 = vmatprep.subr.bf16.mxu0 0
    %1227 = vmatpush2.bf16.msra.mxu0 0
    %1228 = vmatprep.subr.bf16.mxu0 0
    %1229 = vmatpush2.bf16.msra.mxu0 0
    %1230 = vmatprep.subr.bf16.mxu0 0
    %1231 = vmatpush2.bf16.msra.mxu0 0
    %1232 = vmatprep.subr.bf16.mxu0 0
    %1233 = vmatpush2.bf16.msra.mxu0 0
    %1234 = vmatprep.mubr.bf16.mxu0 0
    %1235 = vmatmul.mubr.bf16.gmra.mxu0 %v1201
    %v1236 = vpop.f32.mrf.mxu0
    %v1237 = vadd.f32 0.0, %v1236
    %v1238 = vpop.f32.mrf.mxu0
    %v1239 = vadd.f32 0.0, %v1238
    %v1240 = vpop.f32.mrf.mxu0
    %v1241 = vpop.f32.mrf.mxu0
    %1242 = vdwg.mxu0
    %1243 = vmatprep.subr.bf16.mxu0 %v580
    %1244 = vmatpush1.bf16.msra.mxu0 %v579
    %1245 = vmatprep.subr.bf16.mxu0 %v576
    %1246 = vmatpush1.bf16.msra.mxu0 %v575
    %1247 = vmatprep.subr.bf16.mxu0 %v572
    %1248 = vmatpush1.bf16.msra.mxu0 %v571
    %1249 = vmatprep.subr.bf16.mxu0 %v568
    %1250 = vmatpush1.bf16.msra.mxu0 %v567
    %1251 = vmatprep.subr.bf16.mxu0 %v564
    %1252 = vmatpush1.bf16.msra.mxu0 %v563
    %1253 = vmatprep.subr.bf16.mxu0 %v560
    %1254 = vmatpush1.bf16.msra.mxu0 %v559
    %1255 = vmatprep.subr.bf16.mxu0 %v556
    %1256 = vmatpush1.bf16.msra.mxu0 %v555
    %1257 = vmatprep.subr.bf16.mxu0 %v552
    %1258 = vmatpush1.bf16.msra.mxu0 %v551
    %1259 = vmatprep.subr.bf16.mxu0 0
    %1260 = vmatpush2.bf16.msra.mxu0 0
    %1261 = vmatprep.subr.bf16.mxu0 0
    %1262 = vmatpush2.bf16.msra.mxu0 0
    %1263 = vmatprep.subr.bf16.mxu0 0
    %1264 = vmatpush2.bf16.msra.mxu0 0
    %1265 = vmatprep.subr.bf16.mxu0 0
    %1266 = vmatpush2.bf16.msra.mxu0 0
    %1267 = vmatprep.subr.bf16.mxu0 0
    %1268 = vmatpush2.bf16.msra.mxu0 0
    %1269 = vmatprep.subr.bf16.mxu0 0
    %1270 = vmatpush2.bf16.msra.mxu0 0
    %1271 = vmatprep.subr.bf16.mxu0 0
    %1272 = vmatpush2.bf16.msra.mxu0 0
    %1273 = vmatprep.subr.bf16.mxu0 0
    %1274 = vmatpush2.bf16.msra.mxu0 0
    %1275 = vmatprep.mubr.bf16.mxu0 0
    %1276 = vmatmul.mubr.bf16.gmra.mxu0 %v1201
    %v1277 = vpop.f32.mrf.mxu0
    %v1278 = vadd.f32 0.0, %v1277
    %v1279 = vpop.f32.mrf.mxu0
    %v1280 = vadd.f32 0.0, %v1279
    %v1281 = vpop.f32.mrf.mxu0
    %v1282 = vpop.f32.mrf.mxu0
    %1283 = vdwg.mxu0
    %v1284 = vadd.f32 %v1197, %v1237
    %v1285 = vadd.f32 %v1198, %v1239
    %v1286 = vadd.f32 %v1199, %v1278
    %v1287 = vadd.f32 %v1200, %v1280
    %v1288 = vxor.u32 %v1284, 2147483648
    %v1289 = vmul.f32 %v1288, 1.442695
    %v1290 = vpow.pop %v1289
    %v1291 = vadd.f32 %v1290, 1.0
    %v1292 = vrcp.pop %v1291
    %v1293 = vmul.f32 1.0, %v1292
    %v1294 = vxor.u32 %v1285, 2147483648
    %v1295 = vmul.f32 %v1294, 1.442695
    %v1296 = vpow.pop %v1295
    %v1297 = vadd.f32 %v1296, 1.0
    %v1298 = vrcp.pop %v1297
    %v1299 = vmul.f32 1.0, %v1298
    %v1300 = vtanh.pop %v1286
    %v1301 = vxor.u32 %v1287, 2147483648
    %v1302 = vmul.f32 %v1301, 1.442695
    %v1303 = vpow.pop %v1302
    %v1304 = vadd.f32 %v1303, 1.0
    %v1305 = vrcp.pop %v1304
    %v1306 = vmul.f32 1.0, %v1305
    %v1307 = vmul.f32 %v1299, %v1191
    %v1308 = vmul.f32 %v1293, %v1300
    %v1309 = vadd.f32 %v1307, %v1308
    %v1310 = vtanh.pop %v1309
    %v1311 = vmul.f32 %v1306, %v1310
    %s1312 = scalar_lea.vmem [#allocation6], 40
    %1313 = vst [vmem:[%s1312] sm:$0xff] %v1311
    %s1314 = scalar_lea.vmem [#allocation2], 192
    %v1315 = vld [vmem:[%s1314] sm:$0xff]
    %v1316 = vld [vmem:[%s1314 + $0x8] sm:$0xff]
    %v1317 = vld [vmem:[%s1314 + $0x10] sm:$0xff]
    %v1318 = vld [vmem:[%s1314 + $0x18] sm:$0xff]
    %v1319 = vpack.c.bf16 %v1311, %v1311
    %1320 = vmatprep.subr.bf16.mxu0 %v578
    %1321 = vmatpush1.bf16.msra.mxu0 %v577
    %1322 = vmatprep.subr.bf16.mxu0 %v574
    %1323 = vmatpush1.bf16.msra.mxu0 %v573
    %1324 = vmatprep.subr.bf16.mxu0 %v570
    %1325 = vmatpush1.bf16.msra.mxu0 %v569
    %1326 = vmatprep.subr.bf16.mxu0 %v566
    %1327 = vmatpush1.bf16.msra.mxu0 %v565
    %1328 = vmatprep.subr.bf16.mxu0 %v562
    %1329 = vmatpush1.bf16.msra.mxu0 %v561
    %1330 = vmatprep.subr.bf16.mxu0 %v558
    %1331 = vmatpush1.bf16.msra.mxu0 %v557
    %1332 = vmatprep.subr.bf16.mxu0 %v554
    %1333 = vmatpush1.bf16.msra.mxu0 %v553
    %1334 = vmatprep.subr.bf16.mxu0 %v550
    %1335 = vmatpush1.bf16.msra.mxu0 %v549
    %1336 = vmatprep.subr.bf16.mxu0 0
    %1337 = vmatpush2.bf16.msra.mxu0 0
    %1338 = vmatprep.subr.bf16.mxu0 0
    %1339 = vmatpush2.bf16.msra.mxu0 0
    %1340 = vmatprep.subr.bf16.mxu0 0
    %1341 = vmatpush2.bf16.msra.mxu0 0
    %1342 = vmatprep.subr.bf16.mxu0 0
    %1343 = vmatpush2.bf16.msra.mxu0 0
    %1344 = vmatprep.subr.bf16.mxu0 0
    %1345 = vmatpush2.bf16.msra.mxu0 0
    %1346 = vmatprep.subr.bf16.mxu0 0
    %1347 = vmatpush2.bf16.msra.mxu0 0
    %1348 = vmatprep.subr.bf16.mxu0 0
    %1349 = vmatpush2.bf16.msra.mxu0 0
    %1350 = vmatprep.subr.bf16.mxu0 0
    %1351 = vmatpush2.bf16.msra.mxu0 0
    %1352 = vmatprep.mubr.bf16.mxu0 0
    %1353 = vmatmul.mubr.bf16.gmra.mxu0 %v1319
    %v1354 = vpop.f32.mrf.mxu0
    %v1355 = vadd.f32 0.0, %v1354
    %v1356 = vpop.f32.mrf.mxu0
    %v1357 = vadd.f32 0.0, %v1356
    %v1358 = vpop.f32.mrf.mxu0
    %v1359 = vpop.f32.mrf.mxu0
    %1360 = vdwg.mxu0
    %1361 = vmatprep.subr.bf16.mxu0 %v580
    %1362 = vmatpush1.bf16.msra.mxu0 %v579
    %1363 = vmatprep.subr.bf16.mxu0 %v576
    %1364 = vmatpush1.bf16.msra.mxu0 %v575
    %1365 = vmatprep.subr.bf16.mxu0 %v572
    %1366 = vmatpush1.bf16.msra.mxu0 %v571
    %1367 = vmatprep.subr.bf16.mxu0 %v568
    %1368 = vmatpush1.bf16.msra.mxu0 %v567
    %1369 = vmatprep.subr.bf16.mxu0 %v564
    %1370 = vmatpush1.bf16.msra.mxu0 %v563
    %1371 = vmatprep.subr.bf16.mxu0 %v560
    %1372 = vmatpush1.bf16.msra.mxu0 %v559
    %1373 = vmatprep.subr.bf16.mxu0 %v556
    %1374 = vmatpush1.bf16.msra.mxu0 %v555
    %1375 = vmatprep.subr.bf16.mxu0 %v552
    %1376 = vmatpush1.bf16.msra.mxu0 %v551
    %1377 = vmatprep.subr.bf16.mxu0 0
    %1378 = vmatpush2.bf16.msra.mxu0 0
    %1379 = vmatprep.subr.bf16.mxu0 0
    %1380 = vmatpush2.bf16.msra.mxu0 0
    %1381 = vmatprep.subr.bf16.mxu0 0
    %1382 = vmatpush2.bf16.msra.mxu0 0
    %1383 = vmatprep.subr.bf16.mxu0 0
    %1384 = vmatpush2.bf16.msra.mxu0 0
    %1385 = vmatprep.subr.bf16.mxu0 0
    %1386 = vmatpush2.bf16.msra.mxu0 0
    %1387 = vmatprep.subr.bf16.mxu0 0
    %1388 = vmatpush2.bf16.msra.mxu0 0
    %1389 = vmatprep.subr.bf16.mxu0 0
    %1390 = vmatpush2.bf16.msra.mxu0 0
    %1391 = vmatprep.subr.bf16.mxu0 0
    %1392 = vmatpush2.bf16.msra.mxu0 0
    %1393 = vmatprep.mubr.bf16.mxu0 0
    %1394 = vmatmul.mubr.bf16.gmra.mxu0 %v1319
    %v1395 = vpop.f32.mrf.mxu0
    %v1396 = vadd.f32 0.0, %v1395
    %v1397 = vpop.f32.mrf.mxu0
    %v1398 = vadd.f32 0.0, %v1397
    %v1399 = vpop.f32.mrf.mxu0
    %v1400 = vpop.f32.mrf.mxu0
    %1401 = vdwg.mxu0
    %v1402 = vadd.f32 %v1315, %v1355
    %v1403 = vadd.f32 %v1316, %v1357
    %v1404 = vadd.f32 %v1317, %v1396
    %v1405 = vadd.f32 %v1318, %v1398
    %v1406 = vxor.u32 %v1402, 2147483648
    %v1407 = vmul.f32 %v1406, 1.442695
    %v1408 = vpow.pop %v1407
    %v1409 = vadd.f32 %v1408, 1.0
    %v1410 = vrcp.pop %v1409
    %v1411 = vmul.f32 1.0, %v1410
    %v1412 = vxor.u32 %v1403, 2147483648
    %v1413 = vmul.f32 %v1412, 1.442695
    %v1414 = vpow.pop %v1413
    %v1415 = vadd.f32 %v1414, 1.0
    %v1416 = vrcp.pop %v1415
    %v1417 = vmul.f32 1.0, %v1416
    %v1418 = vtanh.pop %v1404
    %v1419 = vxor.u32 %v1405, 2147483648
    %v1420 = vmul.f32 %v1419, 1.442695
    %v1421 = vpow.pop %v1420
    %v1422 = vadd.f32 %v1421, 1.0
    %v1423 = vrcp.pop %v1422
    %v1424 = vmul.f32 1.0, %v1423
    %v1425 = vmul.f32 %v1417, %v1309
    %v1426 = vmul.f32 %v1411, %v1418
    %v1427 = vadd.f32 %v1425, %v1426
    %v1428 = vtanh.pop %v1427
    %v1429 = vmul.f32 %v1424, %v1428
    %s1430 = scalar_lea.vmem [#allocation6], 48
    %1431 = vst [vmem:[%s1430] sm:$0xff] %v1429
    %s1432 = scalar_lea.vmem [#allocation2], 224
    %v1433 = vld [vmem:[%s1432] sm:$0xff]
    %v1434 = vld [vmem:[%s1432 + $0x8] sm:$0xff]
    %v1435 = vld [vmem:[%s1432 + $0x10] sm:$0xff]
    %v1436 = vld [vmem:[%s1432 + $0x18] sm:$0xff]
    %v1437 = vpack.c.bf16 %v1429, %v1429
    %1438 = vmatprep.subr.bf16.mxu0 %v578
    %1439 = vmatpush1.bf16.msra.mxu0 %v577
    %1440 = vmatprep.subr.bf16.mxu0 %v574
    %1441 = vmatpush1.bf16.msra.mxu0 %v573
    %1442 = vmatprep.subr.bf16.mxu0 %v570
    %1443 = vmatpush1.bf16.msra.mxu0 %v569
    %1444 = vmatprep.subr.bf16.mxu0 %v566
    %1445 = vmatpush1.bf16.msra.mxu0 %v565
    %1446 = vmatprep.subr.bf16.mxu0 %v562
    %1447 = vmatpush1.bf16.msra.mxu0 %v561
    %1448 = vmatprep.subr.bf16.mxu0 %v558
    %1449 = vmatpush1.bf16.msra.mxu0 %v557
    %1450 = vmatprep.subr.bf16.mxu0 %v554
    %1451 = vmatpush1.bf16.msra.mxu0 %v553
    %1452 = vmatprep.subr.bf16.mxu0 %v550
    %1453 = vmatpush1.bf16.msra.mxu0 %v549
    %1454 = vmatprep.subr.bf16.mxu0 0
    %1455 = vmatpush2.bf16.msra.mxu0 0
    %1456 = vmatprep.subr.bf16.mxu0 0
    %1457 = vmatpush2.bf16.msra.mxu0 0
    %1458 = vmatprep.subr.bf16.mxu0 0
    %1459 = vmatpush2.bf16.msra.mxu0 0
    %1460 = vmatprep.subr.bf16.mxu0 0
    %1461 = vmatpush2.bf16.msra.mxu0 0
    %1462 = vmatprep.subr.bf16.mxu0 0
    %1463 = vmatpush2.bf16.msra.mxu0 0
    %1464 = vmatprep.subr.bf16.mxu0 0
    %1465 = vmatpush2.bf16.msra.mxu0 0
    %1466 = vmatprep.subr.bf16.mxu0 0
    %1467 = vmatpush2.bf16.msra.mxu0 0
    %1468 = vmatprep.subr.bf16.mxu0 0
    %1469 = vmatpush2.bf16.msra.mxu0 0
    %1470 = vmatprep.mubr.bf16.mxu0 0
    %1471 = vmatmul.mubr.bf16.gmra.mxu0 %v1437
    %v1472 = vpop.f32.mrf.mxu0
    %v1473 = vadd.f32 0.0, %v1472
    %v1474 = vpop.f32.mrf.mxu0
    %v1475 = vadd.f32 0.0, %v1474
    %v1476 = vpop.f32.mrf.mxu0
    %v1477 = vpop.f32.mrf.mxu0
    %1478 = vdwg.mxu0
    %1479 = vmatprep.subr.bf16.mxu0 %v580
    %1480 = vmatpush1.bf16.msra.mxu0 %v579
    %1481 = vmatprep.subr.bf16.mxu0 %v576
    %1482 = vmatpush1.bf16.msra.mxu0 %v575
    %1483 = vmatprep.subr.bf16.mxu0 %v572
    %1484 = vmatpush1.bf16.msra.mxu0 %v571
    %1485 = vmatprep.subr.bf16.mxu0 %v568
    %1486 = vmatpush1.bf16.msra.mxu0 %v567
    %1487 = vmatprep.subr.bf16.mxu0 %v564
    %1488 = vmatpush1.bf16.msra.mxu0 %v563
    %1489 = vmatprep.subr.bf16.mxu0 %v560
    %1490 = vmatpush1.bf16.msra.mxu0 %v559
    %1491 = vmatprep.subr.bf16.mxu0 %v556
    %1492 = vmatpush1.bf16.msra.mxu0 %v555
    %1493 = vmatprep.subr.bf16.mxu0 %v552
    %1494 = vmatpush1.bf16.msra.mxu0 %v551
    %1495 = vmatprep.subr.bf16.mxu0 0
    %1496 = vmatpush2.bf16.msra.mxu0 0
    %1497 = vmatprep.subr.bf16.mxu0 0
    %1498 = vmatpush2.bf16.msra.mxu0 0
    %1499 = vmatprep.subr.bf16.mxu0 0
    %1500 = vmatpush2.bf16.msra.mxu0 0
    %1501 = vmatprep.subr.bf16.mxu0 0
    %1502 = vmatpush2.bf16.msra.mxu0 0
    %1503 = vmatprep.subr.bf16.mxu0 0
    %1504 = vmatpush2.bf16.msra.mxu0 0
    %1505 = vmatprep.subr.bf16.mxu0 0
    %1506 = vmatpush2.bf16.msra.mxu0 0
    %1507 = vmatprep.subr.bf16.mxu0 0
    %1508 = vmatpush2.bf16.msra.mxu0 0
    %1509 = vmatprep.subr.bf16.mxu0 0
    %1510 = vmatpush2.bf16.msra.mxu0 0
    %1511 = vmatprep.mubr.bf16.mxu0 0
    %1512 = vmatmul.mubr.bf16.gmra.mxu0 %v1437
    %v1513 = vpop.f32.mrf.mxu0
    %v1514 = vadd.f32 0.0, %v1513
    %v1515 = vpop.f32.mrf.mxu0
    %v1516 = vadd.f32 0.0, %v1515
    %v1517 = vpop.f32.mrf.mxu0
    %v1518 = vpop.f32.mrf.mxu0
    %1519 = vdwg.mxu0
    %v1520 = vadd.f32 %v1433, %v1473
    %v1521 = vadd.f32 %v1434, %v1475
    %v1522 = vadd.f32 %v1435, %v1514
    %v1523 = vadd.f32 %v1436, %v1516
    %v1524 = vxor.u32 %v1520, 2147483648
    %v1525 = vmul.f32 %v1524, 1.442695
    %v1526 = vpow.pop %v1525
    %v1527 = vadd.f32 %v1526, 1.0
    %v1528 = vrcp.pop %v1527
    %v1529 = vmul.f32 1.0, %v1528
    %v1530 = vxor.u32 %v1521, 2147483648
    %v1531 = vmul.f32 %v1530, 1.442695
    %v1532 = vpow.pop %v1531
    %v1533 = vadd.f32 %v1532, 1.0
    %v1534 = vrcp.pop %v1533
    %v1535 = vmul.f32 1.0, %v1534
    %v1536 = vtanh.pop %v1522
    %v1537 = vxor.u32 %v1523, 2147483648
    %v1538 = vmul.f32 %v1537, 1.442695
    %v1539 = vpow.pop %v1538
    %v1540 = vadd.f32 %v1539, 1.0
    %v1541 = vrcp.pop %v1540
    %v1542 = vmul.f32 1.0, %v1541
    %v1543 = vmul.f32 %v1535, %v1427
    %v1544 = vmul.f32 %v1529, %v1536
    %v1545 = vadd.f32 %v1543, %v1544
    %v1546 = vtanh.pop %v1545
    %v1547 = vmul.f32 %v1542, %v1546
    %s1548 = scalar_lea.vmem [#allocation6], 56
    %1549 = vst [vmem:[%s1548] sm:$0xff] %v1547
    %1550 = vst [vmem:[%s8] sm:$0xff] %v1547
    %1551 = vst [vmem:[%s9] sm:$0xff] %v1545
    %v1552 = vld [vmem:[#allocation6] sm:$0xff]
    %v1553 = vld [vmem:[#allocation6 + $0x8] sm:$0xff]
    %v1554 = vld [vmem:[#allocation6 + $0x10] sm:$0xff]
    %v1555 = vld [vmem:[#allocation6 + $0x18] sm:$0xff]
    %v1556 = vld [vmem:[#allocation6 + $0x20] sm:$0xff]
    %v1557 = vld [vmem:[#allocation6 + $0x28] sm:$0xff]
    %v1558 = vld [vmem:[#allocation6 + $0x30] sm:$0xff]
    %v1559 = vld [vmem:[#allocation6 + $0x38] sm:$0xff]
    %v1560 = vpack.c.bf16 %v1553, %v1552
    %v1561 = vpack.c.bf16 %v1555, %v1554
    %v1562 = vpack.c.bf16 %v1557, %v1556
    %v1563 = vpack.c.bf16 %v1559, %v1558
    %v1564 = vld [vmem:[%s2] sm:$0xff]
    %v1565 = vld [vmem:[%s2 + $0x8] sm:$0xff]
    %v1566 = vld [vmem:[%s2 + $0x10] sm:$0xff]
    %v1567 = vld [vmem:[%s2 + $0x18] sm:$0xff]
    %v1568 = vld [vmem:[%s2 + $0x20] sm:$0xff]
    %v1569 = vld [vmem:[%s2 + $0x28] sm:$0xff]
    %v1570 = vld [vmem:[%s2 + $0x30] sm:$0xff]
    %v1571 = vld [vmem:[%s2 + $0x38] sm:$0xff]
    %v1572 = vld [vmem:[%s2 + $0x40] sm:$0xff]
    %v1573 = vld [vmem:[%s2 + $0x48] sm:$0xff]
    %v1574 = vld [vmem:[%s2 + $0x50] sm:$0xff]
    %v1575 = vld [vmem:[%s2 + $0x58] sm:$0xff]
    %v1576 = vld [vmem:[%s2 + $0x60] sm:$0xff]
    %v1577 = vld [vmem:[%s2 + $0x68] sm:$0xff]
    %v1578 = vld [vmem:[%s2 + $0x70] sm:$0xff]
    %v1579 = vld [vmem:[%s2 + $0x78] sm:$0xff]
    %v1580 = vld [vmem:[%s2 + $0x80] sm:$0xff]
    %v1581 = vld [vmem:[%s2 + $0x88] sm:$0xff]
    %v1582 = vld [vmem:[%s2 + $0x90] sm:$0xff]
    %v1583 = vld [vmem:[%s2 + $0x98] sm:$0xff]
    %v1584 = vld [vmem:[%s2 + $0xa0] sm:$0xff]
    %v1585 = vld [vmem:[%s2 + $0xa8] sm:$0xff]
    %v1586 = vld [vmem:[%s2 + $0xb0] sm:$0xff]
    %v1587 = vld [vmem:[%s2 + $0xb8] sm:$0xff]
    %v1588 = vld [vmem:[%s2 + $0xc0] sm:$0xff]
    %v1589 = vld [vmem:[%s2 + $0xc8] sm:$0xff]
    %v1590 = vld [vmem:[%s2 + $0xd0] sm:$0xff]
    %v1591 = vld [vmem:[%s2 + $0xd8] sm:$0xff]
    %v1592 = vld [vmem:[%s2 + $0xe0] sm:$0xff]
    %v1593 = vld [vmem:[%s2 + $0xe8] sm:$0xff]
    %v1594 = vld [vmem:[%s2 + $0xf0] sm:$0xff]
    %v1595 = vld [vmem:[%s2 + $0xf8] sm:$0xff]
    %v1628 = vunpack.c.l.b16 %v1564
    %v1629 = vunpack.c.h.b16 %v1564
    %v1630 = vunpack.c.l.b16 %v1565
    %v1631 = vunpack.c.h.b16 %v1565
    %v1632 = vunpack.c.l.b16 %v1566
    %v1633 = vunpack.c.h.b16 %v1566
    %v1634 = vunpack.c.l.b16 %v1567
    %v1635 = vunpack.c.h.b16 %v1567
    %v1636 = vunpack.c.l.b16 %v1568
    %v1637 = vunpack.c.h.b16 %v1568
    %v1638 = vunpack.c.l.b16 %v1569
    %v1639 = vunpack.c.h.b16 %v1569
    %v1640 = vunpack.c.l.b16 %v1570
    %v1641 = vunpack.c.h.b16 %v1570
    %v1642 = vunpack.c.l.b16 %v1571
    %v1643 = vunpack.c.h.b16 %v1571
    %v1644 = vunpack.c.l.b16 %v1572
    %v1645 = vunpack.c.h.b16 %v1572
    %v1646 = vunpack.c.l.b16 %v1573
    %v1647 = vunpack.c.h.b16 %v1573
    %v1648 = vunpack.c.l.b16 %v1574
    %v1649 = vunpack.c.h.b16 %v1574
    %v1650 = vunpack.c.l.b16 %v1575
    %v1651 = vunpack.c.h.b16 %v1575
    %v1652 = vunpack.c.l.b16 %v1576
    %v1653 = vunpack.c.h.b16 %v1576
    %v1654 = vunpack.c.l.b16 %v1577
    %v1655 = vunpack.c.h.b16 %v1577
    %v1656 = vunpack.c.l.b16 %v1578
    %v1657 = vunpack.c.h.b16 %v1578
    %v1658 = vunpack.c.l.b16 %v1579
    %v1659 = vunpack.c.h.b16 %v1579
    %v1660 = vunpack.c.l.b16 %v1580
    %v1661 = vunpack.c.h.b16 %v1580
    %v1662 = vunpack.c.l.b16 %v1581
    %v1663 = vunpack.c.h.b16 %v1581
    %v1664 = vunpack.c.l.b16 %v1582
    %v1665 = vunpack.c.h.b16 %v1582
    %v1666 = vunpack.c.l.b16 %v1583
    %v1667 = vunpack.c.h.b16 %v1583
    %v1668 = vunpack.c.l.b16 %v1584
    %v1669 = vunpack.c.h.b16 %v1584
    %v1670 = vunpack.c.l.b16 %v1585
    %v1671 = vunpack.c.h.b16 %v1585
    %v1672 = vunpack.c.l.b16 %v1586
    %v1673 = vunpack.c.h.b16 %v1586
    %v1674 = vunpack.c.l.b16 %v1587
    %v1675 = vunpack.c.h.b16 %v1587
    %v1676 = vunpack.c.l.b16 %v1588
    %v1677 = vunpack.c.h.b16 %v1588
    %v1678 = vunpack.c.l.b16 %v1589
    %v1679 = vunpack.c.h.b16 %v1589
    %v1680 = vunpack.c.l.b16 %v1590
    %v1681 = vunpack.c.h.b16 %v1590
    %v1682 = vunpack.c.l.b16 %v1591
    %v1683 = vunpack.c.h.b16 %v1591
    %v1684 = vunpack.c.l.b16 %v1592
    %v1685 = vunpack.c.h.b16 %v1592
    %v1686 = vunpack.c.l.b16 %v1593
    %v1687 = vunpack.c.h.b16 %v1593
    %v1688 = vunpack.c.l.b16 %v1594
    %v1689 = vunpack.c.h.b16 %v1594
    %v1690 = vunpack.c.l.b16 %v1595
    %v1691 = vunpack.c.h.b16 %v1595
    %v1692 = vpack.c.b16 %v1632, %v1628
    %v1693 = vpack.c.b16 %v1633, %v1629
    %v1694 = vpack.c.b16 %v1634, %v1630
    %v1695 = vpack.c.b16 %v1635, %v1631
    %v1696 = vpack.c.b16 %v1640, %v1636
    %v1697 = vpack.c.b16 %v1641, %v1637
    %v1698 = vpack.c.b16 %v1642, %v1638
    %v1699 = vpack.c.b16 %v1643, %v1639
    %v1700 = vpack.c.b16 %v1648, %v1644
    %v1701 = vpack.c.b16 %v1649, %v1645
    %v1702 = vpack.c.b16 %v1650, %v1646
    %v1703 = vpack.c.b16 %v1651, %v1647
    %v1704 = vpack.c.b16 %v1656, %v1652
    %v1705 = vpack.c.b16 %v1657, %v1653
    %v1706 = vpack.c.b16 %v1658, %v1654
    %v1707 = vpack.c.b16 %v1659, %v1655
    %v1708 = vpack.c.b16 %v1664, %v1660
    %v1709 = vpack.c.b16 %v1665, %v1661
    %v1710 = vpack.c.b16 %v1666, %v1662
    %v1711 = vpack.c.b16 %v1667, %v1663
    %v1712 = vpack.c.b16 %v1672, %v1668
    %v1713 = vpack.c.b16 %v1673, %v1669
    %v1714 = vpack.c.b16 %v1674, %v1670
    %v1715 = vpack.c.b16 %v1675, %v1671
    %v1716 = vpack.c.b16 %v1680, %v1676
    %v1717 = vpack.c.b16 %v1681, %v1677
    %v1718 = vpack.c.b16 %v1682, %v1678
    %v1719 = vpack.c.b16 %v1683, %v1679
    %v1720 = vpack.c.b16 %v1688, %v1684
    %v1721 = vpack.c.b16 %v1689, %v1685
    %v1722 = vpack.c.b16 %v1690, %v1686
    %v1723 = vpack.c.b16 %v1691, %v1687
    %1756 = vmatprep.subr.bf16.mxu0 %v1721
    %1757 = vmatpush1.bf16.msra.mxu0 %v1720
    %1758 = vmatprep.subr.bf16.mxu0 %v1717
    %1759 = vmatpush1.bf16.msra.mxu0 %v1716
    %1760 = vmatprep.subr.bf16.mxu0 %v1713
    %1761 = vmatpush1.bf16.msra.mxu0 %v1712
    %1762 = vmatprep.subr.bf16.mxu0 %v1709
    %1763 = vmatpush1.bf16.msra.mxu0 %v1708
    %1764 = vmatprep.subr.bf16.mxu0 %v1705
    %1765 = vmatpush1.bf16.msra.mxu0 %v1704
    %1766 = vmatprep.subr.bf16.mxu0 %v1701
    %1767 = vmatpush1.bf16.msra.mxu0 %v1700
    %1768 = vmatprep.subr.bf16.mxu0 %v1697
    %1769 = vmatpush1.bf16.msra.mxu0 %v1696
    %1770 = vmatprep.subr.bf16.mxu0 %v1693
    %1771 = vmatpush1.bf16.msra.mxu0 %v1692
    %1772 = vmatprep.subr.bf16.mxu0 0
    %1773 = vmatpush2.bf16.msra.mxu0 0
    %1774 = vmatprep.subr.bf16.mxu0 0
    %1775 = vmatpush2.bf16.msra.mxu0 0
    %1776 = vmatprep.subr.bf16.mxu0 0
    %1777 = vmatpush2.bf16.msra.mxu0 0
    %1778 = vmatprep.subr.bf16.mxu0 0
    %1779 = vmatpush2.bf16.msra.mxu0 0
    %1780 = vmatprep.subr.bf16.mxu0 0
    %1781 = vmatpush2.bf16.msra.mxu0 0
    %1782 = vmatprep.subr.bf16.mxu0 0
    %1783 = vmatpush2.bf16.msra.mxu0 0
    %1784 = vmatprep.subr.bf16.mxu0 0
    %1785 = vmatpush2.bf16.msra.mxu0 0
    %1786 = vmatprep.subr.bf16.mxu0 0
    %1787 = vmatpush2.bf16.msra.mxu0 0
    %1788 = vmatprep.mubr.bf16.mxu0 0
    %1789 = vmatmul.mubr.bf16.gmra.mxu0 %v1560
    %v1790 = vpop.f32.mrf.mxu0
    %v1791 = vadd.f32 0.0, %v1790
    %v1792 = vpop.f32.mrf.mxu0
    %v1793 = vadd.f32 0.0, %v1792
    %v1794 = vpop.f32.mrf.mxu0
    %v1795 = vadd.f32 0.0, %v1794
    %v1796 = vpop.f32.mrf.mxu0
    %v1797 = vadd.f32 0.0, %v1796
    %1798 = vmatprep.mubr.bf16.mxu0 0
    %1799 = vmatmul.mubr.bf16.gmra.mxu0 %v1561
    %v1800 = vpop.f32.mrf.mxu0
    %v1801 = vadd.f32 0.0, %v1800
    %v1802 = vpop.f32.mrf.mxu0
    %v1803 = vadd.f32 0.0, %v1802
    %v1804 = vpop.f32.mrf.mxu0
    %v1805 = vadd.f32 0.0, %v1804
    %v1806 = vpop.f32.mrf.mxu0
    %v1807 = vadd.f32 0.0, %v1806
    %1808 = vmatprep.mubr.bf16.mxu0 0
    %1809 = vmatmul.mubr.bf16.gmra.mxu0 %v1562
    %v1810 = vpop.f32.mrf.mxu0
    %v1811 = vadd.f32 0.0, %v1810
    %v1812 = vpop.f32.mrf.mxu0
    %v1813 = vadd.f32 0.0, %v1812
    %v1814 = vpop.f32.mrf.mxu0
    %v1815 = vadd.f32 0.0, %v1814
    %v1816 = vpop.f32.mrf.mxu0
    %v1817 = vadd.f32 0.0, %v1816
    %1818 = vmatprep.mubr.bf16.mxu0 0
    %1819 = vmatmul.mubr.bf16.gmra.mxu0 %v1563
    %v1820 = vpop.f32.mrf.mxu0
    %v1821 = vadd.f32 0.0, %v1820
    %v1822 = vpop.f32.mrf.mxu0
    %v1823 = vadd.f32 0.0, %v1822
    %v1824 = vpop.f32.mrf.mxu0
    %v1825 = vadd.f32 0.0, %v1824
    %v1826 = vpop.f32.mrf.mxu0
    %v1827 = vadd.f32 0.0, %v1826
    %1828 = vdwg.mxu0
    %1829 = vmatprep.subr.bf16.mxu0 %v1723
    %1830 = vmatpush1.bf16.msra.mxu0 %v1722
    %1831 = vmatprep.subr.bf16.mxu0 %v1719
    %1832 = vmatpush1.bf16.msra.mxu0 %v1718
    %1833 = vmatprep.subr.bf16.mxu0 %v1715
    %1834 = vmatpush1.bf16.msra.mxu0 %v1714
    %1835 = vmatprep.subr.bf16.mxu0 %v1711
    %1836 = vmatpush1.bf16.msra.mxu0 %v1710
    %1837 = vmatprep.subr.bf16.mxu0 %v1707
    %1838 = vmatpush1.bf16.msra.mxu0 %v1706
    %1839 = vmatprep.subr.bf16.mxu0 %v1703
    %1840 = vmatpush1.bf16.msra.mxu0 %v1702
    %1841 = vmatprep.subr.bf16.mxu0 %v1699
    %1842 = vmatpush1.bf16.msra.mxu0 %v1698
    %1843 = vmatprep.subr.bf16.mxu0 %v1695
    %1844 = vmatpush1.bf16.msra.mxu0 %v1694
    %1845 = vmatprep.subr.bf16.mxu0 0
    %1846 = vmatpush2.bf16.msra.mxu0 0
    %1847 = vmatprep.subr.bf16.mxu0 0
    %1848 = vmatpush2.bf16.msra.mxu0 0
    %1849 = vmatprep.subr.bf16.mxu0 0
    %1850 = vmatpush2.bf16.msra.mxu0 0
    %1851 = vmatprep.subr.bf16.mxu0 0
    %1852 = vmatpush2.bf16.msra.mxu0 0
    %1853 = vmatprep.subr.bf16.mxu0 0
    %1854 = vmatpush2.bf16.msra.mxu0 0
    %1855 = vmatprep.subr.bf16.mxu0 0
    %1856 = vmatpush2.bf16.msra.mxu0 0
    %1857 = vmatprep.subr.bf16.mxu0 0
    %1858 = vmatpush2.bf16.msra.mxu0 0
    %1859 = vmatprep.subr.bf16.mxu0 0
    %1860 = vmatpush2.bf16.msra.mxu0 0
    %1861 = vmatprep.mubr.bf16.mxu0 0
    %1862 = vmatmul.mubr.bf16.gmra.mxu0 %v1560
    %v1863 = vpop.f32.mrf.mxu0
    %v1864 = vadd.f32 0.0, %v1863
    %v1865 = vpop.f32.mrf.mxu0
    %v1866 = vadd.f32 0.0, %v1865
    %v1867 = vpop.f32.mrf.mxu0
    %v1868 = vadd.f32 0.0, %v1867
    %v1869 = vpop.f32.mrf.mxu0
    %v1870 = vadd.f32 0.0, %v1869
    %1871 = vmatprep.mubr.bf16.mxu0 0
    %1872 = vmatmul.mubr.bf16.gmra.mxu0 %v1561
    %v1873 = vpop.f32.mrf.mxu0
    %v1874 = vadd.f32 0.0, %v1873
    %v1875 = vpop.f32.mrf.mxu0
    %v1876 = vadd.f32 0.0, %v1875
    %v1877 = vpop.f32.mrf.mxu0
    %v1878 = vadd.f32 0.0, %v1877
    %v1879 = vpop.f32.mrf.mxu0
    %v1880 = vadd.f32 0.0, %v1879
    %1881 = vmatprep.mubr.bf16.mxu0 0
    %1882 = vmatmul.mubr.bf16.gmra.mxu0 %v1562
    %v1883 = vpop.f32.mrf.mxu0
    %v1884 = vadd.f32 0.0, %v1883
    %v1885 = vpop.f32.mrf.mxu0
    %v1886 = vadd.f32 0.0, %v1885
    %v1887 = vpop.f32.mrf.mxu0
    %v1888 = vadd.f32 0.0, %v1887
    %v1889 = vpop.f32.mrf.mxu0
    %v1890 = vadd.f32 0.0, %v1889
    %1891 = vmatprep.mubr.bf16.mxu0 0
    %1892 = vmatmul.mubr.bf16.gmra.mxu0 %v1563
    %v1893 = vpop.f32.mrf.mxu0
    %v1894 = vadd.f32 0.0, %v1893
    %v1895 = vpop.f32.mrf.mxu0
    %v1896 = vadd.f32 0.0, %v1895
    %v1897 = vpop.f32.mrf.mxu0
    %v1898 = vadd.f32 0.0, %v1897
    %v1899 = vpop.f32.mrf.mxu0
    %v1900 = vadd.f32 0.0, %v1899
    %1901 = vdwg.mxu0
    %s1902 = scalar_lea.vmem %s4, 4
    %v1903 = vld [vmem:[%s1902] sm:$0xf]
    %v1905 = vlaneseq
    %v1906 = vshrl.u32 %v1905, 7
    %v1907 = vsub.s32 0, %v1906
    %v1908 = vrot.slane %v1903, %v1907
    %v1909 = vlaneseq
    %v1910 = vshrl.u32 %v1909, 7
    %v1911 = vsub.s32 1, %v1910
    %v1912 = vrot.slane %v1903, %v1911
    %v1913 = vlaneseq
    %v1914 = vshrl.u32 %v1913, 7
    %v1915 = vsub.s32 2, %v1914
    %v1916 = vrot.slane %v1903, %v1915
    %v1917 = vlaneseq
    %v1918 = vshrl.u32 %v1917, 7
    %v1919 = vsub.s32 3, %v1918
    %v1920 = vrot.slane %v1903, %v1919
    %v1925 = vadd.f32 %v1791, %v1908
    %v1926 = vadd.f32 %v1793, %v1912
    %v1927 = vadd.f32 %v1864, %v1916
    %v1928 = vadd.f32 %v1866, %v1920
    %v1929 = vadd.f32 %v1795, %v1908
    %v1930 = vadd.f32 %v1797, %v1912
    %v1931 = vadd.f32 %v1868, %v1916
    %v1932 = vadd.f32 %v1870, %v1920
    %v1933 = vadd.f32 %v1801, %v1908
    %v1934 = vadd.f32 %v1803, %v1912
    %v1935 = vadd.f32 %v1874, %v1916
    %v1936 = vadd.f32 %v1876, %v1920
    %v1937 = vadd.f32 %v1805, %v1908
    %v1938 = vadd.f32 %v1807, %v1912
    %v1939 = vadd.f32 %v1878, %v1916
    %v1940 = vadd.f32 %v1880, %v1920
    %v1941 = vadd.f32 %v1811, %v1908
    %v1942 = vadd.f32 %v1813, %v1912
    %v1943 = vadd.f32 %v1884, %v1916
    %v1944 = vadd.f32 %v1886, %v1920
    %v1945 = vadd.f32 %v1815, %v1908
    %v1946 = vadd.f32 %v1817, %v1912
    %v1947 = vadd.f32 %v1888, %v1916
    %v1948 = vadd.f32 %v1890, %v1920
    %v1949 = vadd.f32 %v1821, %v1908
    %v1950 = vadd.f32 %v1823, %v1912
    %v1951 = vadd.f32 %v1894, %v1916
    %v1952 = vadd.f32 %v1896, %v1920
    %v1953 = vadd.f32 %v1825, %v1908
    %v1954 = vadd.f32 %v1827, %v1912
    %v1955 = vadd.f32 %v1898, %v1916
    %v1956 = vadd.f32 %v1900, %v1920
    %1957 = vst [vmem:[#allocation2] sm:$0xff] %v1925
    %1958 = vst [vmem:[#allocation2 + $0x8] sm:$0xff] %v1926
    %1959 = vst [vmem:[#allocation2 + $0x10] sm:$0xff] %v1927
    %1960 = vst [vmem:[#allocation2 + $0x18] sm:$0xff] %v1928
    %1961 = vst [vmem:[#allocation2 + $0x20] sm:$0xff] %v1929
    %1962 = vst [vmem:[#allocation2 + $0x28] sm:$0xff] %v1930
    %1963 = vst [vmem:[#allocation2 + $0x30] sm:$0xff] %v1931
    %1964 = vst [vmem:[#allocation2 + $0x38] sm:$0xff] %v1932
    %1965 = vst [vmem:[#allocation2 + $0x40] sm:$0xff] %v1933
    %1966 = vst [vmem:[#allocation2 + $0x48] sm:$0xff] %v1934
    %1967 = vst [vmem:[#allocation2 + $0x50] sm:$0xff] %v1935
    %1968 = vst [vmem:[#allocation2 + $0x58] sm:$0xff] %v1936
    %1969 = vst [vmem:[#allocation2 + $0x60] sm:$0xff] %v1937
    %1970 = vst [vmem:[#allocation2 + $0x68] sm:$0xff] %v1938
    %1971 = vst [vmem:[#allocation2 + $0x70] sm:$0xff] %v1939
    %1972 = vst [vmem:[#allocation2 + $0x78] sm:$0xff] %v1940
    %1973 = vst [vmem:[#allocation2 + $0x80] sm:$0xff] %v1941
    %1974 = vst [vmem:[#allocation2 + $0x88] sm:$0xff] %v1942
    %1975 = vst [vmem:[#allocation2 + $0x90] sm:$0xff] %v1943
    %1976 = vst [vmem:[#allocation2 + $0x98] sm:$0xff] %v1944
    %1977 = vst [vmem:[#allocation2 + $0xa0] sm:$0xff] %v1945
    %1978 = vst [vmem:[#allocation2 + $0xa8] sm:$0xff] %v1946
    %1979 = vst [vmem:[#allocation2 + $0xb0] sm:$0xff] %v1947
    %1980 = vst [vmem:[#allocation2 + $0xb8] sm:$0xff] %v1948
    %1981 = vst [vmem:[#allocation2 + $0xc0] sm:$0xff] %v1949
    %1982 = vst [vmem:[#allocation2 + $0xc8] sm:$0xff] %v1950
    %1983 = vst [vmem:[#allocation2 + $0xd0] sm:$0xff] %v1951
    %1984 = vst [vmem:[#allocation2 + $0xd8] sm:$0xff] %v1952
    %1985 = vst [vmem:[#allocation2 + $0xe0] sm:$0xff] %v1953
    %1986 = vst [vmem:[#allocation2 + $0xe8] sm:$0xff] %v1954
    %1987 = vst [vmem:[#allocation2 + $0xf0] sm:$0xff] %v1955
    %1988 = vst [vmem:[#allocation2 + $0xf8] sm:$0xff] %v1956
    %s1989 = scalar_lea.vmem [#allocation3], 256
    %v1990 = vld [vmem:[%s1989] sm:$0xff]
    %v1991 = vld [vmem:[%s1989 + $0x8] sm:$0xff]
    %v1992 = vld [vmem:[%s1989 + $0x10] sm:$0xff]
    %v1993 = vld [vmem:[%s1989 + $0x18] sm:$0xff]
    %v1994 = vld [vmem:[%s1989 + $0x20] sm:$0xff]
    %v1995 = vld [vmem:[%s1989 + $0x28] sm:$0xff]
    %v1996 = vld [vmem:[%s1989 + $0x30] sm:$0xff]
    %v1997 = vld [vmem:[%s1989 + $0x38] sm:$0xff]
    %v1998 = vld [vmem:[%s1989 + $0x40] sm:$0xff]
    %v1999 = vld [vmem:[%s1989 + $0x48] sm:$0xff]
    %v2000 = vld [vmem:[%s1989 + $0x50] sm:$0xff]
    %v2001 = vld [vmem:[%s1989 + $0x58] sm:$0xff]
    %v2002 = vld [vmem:[%s1989 + $0x60] sm:$0xff]
    %v2003 = vld [vmem:[%s1989 + $0x68] sm:$0xff]
    %v2004 = vld [vmem:[%s1989 + $0x70] sm:$0xff]
    %v2005 = vld [vmem:[%s1989 + $0x78] sm:$0xff]
    %v2006 = vld [vmem:[%s1989 + $0x80] sm:$0xff]
    %v2007 = vld [vmem:[%s1989 + $0x88] sm:$0xff]
    %v2008 = vld [vmem:[%s1989 + $0x90] sm:$0xff]
    %v2009 = vld [vmem:[%s1989 + $0x98] sm:$0xff]
    %v2010 = vld [vmem:[%s1989 + $0xa0] sm:$0xff]
    %v2011 = vld [vmem:[%s1989 + $0xa8] sm:$0xff]
    %v2012 = vld [vmem:[%s1989 + $0xb0] sm:$0xff]
    %v2013 = vld [vmem:[%s1989 + $0xb8] sm:$0xff]
    %v2014 = vld [vmem:[%s1989 + $0xc0] sm:$0xff]
    %v2015 = vld [vmem:[%s1989 + $0xc8] sm:$0xff]
    %v2016 = vld [vmem:[%s1989 + $0xd0] sm:$0xff]
    %v2017 = vld [vmem:[%s1989 + $0xd8] sm:$0xff]
    %v2018 = vld [vmem:[%s1989 + $0xe0] sm:$0xff]
    %v2019 = vld [vmem:[%s1989 + $0xe8] sm:$0xff]
    %v2020 = vld [vmem:[%s1989 + $0xf0] sm:$0xff]
    %v2021 = vld [vmem:[%s1989 + $0xf8] sm:$0xff]
    %s2022 = scalar_lea.vmem %s5, 8
    %v2023 = vld [vmem:[%s2022] sm:$0xff]
    %s2024 = scalar_lea.vmem %s6, 8
    %v2025 = vld [vmem:[%s2024] sm:$0xff]
    %v2026 = vld [vmem:[#allocation2] sm:$0xff]
    %v2027 = vld [vmem:[#allocation2 + $0x8] sm:$0xff]
    %v2028 = vld [vmem:[#allocation2 + $0x10] sm:$0xff]
    %v2029 = vld [vmem:[#allocation2 + $0x18] sm:$0xff]
    %v2030 = vpack.c.bf16 %v2023, %v2023
    %v2063 = vunpack.c.l.b16 %v1990
    %v2064 = vunpack.c.h.b16 %v1990
    %v2065 = vunpack.c.l.b16 %v1991
    %v2066 = vunpack.c.h.b16 %v1991
    %v2067 = vunpack.c.l.b16 %v1992
    %v2068 = vunpack.c.h.b16 %v1992
    %v2069 = vunpack.c.l.b16 %v1993
    %v2070 = vunpack.c.h.b16 %v1993
    %v2071 = vunpack.c.l.b16 %v1994
    %v2072 = vunpack.c.h.b16 %v1994
    %v2073 = vunpack.c.l.b16 %v1995
    %v2074 = vunpack.c.h.b16 %v1995
    %v2075 = vunpack.c.l.b16 %v1996
    %v2076 = vunpack.c.h.b16 %v1996
    %v2077 = vunpack.c.l.b16 %v1997
    %v2078 = vunpack.c.h.b16 %v1997
    %v2079 = vunpack.c.l.b16 %v1998
    %v2080 = vunpack.c.h.b16 %v1998
    %v2081 = vunpack.c.l.b16 %v1999
    %v2082 = vunpack.c.h.b16 %v1999
    %v2083 = vunpack.c.l.b16 %v2000
    %v2084 = vunpack.c.h.b16 %v2000
    %v2085 = vunpack.c.l.b16 %v2001
    %v2086 = vunpack.c.h.b16 %v2001
    %v2087 = vunpack.c.l.b16 %v2002
    %v2088 = vunpack.c.h.b16 %v2002
    %v2089 = vunpack.c.l.b16 %v2003
    %v2090 = vunpack.c.h.b16 %v2003
    %v2091 = vunpack.c.l.b16 %v2004
    %v2092 = vunpack.c.h.b16 %v2004
    %v2093 = vunpack.c.l.b16 %v2005
    %v2094 = vunpack.c.h.b16 %v2005
    %v2095 = vunpack.c.l.b16 %v2006
    %v2096 = vunpack.c.h.b16 %v2006
    %v2097 = vunpack.c.l.b16 %v2007
    %v2098 = vunpack.c.h.b16 %v2007
    %v2099 = vunpack.c.l.b16 %v2008
    %v2100 = vunpack.c.h.b16 %v2008
    %v2101 = vunpack.c.l.b16 %v2009
    %v2102 = vunpack.c.h.b16 %v2009
    %v2103 = vunpack.c.l.b16 %v2010
    %v2104 = vunpack.c.h.b16 %v2010
    %v2105 = vunpack.c.l.b16 %v2011
    %v2106 = vunpack.c.h.b16 %v2011
    %v2107 = vunpack.c.l.b16 %v2012
    %v2108 = vunpack.c.h.b16 %v2012
    %v2109 = vunpack.c.l.b16 %v2013
    %v2110 = vunpack.c.h.b16 %v2013
    %v2111 = vunpack.c.l.b16 %v2014
    %v2112 = vunpack.c.h.b16 %v2014
    %v2113 = vunpack.c.l.b16 %v2015
    %v2114 = vunpack.c.h.b16 %v2015
    %v2115 = vunpack.c.l.b16 %v2016
    %v2116 = vunpack.c.h.b16 %v2016
    %v2117 = vunpack.c.l.b16 %v2017
    %v2118 = vunpack.c.h.b16 %v2017
    %v2119 = vunpack.c.l.b16 %v2018
    %v2120 = vunpack.c.h.b16 %v2018
    %v2121 = vunpack.c.l.b16 %v2019
    %v2122 = vunpack.c.h.b16 %v2019
    %v2123 = vunpack.c.l.b16 %v2020
    %v2124 = vunpack.c.h.b16 %v2020
    %v2125 = vunpack.c.l.b16 %v2021
    %v2126 = vunpack.c.h.b16 %v2021
    %v2127 = vpack.c.b16 %v2067, %v2063
    %v2128 = vpack.c.b16 %v2068, %v2064
    %v2129 = vpack.c.b16 %v2069, %v2065
    %v2130 = vpack.c.b16 %v2070, %v2066
    %v2131 = vpack.c.b16 %v2075, %v2071
    %v2132 = vpack.c.b16 %v2076, %v2072
    %v2133 = vpack.c.b16 %v2077, %v2073
    %v2134 = vpack.c.b16 %v2078, %v2074
    %v2135 = vpack.c.b16 %v2083, %v2079
    %v2136 = vpack.c.b16 %v2084, %v2080
    %v2137 = vpack.c.b16 %v2085, %v2081
    %v2138 = vpack.c.b16 %v2086, %v2082
    %v2139 = vpack.c.b16 %v2091, %v2087
    %v2140 = vpack.c.b16 %v2092, %v2088
    %v2141 = vpack.c.b16 %v2093, %v2089
    %v2142 = vpack.c.b16 %v2094, %v2090
    %v2143 = vpack.c.b16 %v2099, %v2095
    %v2144 = vpack.c.b16 %v2100, %v2096
    %v2145 = vpack.c.b16 %v2101, %v2097
    %v2146 = vpack.c.b16 %v2102, %v2098
    %v2147 = vpack.c.b16 %v2107, %v2103
    %v2148 = vpack.c.b16 %v2108, %v2104
    %v2149 = vpack.c.b16 %v2109, %v2105
    %v2150 = vpack.c.b16 %v2110, %v2106
    %v2151 = vpack.c.b16 %v2115, %v2111
    %v2152 = vpack.c.b16 %v2116, %v2112
    %v2153 = vpack.c.b16 %v2117, %v2113
    %v2154 = vpack.c.b16 %v2118, %v2114
    %v2155 = vpack.c.b16 %v2123, %v2119
    %v2156 = vpack.c.b16 %v2124, %v2120
    %v2157 = vpack.c.b16 %v2125, %v2121
    %v2158 = vpack.c.b16 %v2126, %v2122
    %2191 = vmatprep.subr.bf16.mxu0 %v2156
    %2192 = vmatpush1.bf16.msra.mxu0 %v2155
    %2193 = vmatprep.subr.bf16.mxu0 %v2152
    %2194 = vmatpush1.bf16.msra.mxu0 %v2151
    %2195 = vmatprep.subr.bf16.mxu0 %v2148
    %2196 = vmatpush1.bf16.msra.mxu0 %v2147
    %2197 = vmatprep.subr.bf16.mxu0 %v2144
    %2198 = vmatpush1.bf16.msra.mxu0 %v2143
    %2199 = vmatprep.subr.bf16.mxu0 %v2140
    %2200 = vmatpush1.bf16.msra.mxu0 %v2139
    %2201 = vmatprep.subr.bf16.mxu0 %v2136
    %2202 = vmatpush1.bf16.msra.mxu0 %v2135
    %2203 = vmatprep.subr.bf16.mxu0 %v2132
    %2204 = vmatpush1.bf16.msra.mxu0 %v2131
    %2205 = vmatprep.subr.bf16.mxu0 %v2128
    %2206 = vmatpush1.bf16.msra.mxu0 %v2127
    %2207 = vmatprep.subr.bf16.mxu0 0
    %2208 = vmatpush2.bf16.msra.mxu0 0
    %2209 = vmatprep.subr.bf16.mxu0 0
    %2210 = vmatpush2.bf16.msra.mxu0 0
    %2211 = vmatprep.subr.bf16.mxu0 0
    %2212 = vmatpush2.bf16.msra.mxu0 0
    %2213 = vmatprep.subr.bf16.mxu0 0
    %2214 = vmatpush2.bf16.msra.mxu0 0
    %2215 = vmatprep.subr.bf16.mxu0 0
    %2216 = vmatpush2.bf16.msra.mxu0 0
    %2217 = vmatprep.subr.bf16.mxu0 0
    %2218 = vmatpush2.bf16.msra.mxu0 0
    %2219 = vmatprep.subr.bf16.mxu0 0
    %2220 = vmatpush2.bf16.msra.mxu0 0
    %2221 = vmatprep.subr.bf16.mxu0 0
    %2222 = vmatpush2.bf16.msra.mxu0 0
    %2223 = vmatprep.mubr.bf16.mxu0 0
    %2224 = vmatmul.mubr.bf16.gmra.mxu0 %v2030
    %v2225 = vpop.f32.mrf.mxu0
    %v2226 = vadd.f32 0.0, %v2225
    %v2227 = vpop.f32.mrf.mxu0
    %v2228 = vadd.f32 0.0, %v2227
    %v2229 = vpop.f32.mrf.mxu0
    %v2230 = vpop.f32.mrf.mxu0
    %2231 = vdwg.mxu0
    %2232 = vmatprep.subr.bf16.mxu0 %v2158
    %2233 = vmatpush1.bf16.msra.mxu0 %v2157
    %2234 = vmatprep.subr.bf16.mxu0 %v2154
    %2235 = vmatpush1.bf16.msra.mxu0 %v2153
    %2236 = vmatprep.subr.bf16.mxu0 %v2150
    %2237 = vmatpush1.bf16.msra.mxu0 %v2149
    %2238 = vmatprep.subr.bf16.mxu0 %v2146
    %2239 = vmatpush1.bf16.msra.mxu0 %v2145
    %2240 = vmatprep.subr.bf16.mxu0 %v2142
    %2241 = vmatpush1.bf16.msra.mxu0 %v2141
    %2242 = vmatprep.subr.bf16.mxu0 %v2138
    %2243 = vmatpush1.bf16.msra.mxu0 %v2137
    %2244 = vmatprep.subr.bf16.mxu0 %v2134
    %2245 = vmatpush1.bf16.msra.mxu0 %v2133
    %2246 = vmatprep.subr.bf16.mxu0 %v2130
    %2247 = vmatpush1.bf16.msra.mxu0 %v2129
    %2248 = vmatprep.subr.bf16.mxu0 0
    %2249 = vmatpush2.bf16.msra.mxu0 0
    %2250 = vmatprep.subr.bf16.mxu0 0
    %2251 = vmatpush2.bf16.msra.mxu0 0
    %2252 = vmatprep.subr.bf16.mxu0 0
    %2253 = vmatpush2.bf16.msra.mxu0 0
    %2254 = vmatprep.subr.bf16.mxu0 0
    %2255 = vmatpush2.bf16.msra.mxu0 0
    %2256 = vmatprep.subr.bf16.mxu0 0
    %2257 = vmatpush2.bf16.msra.mxu0 0
    %2258 = vmatprep.subr.bf16.mxu0 0
    %2259 = vmatpush2.bf16.msra.mxu0 0
    %2260 = vmatprep.subr.bf16.mxu0 0
    %2261 = vmatpush2.bf16.msra.mxu0 0
    %2262 = vmatprep.subr.bf16.mxu0 0
    %2263 = vmatpush2.bf16.msra.mxu0 0
    %2264 = vmatprep.mubr.bf16.mxu0 0
    %2265 = vmatmul.mubr.bf16.gmra.mxu0 %v2030
    %v2266 = vpop.f32.mrf.mxu0
    %v2267 = vadd.f32 0.0, %v2266
    %v2268 = vpop.f32.mrf.mxu0
    %v2269 = vadd.f32 0.0, %v2268
    %v2270 = vpop.f32.mrf.mxu0
    %v2271 = vpop.f32.mrf.mxu0
    %2272 = vdwg.mxu0
    %v2273 = vadd.f32 %v2026, %v2226
    %v2274 = vadd.f32 %v2027, %v2228
    %v2275 = vadd.f32 %v2028, %v2267
    %v2276 = vadd.f32 %v2029, %v2269
    %v2277 = vxor.u32 %v2273, 2147483648
    %v2278 = vmul.f32 %v2277, 1.442695
    %v2279 = vpow.pop %v2278
    %v2280 = vadd.f32 %v2279, 1.0
    %v2281 = vrcp.pop %v2280
    %v2282 = vmul.f32 1.0, %v2281
    %v2283 = vxor.u32 %v2274, 2147483648
    %v2284 = vmul.f32 %v2283, 1.442695
    %v2285 = vpow.pop %v2284
    %v2286 = vadd.f32 %v2285, 1.0
    %v2287 = vrcp.pop %v2286
    %v2288 = vmul.f32 1.0, %v2287
    %v2289 = vtanh.pop %v2275
    %v2290 = vxor.u32 %v2276, 2147483648
    %v2291 = vmul.f32 %v2290, 1.442695
    %v2292 = vpow.pop %v2291
    %v2293 = vadd.f32 %v2292, 1.0
    %v2294 = vrcp.pop %v2293
    %v2295 = vmul.f32 1.0, %v2294
    %v2296 = vmul.f32 %v2288, %v2025
    %v2297 = vmul.f32 %v2282, %v2289
    %v2298 = vadd.f32 %v2296, %v2297
    %v2299 = vtanh.pop %v2298
    %v2300 = vmul.f32 %v2295, %v2299
    %2301 = vst [vmem:[#allocation6] sm:$0xff] %v2300
    %v2302 = vld [vmem:[%s724] sm:$0xff]
    %v2303 = vld [vmem:[%s724 + $0x8] sm:$0xff]
    %v2304 = vld [vmem:[%s724 + $0x10] sm:$0xff]
    %v2305 = vld [vmem:[%s724 + $0x18] sm:$0xff]
    %v2306 = vpack.c.bf16 %v2300, %v2300
    %2307 = vmatprep.subr.bf16.mxu0 %v2156
    %2308 = vmatpush1.bf16.msra.mxu0 %v2155
    %2309 = vmatprep.subr.bf16.mxu0 %v2152
    %2310 = vmatpush1.bf16.msra.mxu0 %v2151
    %2311 = vmatprep.subr.bf16.mxu0 %v2148
    %2312 = vmatpush1.bf16.msra.mxu0 %v2147
    %2313 = vmatprep.subr.bf16.mxu0 %v2144
    %2314 = vmatpush1.bf16.msra.mxu0 %v2143
    %2315 = vmatprep.subr.bf16.mxu0 %v2140
    %2316 = vmatpush1.bf16.msra.mxu0 %v2139
    %2317 = vmatprep.subr.bf16.mxu0 %v2136
    %2318 = vmatpush1.bf16.msra.mxu0 %v2135
    %2319 = vmatprep.subr.bf16.mxu0 %v2132
    %2320 = vmatpush1.bf16.msra.mxu0 %v2131
    %2321 = vmatprep.subr.bf16.mxu0 %v2128
    %2322 = vmatpush1.bf16.msra.mxu0 %v2127
    %2323 = vmatprep.subr.bf16.mxu0 0
    %2324 = vmatpush2.bf16.msra.mxu0 0
    %2325 = vmatprep.subr.bf16.mxu0 0
    %2326 = vmatpush2.bf16.msra.mxu0 0
    %2327 = vmatprep.subr.bf16.mxu0 0
    %2328 = vmatpush2.bf16.msra.mxu0 0
    %2329 = vmatprep.subr.bf16.mxu0 0
    %2330 = vmatpush2.bf16.msra.mxu0 0
    %2331 = vmatprep.subr.bf16.mxu0 0
    %2332 = vmatpush2.bf16.msra.mxu0 0
    %2333 = vmatprep.subr.bf16.mxu0 0
    %2334 = vmatpush2.bf16.msra.mxu0 0
    %2335 = vmatprep.subr.bf16.mxu0 0
    %2336 = vmatpush2.bf16.msra.mxu0 0
    %2337 = vmatprep.subr.bf16.mxu0 0
    %2338 = vmatpush2.bf16.msra.mxu0 0
    %2339 = vmatprep.mubr.bf16.mxu0 0
    %2340 = vmatmul.mubr.bf16.gmra.mxu0 %v2306
    %v2341 = vpop.f32.mrf.mxu0
    %v2342 = vadd.f32 0.0, %v2341
    %v2343 = vpop.f32.mrf.mxu0
    %v2344 = vadd.f32 0.0, %v2343
    %v2345 = vpop.f32.mrf.mxu0
    %v2346 = vpop.f32.mrf.mxu0
    %2347 = vdwg.mxu0
    %2348 = vmatprep.subr.bf16.mxu0 %v2158
    %2349 = vmatpush1.bf16.msra.mxu0 %v2157
    %2350 = vmatprep.subr.bf16.mxu0 %v2154
    %2351 = vmatpush1.bf16.msra.mxu0 %v2153
    %2352 = vmatprep.subr.bf16.mxu0 %v2150
    %2353 = vmatpush1.bf16.msra.mxu0 %v2149
    %2354 = vmatprep.subr.bf16.mxu0 %v2146
    %2355 = vmatpush1.bf16.msra.mxu0 %v2145
    %2356 = vmatprep.subr.bf16.mxu0 %v2142
    %2357 = vmatpush1.bf16.msra.mxu0 %v2141
    %2358 = vmatprep.subr.bf16.mxu0 %v2138
    %2359 = vmatpush1.bf16.msra.mxu0 %v2137
    %2360 = vmatprep.subr.bf16.mxu0 %v2134
    %2361 = vmatpush1.bf16.msra.mxu0 %v2133
    %2362 = vmatprep.subr.bf16.mxu0 %v2130
    %2363 = vmatpush1.bf16.msra.mxu0 %v2129
    %2364 = vmatprep.subr.bf16.mxu0 0
    %2365 = vmatpush2.bf16.msra.mxu0 0
    %2366 = vmatprep.subr.bf16.mxu0 0
    %2367 = vmatpush2.bf16.msra.mxu0 0
    %2368 = vmatprep.subr.bf16.mxu0 0
    %2369 = vmatpush2.bf16.msra.mxu0 0
    %2370 = vmatprep.subr.bf16.mxu0 0
    %2371 = vmatpush2.bf16.msra.mxu0 0
    %2372 = vmatprep.subr.bf16.mxu0 0
    %2373 = vmatpush2.bf16.msra.mxu0 0
    %2374 = vmatprep.subr.bf16.mxu0 0
    %2375 = vmatpush2.bf16.msra.mxu0 0
    %2376 = vmatprep.subr.bf16.mxu0 0
    %2377 = vmatpush2.bf16.msra.mxu0 0
    %2378 = vmatprep.subr.bf16.mxu0 0
    %2379 = vmatpush2.bf16.msra.mxu0 0
    %2380 = vmatprep.mubr.bf16.mxu0 0
    %2381 = vmatmul.mubr.bf16.gmra.mxu0 %v2306
    %v2382 = vpop.f32.mrf.mxu0
    %v2383 = vadd.f32 0.0, %v2382
    %v2384 = vpop.f32.mrf.mxu0
    %v2385 = vadd.f32 0.0, %v2384
    %v2386 = vpop.f32.mrf.mxu0
    %v2387 = vpop.f32.mrf.mxu0
    %2388 = vdwg.mxu0
    %v2389 = vadd.f32 %v2302, %v2342
    %v2390 = vadd.f32 %v2303, %v2344
    %v2391 = vadd.f32 %v2304, %v2383
    %v2392 = vadd.f32 %v2305, %v2385
    %v2393 = vxor.u32 %v2389, 2147483648
    %v2394 = vmul.f32 %v2393, 1.442695
    %v2395 = vpow.pop %v2394
    %v2396 = vadd.f32 %v2395, 1.0
    %v2397 = vrcp.pop %v2396
    %v2398 = vmul.f32 1.0, %v2397
    %v2399 = vxor.u32 %v2390, 2147483648
    %v2400 = vmul.f32 %v2399, 1.442695
    %v2401 = vpow.pop %v2400
    %v2402 = vadd.f32 %v2401, 1.0
    %v2403 = vrcp.pop %v2402
    %v2404 = vmul.f32 1.0, %v2403
    %v2405 = vtanh.pop %v2391
    %v2406 = vxor.u32 %v2392, 2147483648
    %v2407 = vmul.f32 %v2406, 1.442695
    %v2408 = vpow.pop %v2407
    %v2409 = vadd.f32 %v2408, 1.0
    %v2410 = vrcp.pop %v2409
    %v2411 = vmul.f32 1.0, %v2410
    %v2412 = vmul.f32 %v2404, %v2298
    %v2413 = vmul.f32 %v2398, %v2405
    %v2414 = vadd.f32 %v2412, %v2413
    %v2415 = vtanh.pop %v2414
    %v2416 = vmul.f32 %v2411, %v2415
    %2417 = vst [vmem:[%s840] sm:$0xff] %v2416
    %v2418 = vld [vmem:[%s842] sm:$0xff]
    %v2419 = vld [vmem:[%s842 + $0x8] sm:$0xff]
    %v2420 = vld [vmem:[%s842 + $0x10] sm:$0xff]
    %v2421 = vld [vmem:[%s842 + $0x18] sm:$0xff]
    %v2422 = vpack.c.bf16 %v2416, %v2416
    %2423 = vmatprep.subr.bf16.mxu0 %v2156
    %2424 = vmatpush1.bf16.msra.mxu0 %v2155
    %2425 = vmatprep.subr.bf16.mxu0 %v2152
    %2426 = vmatpush1.bf16.msra.mxu0 %v2151
    %2427 = vmatprep.subr.bf16.mxu0 %v2148
    %2428 = vmatpush1.bf16.msra.mxu0 %v2147
    %2429 = vmatprep.subr.bf16.mxu0 %v2144
    %2430 = vmatpush1.bf16.msra.mxu0 %v2143
    %2431 = vmatprep.subr.bf16.mxu0 %v2140
    %2432 = vmatpush1.bf16.msra.mxu0 %v2139
    %2433 = vmatprep.subr.bf16.mxu0 %v2136
    %2434 = vmatpush1.bf16.msra.mxu0 %v2135
    %2435 = vmatprep.subr.bf16.mxu0 %v2132
    %2436 = vmatpush1.bf16.msra.mxu0 %v2131
    %2437 = vmatprep.subr.bf16.mxu0 %v2128
    %2438 = vmatpush1.bf16.msra.mxu0 %v2127
    %2439 = vmatprep.subr.bf16.mxu0 0
    %2440 = vmatpush2.bf16.msra.mxu0 0
    %2441 = vmatprep.subr.bf16.mxu0 0
    %2442 = vmatpush2.bf16.msra.mxu0 0
    %2443 = vmatprep.subr.bf16.mxu0 0
    %2444 = vmatpush2.bf16.msra.mxu0 0
    %2445 = vmatprep.subr.bf16.mxu0 0
    %2446 = vmatpush2.bf16.msra.mxu0 0
    %2447 = vmatprep.subr.bf16.mxu0 0
    %2448 = vmatpush2.bf16.msra.mxu0 0
    %2449 = vmatprep.subr.bf16.mxu0 0
    %2450 = vmatpush2.bf16.msra.mxu0 0
    %2451 = vmatprep.subr.bf16.mxu0 0
    %2452 = vmatpush2.bf16.msra.mxu0 0
    %2453 = vmatprep.subr.bf16.mxu0 0
    %2454 = vmatpush2.bf16.msra.mxu0 0
    %2455 = vmatprep.mubr.bf16.mxu0 0
    %2456 = vmatmul.mubr.bf16.gmra.mxu0 %v2422
    %v2457 = vpop.f32.mrf.mxu0
    %v2458 = vadd.f32 0.0, %v2457
    %v2459 = vpop.f32.mrf.mxu0
    %v2460 = vadd.f32 0.0, %v2459
    %v2461 = vpop.f32.mrf.mxu0
    %v2462 = vpop.f32.mrf.mxu0
    %2463 = vdwg.mxu0
    %2464 = vmatprep.subr.bf16.mxu0 %v2158
    %2465 = vmatpush1.bf16.msra.mxu0 %v2157
    %2466 = vmatprep.subr.bf16.mxu0 %v2154
    %2467 = vmatpush1.bf16.msra.mxu0 %v2153
    %2468 = vmatprep.subr.bf16.mxu0 %v2150
    %2469 = vmatpush1.bf16.msra.mxu0 %v2149
    %2470 = vmatprep.subr.bf16.mxu0 %v2146
    %2471 = vmatpush1.bf16.msra.mxu0 %v2145
    %2472 = vmatprep.subr.bf16.mxu0 %v2142
    %2473 = vmatpush1.bf16.msra.mxu0 %v2141
    %2474 = vmatprep.subr.bf16.mxu0 %v2138
    %2475 = vmatpush1.bf16.msra.mxu0 %v2137
    %2476 = vmatprep.subr.bf16.mxu0 %v2134
    %2477 = vmatpush1.bf16.msra.mxu0 %v2133
    %2478 = vmatprep.subr.bf16.mxu0 %v2130
    %2479 = vmatpush1.bf16.msra.mxu0 %v2129
    %2480 = vmatprep.subr.bf16.mxu0 0
    %2481 = vmatpush2.bf16.msra.mxu0 0
    %2482 = vmatprep.subr.bf16.mxu0 0
    %2483 = vmatpush2.bf16.msra.mxu0 0
    %2484 = vmatprep.subr.bf16.mxu0 0
    %2485 = vmatpush2.bf16.msra.mxu0 0
    %2486 = vmatprep.subr.bf16.mxu0 0
    %2487 = vmatpush2.bf16.msra.mxu0 0
    %2488 = vmatprep.subr.bf16.mxu0 0
    %2489 = vmatpush2.bf16.msra.mxu0 0
    %2490 = vmatprep.subr.bf16.mxu0 0
    %2491 = vmatpush2.bf16.msra.mxu0 0
    %2492 = vmatprep.subr.bf16.mxu0 0
    %2493 = vmatpush2.bf16.msra.mxu0 0
    %2494 = vmatprep.subr.bf16.mxu0 0
    %2495 = vmatpush2.bf16.msra.mxu0 0
    %2496 = vmatprep.mubr.bf16.mxu0 0
    %2497 = vmatmul.mubr.bf16.gmra.mxu0 %v2422
    %v2498 = vpop.f32.mrf.mxu0
    %v2499 = vadd.f32 0.0, %v2498
    %v2500 = vpop.f32.mrf.mxu0
    %v2501 = vadd.f32 0.0, %v2500
    %v2502 = vpop.f32.mrf.mxu0
    %v2503 = vpop.f32.mrf.mxu0
    %2504 = vdwg.mxu0
    %v2505 = vadd.f32 %v2418, %v2458
    %v2506 = vadd.f32 %v2419, %v2460
    %v2507 = vadd.f32 %v2420, %v2499
    %v2508 = vadd.f32 %v2421, %v2501
    %v2509 = vxor.u32 %v2505, 2147483648
    %v2510 = vmul.f32 %v2509, 1.442695
    %v2511 = vpow.pop %v2510
    %v2512 = vadd.f32 %v2511, 1.0
    %v2513 = vrcp.pop %v2512
    %v2514 = vmul.f32 1.0, %v2513
    %v2515 = vxor.u32 %v2506, 2147483648
    %v2516 = vmul.f32 %v2515, 1.442695
    %v2517 = vpow.pop %v2516
    %v2518 = vadd.f32 %v2517, 1.0
    %v2519 = vrcp.pop %v2518
    %v2520 = vmul.f32 1.0, %v2519
    %v2521 = vtanh.pop %v2507
    %v2522 = vxor.u32 %v2508, 2147483648
    %v2523 = vmul.f32 %v2522, 1.442695
    %v2524 = vpow.pop %v2523
    %v2525 = vadd.f32 %v2524, 1.0
    %v2526 = vrcp.pop %v2525
    %v2527 = vmul.f32 1.0, %v2526
    %v2528 = vmul.f32 %v2520, %v2414
    %v2529 = vmul.f32 %v2514, %v2521
    %v2530 = vadd.f32 %v2528, %v2529
    %v2531 = vtanh.pop %v2530
    %v2532 = vmul.f32 %v2527, %v2531
    %2533 = vst [vmem:[%s958] sm:$0xff] %v2532
    %v2534 = vld [vmem:[%s960] sm:$0xff]
    %v2535 = vld [vmem:[%s960 + $0x8] sm:$0xff]
    %v2536 = vld [vmem:[%s960 + $0x10] sm:$0xff]
    %v2537 = vld [vmem:[%s960 + $0x18] sm:$0xff]
    %v2538 = vpack.c.bf16 %v2532, %v2532
    %2539 = vmatprep.subr.bf16.mxu0 %v2156
    %2540 = vmatpush1.bf16.msra.mxu0 %v2155
    %2541 = vmatprep.subr.bf16.mxu0 %v2152
    %2542 = vmatpush1.bf16.msra.mxu0 %v2151
    %2543 = vmatprep.subr.bf16.mxu0 %v2148
    %2544 = vmatpush1.bf16.msra.mxu0 %v2147
    %2545 = vmatprep.subr.bf16.mxu0 %v2144
    %2546 = vmatpush1.bf16.msra.mxu0 %v2143
    %2547 = vmatprep.subr.bf16.mxu0 %v2140
    %2548 = vmatpush1.bf16.msra.mxu0 %v2139
    %2549 = vmatprep.subr.bf16.mxu0 %v2136
    %2550 = vmatpush1.bf16.msra.mxu0 %v2135
    %2551 = vmatprep.subr.bf16.mxu0 %v2132
    %2552 = vmatpush1.bf16.msra.mxu0 %v2131
    %2553 = vmatprep.subr.bf16.mxu0 %v2128
    %2554 = vmatpush1.bf16.msra.mxu0 %v2127
    %2555 = vmatprep.subr.bf16.mxu0 0
    %2556 = vmatpush2.bf16.msra.mxu0 0
    %2557 = vmatprep.subr.bf16.mxu0 0
    %2558 = vmatpush2.bf16.msra.mxu0 0
    %2559 = vmatprep.subr.bf16.mxu0 0
    %2560 = vmatpush2.bf16.msra.mxu0 0
    %2561 = vmatprep.subr.bf16.mxu0 0
    %2562 = vmatpush2.bf16.msra.mxu0 0
    %2563 = vmatprep.subr.bf16.mxu0 0
    %2564 = vmatpush2.bf16.msra.mxu0 0
    %2565 = vmatprep.subr.bf16.mxu0 0
    %2566 = vmatpush2.bf16.msra.mxu0 0
    %2567 = vmatprep.subr.bf16.mxu0 0
    %2568 = vmatpush2.bf16.msra.mxu0 0
    %2569 = vmatprep.subr.bf16.mxu0 0
    %2570 = vmatpush2.bf16.msra.mxu0 0
    %2571 = vmatprep.mubr.bf16.mxu0 0
    %2572 = vmatmul.mubr.bf16.gmra.mxu0 %v2538
    %v2573 = vpop.f32.mrf.mxu0
    %v2574 = vadd.f32 0.0, %v2573
    %v2575 = vpop.f32.mrf.mxu0
    %v2576 = vadd.f32 0.0, %v2575
    %v2577 = vpop.f32.mrf.mxu0
    %v2578 = vpop.f32.mrf.mxu0
    %2579 = vdwg.mxu0
    %2580 = vmatprep.subr.bf16.mxu0 %v2158
    %2581 = vmatpush1.bf16.msra.mxu0 %v2157
    %2582 = vmatprep.subr.bf16.mxu0 %v2154
    %2583 = vmatpush1.bf16.msra.mxu0 %v2153
    %2584 = vmatprep.subr.bf16.mxu0 %v2150
    %2585 = vmatpush1.bf16.msra.mxu0 %v2149
    %2586 = vmatprep.subr.bf16.mxu0 %v2146
    %2587 = vmatpush1.bf16.msra.mxu0 %v2145
    %2588 = vmatprep.subr.bf16.mxu0 %v2142
    %2589 = vmatpush1.bf16.msra.mxu0 %v2141
    %2590 = vmatprep.subr.bf16.mxu0 %v2138
    %2591 = vmatpush1.bf16.msra.mxu0 %v2137
    %2592 = vmatprep.subr.bf16.mxu0 %v2134
    %2593 = vmatpush1.bf16.msra.mxu0 %v2133
    %2594 = vmatprep.subr.bf16.mxu0 %v2130
    %2595 = vmatpush1.bf16.msra.mxu0 %v2129
    %2596 = vmatprep.subr.bf16.mxu0 0
    %2597 = vmatpush2.bf16.msra.mxu0 0
    %2598 = vmatprep.subr.bf16.mxu0 0
    %2599 = vmatpush2.bf16.msra.mxu0 0
    %2600 = vmatprep.subr.bf16.mxu0 0
    %2601 = vmatpush2.bf16.msra.mxu0 0
    %2602 = vmatprep.subr.bf16.mxu0 0
    %2603 = vmatpush2.bf16.msra.mxu0 0
    %2604 = vmatprep.subr.bf16.mxu0 0
    %2605 = vmatpush2.bf16.msra.mxu0 0
    %2606 = vmatprep.subr.bf16.mxu0 0
    %2607 = vmatpush2.bf16.msra.mxu0 0
    %2608 = vmatprep.subr.bf16.mxu0 0
    %2609 = vmatpush2.bf16.msra.mxu0 0
    %2610 = vmatprep.subr.bf16.mxu0 0
    %2611 = vmatpush2.bf16.msra.mxu0 0
    %2612 = vmatprep.mubr.bf16.mxu0 0
    %2613 = vmatmul.mubr.bf16.gmra.mxu0 %v2538
    %v2614 = vpop.f32.mrf.mxu0
    %v2615 = vadd.f32 0.0, %v2614
    %v2616 = vpop.f32.mrf.mxu0
    %v2617 = vadd.f32 0.0, %v2616
    %v2618 = vpop.f32.mrf.mxu0
    %v2619 = vpop.f32.mrf.mxu0
    %2620 = vdwg.mxu0
    %v2621 = vadd.f32 %v2534, %v2574
    %v2622 = vadd.f32 %v2535, %v2576
    %v2623 = vadd.f32 %v2536, %v2615
    %v2624 = vadd.f32 %v2537, %v2617
    %v2625 = vxor.u32 %v2621, 2147483648
    %v2626 = vmul.f32 %v2625, 1.442695
    %v2627 = vpow.pop %v2626
    %v2628 = vadd.f32 %v2627, 1.0
    %v2629 = vrcp.pop %v2628
    %v2630 = vmul.f32 1.0, %v2629
    %v2631 = vxor.u32 %v2622, 2147483648
    %v2632 = vmul.f32 %v2631, 1.442695
    %v2633 = vpow.pop %v2632
    %v2634 = vadd.f32 %v2633, 1.0
    %v2635 = vrcp.pop %v2634
    %v2636 = vmul.f32 1.0, %v2635
    %v2637 = vtanh.pop %v2623
    %v2638 = vxor.u32 %v2624, 2147483648
    %v2639 = vmul.f32 %v2638, 1.442695
    %v2640 = vpow.pop %v2639
    %v2641 = vadd.f32 %v2640, 1.0
    %v2642 = vrcp.pop %v2641
    %v2643 = vmul.f32 1.0, %v2642
    %v2644 = vmul.f32 %v2636, %v2530
    %v2645 = vmul.f32 %v2630, %v2637
    %v2646 = vadd.f32 %v2644, %v2645
    %v2647 = vtanh.pop %v2646
    %v2648 = vmul.f32 %v2643, %v2647
    %2649 = vst [vmem:[%s1076] sm:$0xff] %v2648
    %v2650 = vld [vmem:[%s1078] sm:$0xff]
    %v2651 = vld [vmem:[%s1078 + $0x8] sm:$0xff]
    %v2652 = vld [vmem:[%s1078 + $0x10] sm:$0xff]
    %v2653 = vld [vmem:[%s1078 + $0x18] sm:$0xff]
    %v2654 = vpack.c.bf16 %v2648, %v2648
    %2655 = vmatprep.subr.bf16.mxu0 %v2156
    %2656 = vmatpush1.bf16.msra.mxu0 %v2155
    %2657 = vmatprep.subr.bf16.mxu0 %v2152
    %2658 = vmatpush1.bf16.msra.mxu0 %v2151
    %2659 = vmatprep.subr.bf16.mxu0 %v2148
    %2660 = vmatpush1.bf16.msra.mxu0 %v2147
    %2661 = vmatprep.subr.bf16.mxu0 %v2144
    %2662 = vmatpush1.bf16.msra.mxu0 %v2143
    %2663 = vmatprep.subr.bf16.mxu0 %v2140
    %2664 = vmatpush1.bf16.msra.mxu0 %v2139
    %2665 = vmatprep.subr.bf16.mxu0 %v2136
    %2666 = vmatpush1.bf16.msra.mxu0 %v2135
    %2667 = vmatprep.subr.bf16.mxu0 %v2132
    %2668 = vmatpush1.bf16.msra.mxu0 %v2131
    %2669 = vmatprep.subr.bf16.mxu0 %v2128
    %2670 = vmatpush1.bf16.msra.mxu0 %v2127
    %2671 = vmatprep.subr.bf16.mxu0 0
    %2672 = vmatpush2.bf16.msra.mxu0 0
    %2673 = vmatprep.subr.bf16.mxu0 0
    %2674 = vmatpush2.bf16.msra.mxu0 0
    %2675 = vmatprep.subr.bf16.mxu0 0
    %2676 = vmatpush2.bf16.msra.mxu0 0
    %2677 = vmatprep.subr.bf16.mxu0 0
    %2678 = vmatpush2.bf16.msra.mxu0 0
    %2679 = vmatprep.subr.bf16.mxu0 0
    %2680 = vmatpush2.bf16.msra.mxu0 0
    %2681 = vmatprep.subr.bf16.mxu0 0
    %2682 = vmatpush2.bf16.msra.mxu0 0
    %2683 = vmatprep.subr.bf16.mxu0 0
    %2684 = vmatpush2.bf16.msra.mxu0 0
    %2685 = vmatprep.subr.bf16.mxu0 0
    %2686 = vmatpush2.bf16.msra.mxu0 0
    %2687 = vmatprep.mubr.bf16.mxu0 0
    %2688 = vmatmul.mubr.bf16.gmra.mxu0 %v2654
    %v2689 = vpop.f32.mrf.mxu0
    %v2690 = vadd.f32 0.0, %v2689
    %v2691 = vpop.f32.mrf.mxu0
    %v2692 = vadd.f32 0.0, %v2691
    %v2693 = vpop.f32.mrf.mxu0
    %v2694 = vpop.f32.mrf.mxu0
    %2695 = vdwg.mxu0
    %2696 = vmatprep.subr.bf16.mxu0 %v2158
    %2697 = vmatpush1.bf16.msra.mxu0 %v2157
    %2698 = vmatprep.subr.bf16.mxu0 %v2154
    %2699 = vmatpush1.bf16.msra.mxu0 %v2153
    %2700 = vmatprep.subr.bf16.mxu0 %v2150
    %2701 = vmatpush1.bf16.msra.mxu0 %v2149
    %2702 = vmatprep.subr.bf16.mxu0 %v2146
    %2703 = vmatpush1.bf16.msra.mxu0 %v2145
    %2704 = vmatprep.subr.bf16.mxu0 %v2142
    %2705 = vmatpush1.bf16.msra.mxu0 %v2141
    %2706 = vmatprep.subr.bf16.mxu0 %v2138
    %2707 = vmatpush1.bf16.msra.mxu0 %v2137
    %2708 = vmatprep.subr.bf16.mxu0 %v2134
    %2709 = vmatpush1.bf16.msra.mxu0 %v2133
    %2710 = vmatprep.subr.bf16.mxu0 %v2130
    %2711 = vmatpush1.bf16.msra.mxu0 %v2129
    %2712 = vmatprep.subr.bf16.mxu0 0
    %2713 = vmatpush2.bf16.msra.mxu0 0
    %2714 = vmatprep.subr.bf16.mxu0 0
    %2715 = vmatpush2.bf16.msra.mxu0 0
    %2716 = vmatprep.subr.bf16.mxu0 0
    %2717 = vmatpush2.bf16.msra.mxu0 0
    %2718 = vmatprep.subr.bf16.mxu0 0
    %2719 = vmatpush2.bf16.msra.mxu0 0
    %2720 = vmatprep.subr.bf16.mxu0 0
    %2721 = vmatpush2.bf16.msra.mxu0 0
    %2722 = vmatprep.subr.bf16.mxu0 0
    %2723 = vmatpush2.bf16.msra.mxu0 0
    %2724 = vmatprep.subr.bf16.mxu0 0
    %2725 = vmatpush2.bf16.msra.mxu0 0
    %2726 = vmatprep.subr.bf16.mxu0 0
    %2727 = vmatpush2.bf16.msra.mxu0 0
    %2728 = vmatprep.mubr.bf16.mxu0 0
    %2729 = vmatmul.mubr.bf16.gmra.mxu0 %v2654
    %v2730 = vpop.f32.mrf.mxu0
    %v2731 = vadd.f32 0.0, %v2730
    %v2732 = vpop.f32.mrf.mxu0
    %v2733 = vadd.f32 0.0, %v2732
    %v2734 = vpop.f32.mrf.mxu0
    %v2735 = vpop.f32.mrf.mxu0
    %2736 = vdwg.mxu0
    %v2737 = vadd.f32 %v2650, %v2690
    %v2738 = vadd.f32 %v2651, %v2692
    %v2739 = vadd.f32 %v2652, %v2731
    %v2740 = vadd.f32 %v2653, %v2733
    %v2741 = vxor.u32 %v2737, 2147483648
    %v2742 = vmul.f32 %v2741, 1.442695
    %v2743 = vpow.pop %v2742
    %v2744 = vadd.f32 %v2743, 1.0
    %v2745 = vrcp.pop %v2744
    %v2746 = vmul.f32 1.0, %v2745
    %v2747 = vxor.u32 %v2738, 2147483648
    %v2748 = vmul.f32 %v2747, 1.442695
    %v2749 = vpow.pop %v2748
    %v2750 = vadd.f32 %v2749, 1.0
    %v2751 = vrcp.pop %v2750
    %v2752 = vmul.f32 1.0, %v2751
    %v2753 = vtanh.pop %v2739
    %v2754 = vxor.u32 %v2740, 2147483648
    %v2755 = vmul.f32 %v2754, 1.442695
    %v2756 = vpow.pop %v2755
    %v2757 = vadd.f32 %v2756, 1.0
    %v2758 = vrcp.pop %v2757
    %v2759 = vmul.f32 1.0, %v2758
    %v2760 = vmul.f32 %v2752, %v2646
    %v2761 = vmul.f32 %v2746, %v2753
    %v2762 = vadd.f32 %v2760, %v2761
    %v2763 = vtanh.pop %v2762
    %v2764 = vmul.f32 %v2759, %v2763
    %2765 = vst [vmem:[%s1194] sm:$0xff] %v2764
    %v2766 = vld [vmem:[%s1196] sm:$0xff]
    %v2767 = vld [vmem:[%s1196 + $0x8] sm:$0xff]
    %v2768 = vld [vmem:[%s1196 + $0x10] sm:$0xff]
    %v2769 = vld [vmem:[%s1196 + $0x18] sm:$0xff]
    %v2770 = vpack.c.bf16 %v2764, %v2764
    %2771 = vmatprep.subr.bf16.mxu0 %v2156
    %2772 = vmatpush1.bf16.msra.mxu0 %v2155
    %2773 = vmatprep.subr.bf16.mxu0 %v2152
    %2774 = vmatpush1.bf16.msra.mxu0 %v2151
    %2775 = vmatprep.subr.bf16.mxu0 %v2148
    %2776 = vmatpush1.bf16.msra.mxu0 %v2147
    %2777 = vmatprep.subr.bf16.mxu0 %v2144
    %2778 = vmatpush1.bf16.msra.mxu0 %v2143
    %2779 = vmatprep.subr.bf16.mxu0 %v2140
    %2780 = vmatpush1.bf16.msra.mxu0 %v2139
    %2781 = vmatprep.subr.bf16.mxu0 %v2136
    %2782 = vmatpush1.bf16.msra.mxu0 %v2135
    %2783 = vmatprep.subr.bf16.mxu0 %v2132
    %2784 = vmatpush1.bf16.msra.mxu0 %v2131
    %2785 = vmatprep.subr.bf16.mxu0 %v2128
    %2786 = vmatpush1.bf16.msra.mxu0 %v2127
    %2787 = vmatprep.subr.bf16.mxu0 0
    %2788 = vmatpush2.bf16.msra.mxu0 0
    %2789 = vmatprep.subr.bf16.mxu0 0
    %2790 = vmatpush2.bf16.msra.mxu0 0
    %2791 = vmatprep.subr.bf16.mxu0 0
    %2792 = vmatpush2.bf16.msra.mxu0 0
    %2793 = vmatprep.subr.bf16.mxu0 0
    %2794 = vmatpush2.bf16.msra.mxu0 0
    %2795 = vmatprep.subr.bf16.mxu0 0
    %2796 = vmatpush2.bf16.msra.mxu0 0
    %2797 = vmatprep.subr.bf16.mxu0 0
    %2798 = vmatpush2.bf16.msra.mxu0 0
    %2799 = vmatprep.subr.bf16.mxu0 0
    %2800 = vmatpush2.bf16.msra.mxu0 0
    %2801 = vmatprep.subr.bf16.mxu0 0
    %2802 = vmatpush2.bf16.msra.mxu0 0
    %2803 = vmatprep.mubr.bf16.mxu0 0
    %2804 = vmatmul.mubr.bf16.gmra.mxu0 %v2770
    %v2805 = vpop.f32.mrf.mxu0
    %v2806 = vadd.f32 0.0, %v2805
    %v2807 = vpop.f32.mrf.mxu0
    %v2808 = vadd.f32 0.0, %v2807
    %v2809 = vpop.f32.mrf.mxu0
    %v2810 = vpop.f32.mrf.mxu0
    %2811 = vdwg.mxu0
    %2812 = vmatprep.subr.bf16.mxu0 %v2158
    %2813 = vmatpush1.bf16.msra.mxu0 %v2157
    %2814 = vmatprep.subr.bf16.mxu0 %v2154
    %2815 = vmatpush1.bf16.msra.mxu0 %v2153
    %2816 = vmatprep.subr.bf16.mxu0 %v2150
    %2817 = vmatpush1.bf16.msra.mxu0 %v2149
    %2818 = vmatprep.subr.bf16.mxu0 %v2146
    %2819 = vmatpush1.bf16.msra.mxu0 %v2145
    %2820 = vmatprep.subr.bf16.mxu0 %v2142
    %2821 = vmatpush1.bf16.msra.mxu0 %v2141
    %2822 = vmatprep.subr.bf16.mxu0 %v2138
    %2823 = vmatpush1.bf16.msra.mxu0 %v2137
    %2824 = vmatprep.subr.bf16.mxu0 %v2134
    %2825 = vmatpush1.bf16.msra.mxu0 %v2133
    %2826 = vmatprep.subr.bf16.mxu0 %v2130
    %2827 = vmatpush1.bf16.msra.mxu0 %v2129
    %2828 = vmatprep.subr.bf16.mxu0 0
    %2829 = vmatpush2.bf16.msra.mxu0 0
    %2830 = vmatprep.subr.bf16.mxu0 0
    %2831 = vmatpush2.bf16.msra.mxu0 0
    %2832 = vmatprep.subr.bf16.mxu0 0
    %2833 = vmatpush2.bf16.msra.mxu0 0
    %2834 = vmatprep.subr.bf16.mxu0 0
    %2835 = vmatpush2.bf16.msra.mxu0 0
    %2836 = vmatprep.subr.bf16.mxu0 0
    %2837 = vmatpush2.bf16.msra.mxu0 0
    %2838 = vmatprep.subr.bf16.mxu0 0
    %2839 = vmatpush2.bf16.msra.mxu0 0
    %2840 = vmatprep.subr.bf16.mxu0 0
    %2841 = vmatpush2.bf16.msra.mxu0 0
    %2842 = vmatprep.subr.bf16.mxu0 0
    %2843 = vmatpush2.bf16.msra.mxu0 0
    %2844 = vmatprep.mubr.bf16.mxu0 0
    %2845 = vmatmul.mubr.bf16.gmra.mxu0 %v2770
    %v2846 = vpop.f32.mrf.mxu0
    %v2847 = vadd.f32 0.0, %v2846
    %v2848 = vpop.f32.mrf.mxu0
    %v2849 = vadd.f32 0.0, %v2848
    %v2850 = vpop.f32.mrf.mxu0
    %v2851 = vpop.f32.mrf.mxu0
    %2852 = vdwg.mxu0
    %v2853 = vadd.f32 %v2766, %v2806
    %v2854 = vadd.f32 %v2767, %v2808
    %v2855 = vadd.f32 %v2768, %v2847
    %v2856 = vadd.f32 %v2769, %v2849
    %v2857 = vxor.u32 %v2853, 2147483648
    %v2858 = vmul.f32 %v2857, 1.442695
    %v2859 = vpow.pop %v2858
    %v2860 = vadd.f32 %v2859, 1.0
    %v2861 = vrcp.pop %v2860
    %v2862 = vmul.f32 1.0, %v2861
    %v2863 = vxor.u32 %v2854, 2147483648
    %v2864 = vmul.f32 %v2863, 1.442695
    %v2865 = vpow.pop %v2864
    %v2866 = vadd.f32 %v2865, 1.0
    %v2867 = vrcp.pop %v2866
    %v2868 = vmul.f32 1.0, %v2867
    %v2869 = vtanh.pop %v2855
    %v2870 = vxor.u32 %v2856, 2147483648
    %v2871 = vmul.f32 %v2870, 1.442695
    %v2872 = vpow.pop %v2871
    %v2873 = vadd.f32 %v2872, 1.0
    %v2874 = vrcp.pop %v2873
    %v2875 = vmul.f32 1.0, %v2874
    %v2876 = vmul.f32 %v2868, %v2762
    %v2877 = vmul.f32 %v2862, %v2869
    %v2878 = vadd.f32 %v2876, %v2877
    %v2879 = vtanh.pop %v2878
    %v2880 = vmul.f32 %v2875, %v2879
    %2881 = vst [vmem:[%s1312] sm:$0xff] %v2880
    %v2882 = vld [vmem:[%s1314] sm:$0xff]
    %v2883 = vld [vmem:[%s1314 + $0x8] sm:$0xff]
    %v2884 = vld [vmem:[%s1314 + $0x10] sm:$0xff]
    %v2885 = vld [vmem:[%s1314 + $0x18] sm:$0xff]
    %v2886 = vpack.c.bf16 %v2880, %v2880
    %2887 = vmatprep.subr.bf16.mxu0 %v2156
    %2888 = vmatpush1.bf16.msra.mxu0 %v2155
    %2889 = vmatprep.subr.bf16.mxu0 %v2152
    %2890 = vmatpush1.bf16.msra.mxu0 %v2151
    %2891 = vmatprep.subr.bf16.mxu0 %v2148
    %2892 = vmatpush1.bf16.msra.mxu0 %v2147
    %2893 = vmatprep.subr.bf16.mxu0 %v2144
    %2894 = vmatpush1.bf16.msra.mxu0 %v2143
    %2895 = vmatprep.subr.bf16.mxu0 %v2140
    %2896 = vmatpush1.bf16.msra.mxu0 %v2139
    %2897 = vmatprep.subr.bf16.mxu0 %v2136
    %2898 = vmatpush1.bf16.msra.mxu0 %v2135
    %2899 = vmatprep.subr.bf16.mxu0 %v2132
    %2900 = vmatpush1.bf16.msra.mxu0 %v2131
    %2901 = vmatprep.subr.bf16.mxu0 %v2128
    %2902 = vmatpush1.bf16.msra.mxu0 %v2127
    %2903 = vmatprep.subr.bf16.mxu0 0
    %2904 = vmatpush2.bf16.msra.mxu0 0
    %2905 = vmatprep.subr.bf16.mxu0 0
    %2906 = vmatpush2.bf16.msra.mxu0 0
    %2907 = vmatprep.subr.bf16.mxu0 0
    %2908 = vmatpush2.bf16.msra.mxu0 0
    %2909 = vmatprep.subr.bf16.mxu0 0
    %2910 = vmatpush2.bf16.msra.mxu0 0
    %2911 = vmatprep.subr.bf16.mxu0 0
    %2912 = vmatpush2.bf16.msra.mxu0 0
    %2913 = vmatprep.subr.bf16.mxu0 0
    %2914 = vmatpush2.bf16.msra.mxu0 0
    %2915 = vmatprep.subr.bf16.mxu0 0
    %2916 = vmatpush2.bf16.msra.mxu0 0
    %2917 = vmatprep.subr.bf16.mxu0 0
    %2918 = vmatpush2.bf16.msra.mxu0 0
    %2919 = vmatprep.mubr.bf16.mxu0 0
    %2920 = vmatmul.mubr.bf16.gmra.mxu0 %v2886
    %v2921 = vpop.f32.mrf.mxu0
    %v2922 = vadd.f32 0.0, %v2921
    %v2923 = vpop.f32.mrf.mxu0
    %v2924 = vadd.f32 0.0, %v2923
    %v2925 = vpop.f32.mrf.mxu0
    %v2926 = vpop.f32.mrf.mxu0
    %2927 = vdwg.mxu0
    %2928 = vmatprep.subr.bf16.mxu0 %v2158
    %2929 = vmatpush1.bf16.msra.mxu0 %v2157
    %2930 = vmatprep.subr.bf16.mxu0 %v2154
    %2931 = vmatpush1.bf16.msra.mxu0 %v2153
    %2932 = vmatprep.subr.bf16.mxu0 %v2150
    %2933 = vmatpush1.bf16.msra.mxu0 %v2149
    %2934 = vmatprep.subr.bf16.mxu0 %v2146
    %2935 = vmatpush1.bf16.msra.mxu0 %v2145
    %2936 = vmatprep.subr.bf16.mxu0 %v2142
    %2937 = vmatpush1.bf16.msra.mxu0 %v2141
    %2938 = vmatprep.subr.bf16.mxu0 %v2138
    %2939 = vmatpush1.bf16.msra.mxu0 %v2137
    %2940 = vmatprep.subr.bf16.mxu0 %v2134
    %2941 = vmatpush1.bf16.msra.mxu0 %v2133
    %2942 = vmatprep.subr.bf16.mxu0 %v2130
    %2943 = vmatpush1.bf16.msra.mxu0 %v2129
    %2944 = vmatprep.subr.bf16.mxu0 0
    %2945 = vmatpush2.bf16.msra.mxu0 0
    %2946 = vmatprep.subr.bf16.mxu0 0
    %2947 = vmatpush2.bf16.msra.mxu0 0
    %2948 = vmatprep.subr.bf16.mxu0 0
    %2949 = vmatpush2.bf16.msra.mxu0 0
    %2950 = vmatprep.subr.bf16.mxu0 0
    %2951 = vmatpush2.bf16.msra.mxu0 0
    %2952 = vmatprep.subr.bf16.mxu0 0
    %2953 = vmatpush2.bf16.msra.mxu0 0
    %2954 = vmatprep.subr.bf16.mxu0 0
    %2955 = vmatpush2.bf16.msra.mxu0 0
    %2956 = vmatprep.subr.bf16.mxu0 0
    %2957 = vmatpush2.bf16.msra.mxu0 0
    %2958 = vmatprep.subr.bf16.mxu0 0
    %2959 = vmatpush2.bf16.msra.mxu0 0
    %2960 = vmatprep.mubr.bf16.mxu0 0
    %2961 = vmatmul.mubr.bf16.gmra.mxu0 %v2886
    %v2962 = vpop.f32.mrf.mxu0
    %v2963 = vadd.f32 0.0, %v2962
    %v2964 = vpop.f32.mrf.mxu0
    %v2965 = vadd.f32 0.0, %v2964
    %v2966 = vpop.f32.mrf.mxu0
    %v2967 = vpop.f32.mrf.mxu0
    %2968 = vdwg.mxu0
    %v2969 = vadd.f32 %v2882, %v2922
    %v2970 = vadd.f32 %v2883, %v2924
    %v2971 = vadd.f32 %v2884, %v2963
    %v2972 = vadd.f32 %v2885, %v2965
    %v2973 = vxor.u32 %v2969, 2147483648
    %v2974 = vmul.f32 %v2973, 1.442695
    %v2975 = vpow.pop %v2974
    %v2976 = vadd.f32 %v2975, 1.0
    %v2977 = vrcp.pop %v2976
    %v2978 = vmul.f32 1.0, %v2977
    %v2979 = vxor.u32 %v2970, 2147483648
    %v2980 = vmul.f32 %v2979, 1.442695
    %v2981 = vpow.pop %v2980
    %v2982 = vadd.f32 %v2981, 1.0
    %v2983 = vrcp.pop %v2982
    %v2984 = vmul.f32 1.0, %v2983
    %v2985 = vtanh.pop %v2971
    %v2986 = vxor.u32 %v2972, 2147483648
    %v2987 = vmul.f32 %v2986, 1.442695
    %v2988 = vpow.pop %v2987
    %v2989 = vadd.f32 %v2988, 1.0
    %v2990 = vrcp.pop %v2989
    %v2991 = vmul.f32 1.0, %v2990
    %v2992 = vmul.f32 %v2984, %v2878
    %v2993 = vmul.f32 %v2978, %v2985
    %v2994 = vadd.f32 %v2992, %v2993
    %v2995 = vtanh.pop %v2994
    %v2996 = vmul.f32 %v2991, %v2995
    %2997 = vst [vmem:[%s1430] sm:$0xff] %v2996
    %v2998 = vld [vmem:[%s1432] sm:$0xff]
    %v2999 = vld [vmem:[%s1432 + $0x8] sm:$0xff]
    %v3000 = vld [vmem:[%s1432 + $0x10] sm:$0xff]
    %v3001 = vld [vmem:[%s1432 + $0x18] sm:$0xff]
    %v3002 = vpack.c.bf16 %v2996, %v2996
    %3003 = vmatprep.subr.bf16.mxu0 %v2156
    %3004 = vmatpush1.bf16.msra.mxu0 %v2155
    %3005 = vmatprep.subr.bf16.mxu0 %v2152
    %3006 = vmatpush1.bf16.msra.mxu0 %v2151
    %3007 = vmatprep.subr.bf16.mxu0 %v2148
    %3008 = vmatpush1.bf16.msra.mxu0 %v2147
    %3009 = vmatprep.subr.bf16.mxu0 %v2144
    %3010 = vmatpush1.bf16.msra.mxu0 %v2143
    %3011 = vmatprep.subr.bf16.mxu0 %v2140
    %3012 = vmatpush1.bf16.msra.mxu0 %v2139
    %3013 = vmatprep.subr.bf16.mxu0 %v2136
    %3014 = vmatpush1.bf16.msra.mxu0 %v2135
    %3015 = vmatprep.subr.bf16.mxu0 %v2132
    %3016 = vmatpush1.bf16.msra.mxu0 %v2131
    %3017 = vmatprep.subr.bf16.mxu0 %v2128
    %3018 = vmatpush1.bf16.msra.mxu0 %v2127
    %3019 = vmatprep.subr.bf16.mxu0 0
    %3020 = vmatpush2.bf16.msra.mxu0 0
    %3021 = vmatprep.subr.bf16.mxu0 0
    %3022 = vmatpush2.bf16.msra.mxu0 0
    %3023 = vmatprep.subr.bf16.mxu0 0
    %3024 = vmatpush2.bf16.msra.mxu0 0
    %3025 = vmatprep.subr.bf16.mxu0 0
    %3026 = vmatpush2.bf16.msra.mxu0 0
    %3027 = vmatprep.subr.bf16.mxu0 0
    %3028 = vmatpush2.bf16.msra.mxu0 0
    %3029 = vmatprep.subr.bf16.mxu0 0
    %3030 = vmatpush2.bf16.msra.mxu0 0
    %3031 = vmatprep.subr.bf16.mxu0 0
    %3032 = vmatpush2.bf16.msra.mxu0 0
    %3033 = vmatprep.subr.bf16.mxu0 0
    %3034 = vmatpush2.bf16.msra.mxu0 0
    %3035 = vmatprep.mubr.bf16.mxu0 0
    %3036 = vmatmul.mubr.bf16.gmra.mxu0 %v3002
    %v3037 = vpop.f32.mrf.mxu0
    %v3038 = vadd.f32 0.0, %v3037
    %v3039 = vpop.f32.mrf.mxu0
    %v3040 = vadd.f32 0.0, %v3039
    %v3041 = vpop.f32.mrf.mxu0
    %v3042 = vpop.f32.mrf.mxu0
    %3043 = vdwg.mxu0
    %3044 = vmatprep.subr.bf16.mxu0 %v2158
    %3045 = vmatpush1.bf16.msra.mxu0 %v2157
    %3046 = vmatprep.subr.bf16.mxu0 %v2154
    %3047 = vmatpush1.bf16.msra.mxu0 %v2153
    %3048 = vmatprep.subr.bf16.mxu0 %v2150
    %3049 = vmatpush1.bf16.msra.mxu0 %v2149
    %3050 = vmatprep.subr.bf16.mxu0 %v2146
    %3051 = vmatpush1.bf16.msra.mxu0 %v2145
    %3052 = vmatprep.subr.bf16.mxu0 %v2142
    %3053 = vmatpush1.bf16.msra.mxu0 %v2141
    %3054 = vmatprep.subr.bf16.mxu0 %v2138
    %3055 = vmatpush1.bf16.msra.mxu0 %v2137
    %3056 = vmatprep.subr.bf16.mxu0 %v2134
    %3057 = vmatpush1.bf16.msra.mxu0 %v2133
    %3058 = vmatprep.subr.bf16.mxu0 %v2130
    %3059 = vmatpush1.bf16.msra.mxu0 %v2129
    %3060 = vmatprep.subr.bf16.mxu0 0
    %3061 = vmatpush2.bf16.msra.mxu0 0
    %3062 = vmatprep.subr.bf16.mxu0 0
    %3063 = vmatpush2.bf16.msra.mxu0 0
    %3064 = vmatprep.subr.bf16.mxu0 0
    %3065 = vmatpush2.bf16.msra.mxu0 0
    %3066 = vmatprep.subr.bf16.mxu0 0
    %3067 = vmatpush2.bf16.msra.mxu0 0
    %3068 = vmatprep.subr.bf16.mxu0 0
    %3069 = vmatpush2.bf16.msra.mxu0 0
    %3070 = vmatprep.subr.bf16.mxu0 0
    %3071 = vmatpush2.bf16.msra.mxu0 0
    %3072 = vmatprep.subr.bf16.mxu0 0
    %3073 = vmatpush2.bf16.msra.mxu0 0
    %3074 = vmatprep.subr.bf16.mxu0 0
    %3075 = vmatpush2.bf16.msra.mxu0 0
    %3076 = vmatprep.mubr.bf16.mxu0 0
    %3077 = vmatmul.mubr.bf16.gmra.mxu0 %v3002
    %v3078 = vpop.f32.mrf.mxu0
    %v3079 = vadd.f32 0.0, %v3078
    %v3080 = vpop.f32.mrf.mxu0
    %v3081 = vadd.f32 0.0, %v3080
    %v3082 = vpop.f32.mrf.mxu0
    %v3083 = vpop.f32.mrf.mxu0
    %3084 = vdwg.mxu0
    %v3085 = vadd.f32 %v2998, %v3038
    %v3086 = vadd.f32 %v2999, %v3040
    %v3087 = vadd.f32 %v3000, %v3079
    %v3088 = vadd.f32 %v3001, %v3081
    %v3089 = vxor.u32 %v3085, 2147483648
    %v3090 = vmul.f32 %v3089, 1.442695
    %v3091 = vpow.pop %v3090
    %v3092 = vadd.f32 %v3091, 1.0
    %v3093 = vrcp.pop %v3092
    %v3094 = vmul.f32 1.0, %v3093
    %v3095 = vxor.u32 %v3086, 2147483648
    %v3096 = vmul.f32 %v3095, 1.442695
    %v3097 = vpow.pop %v3096
    %v3098 = vadd.f32 %v3097, 1.0
    %v3099 = vrcp.pop %v3098
    %v3100 = vmul.f32 1.0, %v3099
    %v3101 = vtanh.pop %v3087
    %v3102 = vxor.u32 %v3088, 2147483648
    %v3103 = vmul.f32 %v3102, 1.442695
    %v3104 = vpow.pop %v3103
    %v3105 = vadd.f32 %v3104, 1.0
    %v3106 = vrcp.pop %v3105
    %v3107 = vmul.f32 1.0, %v3106
    %v3108 = vmul.f32 %v3100, %v2994
    %v3109 = vmul.f32 %v3094, %v3101
    %v3110 = vadd.f32 %v3108, %v3109
    %v3111 = vtanh.pop %v3110
    %v3112 = vmul.f32 %v3107, %v3111
    %3113 = vst [vmem:[%s1548] sm:$0xff] %v3112
    %s3114 = scalar_lea.vmem %s8, 8
    %3115 = vst [vmem:[%s3114] sm:$0xff] %v3112
    %s3116 = scalar_lea.vmem %s9, 8
    %3117 = vst [vmem:[%s3116] sm:$0xff] %v3110
    // Predicated region
    $region34: #{encoder_decoder_forward.3} parent=1 // pred_check
      _
    $region35: #{encoder_decoder_forward.3} parent=1 // pred_check_branch
      %3119 = sbr.rel (0) target = $region37
    $region36: #{encoder_decoder_forward.3} parent=1 // pred_region
      %s3121 = ssub.s32 1024, 1024
      %3122 = vsyncadd [#allocation5], %s3121
      %s3123 = sshll.u32 [#allocation6], 4
      %s3124 = int_to_ptr.vmem [resolvable:$true] %s3123
      %3129 = dma.vmem_to_hbm [thread:$0]  %s3124, 1024, %s7, [#allocation5], 128, 128, 8
    $region37: #{encoder_decoder_forward.3} parent=1 // pred_fallthru
      _
    // Predicated region
    $region38: #{encoder_decoder_forward.3} parent=1 // pred_check
      _
    $region39: #{encoder_decoder_forward.3} parent=1 // pred_check_branch
      %3131 = sbr.rel (0) target = $region41
    $region40: #{encoder_decoder_forward.3} parent=1 // pred_region
      _
    $region41: #{encoder_decoder_forward.3} parent=1 // pred_fallthru
      _
    // Predicated region
    $region42: #{encoder_decoder_forward.3} parent=1 // pred_check
      _
    $region43: #{encoder_decoder_forward.3} parent=1 // pred_check_branch
      %3133 = sbr.rel (0) target = $region45
    $region44: #{encoder_decoder_forward.3} parent=1 // pred_region
      _
    $region45: #{encoder_decoder_forward.3} parent=1 // pred_fallthru
      _
    // Predicated region
    $region46: #{encoder_decoder_forward.3} parent=1 // pred_check
      _
    $region47: #{encoder_decoder_forward.3} parent=1 // pred_check_branch
      %3135 = sbr.rel (0) target = $region49
    $region48: #{encoder_decoder_forward.3} parent=1 // pred_region
      %3136 = dma.done [#allocation5], 1024
    $region49: #{encoder_decoder_forward.3} parent=1 // pred_fallthru
      _
    // Predicated region
    $region50: #{encoder_decoder_forward.3} parent=1 // pred_check
      _
    $region51: #{encoder_decoder_forward.3} parent=1 // pred_check_branch
      %3138 = sbr.rel (0) target = $region53
    $region52: #{encoder_decoder_forward.3} parent=1 // pred_region
      _
    $region53: #{encoder_decoder_forward.3} parent=1 // pred_fallthru
      _
    // Predicated region
    $region54: #{encoder_decoder_forward.3} parent=1 // pred_check
      _
    $region55: #{encoder_decoder_forward.3} parent=1 // pred_check_branch
      %3140 = sbr.rel (0) target = $region57
    $region56: #{encoder_decoder_forward.3} parent=1 // pred_region
      _
    $region57: #{encoder_decoder_forward.3} parent=1 // pred_fallthru
      _
    %3141 = vsyncpa [#allocation4], 1
    %3142 = vsyncpa [#allocation5], 1

</llo_original>
